<compile_context>
chip_gen: v7x
topology: tpu7x:2x2x1
jax: 0.10.0
libtpu: 0.0.40
codegen_flags: <defaults>
</compile_context>

<pallas_src>
import functools

import jax
import jax.numpy as jnp
from jax.experimental import pallas as pl
from jax.experimental.pallas import tpu as pltpu

_LEAKY_SLOPE = 0.2
_BN_EPS = 1e-5
_TM_MAX = 512                       # row tile of the im2col GEMM
_LANE = 128
_VMEM_BUDGET = 40 * 1024 * 1024     # conservative vs v7x's 64 MiB physical VMEM


def _round_up(x, m):
    return (x + m - 1) // m * m


def _apply_act(y, act):
    if act == "relu":
        return jnp.maximum(y, 0.0)
    if act == "leaky_relu":
        return jnp.where(y >= 0.0, y, _LEAKY_SLOPE * y)
    if act == "tanh":
        return jnp.tanh(y)
    return y


# ---------------------------------------------------------------------------
# Pallas kernels
# ---------------------------------------------------------------------------
def _gemm_act_kernel(a_ref, b_ref, o_ref, *, act):
    # Non-BN layers: GEMM with the activation fused into the epilogue.
    y = jnp.dot(a_ref[...], b_ref[...], preferred_element_type=jnp.float32)
    o_ref[...] = _apply_act(y, act)


def _gemm_bn_act_kernel(a_ref, b_ref, o_ref, y_sc, sum_sc, sq_sc, *,
                        act, inv_count, tm):
    # grid = (pass, phase, row-tile), all "arbitrary" (sequential).
    #   pass 0: y = A@B into the resident VMEM scratch + channel sum/sumsq
    #   pass 1: BatchNorm (batch stats, biased var, gamma=1/beta=0) + act + store
    s = pl.program_id(0)
    p = pl.program_id(1)
    i = pl.program_id(2)
    row0 = pl.multiple_of(i * tm, tm)

    @pl.when((s == 0) & (p == 0) & (i == 0))
    def _init():
        sum_sc[...] = jnp.zeros_like(sum_sc)
        sq_sc[...] = jnp.zeros_like(sq_sc)

    @pl.when(s == 0)
    def _gemm():
        y = jnp.dot(a_ref[...], b_ref[...], preferred_element_type=jnp.float32)
        y_sc[p, pl.ds(row0, tm), :] = y
        sum_sc[...] += jnp.sum(y, axis=0, keepdims=True)
        sq_sc[...] += jnp.sum(y * y, axis=0, keepdims=True)

    @pl.when(s == 1)
    def _norm():
        mean = sum_sc[...] * inv_count
        var = jnp.maximum(sq_sc[...] * inv_count - mean * mean, 0.0)
        inv = jax.lax.rsqrt(var + _BN_EPS)
        y = y_sc[p, pl.ds(row0, tm), :]
        o_ref[...] = _apply_act((y - mean) * inv, act)


# ---------------------------------------------------------------------------
# Layer driver: (P, M, K) x (P, K, O) batched-phase GEMM (+ optional fused BN)
# ---------------------------------------------------------------------------
def _run_gemm_layer(a_all, b_all, act, use_bn):
    P, M, K = a_all.shape
    O = b_all.shape[2]
    Np = _round_up(O, _LANE)
    tm = min(_TM_MAX, _round_up(M, 16))
    Mp = _round_up(M, tm)
    n_tiles = Mp // tm

    a_p = jnp.pad(a_all, ((0, 0), (0, Mp - M), (0, 0))).astype(jnp.bfloat16)
    b_p = jnp.pad(b_all, ((0, 0), (0, 0), (0, Np - O))).astype(jnp.bfloat16)

    blk_bytes = 2 * (tm * K * 2 + K * Np * 2 + tm * Np * 4)   # double-buffered
    scratch_bytes = (P * Mp * Np + 2 * Np) * 4 if use_bn else 0
    vmem_need = blk_bytes + scratch_bytes
    if vmem_need > _VMEM_BUDGET:
        # TODO(synk): add a non-resident (two-kernel) BN fallback for
        # activations too large for VMEM; not needed at these problem sizes.
        raise NotImplementedError("layer too large for fused VMEM-resident path")

    cp_kwargs = {}
    if vmem_need > 12 * 1024 * 1024:
        cp_kwargs["vmem_limit_bytes"] = min(int(vmem_need * 3 // 2),
                                            48 * 1024 * 1024)

    if use_bn:
        kern = functools.partial(_gemm_bn_act_kernel, act=act,
                                 inv_count=1.0 / float(P * M), tm=tm)
        grid = (2, P, n_tiles)
        in_specs = [
            # re-point A at block 0 during pass 1 so it is not re-streamed
            pl.BlockSpec((None, tm, K), lambda s, p, i: (p, i * (1 - s), 0)),
            pl.BlockSpec((None, K, Np), lambda s, p, i: (p, 0, 0)),
        ]
        out_specs = pl.BlockSpec((None, tm, Np), lambda s, p, i: (p, i * s, 0))
        scratch = [pltpu.VMEM((P, Mp, Np), jnp.float32),
                   pltpu.VMEM((1, Np), jnp.float32),
                   pltpu.VMEM((1, Np), jnp.float32)]
        dims = ("arbitrary", "arbitrary", "arbitrary")
    else:
        kern = functools.partial(_gemm_act_kernel, act=act)
        grid = (P, n_tiles)
        in_specs = [
            pl.BlockSpec((None, tm, K), lambda p, i: (p, i, 0)),
            pl.BlockSpec((None, K, Np), lambda p, i: (p, 0, 0)),
        ]
        out_specs = pl.BlockSpec((None, tm, Np), lambda p, i: (p, i, 0))
        scratch = []
        dims = ("parallel", "parallel")

    y = pl.pallas_call(
        kern,
        out_shape=jax.ShapeDtypeStruct((P, Mp, Np), jnp.float32),
        grid=grid,
        in_specs=in_specs,
        out_specs=out_specs,
        scratch_shapes=scratch,
        compiler_params=pltpu.CompilerParams(dimension_semantics=dims,
                                             **cp_kwargs),
    )(a_p, b_p)
    return y[:, :M, :O]


# ---------------------------------------------------------------------------
# Conv / transposed-conv blocks (NHWC glue around the GEMM kernel)
# ---------------------------------------------------------------------------
def _conv_block(x, w, act, use_bn):
    # x: (N, H, W, C) ; w: Conv2d weight (O, C, 4, 4), stride 2, pad 1, no bias
    N, H, W, C = x.shape
    O = w.shape[0]
    Ho, Wo = H // 2, W // 2
    xp = jnp.pad(x, ((0, 0), (1, 1), (1, 1), (0, 0)))
    cols = [xp[:, kh:kh + 2 * Ho:2, kw:kw + 2 * Wo:2, :]
            for kh in range(4) for kw in range(4)]
    a = jnp.stack(cols, axis=-1).reshape(N * Ho * Wo, C * 16)[None]
    b = jnp.transpose(w, (1, 2, 3, 0)).reshape(C * 16, O)[None]
    y = _run_gemm_layer(a, b, act, use_bn)               # (1, M, O)
    return y[0].reshape(N, Ho, Wo, O)


def _deconv_block(x, w, act, use_bn):
    # x: (N, H, W, C) ; w: ConvTranspose2d weight (C, O, 4, 4), s=2, p=1, no bias
    # Sub-pixel decomposition: output pixel (2q+a, 2r+b) is a 2x2 stride-1 conv
    # of the pad-1 input with taps w[:, :, (3-a, 1-a), (3-b, 1-b)].
    N, H, W, C = x.shape
    O = w.shape[1]
    xp = jnp.pad(x, ((0, 0), (1, 1), (1, 1), (0, 0)))
    a_phases, b_phases = [], []
    for a in (0, 1):
        for b in (0, 1):
            cols = [xp[:, a + th:a + th + H, b + tw:b + tw + W, :]
                    for th in range(2) for tw in range(2)]
            a_phases.append(jnp.stack(cols, axis=-1).reshape(N * H * W, C * 4))
            w_sub = w[:, :, (3 - a, 1 - a), :][:, :, :, (3 - b, 1 - b)]
            b_phases.append(jnp.transpose(w_sub, (0, 2, 3, 1)).reshape(C * 4, O))
    a_all = jnp.stack(a_phases, axis=0)                   # (4, N*H*W, C*4)
    b_all = jnp.stack(b_phases, axis=0)                   # (4, C*4,   O)
    y = _run_gemm_layer(a_all, b_all, act, use_bn)        # (4, N*H*W, O)
    y = y.reshape(2, 2, N, H, W, O)
    return jnp.transpose(y, (2, 3, 0, 4, 1, 5)).reshape(N, 2 * H, 2 * W, O)


# ---------------------------------------------------------------------------
# Generator: 4 conv downsampling blocks + 4 transposed-conv upsampling blocks
# ---------------------------------------------------------------------------
def init_generator_params(key, img_channel=3, o_channel=3, ini_ch_size=16):
    ks = jax.random.split(key, 8)
    std = 0.05
    c = ini_ch_size
    p = {}
    # Conv2d weights: (out_ch, in_ch, 4, 4)
    p["layer1"] = std * jax.random.normal(ks[0], (c, img_channel, 4, 4), jnp.float32)
    p["layer2"] = std * jax.random.normal(ks[1], (2 * c, c, 4, 4), jnp.float32)
    p["layer3"] = std * jax.random.normal(ks[2], (4 * c, 2 * c, 4, 4), jnp.float32)
    p["layer4"] = std * jax.random.normal(ks[3], (8 * c, 4 * c, 4, 4), jnp.float32)
    # ConvTranspose2d weights: (in_ch, out_ch, 4, 4)
    p["layer5"] = std * jax.random.normal(ks[4], (8 * c, 4 * c, 4, 4), jnp.float32)
    p["layer6"] = std * jax.random.normal(ks[5], (4 * c, 2 * c, 4, 4), jnp.float32)
    p["layer7"] = std * jax.random.normal(ks[6], (2 * c, c, 4, 4), jnp.float32)
    p["deconv"] = std * jax.random.normal(ks[7], (c, o_channel, 4, 4), jnp.float32)
    return p


def generator_forward(params, x):
    # x: NCHW (PyTorch convention); internal activations NHWC.
    h = jnp.transpose(x, (0, 2, 3, 1))
    h = _conv_block(h, params["layer1"], act="relu", use_bn=False)
    h = _conv_block(h, params["layer2"], act="leaky_relu", use_bn=True)
    h = _conv_block(h, params["layer3"], act="leaky_relu", use_bn=True)
    h = _conv_block(h, params["layer4"], act="leaky_relu", use_bn=True)
    h = _deconv_block(h, params["layer5"], act="relu", use_bn=True)
    h = _deconv_block(h, params["layer6"], act="relu", use_bn=True)
    h = _deconv_block(h, params["layer7"], act="relu", use_bn=True)
    h = _deconv_block(h, params["deconv"], act="tanh", use_bn=False)
    return jnp.transpose(h, (0, 3, 1, 2))


if __name__ == "__main__":
    key = jax.random.PRNGKey(0)
    kp, kx = jax.random.split(key)
    # Small but consistent shapes: batch=2, 3 channels, 32x32, ini_ch_size=16
    params = init_generator_params(kp, img_channel=3, o_channel=3, ini_ch_size=16)
    x = jax.random.normal(kx, (2, 3, 32, 32), jnp.float32)

    fwd = jax.jit(generator_forward)
    out = jax.block_until_ready(fwd(params, x))

    assert out.shape == (2, 3, 32, 32), out.shape
    assert bool(jnp.all(jnp.isfinite(out)))
    assert bool(jnp.all(jnp.abs(out) <= 1.0))   # tanh output range
    print("KERNEL_OK")
</pallas_src>

<mosaic_0001>
module attributes {stable_mosaic.version = 11 : i64} {
  func.func @_gemm_act_kernel(%arg0: i32, %arg1: i32, %arg2: memref<1x512x48xbf16, #tpu.memory_space<vmem>>, %arg3: memref<1x48x128xbf16, #tpu.memory_space<vmem>>, %arg4: memref<1x512x128xf32, #tpu.memory_space<vmem>>) attributes {dimension_semantics = [#tpu.dimension_semantics<parallel>, #tpu.dimension_semantics<parallel>], iteration_bounds = array<i64: 1, 1>, scalar_prefetch = 0 : i64, scratch_operands = 0 : i64, tpu.core_type = #tpu.core_type<tc>, window_params = [{transform_indices = @transform_0, window_bounds = array<i64: 1, 512, 48>}, {transform_indices = @transform_1, window_bounds = array<i64: 1, 48, 128>}, {transform_indices = @transform_2, window_bounds = array<i64: 1, 512, 128>}]} {
    %c0 = arith.constant 0 : index
    %c0_0 = arith.constant 0 : index
    %c0_1 = arith.constant 0 : index
    %0 = vector.load %arg2[%c0, %c0_0, %c0_1] : memref<1x512x48xbf16, #tpu.memory_space<vmem>>, vector<1x512x48xbf16>
    %1 = vector.shape_cast %0 : vector<1x512x48xbf16> to vector<512x48xbf16>
    %c0_2 = arith.constant 0 : index
    %c0_3 = arith.constant 0 : index
    %c0_4 = arith.constant 0 : index
    %2 = vector.load %arg3[%c0_2, %c0_3, %c0_4] : memref<1x48x128xbf16, #tpu.memory_space<vmem>>, vector<1x48x128xbf16>
    %3 = vector.shape_cast %2 : vector<1x48x128xbf16> to vector<48x128xbf16>
    %cst = arith.constant dense<0.000000e+00> : vector<512x128xf32>
    %4 = tpu.matmul %1, %3, %cst {dimension_numbers = #tpu.dot_dimension_numbers<[1], [0], [0], [1], [0, 0, 1, 1], [], []>} : vector<512x48xbf16>, vector<48x128xbf16>, vector<512x128xf32> -> vector<512x128xf32>
    %cst_5 = arith.constant 0.000000e+00 : f32
    %5 = vector.broadcast %cst_5 : f32 to vector<512x128xf32>
    %6 = arith.maximumf %4, %5 : vector<512x128xf32>
    %c0_6 = arith.constant 0 : index
    %c0_7 = arith.constant 0 : index
    %c0_8 = arith.constant 0 : index
    %7 = vector.load %arg4[%c0_6, %c0_7, %c0_8] : memref<1x512x128xf32, #tpu.memory_space<vmem>>, vector<1x512x128xf32>
    %8 = vector.shape_cast %7 : vector<1x512x128xf32> to vector<512x128xf32>
    %9 = vector.shape_cast %6 : vector<512x128xf32> to vector<1x512x128xf32>
    tpu.vector_store %arg4[%c0_6, %c0_7, %c0_8], %9 {strides = array<i32>} : memref<1x512x128xf32, #tpu.memory_space<vmem>>, vector<1x512x128xf32>,
    return
  }
  func.func @transform_0(%arg0: i32, %arg1: i32) -> (i32, i32, i32) {
    %c0_i32 = arith.constant 0 : i32
    %c0_i32_0 = arith.constant 0 : i32
    return %arg0, %arg1, %c0_i32 : i32, i32, i32
  }
  func.func @transform_1(%arg0: i32, %arg1: i32) -> (i32, i32, i32) {
    %c0_i32 = arith.constant 0 : i32
    %c0_i32_0 = arith.constant 0 : i32
    %c0_i32_1 = arith.constant 0 : i32
    return %arg0, %c0_i32, %c0_i32_0 : i32, i32, i32
  }
  func.func @transform_2(%arg0: i32, %arg1: i32) -> (i32, i32, i32) {
    %c0_i32 = arith.constant 0 : i32
    %c0_i32_0 = arith.constant 0 : i32
    return %arg0, %arg1, %c0_i32 : i32, i32, i32
  }
}

module attributes {stable_mosaic.version = 11 : i64} {
  func.func @_gemm_bn_act_kernel(%arg0: i32, %arg1: i32, %arg2: i32, %arg3: memref<1x128x256xbf16, #tpu.memory_space<vmem>>, %arg4: memref<1x256x128xbf16, #tpu.memory_space<vmem>>, %arg5: memref<1x128x128xf32, #tpu.memory_space<vmem>>, %arg6: memref<1x128x128xf32, #tpu.memory_space<vmem>>, %arg7: memref<1x128xf32, #tpu.memory_space<vmem>>, %arg8: memref<1x128xf32, #tpu.memory_space<vmem>>) attributes {dimension_semantics = [#tpu.dimension_semantics<arbitrary>, #tpu.dimension_semantics<arbitrary>, #tpu.dimension_semantics<arbitrary>], iteration_bounds = array<i64: 2, 1, 1>, scalar_prefetch = 0 : i64, scratch_operands = 3 : i64, tpu.core_type = #tpu.core_type<tc>, window_params = [{transform_indices = @transform_0, window_bounds = array<i64: 1, 128, 256>}, {transform_indices = @transform_1, window_bounds = array<i64: 1, 256, 128>}, {transform_indices = @transform_2, window_bounds = array<i64: 1, 128, 128>}]} {
    %c128_i32 = arith.constant 128 : i32
    %0 = arith.muli %arg2, %c128_i32 : i32
    %1 = tpu.assume_multiple %0, 128 : i32
    %c0_i32 = arith.constant 0 : i32
    %2 = arith.cmpi eq, %arg0, %c0_i32 : i32
    %c0_i32_0 = arith.constant 0 : i32
    %3 = arith.cmpi eq, %arg1, %c0_i32_0 : i32
    %4 = arith.andi %2, %3 : i1
    %c0_i32_1 = arith.constant 0 : i32
    %5 = arith.cmpi eq, %arg2, %c0_i32_1 : i32
    %6 = arith.andi %4, %5 : i1
    %7 = arith.extui %6 : i1 to i32
    %c0_i32_2 = arith.constant 0 : i32
    %8 = arith.cmpi ne, %7, %c0_i32_2 : i32
    scf.if %8 {
      %cst = arith.constant 0.000000e+00 : f32
      %15 = vector.broadcast %cst : f32 to vector<1x128xf32>
      %c0 = arith.constant 0 : index
      %c0_6 = arith.constant 0 : index
      %16 = vector.load %arg7[%c0, %c0_6] : memref<1x128xf32, #tpu.memory_space<vmem>>, vector<1x128xf32>
      tpu.vector_store %arg7[%c0, %c0_6], %15 {strides = array<i32>} : memref<1x128xf32, #tpu.memory_space<vmem>>, vector<1x128xf32>,
      %cst_7 = arith.constant 0.000000e+00 : f32
      %17 = vector.broadcast %cst_7 : f32 to vector<1x128xf32>
      %c0_8 = arith.constant 0 : index
      %c0_9 = arith.constant 0 : index
      %18 = vector.load %arg8[%c0_8, %c0_9] : memref<1x128xf32, #tpu.memory_space<vmem>>, vector<1x128xf32>
      tpu.vector_store %arg8[%c0_8, %c0_9], %17 {strides = array<i32>} : memref<1x128xf32, #tpu.memory_space<vmem>>, vector<1x128xf32>,
    } else {
    }
    %c0_i32_3 = arith.constant 0 : i32
    %9 = arith.cmpi eq, %arg0, %c0_i32_3 : i32
    %10 = arith.extui %9 : i1 to i32
    %c0_i32_4 = arith.constant 0 : i32
    %11 = arith.cmpi ne, %10, %c0_i32_4 : i32
    scf.if %11 {
      %c0 = arith.constant 0 : index
      %c0_6 = arith.constant 0 : index
      %c0_7 = arith.constant 0 : index
      %15 = vector.load %arg3[%c0, %c0_6, %c0_7] : memref<1x128x256xbf16, #tpu.memory_space<vmem>>, vector<1x128x256xbf16>
      %16 = vector.shape_cast %15 : vector<1x128x256xbf16> to vector<128x256xbf16>
      %c0_8 = arith.constant 0 : index
      %c0_9 = arith.constant 0 : index
      %c0_10 = arith.constant 0 : index
      %17 = vector.load %arg4[%c0_8, %c0_9, %c0_10] : memref<1x256x128xbf16, #tpu.memory_space<vmem>>, vector<1x256x128xbf16>
      %18 = vector.shape_cast %17 : vector<1x256x128xbf16> to vector<256x128xbf16>
      %cst = arith.constant dense<0.000000e+00> : vector<128x128xf32>
      %19 = tpu.matmul %16, %18, %cst {dimension_numbers = #tpu.dot_dimension_numbers<[1], [0], [0], [1], [0, 0, 1, 1], [], []>} : vector<128x256xbf16>, vector<256x128xbf16>, vector<128x128xf32> -> vector<128x128xf32>
      %20 = arith.index_cast %arg1 : i32 to index
      %21 = arith.index_cast %1 : i32 to index
      %c0_11 = arith.constant 0 : index
      %22 = vector.load %arg6[%20, %21, %c0_11] : memref<1x128x128xf32, #tpu.memory_space<vmem>>, vector<1x128x128xf32>
      %23 = vector.shape_cast %22 : vector<1x128x128xf32> to vector<128x128xf32>
      %24 = vector.shape_cast %19 : vector<128x128xf32> to vector<1x128x128xf32>
      tpu.vector_store %arg6[%20, %21, %c0_11], %24 {strides = array<i32>} : memref<1x128x128xf32, #tpu.memory_space<vmem>>, vector<1x128x128xf32>,
      %c0_12 = arith.constant 0 : index
      %c0_13 = arith.constant 0 : index
      %25 = vector.load %arg7[%c0_12, %c0_13] : memref<1x128xf32, #tpu.memory_space<vmem>>, vector<1x128xf32>
      %cst_14 = arith.constant dense<0.000000e+00> : vector<128xf32>
      %26 = vector.multi_reduction <add>, %19, %cst_14 [0] : vector<128x128xf32> to vector<128xf32>
      %27 = vector.shape_cast %26 : vector<128xf32> to vector<1x128xf32>
      %28 = arith.addf %25, %27 : vector<1x128xf32>
      %c0_15 = arith.constant 0 : index
      %c0_16 = arith.constant 0 : index
      %29 = vector.load %arg7[%c0_15, %c0_16] : memref<1x128xf32, #tpu.memory_space<vmem>>, vector<1x128xf32>
      tpu.vector_store %arg7[%c0_15, %c0_16], %28 {strides = array<i32>} : memref<1x128xf32, #tpu.memory_space<vmem>>, vector<1x128xf32>,
      %c0_17 = arith.constant 0 : index
      %c0_18 = arith.constant 0 : index
      %30 = vector.load %arg8[%c0_17, %c0_18] : memref<1x128xf32, #tpu.memory_space<vmem>>, vector<1x128xf32>
      %31 = arith.mulf %19, %19 : vector<128x128xf32>
      %cst_19 = arith.constant dense<0.000000e+00> : vector<128xf32>
      %32 = vector.multi_reduction <add>, %31, %cst_19 [0] : vector<128x128xf32> to vector<128xf32>
      %33 = vector.shape_cast %32 : vector<128xf32> to vector<1x128xf32>
      %34 = arith.addf %30, %33 : vector<1x128xf32>
      %c0_20 = arith.constant 0 : index
      %c0_21 = arith.constant 0 : index
      %35 = vector.load %arg8[%c0_20, %c0_21] : memref<1x128xf32, #tpu.memory_space<vmem>>, vector<1x128xf32>
      tpu.vector_store %arg8[%c0_20, %c0_21], %34 {strides = array<i32>} : memref<1x128xf32, #tpu.memory_space<vmem>>, vector<1x128xf32>,
    } else {
    }
    %c1_i32 = arith.constant 1 : i32
    %12 = arith.cmpi eq, %arg0, %c1_i32 : i32
    %13 = arith.extui %12 : i1 to i32
    %c0_i32_5 = arith.constant 0 : i32
    %14 = arith.cmpi ne, %13, %c0_i32_5 : i32
    scf.if %14 {
      %c0 = arith.constant 0 : index
      %c0_6 = arith.constant 0 : index
      %15 = vector.load %arg7[%c0, %c0_6] : memref<1x128xf32, #tpu.memory_space<vmem>>, vector<1x128xf32>
      %cst = arith.constant 7.812500e-03 : f32
      %16 = vector.broadcast %cst : f32 to vector<1x128xf32>
      %17 = arith.mulf %15, %16 : vector<1x128xf32>
      %c0_7 = arith.constant 0 : index
      %c0_8 = arith.constant 0 : index
      %18 = vector.load %arg8[%c0_7, %c0_8] : memref<1x128xf32, #tpu.memory_space<vmem>>, vector<1x128xf32>
      %cst_9 = arith.constant 7.812500e-03 : f32
      %19 = vector.broadcast %cst_9 : f32 to vector<1x128xf32>
      %20 = arith.mulf %18, %19 : vector<1x128xf32>
      %21 = arith.mulf %17, %17 : vector<1x128xf32>
      %22 = arith.subf %20, %21 : vector<1x128xf32>
      %cst_10 = arith.constant 0.000000e+00 : f32
      %23 = vector.broadcast %cst_10 : f32 to vector<1x128xf32>
      %24 = arith.maximumf %22, %23 : vector<1x128xf32>
      %cst_11 = arith.constant 9.99999974E-6 : f32
      %25 = vector.broadcast %cst_11 : f32 to vector<1x128xf32>
      %26 = arith.addf %24, %25 : vector<1x128xf32>
      %27 = math.rsqrt %26 : vector<1x128xf32>
      %28 = arith.index_cast %arg1 : i32 to index
      %29 = arith.index_cast %1 : i32 to index
      %c0_12 = arith.constant 0 : index
      %30 = vector.load %arg6[%28, %29, %c0_12] : memref<1x128x128xf32, #tpu.memory_space<vmem>>, vector<1x128x128xf32>
      %31 = vector.shape_cast %30 : vector<1x128x128xf32> to vector<128x128xf32>
      %32 = vector.broadcast %17 : vector<1x128xf32> to vector<128x128xf32>
      %33 = arith.subf %31, %32 : vector<128x128xf32>
      %34 = vector.broadcast %27 : vector<1x128xf32> to vector<128x128xf32>
      %35 = arith.mulf %33, %34 : vector<128x128xf32>
      %cst_13 = arith.constant 0.000000e+00 : f32
      %36 = vector.broadcast %cst_13 : f32 to vector<128x128xf32>
      %37 = arith.cmpf oge, %35, %36 : vector<128x128xf32>
      %cst_14 = arith.constant 2.000000e-01 : f32
      %38 = vector.broadcast %cst_14 : f32 to vector<128x128xf32>
      %39 = arith.mulf %38, %35 : vector<128x128xf32>
      %40 = arith.select %37, %35, %39 : vector<128x128xi1>, vector<128x128xf32>
      %c0_15 = arith.constant 0 : index
      %c0_16 = arith.constant 0 : index
      %c0_17 = arith.constant 0 : index
      %41 = vector.load %arg5[%c0_15, %c0_16, %c0_17] : memref<1x128x128xf32, #tpu.memory_space<vmem>>, vector<1x128x128xf32>
      %42 = vector.shape_cast %41 : vector<1x128x128xf32> to vector<128x128xf32>
      %43 = vector.shape_cast %40 : vector<128x128xf32> to vector<1x128x128xf32>
      tpu.vector_store %arg5[%c0_15, %c0_16, %c0_17], %43 {strides = array<i32>} : memref<1x128x128xf32, #tpu.memory_space<vmem>>, vector<1x128x128xf32>,
    } else {
    }
    return
  }
  func.func @transform_0(%arg0: i32, %arg1: i32, %arg2: i32) -> (i32, i32, i32) {
    %c1_i32 = arith.constant 1 : i32
    %0 = arith.subi %c1_i32, %arg0 : i32
    %1 = arith.muli %arg2, %0 : i32
    %c0_i32 = arith.constant 0 : i32
    %c0_i32_0 = arith.constant 0 : i32
    return %arg1, %1, %c0_i32 : i32, i32, i32
  }
  func.func @transform_1(%arg0: i32, %arg1: i32, %arg2: i32) -> (i32, i32, i32) {
    %c0_i32 = arith.constant 0 : i32
    %c0_i32_0 = arith.constant 0 : i32
    %c0_i32_1 = arith.constant 0 : i32
    return %arg1, %c0_i32, %c0_i32_0 : i32, i32, i32
  }
  func.func @transform_2(%arg0: i32, %arg1: i32, %arg2: i32) -> (i32, i32, i32) {
    %0 = arith.muli %arg2, %arg0 : i32
    %c0_i32 = arith.constant 0 : i32
    %c0_i32_0 = arith.constant 0 : i32
    return %arg1, %0, %c0_i32 : i32, i32, i32
  }
}

module attributes {stable_mosaic.version = 11 : i64} {
  func.func @_gemm_bn_act_kernel(%arg0: i32, %arg1: i32, %arg2: i32, %arg3: memref<1x32x512xbf16, #tpu.memory_space<vmem>>, %arg4: memref<1x512x128xbf16, #tpu.memory_space<vmem>>, %arg5: memref<1x32x128xf32, #tpu.memory_space<vmem>>, %arg6: memref<1x32x128xf32, #tpu.memory_space<vmem>>, %arg7: memref<1x128xf32, #tpu.memory_space<vmem>>, %arg8: memref<1x128xf32, #tpu.memory_space<vmem>>) attributes {dimension_semantics = [#tpu.dimension_semantics<arbitrary>, #tpu.dimension_semantics<arbitrary>, #tpu.dimension_semantics<arbitrary>], iteration_bounds = array<i64: 2, 1, 1>, scalar_prefetch = 0 : i64, scratch_operands = 3 : i64, tpu.core_type = #tpu.core_type<tc>, window_params = [{transform_indices = @transform_0, window_bounds = array<i64: 1, 32, 512>}, {transform_indices = @transform_1, window_bounds = array<i64: 1, 512, 128>}, {transform_indices = @transform_2, window_bounds = array<i64: 1, 32, 128>}]} {
    %c32_i32 = arith.constant 32 : i32
    %0 = arith.muli %arg2, %c32_i32 : i32
    %1 = tpu.assume_multiple %0, 32 : i32
    %c0_i32 = arith.constant 0 : i32
    %2 = arith.cmpi eq, %arg0, %c0_i32 : i32
    %c0_i32_0 = arith.constant 0 : i32
    %3 = arith.cmpi eq, %arg1, %c0_i32_0 : i32
    %4 = arith.andi %2, %3 : i1
    %c0_i32_1 = arith.constant 0 : i32
    %5 = arith.cmpi eq, %arg2, %c0_i32_1 : i32
    %6 = arith.andi %4, %5 : i1
    %7 = arith.extui %6 : i1 to i32
    %c0_i32_2 = arith.constant 0 : i32
    %8 = arith.cmpi ne, %7, %c0_i32_2 : i32
    scf.if %8 {
      %cst = arith.constant 0.000000e+00 : f32
      %15 = vector.broadcast %cst : f32 to vector<1x128xf32>
      %c0 = arith.constant 0 : index
      %c0_6 = arith.constant 0 : index
      %16 = vector.load %arg7[%c0, %c0_6] : memref<1x128xf32, #tpu.memory_space<vmem>>, vector<1x128xf32>
      tpu.vector_store %arg7[%c0, %c0_6], %15 {strides = array<i32>} : memref<1x128xf32, #tpu.memory_space<vmem>>, vector<1x128xf32>,
      %cst_7 = arith.constant 0.000000e+00 : f32
      %17 = vector.broadcast %cst_7 : f32 to vector<1x128xf32>
      %c0_8 = arith.constant 0 : index
      %c0_9 = arith.constant 0 : index
      %18 = vector.load %arg8[%c0_8, %c0_9] : memref<1x128xf32, #tpu.memory_space<vmem>>, vector<1x128xf32>
      tpu.vector_store %arg8[%c0_8, %c0_9], %17 {strides = array<i32>} : memref<1x128xf32, #tpu.memory_space<vmem>>, vector<1x128xf32>,
    } else {
    }
    %c0_i32_3 = arith.constant 0 : i32
    %9 = arith.cmpi eq, %arg0, %c0_i32_3 : i32
    %10 = arith.extui %9 : i1 to i32
    %c0_i32_4 = arith.constant 0 : i32
    %11 = arith.cmpi ne, %10, %c0_i32_4 : i32
    scf.if %11 {
      %c0 = arith.constant 0 : index
      %c0_6 = arith.constant 0 : index
      %c0_7 = arith.constant 0 : index
      %15 = vector.load %arg3[%c0, %c0_6, %c0_7] : memref<1x32x512xbf16, #tpu.memory_space<vmem>>, vector<1x32x512xbf16>
      %16 = vector.shape_cast %15 : vector<1x32x512xbf16> to vector<32x512xbf16>
      %c0_8 = arith.constant 0 : index
      %c0_9 = arith.constant 0 : index
      %c0_10 = arith.constant 0 : index
      %17 = vector.load %arg4[%c0_8, %c0_9, %c0_10] : memref<1x512x128xbf16, #tpu.memory_space<vmem>>, vector<1x512x128xbf16>
      %18 = vector.shape_cast %17 : vector<1x512x128xbf16> to vector<512x128xbf16>
      %cst = arith.constant dense<0.000000e+00> : vector<32x128xf32>
      %19 = tpu.matmul %16, %18, %cst {dimension_numbers = #tpu.dot_dimension_numbers<[1], [0], [0], [1], [0, 0, 1, 1], [], []>} : vector<32x512xbf16>, vector<512x128xbf16>, vector<32x128xf32> -> vector<32x128xf32>
      %20 = arith.index_cast %arg1 : i32 to index
      %21 = arith.index_cast %1 : i32 to index
      %c0_11 = arith.constant 0 : index
      %22 = vector.load %arg6[%20, %21, %c0_11] : memref<1x32x128xf32, #tpu.memory_space<vmem>>, vector<1x32x128xf32>
      %23 = vector.shape_cast %22 : vector<1x32x128xf32> to vector<32x128xf32>
      %24 = vector.shape_cast %19 : vector<32x128xf32> to vector<1x32x128xf32>
      tpu.vector_store %arg6[%20, %21, %c0_11], %24 {strides = array<i32>} : memref<1x32x128xf32, #tpu.memory_space<vmem>>, vector<1x32x128xf32>,
      %c0_12 = arith.constant 0 : index
      %c0_13 = arith.constant 0 : index
      %25 = vector.load %arg7[%c0_12, %c0_13] : memref<1x128xf32, #tpu.memory_space<vmem>>, vector<1x128xf32>
      %cst_14 = arith.constant dense<0.000000e+00> : vector<128xf32>
      %26 = vector.multi_reduction <add>, %19, %cst_14 [0] : vector<32x128xf32> to vector<128xf32>
      %27 = vector.shape_cast %26 : vector<128xf32> to vector<1x128xf32>
      %28 = arith.addf %25, %27 : vector<1x128xf32>
      %c0_15 = arith.constant 0 : index
      %c0_16 = arith.constant 0 : index
      %29 = vector.load %arg7[%c0_15, %c0_16] : memref<1x128xf32, #tpu.memory_space<vmem>>, vector<1x128xf32>
      tpu.vector_store %arg7[%c0_15, %c0_16], %28 {strides = array<i32>} : memref<1x128xf32, #tpu.memory_space<vmem>>, vector<1x128xf32>,
      %c0_17 = arith.constant 0 : index
      %c0_18 = arith.constant 0 : index
      %30 = vector.load %arg8[%c0_17, %c0_18] : memref<1x128xf32, #tpu.memory_space<vmem>>, vector<1x128xf32>
      %31 = arith.mulf %19, %19 : vector<32x128xf32>
      %cst_19 = arith.constant dense<0.000000e+00> : vector<128xf32>
      %32 = vector.multi_reduction <add>, %31, %cst_19 [0] : vector<32x128xf32> to vector<128xf32>
      %33 = vector.shape_cast %32 : vector<128xf32> to vector<1x128xf32>
      %34 = arith.addf %30, %33 : vector<1x128xf32>
      %c0_20 = arith.constant 0 : index
      %c0_21 = arith.constant 0 : index
      %35 = vector.load %arg8[%c0_20, %c0_21] : memref<1x128xf32, #tpu.memory_space<vmem>>, vector<1x128xf32>
      tpu.vector_store %arg8[%c0_20, %c0_21], %34 {strides = array<i32>} : memref<1x128xf32, #tpu.memory_space<vmem>>, vector<1x128xf32>,
    } else {
    }
    %c1_i32 = arith.constant 1 : i32
    %12 = arith.cmpi eq, %arg0, %c1_i32 : i32
    %13 = arith.extui %12 : i1 to i32
    %c0_i32_5 = arith.constant 0 : i32
    %14 = arith.cmpi ne, %13, %c0_i32_5 : i32
    scf.if %14 {
      %c0 = arith.constant 0 : index
      %c0_6 = arith.constant 0 : index
      %15 = vector.load %arg7[%c0, %c0_6] : memref<1x128xf32, #tpu.memory_space<vmem>>, vector<1x128xf32>
      %cst = arith.constant 3.125000e-02 : f32
      %16 = vector.broadcast %cst : f32 to vector<1x128xf32>
      %17 = arith.mulf %15, %16 : vector<1x128xf32>
      %c0_7 = arith.constant 0 : index
      %c0_8 = arith.constant 0 : index
      %18 = vector.load %arg8[%c0_7, %c0_8] : memref<1x128xf32, #tpu.memory_space<vmem>>, vector<1x128xf32>
      %cst_9 = arith.constant 3.125000e-02 : f32
      %19 = vector.broadcast %cst_9 : f32 to vector<1x128xf32>
      %20 = arith.mulf %18, %19 : vector<1x128xf32>
      %21 = arith.mulf %17, %17 : vector<1x128xf32>
      %22 = arith.subf %20, %21 : vector<1x128xf32>
      %cst_10 = arith.constant 0.000000e+00 : f32
      %23 = vector.broadcast %cst_10 : f32 to vector<1x128xf32>
      %24 = arith.maximumf %22, %23 : vector<1x128xf32>
      %cst_11 = arith.constant 9.99999974E-6 : f32
      %25 = vector.broadcast %cst_11 : f32 to vector<1x128xf32>
      %26 = arith.addf %24, %25 : vector<1x128xf32>
      %27 = math.rsqrt %26 : vector<1x128xf32>
      %28 = arith.index_cast %arg1 : i32 to index
      %29 = arith.index_cast %1 : i32 to index
      %c0_12 = arith.constant 0 : index
      %30 = vector.load %arg6[%28, %29, %c0_12] : memref<1x32x128xf32, #tpu.memory_space<vmem>>, vector<1x32x128xf32>
      %31 = vector.shape_cast %30 : vector<1x32x128xf32> to vector<32x128xf32>
      %32 = vector.broadcast %17 : vector<1x128xf32> to vector<32x128xf32>
      %33 = arith.subf %31, %32 : vector<32x128xf32>
      %34 = vector.broadcast %27 : vector<1x128xf32> to vector<32x128xf32>
      %35 = arith.mulf %33, %34 : vector<32x128xf32>
      %cst_13 = arith.constant 0.000000e+00 : f32
      %36 = vector.broadcast %cst_13 : f32 to vector<32x128xf32>
      %37 = arith.cmpf oge, %35, %36 : vector<32x128xf32>
      %cst_14 = arith.constant 2.000000e-01 : f32
      %38 = vector.broadcast %cst_14 : f32 to vector<32x128xf32>
      %39 = arith.mulf %38, %35 : vector<32x128xf32>
      %40 = arith.select %37, %35, %39 : vector<32x128xi1>, vector<32x128xf32>
      %c0_15 = arith.constant 0 : index
      %c0_16 = arith.constant 0 : index
      %c0_17 = arith.constant 0 : index
      %41 = vector.load %arg5[%c0_15, %c0_16, %c0_17] : memref<1x32x128xf32, #tpu.memory_space<vmem>>, vector<1x32x128xf32>
      %42 = vector.shape_cast %41 : vector<1x32x128xf32> to vector<32x128xf32>
      %43 = vector.shape_cast %40 : vector<32x128xf32> to vector<1x32x128xf32>
      tpu.vector_store %arg5[%c0_15, %c0_16, %c0_17], %43 {strides = array<i32>} : memref<1x32x128xf32, #tpu.memory_space<vmem>>, vector<1x32x128xf32>,
    } else {
    }
    return
  }
  func.func @transform_0(%arg0: i32, %arg1: i32, %arg2: i32) -> (i32, i32, i32) {
    %c1_i32 = arith.constant 1 : i32
    %0 = arith.subi %c1_i32, %arg0 : i32
    %1 = arith.muli %arg2, %0 : i32
    %c0_i32 = arith.constant 0 : i32
    %c0_i32_0 = arith.constant 0 : i32
    return %arg1, %1, %c0_i32 : i32, i32, i32
  }
  func.func @transform_1(%arg0: i32, %arg1: i32, %arg2: i32) -> (i32, i32, i32) {
    %c0_i32 = arith.constant 0 : i32
    %c0_i32_0 = arith.constant 0 : i32
    %c0_i32_1 = arith.constant 0 : i32
    return %arg1, %c0_i32, %c0_i32_0 : i32, i32, i32
  }
  func.func @transform_2(%arg0: i32, %arg1: i32, %arg2: i32) -> (i32, i32, i32) {
    %0 = arith.muli %arg2, %arg0 : i32
    %c0_i32 = arith.constant 0 : i32
    %c0_i32_0 = arith.constant 0 : i32
    return %arg1, %0, %c0_i32 : i32, i32, i32
  }
}

module attributes {stable_mosaic.version = 11 : i64} {
  func.func @_gemm_bn_act_kernel(%arg0: i32, %arg1: i32, %arg2: i32, %arg3: memref<1x16x1024xbf16, #tpu.memory_space<vmem>>, %arg4: memref<1x1024x128xbf16, #tpu.memory_space<vmem>>, %arg5: memref<1x16x128xf32, #tpu.memory_space<vmem>>, %arg6: memref<1x16x128xf32, #tpu.memory_space<vmem>>, %arg7: memref<1x128xf32, #tpu.memory_space<vmem>>, %arg8: memref<1x128xf32, #tpu.memory_space<vmem>>) attributes {dimension_semantics = [#tpu.dimension_semantics<arbitrary>, #tpu.dimension_semantics<arbitrary>, #tpu.dimension_semantics<arbitrary>], iteration_bounds = array<i64: 2, 1, 1>, scalar_prefetch = 0 : i64, scratch_operands = 3 : i64, tpu.core_type = #tpu.core_type<tc>, window_params = [{transform_indices = @transform_0, window_bounds = array<i64: 1, 16, 1024>}, {transform_indices = @transform_1, window_bounds = array<i64: 1, 1024, 128>}, {transform_indices = @transform_2, window_bounds = array<i64: 1, 16, 128>}]} {
    %c16_i32 = arith.constant 16 : i32
    %0 = arith.muli %arg2, %c16_i32 : i32
    %1 = tpu.assume_multiple %0, 16 : i32
    %c0_i32 = arith.constant 0 : i32
    %2 = arith.cmpi eq, %arg0, %c0_i32 : i32
    %c0_i32_0 = arith.constant 0 : i32
    %3 = arith.cmpi eq, %arg1, %c0_i32_0 : i32
    %4 = arith.andi %2, %3 : i1
    %c0_i32_1 = arith.constant 0 : i32
    %5 = arith.cmpi eq, %arg2, %c0_i32_1 : i32
    %6 = arith.andi %4, %5 : i1
    %7 = arith.extui %6 : i1 to i32
    %c0_i32_2 = arith.constant 0 : i32
    %8 = arith.cmpi ne, %7, %c0_i32_2 : i32
    scf.if %8 {
      %cst = arith.constant 0.000000e+00 : f32
      %15 = vector.broadcast %cst : f32 to vector<1x128xf32>
      %c0 = arith.constant 0 : index
      %c0_6 = arith.constant 0 : index
      %16 = vector.load %arg7[%c0, %c0_6] : memref<1x128xf32, #tpu.memory_space<vmem>>, vector<1x128xf32>
      tpu.vector_store %arg7[%c0, %c0_6], %15 {strides = array<i32>} : memref<1x128xf32, #tpu.memory_space<vmem>>, vector<1x128xf32>,
      %cst_7 = arith.constant 0.000000e+00 : f32
      %17 = vector.broadcast %cst_7 : f32 to vector<1x128xf32>
      %c0_8 = arith.constant 0 : index
      %c0_9 = arith.constant 0 : index
      %18 = vector.load %arg8[%c0_8, %c0_9] : memref<1x128xf32, #tpu.memory_space<vmem>>, vector<1x128xf32>
      tpu.vector_store %arg8[%c0_8, %c0_9], %17 {strides = array<i32>} : memref<1x128xf32, #tpu.memory_space<vmem>>, vector<1x128xf32>,
    } else {
    }
    %c0_i32_3 = arith.constant 0 : i32
    %9 = arith.cmpi eq, %arg0, %c0_i32_3 : i32
    %10 = arith.extui %9 : i1 to i32
    %c0_i32_4 = arith.constant 0 : i32
    %11 = arith.cmpi ne, %10, %c0_i32_4 : i32
    scf.if %11 {
      %c0 = arith.constant 0 : index
      %c0_6 = arith.constant 0 : index
      %c0_7 = arith.constant 0 : index
      %15 = vector.load %arg3[%c0, %c0_6, %c0_7] : memref<1x16x1024xbf16, #tpu.memory_space<vmem>>, vector<1x16x1024xbf16>
      %16 = vector.shape_cast %15 : vector<1x16x1024xbf16> to vector<16x1024xbf16>
      %c0_8 = arith.constant 0 : index
      %c0_9 = arith.constant 0 : index
      %c0_10 = arith.constant 0 : index
      %17 = vector.load %arg4[%c0_8, %c0_9, %c0_10] : memref<1x1024x128xbf16, #tpu.memory_space<vmem>>, vector<1x1024x128xbf16>
      %18 = vector.shape_cast %17 : vector<1x1024x128xbf16> to vector<1024x128xbf16>
      %cst = arith.constant dense<0.000000e+00> : vector<16x128xf32>
      %19 = tpu.matmul %16, %18, %cst {dimension_numbers = #tpu.dot_dimension_numbers<[1], [0], [0], [1], [0, 0, 1, 1], [], []>} : vector<16x1024xbf16>, vector<1024x128xbf16>, vector<16x128xf32> -> vector<16x128xf32>
      %20 = arith.index_cast %arg1 : i32 to index
      %21 = arith.index_cast %1 : i32 to index
      %c0_11 = arith.constant 0 : index
      %22 = vector.load %arg6[%20, %21, %c0_11] : memref<1x16x128xf32, #tpu.memory_space<vmem>>, vector<1x16x128xf32>
      %23 = vector.shape_cast %22 : vector<1x16x128xf32> to vector<16x128xf32>
      %24 = vector.shape_cast %19 : vector<16x128xf32> to vector<1x16x128xf32>
      tpu.vector_store %arg6[%20, %21, %c0_11], %24 {strides = array<i32>} : memref<1x16x128xf32, #tpu.memory_space<vmem>>, vector<1x16x128xf32>,
      %c0_12 = arith.constant 0 : index
      %c0_13 = arith.constant 0 : index
      %25 = vector.load %arg7[%c0_12, %c0_13] : memref<1x128xf32, #tpu.memory_space<vmem>>, vector<1x128xf32>
      %cst_14 = arith.constant dense<0.000000e+00> : vector<128xf32>
      %26 = vector.multi_reduction <add>, %19, %cst_14 [0] : vector<16x128xf32> to vector<128xf32>
      %27 = vector.shape_cast %26 : vector<128xf32> to vector<1x128xf32>
      %28 = arith.addf %25, %27 : vector<1x128xf32>
      %c0_15 = arith.constant 0 : index
      %c0_16 = arith.constant 0 : index
      %29 = vector.load %arg7[%c0_15, %c0_16] : memref<1x128xf32, #tpu.memory_space<vmem>>, vector<1x128xf32>
      tpu.vector_store %arg7[%c0_15, %c0_16], %28 {strides = array<i32>} : memref<1x128xf32, #tpu.memory_space<vmem>>, vector<1x128xf32>,
      %c0_17 = arith.constant 0 : index
      %c0_18 = arith.constant 0 : index
      %30 = vector.load %arg8[%c0_17, %c0_18] : memref<1x128xf32, #tpu.memory_space<vmem>>, vector<1x128xf32>
      %31 = arith.mulf %19, %19 : vector<16x128xf32>
      %cst_19 = arith.constant dense<0.000000e+00> : vector<128xf32>
      %32 = vector.multi_reduction <add>, %31, %cst_19 [0] : vector<16x128xf32> to vector<128xf32>
      %33 = vector.shape_cast %32 : vector<128xf32> to vector<1x128xf32>
      %34 = arith.addf %30, %33 : vector<1x128xf32>
      %c0_20 = arith.constant 0 : index
      %c0_21 = arith.constant 0 : index
      %35 = vector.load %arg8[%c0_20, %c0_21] : memref<1x128xf32, #tpu.memory_space<vmem>>, vector<1x128xf32>
      tpu.vector_store %arg8[%c0_20, %c0_21], %34 {strides = array<i32>} : memref<1x128xf32, #tpu.memory_space<vmem>>, vector<1x128xf32>,
    } else {
    }
    %c1_i32 = arith.constant 1 : i32
    %12 = arith.cmpi eq, %arg0, %c1_i32 : i32
    %13 = arith.extui %12 : i1 to i32
    %c0_i32_5 = arith.constant 0 : i32
    %14 = arith.cmpi ne, %13, %c0_i32_5 : i32
    scf.if %14 {
      %c0 = arith.constant 0 : index
      %c0_6 = arith.constant 0 : index
      %15 = vector.load %arg7[%c0, %c0_6] : memref<1x128xf32, #tpu.memory_space<vmem>>, vector<1x128xf32>
      %cst = arith.constant 1.250000e-01 : f32
      %16 = vector.broadcast %cst : f32 to vector<1x128xf32>
      %17 = arith.mulf %15, %16 : vector<1x128xf32>
      %c0_7 = arith.constant 0 : index
      %c0_8 = arith.constant 0 : index
      %18 = vector.load %arg8[%c0_7, %c0_8] : memref<1x128xf32, #tpu.memory_space<vmem>>, vector<1x128xf32>
      %cst_9 = arith.constant 1.250000e-01 : f32
      %19 = vector.broadcast %cst_9 : f32 to vector<1x128xf32>
      %20 = arith.mulf %18, %19 : vector<1x128xf32>
      %21 = arith.mulf %17, %17 : vector<1x128xf32>
      %22 = arith.subf %20, %21 : vector<1x128xf32>
      %cst_10 = arith.constant 0.000000e+00 : f32
      %23 = vector.broadcast %cst_10 : f32 to vector<1x128xf32>
      %24 = arith.maximumf %22, %23 : vector<1x128xf32>
      %cst_11 = arith.constant 9.99999974E-6 : f32
      %25 = vector.broadcast %cst_11 : f32 to vector<1x128xf32>
      %26 = arith.addf %24, %25 : vector<1x128xf32>
      %27 = math.rsqrt %26 : vector<1x128xf32>
      %28 = arith.index_cast %arg1 : i32 to index
      %29 = arith.index_cast %1 : i32 to index
      %c0_12 = arith.constant 0 : index
      %30 = vector.load %arg6[%28, %29, %c0_12] : memref<1x16x128xf32, #tpu.memory_space<vmem>>, vector<1x16x128xf32>
      %31 = vector.shape_cast %30 : vector<1x16x128xf32> to vector<16x128xf32>
      %32 = vector.broadcast %17 : vector<1x128xf32> to vector<16x128xf32>
      %33 = arith.subf %31, %32 : vector<16x128xf32>
      %34 = vector.broadcast %27 : vector<1x128xf32> to vector<16x128xf32>
      %35 = arith.mulf %33, %34 : vector<16x128xf32>
      %cst_13 = arith.constant 0.000000e+00 : f32
      %36 = vector.broadcast %cst_13 : f32 to vector<16x128xf32>
      %37 = arith.cmpf oge, %35, %36 : vector<16x128xf32>
      %cst_14 = arith.constant 2.000000e-01 : f32
      %38 = vector.broadcast %cst_14 : f32 to vector<16x128xf32>
      %39 = arith.mulf %38, %35 : vector<16x128xf32>
      %40 = arith.select %37, %35, %39 : vector<16x128xi1>, vector<16x128xf32>
      %c0_15 = arith.constant 0 : index
      %c0_16 = arith.constant 0 : index
      %c0_17 = arith.constant 0 : index
      %41 = vector.load %arg5[%c0_15, %c0_16, %c0_17] : memref<1x16x128xf32, #tpu.memory_space<vmem>>, vector<1x16x128xf32>
      %42 = vector.shape_cast %41 : vector<1x16x128xf32> to vector<16x128xf32>
      %43 = vector.shape_cast %40 : vector<16x128xf32> to vector<1x16x128xf32>
      tpu.vector_store %arg5[%c0_15, %c0_16, %c0_17], %43 {strides = array<i32>} : memref<1x16x128xf32, #tpu.memory_space<vmem>>, vector<1x16x128xf32>,
    } else {
    }
    return
  }
  func.func @transform_0(%arg0: i32, %arg1: i32, %arg2: i32) -> (i32, i32, i32) {
    %c1_i32 = arith.constant 1 : i32
    %0 = arith.subi %c1_i32, %arg0 : i32
    %1 = arith.muli %arg2, %0 : i32
    %c0_i32 = arith.constant 0 : i32
    %c0_i32_0 = arith.constant 0 : i32
    return %arg1, %1, %c0_i32 : i32, i32, i32
  }
  func.func @transform_1(%arg0: i32, %arg1: i32, %arg2: i32) -> (i32, i32, i32) {
    %c0_i32 = arith.constant 0 : i32
    %c0_i32_0 = arith.constant 0 : i32
    %c0_i32_1 = arith.constant 0 : i32
    return %arg1, %c0_i32, %c0_i32_0 : i32, i32, i32
  }
  func.func @transform_2(%arg0: i32, %arg1: i32, %arg2: i32) -> (i32, i32, i32) {
    %0 = arith.muli %arg2, %arg0 : i32
    %c0_i32 = arith.constant 0 : i32
    %c0_i32_0 = arith.constant 0 : i32
    return %arg1, %0, %c0_i32 : i32, i32, i32
  }
}

module attributes {stable_mosaic.version = 11 : i64} {
  func.func @_gemm_bn_act_kernel(%arg0: i32, %arg1: i32, %arg2: i32, %arg3: memref<1x16x512xbf16, #tpu.memory_space<vmem>>, %arg4: memref<1x512x128xbf16, #tpu.memory_space<vmem>>, %arg5: memref<1x16x128xf32, #tpu.memory_space<vmem>>, %arg6: memref<4x16x128xf32, #tpu.memory_space<vmem>>, %arg7: memref<1x128xf32, #tpu.memory_space<vmem>>, %arg8: memref<1x128xf32, #tpu.memory_space<vmem>>) attributes {dimension_semantics = [#tpu.dimension_semantics<arbitrary>, #tpu.dimension_semantics<arbitrary>, #tpu.dimension_semantics<arbitrary>], iteration_bounds = array<i64: 2, 4, 1>, scalar_prefetch = 0 : i64, scratch_operands = 3 : i64, tpu.core_type = #tpu.core_type<tc>, window_params = [{transform_indices = @transform_0, window_bounds = array<i64: 1, 16, 512>}, {transform_indices = @transform_1, window_bounds = array<i64: 1, 512, 128>}, {transform_indices = @transform_2, window_bounds = array<i64: 1, 16, 128>}]} {
    %c16_i32 = arith.constant 16 : i32
    %0 = arith.muli %arg2, %c16_i32 : i32
    %1 = tpu.assume_multiple %0, 16 : i32
    %c0_i32 = arith.constant 0 : i32
    %2 = arith.cmpi eq, %arg0, %c0_i32 : i32
    %c0_i32_0 = arith.constant 0 : i32
    %3 = arith.cmpi eq, %arg1, %c0_i32_0 : i32
    %4 = arith.andi %2, %3 : i1
    %c0_i32_1 = arith.constant 0 : i32
    %5 = arith.cmpi eq, %arg2, %c0_i32_1 : i32
    %6 = arith.andi %4, %5 : i1
    %7 = arith.extui %6 : i1 to i32
    %c0_i32_2 = arith.constant 0 : i32
    %8 = arith.cmpi ne, %7, %c0_i32_2 : i32
    scf.if %8 {
      %cst = arith.constant 0.000000e+00 : f32
      %15 = vector.broadcast %cst : f32 to vector<1x128xf32>
      %c0 = arith.constant 0 : index
      %c0_6 = arith.constant 0 : index
      %16 = vector.load %arg7[%c0, %c0_6] : memref<1x128xf32, #tpu.memory_space<vmem>>, vector<1x128xf32>
      tpu.vector_store %arg7[%c0, %c0_6], %15 {strides = array<i32>} : memref<1x128xf32, #tpu.memory_space<vmem>>, vector<1x128xf32>,
      %cst_7 = arith.constant 0.000000e+00 : f32
      %17 = vector.broadcast %cst_7 : f32 to vector<1x128xf32>
      %c0_8 = arith.constant 0 : index
      %c0_9 = arith.constant 0 : index
      %18 = vector.load %arg8[%c0_8, %c0_9] : memref<1x128xf32, #tpu.memory_space<vmem>>, vector<1x128xf32>
      tpu.vector_store %arg8[%c0_8, %c0_9], %17 {strides = array<i32>} : memref<1x128xf32, #tpu.memory_space<vmem>>, vector<1x128xf32>,
    } else {
    }
    %c0_i32_3 = arith.constant 0 : i32
    %9 = arith.cmpi eq, %arg0, %c0_i32_3 : i32
    %10 = arith.extui %9 : i1 to i32
    %c0_i32_4 = arith.constant 0 : i32
    %11 = arith.cmpi ne, %10, %c0_i32_4 : i32
    scf.if %11 {
      %c0 = arith.constant 0 : index
      %c0_6 = arith.constant 0 : index
      %c0_7 = arith.constant 0 : index
      %15 = vector.load %arg3[%c0, %c0_6, %c0_7] : memref<1x16x512xbf16, #tpu.memory_space<vmem>>, vector<1x16x512xbf16>
      %16 = vector.shape_cast %15 : vector<1x16x512xbf16> to vector<16x512xbf16>
      %c0_8 = arith.constant 0 : index
      %c0_9 = arith.constant 0 : index
      %c0_10 = arith.constant 0 : index
      %17 = vector.load %arg4[%c0_8, %c0_9, %c0_10] : memref<1x512x128xbf16, #tpu.memory_space<vmem>>, vector<1x512x128xbf16>
      %18 = vector.shape_cast %17 : vector<1x512x128xbf16> to vector<512x128xbf16>
      %cst = arith.constant dense<0.000000e+00> : vector<16x128xf32>
      %19 = tpu.matmul %16, %18, %cst {dimension_numbers = #tpu.dot_dimension_numbers<[1], [0], [0], [1], [0, 0, 1, 1], [], []>} : vector<16x512xbf16>, vector<512x128xbf16>, vector<16x128xf32> -> vector<16x128xf32>
      %20 = arith.index_cast %arg1 : i32 to index
      %21 = arith.index_cast %1 : i32 to index
      %c0_11 = arith.constant 0 : index
      %22 = vector.load %arg6[%20, %21, %c0_11] : memref<4x16x128xf32, #tpu.memory_space<vmem>>, vector<1x16x128xf32>
      %23 = vector.shape_cast %22 : vector<1x16x128xf32> to vector<16x128xf32>
      %24 = vector.shape_cast %19 : vector<16x128xf32> to vector<1x16x128xf32>
      tpu.vector_store %arg6[%20, %21, %c0_11], %24 {strides = array<i32>} : memref<4x16x128xf32, #tpu.memory_space<vmem>>, vector<1x16x128xf32>,
      %c0_12 = arith.constant 0 : index
      %c0_13 = arith.constant 0 : index
      %25 = vector.load %arg7[%c0_12, %c0_13] : memref<1x128xf32, #tpu.memory_space<vmem>>, vector<1x128xf32>
      %cst_14 = arith.constant dense<0.000000e+00> : vector<128xf32>
      %26 = vector.multi_reduction <add>, %19, %cst_14 [0] : vector<16x128xf32> to vector<128xf32>
      %27 = vector.shape_cast %26 : vector<128xf32> to vector<1x128xf32>
      %28 = arith.addf %25, %27 : vector<1x128xf32>
      %c0_15 = arith.constant 0 : index
      %c0_16 = arith.constant 0 : index
      %29 = vector.load %arg7[%c0_15, %c0_16] : memref<1x128xf32, #tpu.memory_space<vmem>>, vector<1x128xf32>
      tpu.vector_store %arg7[%c0_15, %c0_16], %28 {strides = array<i32>} : memref<1x128xf32, #tpu.memory_space<vmem>>, vector<1x128xf32>,
      %c0_17 = arith.constant 0 : index
      %c0_18 = arith.constant 0 : index
      %30 = vector.load %arg8[%c0_17, %c0_18] : memref<1x128xf32, #tpu.memory_space<vmem>>, vector<1x128xf32>
      %31 = arith.mulf %19, %19 : vector<16x128xf32>
      %cst_19 = arith.constant dense<0.000000e+00> : vector<128xf32>
      %32 = vector.multi_reduction <add>, %31, %cst_19 [0] : vector<16x128xf32> to vector<128xf32>
      %33 = vector.shape_cast %32 : vector<128xf32> to vector<1x128xf32>
      %34 = arith.addf %30, %33 : vector<1x128xf32>
      %c0_20 = arith.constant 0 : index
      %c0_21 = arith.constant 0 : index
      %35 = vector.load %arg8[%c0_20, %c0_21] : memref<1x128xf32, #tpu.memory_space<vmem>>, vector<1x128xf32>
      tpu.vector_store %arg8[%c0_20, %c0_21], %34 {strides = array<i32>} : memref<1x128xf32, #tpu.memory_space<vmem>>, vector<1x128xf32>,
    } else {
    }
    %c1_i32 = arith.constant 1 : i32
    %12 = arith.cmpi eq, %arg0, %c1_i32 : i32
    %13 = arith.extui %12 : i1 to i32
    %c0_i32_5 = arith.constant 0 : i32
    %14 = arith.cmpi ne, %13, %c0_i32_5 : i32
    scf.if %14 {
      %c0 = arith.constant 0 : index
      %c0_6 = arith.constant 0 : index
      %15 = vector.load %arg7[%c0, %c0_6] : memref<1x128xf32, #tpu.memory_space<vmem>>, vector<1x128xf32>
      %cst = arith.constant 3.125000e-02 : f32
      %16 = vector.broadcast %cst : f32 to vector<1x128xf32>
      %17 = arith.mulf %15, %16 : vector<1x128xf32>
      %c0_7 = arith.constant 0 : index
      %c0_8 = arith.constant 0 : index
      %18 = vector.load %arg8[%c0_7, %c0_8] : memref<1x128xf32, #tpu.memory_space<vmem>>, vector<1x128xf32>
      %cst_9 = arith.constant 3.125000e-02 : f32
      %19 = vector.broadcast %cst_9 : f32 to vector<1x128xf32>
      %20 = arith.mulf %18, %19 : vector<1x128xf32>
      %21 = arith.mulf %17, %17 : vector<1x128xf32>
      %22 = arith.subf %20, %21 : vector<1x128xf32>
      %cst_10 = arith.constant 0.000000e+00 : f32
      %23 = vector.broadcast %cst_10 : f32 to vector<1x128xf32>
      %24 = arith.maximumf %22, %23 : vector<1x128xf32>
      %cst_11 = arith.constant 9.99999974E-6 : f32
      %25 = vector.broadcast %cst_11 : f32 to vector<1x128xf32>
      %26 = arith.addf %24, %25 : vector<1x128xf32>
      %27 = math.rsqrt %26 : vector<1x128xf32>
      %28 = arith.index_cast %arg1 : i32 to index
      %29 = arith.index_cast %1 : i32 to index
      %c0_12 = arith.constant 0 : index
      %30 = vector.load %arg6[%28, %29, %c0_12] : memref<4x16x128xf32, #tpu.memory_space<vmem>>, vector<1x16x128xf32>
      %31 = vector.shape_cast %30 : vector<1x16x128xf32> to vector<16x128xf32>
      %32 = vector.broadcast %17 : vector<1x128xf32> to vector<16x128xf32>
      %33 = arith.subf %31, %32 : vector<16x128xf32>
      %34 = vector.broadcast %27 : vector<1x128xf32> to vector<16x128xf32>
      %35 = arith.mulf %33, %34 : vector<16x128xf32>
      %cst_13 = arith.constant 0.000000e+00 : f32
      %36 = vector.broadcast %cst_13 : f32 to vector<16x128xf32>
      %37 = arith.maximumf %35, %36 : vector<16x128xf32>
      %c0_14 = arith.constant 0 : index
      %c0_15 = arith.constant 0 : index
      %c0_16 = arith.constant 0 : index
      %38 = vector.load %arg5[%c0_14, %c0_15, %c0_16] : memref<1x16x128xf32, #tpu.memory_space<vmem>>, vector<1x16x128xf32>
      %39 = vector.shape_cast %38 : vector<1x16x128xf32> to vector<16x128xf32>
      %40 = vector.shape_cast %37 : vector<16x128xf32> to vector<1x16x128xf32>
      tpu.vector_store %arg5[%c0_14, %c0_15, %c0_16], %40 {strides = array<i32>} : memref<1x16x128xf32, #tpu.memory_space<vmem>>, vector<1x16x128xf32>,
    } else {
    }
    return
  }
  func.func @transform_0(%arg0: i32, %arg1: i32, %arg2: i32) -> (i32, i32, i32) {
    %c1_i32 = arith.constant 1 : i32
    %0 = arith.subi %c1_i32, %arg0 : i32
    %1 = arith.muli %arg2, %0 : i32
    %c0_i32 = arith.constant 0 : i32
    %c0_i32_0 = arith.constant 0 : i32
    return %arg1, %1, %c0_i32 : i32, i32, i32
  }
  func.func @transform_1(%arg0: i32, %arg1: i32, %arg2: i32) -> (i32, i32, i32) {
    %c0_i32 = arith.constant 0 : i32
    %c0_i32_0 = arith.constant 0 : i32
    %c0_i32_1 = arith.constant 0 : i32
    return %arg1, %c0_i32, %c0_i32_0 : i32, i32, i32
  }
  func.func @transform_2(%arg0: i32, %arg1: i32, %arg2: i32) -> (i32, i32, i32) {
    %0 = arith.muli %arg2, %arg0 : i32
    %c0_i32 = arith.constant 0 : i32
    %c0_i32_0 = arith.constant 0 : i32
    return %arg1, %0, %c0_i32 : i32, i32, i32
  }
}

module attributes {stable_mosaic.version = 11 : i64} {
  func.func @_gemm_bn_act_kernel(%arg0: i32, %arg1: i32, %arg2: i32, %arg3: memref<1x32x256xbf16, #tpu.memory_space<vmem>>, %arg4: memref<1x256x128xbf16, #tpu.memory_space<vmem>>, %arg5: memref<1x32x128xf32, #tpu.memory_space<vmem>>, %arg6: memref<4x32x128xf32, #tpu.memory_space<vmem>>, %arg7: memref<1x128xf32, #tpu.memory_space<vmem>>, %arg8: memref<1x128xf32, #tpu.memory_space<vmem>>) attributes {dimension_semantics = [#tpu.dimension_semantics<arbitrary>, #tpu.dimension_semantics<arbitrary>, #tpu.dimension_semantics<arbitrary>], iteration_bounds = array<i64: 2, 4, 1>, scalar_prefetch = 0 : i64, scratch_operands = 3 : i64, tpu.core_type = #tpu.core_type<tc>, window_params = [{transform_indices = @transform_0, window_bounds = array<i64: 1, 32, 256>}, {transform_indices = @transform_1, window_bounds = array<i64: 1, 256, 128>}, {transform_indices = @transform_2, window_bounds = array<i64: 1, 32, 128>}]} {
    %c32_i32 = arith.constant 32 : i32
    %0 = arith.muli %arg2, %c32_i32 : i32
    %1 = tpu.assume_multiple %0, 32 : i32
    %c0_i32 = arith.constant 0 : i32
    %2 = arith.cmpi eq, %arg0, %c0_i32 : i32
    %c0_i32_0 = arith.constant 0 : i32
    %3 = arith.cmpi eq, %arg1, %c0_i32_0 : i32
    %4 = arith.andi %2, %3 : i1
    %c0_i32_1 = arith.constant 0 : i32
    %5 = arith.cmpi eq, %arg2, %c0_i32_1 : i32
    %6 = arith.andi %4, %5 : i1
    %7 = arith.extui %6 : i1 to i32
    %c0_i32_2 = arith.constant 0 : i32
    %8 = arith.cmpi ne, %7, %c0_i32_2 : i32
    scf.if %8 {
      %cst = arith.constant 0.000000e+00 : f32
      %15 = vector.broadcast %cst : f32 to vector<1x128xf32>
      %c0 = arith.constant 0 : index
      %c0_6 = arith.constant 0 : index
      %16 = vector.load %arg7[%c0, %c0_6] : memref<1x128xf32, #tpu.memory_space<vmem>>, vector<1x128xf32>
      tpu.vector_store %arg7[%c0, %c0_6], %15 {strides = array<i32>} : memref<1x128xf32, #tpu.memory_space<vmem>>, vector<1x128xf32>,
      %cst_7 = arith.constant 0.000000e+00 : f32
      %17 = vector.broadcast %cst_7 : f32 to vector<1x128xf32>
      %c0_8 = arith.constant 0 : index
      %c0_9 = arith.constant 0 : index
      %18 = vector.load %arg8[%c0_8, %c0_9] : memref<1x128xf32, #tpu.memory_space<vmem>>, vector<1x128xf32>
      tpu.vector_store %arg8[%c0_8, %c0_9], %17 {strides = array<i32>} : memref<1x128xf32, #tpu.memory_space<vmem>>, vector<1x128xf32>,
    } else {
    }
    %c0_i32_3 = arith.constant 0 : i32
    %9 = arith.cmpi eq, %arg0, %c0_i32_3 : i32
    %10 = arith.extui %9 : i1 to i32
    %c0_i32_4 = arith.constant 0 : i32
    %11 = arith.cmpi ne, %10, %c0_i32_4 : i32
    scf.if %11 {
      %c0 = arith.constant 0 : index
      %c0_6 = arith.constant 0 : index
      %c0_7 = arith.constant 0 : index
      %15 = vector.load %arg3[%c0, %c0_6, %c0_7] : memref<1x32x256xbf16, #tpu.memory_space<vmem>>, vector<1x32x256xbf16>
      %16 = vector.shape_cast %15 : vector<1x32x256xbf16> to vector<32x256xbf16>
      %c0_8 = arith.constant 0 : index
      %c0_9 = arith.constant 0 : index
      %c0_10 = arith.constant 0 : index
      %17 = vector.load %arg4[%c0_8, %c0_9, %c0_10] : memref<1x256x128xbf16, #tpu.memory_space<vmem>>, vector<1x256x128xbf16>
      %18 = vector.shape_cast %17 : vector<1x256x128xbf16> to vector<256x128xbf16>
      %cst = arith.constant dense<0.000000e+00> : vector<32x128xf32>
      %19 = tpu.matmul %16, %18, %cst {dimension_numbers = #tpu.dot_dimension_numbers<[1], [0], [0], [1], [0, 0, 1, 1], [], []>} : vector<32x256xbf16>, vector<256x128xbf16>, vector<32x128xf32> -> vector<32x128xf32>
      %20 = arith.index_cast %arg1 : i32 to index
      %21 = arith.index_cast %1 : i32 to index
      %c0_11 = arith.constant 0 : index
      %22 = vector.load %arg6[%20, %21, %c0_11] : memref<4x32x128xf32, #tpu.memory_space<vmem>>, vector<1x32x128xf32>
      %23 = vector.shape_cast %22 : vector<1x32x128xf32> to vector<32x128xf32>
      %24 = vector.shape_cast %19 : vector<32x128xf32> to vector<1x32x128xf32>
      tpu.vector_store %arg6[%20, %21, %c0_11], %24 {strides = array<i32>} : memref<4x32x128xf32, #tpu.memory_space<vmem>>, vector<1x32x128xf32>,
      %c0_12 = arith.constant 0 : index
      %c0_13 = arith.constant 0 : index
      %25 = vector.load %arg7[%c0_12, %c0_13] : memref<1x128xf32, #tpu.memory_space<vmem>>, vector<1x128xf32>
      %cst_14 = arith.constant dense<0.000000e+00> : vector<128xf32>
      %26 = vector.multi_reduction <add>, %19, %cst_14 [0] : vector<32x128xf32> to vector<128xf32>
      %27 = vector.shape_cast %26 : vector<128xf32> to vector<1x128xf32>
      %28 = arith.addf %25, %27 : vector<1x128xf32>
      %c0_15 = arith.constant 0 : index
      %c0_16 = arith.constant 0 : index
      %29 = vector.load %arg7[%c0_15, %c0_16] : memref<1x128xf32, #tpu.memory_space<vmem>>, vector<1x128xf32>
      tpu.vector_store %arg7[%c0_15, %c0_16], %28 {strides = array<i32>} : memref<1x128xf32, #tpu.memory_space<vmem>>, vector<1x128xf32>,
      %c0_17 = arith.constant 0 : index
      %c0_18 = arith.constant 0 : index
      %30 = vector.load %arg8[%c0_17, %c0_18] : memref<1x128xf32, #tpu.memory_space<vmem>>, vector<1x128xf32>
      %31 = arith.mulf %19, %19 : vector<32x128xf32>
      %cst_19 = arith.constant dense<0.000000e+00> : vector<128xf32>
      %32 = vector.multi_reduction <add>, %31, %cst_19 [0] : vector<32x128xf32> to vector<128xf32>
      %33 = vector.shape_cast %32 : vector<128xf32> to vector<1x128xf32>
      %34 = arith.addf %30, %33 : vector<1x128xf32>
      %c0_20 = arith.constant 0 : index
      %c0_21 = arith.constant 0 : index
      %35 = vector.load %arg8[%c0_20, %c0_21] : memref<1x128xf32, #tpu.memory_space<vmem>>, vector<1x128xf32>
      tpu.vector_store %arg8[%c0_20, %c0_21], %34 {strides = array<i32>} : memref<1x128xf32, #tpu.memory_space<vmem>>, vector<1x128xf32>,
    } else {
    }
    %c1_i32 = arith.constant 1 : i32
    %12 = arith.cmpi eq, %arg0, %c1_i32 : i32
    %13 = arith.extui %12 : i1 to i32
    %c0_i32_5 = arith.constant 0 : i32
    %14 = arith.cmpi ne, %13, %c0_i32_5 : i32
    scf.if %14 {
      %c0 = arith.constant 0 : index
      %c0_6 = arith.constant 0 : index
      %15 = vector.load %arg7[%c0, %c0_6] : memref<1x128xf32, #tpu.memory_space<vmem>>, vector<1x128xf32>
      %cst = arith.constant 7.812500e-03 : f32
      %16 = vector.broadcast %cst : f32 to vector<1x128xf32>
      %17 = arith.mulf %15, %16 : vector<1x128xf32>
      %c0_7 = arith.constant 0 : index
      %c0_8 = arith.constant 0 : index
      %18 = vector.load %arg8[%c0_7, %c0_8] : memref<1x128xf32, #tpu.memory_space<vmem>>, vector<1x128xf32>
      %cst_9 = arith.constant 7.812500e-03 : f32
      %19 = vector.broadcast %cst_9 : f32 to vector<1x128xf32>
      %20 = arith.mulf %18, %19 : vector<1x128xf32>
      %21 = arith.mulf %17, %17 : vector<1x128xf32>
      %22 = arith.subf %20, %21 : vector<1x128xf32>
      %cst_10 = arith.constant 0.000000e+00 : f32
      %23 = vector.broadcast %cst_10 : f32 to vector<1x128xf32>
      %24 = arith.maximumf %22, %23 : vector<1x128xf32>
      %cst_11 = arith.constant 9.99999974E-6 : f32
      %25 = vector.broadcast %cst_11 : f32 to vector<1x128xf32>
      %26 = arith.addf %24, %25 : vector<1x128xf32>
      %27 = math.rsqrt %26 : vector<1x128xf32>
      %28 = arith.index_cast %arg1 : i32 to index
      %29 = arith.index_cast %1 : i32 to index
      %c0_12 = arith.constant 0 : index
      %30 = vector.load %arg6[%28, %29, %c0_12] : memref<4x32x128xf32, #tpu.memory_space<vmem>>, vector<1x32x128xf32>
      %31 = vector.shape_cast %30 : vector<1x32x128xf32> to vector<32x128xf32>
      %32 = vector.broadcast %17 : vector<1x128xf32> to vector<32x128xf32>
      %33 = arith.subf %31, %32 : vector<32x128xf32>
      %34 = vector.broadcast %27 : vector<1x128xf32> to vector<32x128xf32>
      %35 = arith.mulf %33, %34 : vector<32x128xf32>
      %cst_13 = arith.constant 0.000000e+00 : f32
      %36 = vector.broadcast %cst_13 : f32 to vector<32x128xf32>
      %37 = arith.maximumf %35, %36 : vector<32x128xf32>
      %c0_14 = arith.constant 0 : index
      %c0_15 = arith.constant 0 : index
      %c0_16 = arith.constant 0 : index
      %38 = vector.load %arg5[%c0_14, %c0_15, %c0_16] : memref<1x32x128xf32, #tpu.memory_space<vmem>>, vector<1x32x128xf32>
      %39 = vector.shape_cast %38 : vector<1x32x128xf32> to vector<32x128xf32>
      %40 = vector.shape_cast %37 : vector<32x128xf32> to vector<1x32x128xf32>
      tpu.vector_store %arg5[%c0_14, %c0_15, %c0_16], %40 {strides = array<i32>} : memref<1x32x128xf32, #tpu.memory_space<vmem>>, vector<1x32x128xf32>,
    } else {
    }
    return
  }
  func.func @transform_0(%arg0: i32, %arg1: i32, %arg2: i32) -> (i32, i32, i32) {
    %c1_i32 = arith.constant 1 : i32
    %0 = arith.subi %c1_i32, %arg0 : i32
    %1 = arith.muli %arg2, %0 : i32
    %c0_i32 = arith.constant 0 : i32
    %c0_i32_0 = arith.constant 0 : i32
    return %arg1, %1, %c0_i32 : i32, i32, i32
  }
  func.func @transform_1(%arg0: i32, %arg1: i32, %arg2: i32) -> (i32, i32, i32) {
    %c0_i32 = arith.constant 0 : i32
    %c0_i32_0 = arith.constant 0 : i32
    %c0_i32_1 = arith.constant 0 : i32
    return %arg1, %c0_i32, %c0_i32_0 : i32, i32, i32
  }
  func.func @transform_2(%arg0: i32, %arg1: i32, %arg2: i32) -> (i32, i32, i32) {
    %0 = arith.muli %arg2, %arg0 : i32
    %c0_i32 = arith.constant 0 : i32
    %c0_i32_0 = arith.constant 0 : i32
    return %arg1, %0, %c0_i32 : i32, i32, i32
  }
}

module attributes {stable_mosaic.version = 11 : i64} {
  func.func @_gemm_bn_act_kernel(%arg0: i32, %arg1: i32, %arg2: i32, %arg3: memref<1x128x128xbf16, #tpu.memory_space<vmem>>, %arg4: memref<1x128x128xbf16, #tpu.memory_space<vmem>>, %arg5: memref<1x128x128xf32, #tpu.memory_space<vmem>>, %arg6: memref<4x128x128xf32, #tpu.memory_space<vmem>>, %arg7: memref<1x128xf32, #tpu.memory_space<vmem>>, %arg8: memref<1x128xf32, #tpu.memory_space<vmem>>) attributes {dimension_semantics = [#tpu.dimension_semantics<arbitrary>, #tpu.dimension_semantics<arbitrary>, #tpu.dimension_semantics<arbitrary>], iteration_bounds = array<i64: 2, 4, 1>, scalar_prefetch = 0 : i64, scratch_operands = 3 : i64, tpu.core_type = #tpu.core_type<tc>, window_params = [{transform_indices = @transform_0, window_bounds = array<i64: 1, 128, 128>}, {transform_indices = @transform_1, window_bounds = array<i64: 1, 128, 128>}, {transform_indices = @transform_2, window_bounds = array<i64: 1, 128, 128>}]} {
    %c128_i32 = arith.constant 128 : i32
    %0 = arith.muli %arg2, %c128_i32 : i32
    %1 = tpu.assume_multiple %0, 128 : i32
    %c0_i32 = arith.constant 0 : i32
    %2 = arith.cmpi eq, %arg0, %c0_i32 : i32
    %c0_i32_0 = arith.constant 0 : i32
    %3 = arith.cmpi eq, %arg1, %c0_i32_0 : i32
    %4 = arith.andi %2, %3 : i1
    %c0_i32_1 = arith.constant 0 : i32
    %5 = arith.cmpi eq, %arg2, %c0_i32_1 : i32
    %6 = arith.andi %4, %5 : i1
    %7 = arith.extui %6 : i1 to i32
    %c0_i32_2 = arith.constant 0 : i32
    %8 = arith.cmpi ne, %7, %c0_i32_2 : i32
    scf.if %8 {
      %cst = arith.constant 0.000000e+00 : f32
      %15 = vector.broadcast %cst : f32 to vector<1x128xf32>
      %c0 = arith.constant 0 : index
      %c0_6 = arith.constant 0 : index
      %16 = vector.load %arg7[%c0, %c0_6] : memref<1x128xf32, #tpu.memory_space<vmem>>, vector<1x128xf32>
      tpu.vector_store %arg7[%c0, %c0_6], %15 {strides = array<i32>} : memref<1x128xf32, #tpu.memory_space<vmem>>, vector<1x128xf32>,
      %cst_7 = arith.constant 0.000000e+00 : f32
      %17 = vector.broadcast %cst_7 : f32 to vector<1x128xf32>
      %c0_8 = arith.constant 0 : index
      %c0_9 = arith.constant 0 : index
      %18 = vector.load %arg8[%c0_8, %c0_9] : memref<1x128xf32, #tpu.memory_space<vmem>>, vector<1x128xf32>
      tpu.vector_store %arg8[%c0_8, %c0_9], %17 {strides = array<i32>} : memref<1x128xf32, #tpu.memory_space<vmem>>, vector<1x128xf32>,
    } else {
    }
    %c0_i32_3 = arith.constant 0 : i32
    %9 = arith.cmpi eq, %arg0, %c0_i32_3 : i32
    %10 = arith.extui %9 : i1 to i32
    %c0_i32_4 = arith.constant 0 : i32
    %11 = arith.cmpi ne, %10, %c0_i32_4 : i32
    scf.if %11 {
      %c0 = arith.constant 0 : index
      %c0_6 = arith.constant 0 : index
      %c0_7 = arith.constant 0 : index
      %15 = vector.load %arg3[%c0, %c0_6, %c0_7] : memref<1x128x128xbf16, #tpu.memory_space<vmem>>, vector<1x128x128xbf16>
      %16 = vector.shape_cast %15 : vector<1x128x128xbf16> to vector<128x128xbf16>
      %c0_8 = arith.constant 0 : index
      %c0_9 = arith.constant 0 : index
      %c0_10 = arith.constant 0 : index
      %17 = vector.load %arg4[%c0_8, %c0_9, %c0_10] : memref<1x128x128xbf16, #tpu.memory_space<vmem>>, vector<1x128x128xbf16>
      %18 = vector.shape_cast %17 : vector<1x128x128xbf16> to vector<128x128xbf16>
      %cst = arith.constant dense<0.000000e+00> : vector<128x128xf32>
      %19 = tpu.matmul %16, %18, %cst {dimension_numbers = #tpu.dot_dimension_numbers<[1], [0], [0], [1], [0, 0, 1, 1], [], []>} : vector<128x128xbf16>, vector<128x128xbf16>, vector<128x128xf32> -> vector<128x128xf32>
      %20 = arith.index_cast %arg1 : i32 to index
      %21 = arith.index_cast %1 : i32 to index
      %c0_11 = arith.constant 0 : index
      %22 = vector.load %arg6[%20, %21, %c0_11] : memref<4x128x128xf32, #tpu.memory_space<vmem>>, vector<1x128x128xf32>
      %23 = vector.shape_cast %22 : vector<1x128x128xf32> to vector<128x128xf32>
      %24 = vector.shape_cast %19 : vector<128x128xf32> to vector<1x128x128xf32>
      tpu.vector_store %arg6[%20, %21, %c0_11], %24 {strides = array<i32>} : memref<4x128x128xf32, #tpu.memory_space<vmem>>, vector<1x128x128xf32>,
      %c0_12 = arith.constant 0 : index
      %c0_13 = arith.constant 0 : index
      %25 = vector.load %arg7[%c0_12, %c0_13] : memref<1x128xf32, #tpu.memory_space<vmem>>, vector<1x128xf32>
      %cst_14 = arith.constant dense<0.000000e+00> : vector<128xf32>
      %26 = vector.multi_reduction <add>, %19, %cst_14 [0] : vector<128x128xf32> to vector<128xf32>
      %27 = vector.shape_cast %26 : vector<128xf32> to vector<1x128xf32>
      %28 = arith.addf %25, %27 : vector<1x128xf32>
      %c0_15 = arith.constant 0 : index
      %c0_16 = arith.constant 0 : index
      %29 = vector.load %arg7[%c0_15, %c0_16] : memref<1x128xf32, #tpu.memory_space<vmem>>, vector<1x128xf32>
      tpu.vector_store %arg7[%c0_15, %c0_16], %28 {strides = array<i32>} : memref<1x128xf32, #tpu.memory_space<vmem>>, vector<1x128xf32>,
      %c0_17 = arith.constant 0 : index
      %c0_18 = arith.constant 0 : index
      %30 = vector.load %arg8[%c0_17, %c0_18] : memref<1x128xf32, #tpu.memory_space<vmem>>, vector<1x128xf32>
      %31 = arith.mulf %19, %19 : vector<128x128xf32>
      %cst_19 = arith.constant dense<0.000000e+00> : vector<128xf32>
      %32 = vector.multi_reduction <add>, %31, %cst_19 [0] : vector<128x128xf32> to vector<128xf32>
      %33 = vector.shape_cast %32 : vector<128xf32> to vector<1x128xf32>
      %34 = arith.addf %30, %33 : vector<1x128xf32>
      %c0_20 = arith.constant 0 : index
      %c0_21 = arith.constant 0 : index
      %35 = vector.load %arg8[%c0_20, %c0_21] : memref<1x128xf32, #tpu.memory_space<vmem>>, vector<1x128xf32>
      tpu.vector_store %arg8[%c0_20, %c0_21], %34 {strides = array<i32>} : memref<1x128xf32, #tpu.memory_space<vmem>>, vector<1x128xf32>,
    } else {
    }
    %c1_i32 = arith.constant 1 : i32
    %12 = arith.cmpi eq, %arg0, %c1_i32 : i32
    %13 = arith.extui %12 : i1 to i32
    %c0_i32_5 = arith.constant 0 : i32
    %14 = arith.cmpi ne, %13, %c0_i32_5 : i32
    scf.if %14 {
      %c0 = arith.constant 0 : index
      %c0_6 = arith.constant 0 : index
      %15 = vector.load %arg7[%c0, %c0_6] : memref<1x128xf32, #tpu.memory_space<vmem>>, vector<1x128xf32>
      %cst = arith.constant 0.001953125 : f32
      %16 = vector.broadcast %cst : f32 to vector<1x128xf32>
      %17 = arith.mulf %15, %16 : vector<1x128xf32>
      %c0_7 = arith.constant 0 : index
      %c0_8 = arith.constant 0 : index
      %18 = vector.load %arg8[%c0_7, %c0_8] : memref<1x128xf32, #tpu.memory_space<vmem>>, vector<1x128xf32>
      %cst_9 = arith.constant 0.001953125 : f32
      %19 = vector.broadcast %cst_9 : f32 to vector<1x128xf32>
      %20 = arith.mulf %18, %19 : vector<1x128xf32>
      %21 = arith.mulf %17, %17 : vector<1x128xf32>
      %22 = arith.subf %20, %21 : vector<1x128xf32>
      %cst_10 = arith.constant 0.000000e+00 : f32
      %23 = vector.broadcast %cst_10 : f32 to vector<1x128xf32>
      %24 = arith.maximumf %22, %23 : vector<1x128xf32>
      %cst_11 = arith.constant 9.99999974E-6 : f32
      %25 = vector.broadcast %cst_11 : f32 to vector<1x128xf32>
      %26 = arith.addf %24, %25 : vector<1x128xf32>
      %27 = math.rsqrt %26 : vector<1x128xf32>
      %28 = arith.index_cast %arg1 : i32 to index
      %29 = arith.index_cast %1 : i32 to index
      %c0_12 = arith.constant 0 : index
      %30 = vector.load %arg6[%28, %29, %c0_12] : memref<4x128x128xf32, #tpu.memory_space<vmem>>, vector<1x128x128xf32>
      %31 = vector.shape_cast %30 : vector<1x128x128xf32> to vector<128x128xf32>
      %32 = vector.broadcast %17 : vector<1x128xf32> to vector<128x128xf32>
      %33 = arith.subf %31, %32 : vector<128x128xf32>
      %34 = vector.broadcast %27 : vector<1x128xf32> to vector<128x128xf32>
      %35 = arith.mulf %33, %34 : vector<128x128xf32>
      %cst_13 = arith.constant 0.000000e+00 : f32
      %36 = vector.broadcast %cst_13 : f32 to vector<128x128xf32>
      %37 = arith.maximumf %35, %36 : vector<128x128xf32>
      %c0_14 = arith.constant 0 : index
      %c0_15 = arith.constant 0 : index
      %c0_16 = arith.constant 0 : index
      %38 = vector.load %arg5[%c0_14, %c0_15, %c0_16] : memref<1x128x128xf32, #tpu.memory_space<vmem>>, vector<1x128x128xf32>
      %39 = vector.shape_cast %38 : vector<1x128x128xf32> to vector<128x128xf32>
      %40 = vector.shape_cast %37 : vector<128x128xf32> to vector<1x128x128xf32>
      tpu.vector_store %arg5[%c0_14, %c0_15, %c0_16], %40 {strides = array<i32>} : memref<1x128x128xf32, #tpu.memory_space<vmem>>, vector<1x128x128xf32>,
    } else {
    }
    return
  }
  func.func @transform_0(%arg0: i32, %arg1: i32, %arg2: i32) -> (i32, i32, i32) {
    %c1_i32 = arith.constant 1 : i32
    %0 = arith.subi %c1_i32, %arg0 : i32
    %1 = arith.muli %arg2, %0 : i32
    %c0_i32 = arith.constant 0 : i32
    %c0_i32_0 = arith.constant 0 : i32
    return %arg1, %1, %c0_i32 : i32, i32, i32
  }
  func.func @transform_1(%arg0: i32, %arg1: i32, %arg2: i32) -> (i32, i32, i32) {
    %c0_i32 = arith.constant 0 : i32
    %c0_i32_0 = arith.constant 0 : i32
    %c0_i32_1 = arith.constant 0 : i32
    return %arg1, %c0_i32, %c0_i32_0 : i32, i32, i32
  }
  func.func @transform_2(%arg0: i32, %arg1: i32, %arg2: i32) -> (i32, i32, i32) {
    %0 = arith.muli %arg2, %arg0 : i32
    %c0_i32 = arith.constant 0 : i32
    %c0_i32_0 = arith.constant 0 : i32
    return %arg1, %0, %c0_i32 : i32, i32, i32
  }
}

module attributes {stable_mosaic.version = 11 : i64} {
  func.func @_gemm_act_kernel(%arg0: i32, %arg1: i32, %arg2: memref<1x512x64xbf16, #tpu.memory_space<vmem>>, %arg3: memref<1x64x128xbf16, #tpu.memory_space<vmem>>, %arg4: memref<1x512x128xf32, #tpu.memory_space<vmem>>) attributes {dimension_semantics = [#tpu.dimension_semantics<parallel>, #tpu.dimension_semantics<parallel>], iteration_bounds = array<i64: 4, 1>, scalar_prefetch = 0 : i64, scratch_operands = 0 : i64, tpu.core_type = #tpu.core_type<tc>, window_params = [{transform_indices = @transform_0, window_bounds = array<i64: 1, 512, 64>}, {transform_indices = @transform_1, window_bounds = array<i64: 1, 64, 128>}, {transform_indices = @transform_2, window_bounds = array<i64: 1, 512, 128>}]} {
    %c0 = arith.constant 0 : index
    %c0_0 = arith.constant 0 : index
    %c0_1 = arith.constant 0 : index
    %0 = vector.load %arg2[%c0, %c0_0, %c0_1] : memref<1x512x64xbf16, #tpu.memory_space<vmem>>, vector<1x512x64xbf16>
    %1 = vector.shape_cast %0 : vector<1x512x64xbf16> to vector<512x64xbf16>
    %c0_2 = arith.constant 0 : index
    %c0_3 = arith.constant 0 : index
    %c0_4 = arith.constant 0 : index
    %2 = vector.load %arg3[%c0_2, %c0_3, %c0_4] : memref<1x64x128xbf16, #tpu.memory_space<vmem>>, vector<1x64x128xbf16>
    %3 = vector.shape_cast %2 : vector<1x64x128xbf16> to vector<64x128xbf16>
    %cst = arith.constant dense<0.000000e+00> : vector<512x128xf32>
    %4 = tpu.matmul %1, %3, %cst {dimension_numbers = #tpu.dot_dimension_numbers<[1], [0], [0], [1], [0, 0, 1, 1], [], []>} : vector<512x64xbf16>, vector<64x128xbf16>, vector<512x128xf32> -> vector<512x128xf32>
    %5 = math.tanh %4 : vector<512x128xf32>
    %c0_5 = arith.constant 0 : index
    %c0_6 = arith.constant 0 : index
    %c0_7 = arith.constant 0 : index
    %6 = vector.load %arg4[%c0_5, %c0_6, %c0_7] : memref<1x512x128xf32, #tpu.memory_space<vmem>>, vector<1x512x128xf32>
    %7 = vector.shape_cast %6 : vector<1x512x128xf32> to vector<512x128xf32>
    %8 = vector.shape_cast %5 : vector<512x128xf32> to vector<1x512x128xf32>
    tpu.vector_store %arg4[%c0_5, %c0_6, %c0_7], %8 {strides = array<i32>} : memref<1x512x128xf32, #tpu.memory_space<vmem>>, vector<1x512x128xf32>,
    return
  }
  func.func @transform_0(%arg0: i32, %arg1: i32) -> (i32, i32, i32) {
    %c0_i32 = arith.constant 0 : i32
    %c0_i32_0 = arith.constant 0 : i32
    return %arg0, %arg1, %c0_i32 : i32, i32, i32
  }
  func.func @transform_1(%arg0: i32, %arg1: i32) -> (i32, i32, i32) {
    %c0_i32 = arith.constant 0 : i32
    %c0_i32_0 = arith.constant 0 : i32
    %c0_i32_1 = arith.constant 0 : i32
    return %arg0, %c0_i32, %c0_i32_0 : i32, i32, i32
  }
  func.func @transform_2(%arg0: i32, %arg1: i32) -> (i32, i32, i32) {
    %c0_i32 = arith.constant 0 : i32
    %c0_i32_0 = arith.constant 0 : i32
    return %arg0, %arg1, %c0_i32 : i32, i32, i32
  }
}

</mosaic_0001>

<llo_original>
// kernel: generator_forward.8
$region0: #{generator_forward.8}
  #allocation0 [shape = 'u32[]', space=smem, size = 0x4, offset = 0x4, fixed_abs, tag = 'smem constant byte address 0x4 - core index']
  #allocation1 [shape = 'u32[144,128]{1,0:T(1,128)}', space=vmem, size = 0x12000, scoped, tag = 'internal scratch']
  %s0 = inlined_call_operand.vmem [shape: bf16[1,512,48], index: 0, kind: input, shape index: {}]
  %s1 = inlined_call_operand.vmem [shape: bf16[1,48,128], index: 1, kind: input, shape index: {}]
  %s2 = inlined_call_operand.vmem [shape: f32[1,512,128], index: 2, kind: output, shape index: {}]
  %s3 = sld [smem:[#allocation0]]
  $region18: #{generator_forward.8} parent=0
    _
  %s5 = ssub.s32 1, %s3
  %s6 = scalar_select 0, %s5, %s3
  // Predicated region
  $region2: #{generator_forward.8} parent=0 // pred_check
    _
  $region3: #{generator_forward.8} parent=0 // pred_check_branch
    %8 = sbr.rel (0) target = $region5
  $region4: #{generator_forward.8} parent=0 // pred_region
    _
  $region5: #{generator_forward.8} parent=0 // pred_fallthru
    _
  // Predicated region
  $region6: #{generator_forward.8} parent=0 // pred_check
    _
  $region7: #{generator_forward.8} parent=0 // pred_check_branch
    %10 = sbr.rel (0) target = $region9
  $region8: #{generator_forward.8} parent=0 // pred_region
    _
  $region9: #{generator_forward.8} parent=0 // pred_fallthru
    _
  %v12 = vld [vmem:[%s0] sm:$0xf]
  %v13 = vld [vmem:[%s0 + $0x4] sm:$0xf]
  %v14 = vld [vmem:[%s0 + $0x8] sm:$0xf]
  %v15 = vld [vmem:[%s0 + $0xc] sm:$0xf]
  %v16 = vld [vmem:[%s0 + $0x10] sm:$0xf]
  %v17 = vld [vmem:[%s0 + $0x14] sm:$0xf]
  %v18 = vld [vmem:[%s0 + $0x18] sm:$0xf]
  %v19 = vld [vmem:[%s0 + $0x1c] sm:$0xf]
  %v20 = vld [vmem:[%s0 + $0x20] sm:$0xf]
  %v21 = vld [vmem:[%s0 + $0x24] sm:$0xf]
  %v22 = vld [vmem:[%s0 + $0x28] sm:$0xf]
  %v23 = vld [vmem:[%s0 + $0x2c] sm:$0xf]
  %v24 = vld [vmem:[%s0 + $0x30] sm:$0xf]
  %v25 = vld [vmem:[%s0 + $0x34] sm:$0xf]
  %v26 = vld [vmem:[%s0 + $0x38] sm:$0xf]
  %v27 = vld [vmem:[%s0 + $0x3c] sm:$0xf]
  %v28 = vld [vmem:[%s0 + $0x40] sm:$0xf]
  %v29 = vld [vmem:[%s0 + $0x44] sm:$0xf]
  %v30 = vld [vmem:[%s0 + $0x48] sm:$0xf]
  %v31 = vld [vmem:[%s0 + $0x4c] sm:$0xf]
  %v32 = vld [vmem:[%s0 + $0x50] sm:$0xf]
  %v33 = vld [vmem:[%s0 + $0x54] sm:$0xf]
  %v34 = vld [vmem:[%s0 + $0x58] sm:$0xf]
  %v35 = vld [vmem:[%s0 + $0x5c] sm:$0xf]
  %v36 = vld [vmem:[%s0 + $0x60] sm:$0xf]
  %v37 = vld [vmem:[%s0 + $0x64] sm:$0xf]
  %v38 = vld [vmem:[%s0 + $0x68] sm:$0xf]
  %v39 = vld [vmem:[%s0 + $0x6c] sm:$0xf]
  %v40 = vld [vmem:[%s0 + $0x70] sm:$0xf]
  %v41 = vld [vmem:[%s0 + $0x74] sm:$0xf]
  %v42 = vld [vmem:[%s0 + $0x78] sm:$0xf]
  %v43 = vld [vmem:[%s0 + $0x7c] sm:$0xf]
  %v44 = vld [vmem:[%s0 + $0x80] sm:$0xf]
  %v45 = vld [vmem:[%s0 + $0x84] sm:$0xf]
  %v46 = vld [vmem:[%s0 + $0x88] sm:$0xf]
  %v47 = vld [vmem:[%s0 + $0x8c] sm:$0xf]
  %v48 = vld [vmem:[%s0 + $0x90] sm:$0xf]
  %v49 = vld [vmem:[%s0 + $0x94] sm:$0xf]
  %v50 = vld [vmem:[%s0 + $0x98] sm:$0xf]
  %v51 = vld [vmem:[%s0 + $0x9c] sm:$0xf]
  %v52 = vld [vmem:[%s0 + $0xa0] sm:$0xf]
  %v53 = vld [vmem:[%s0 + $0xa4] sm:$0xf]
  %v54 = vld [vmem:[%s0 + $0xa8] sm:$0xf]
  %v55 = vld [vmem:[%s0 + $0xac] sm:$0xf]
  %v56 = vld [vmem:[%s0 + $0xb0] sm:$0xf]
  %v57 = vld [vmem:[%s0 + $0xb4] sm:$0xf]
  %v58 = vld [vmem:[%s0 + $0xb8] sm:$0xf]
  %v59 = vld [vmem:[%s0 + $0xbc] sm:$0xf]
  %v60 = vld [vmem:[%s0 + $0xc0] sm:$0xf]
  %v61 = vld [vmem:[%s0 + $0xc4] sm:$0xf]
  %v62 = vld [vmem:[%s0 + $0xc8] sm:$0xf]
  %v63 = vld [vmem:[%s0 + $0xcc] sm:$0xf]
  %v64 = vld [vmem:[%s0 + $0xd0] sm:$0xf]
  %v65 = vld [vmem:[%s0 + $0xd4] sm:$0xf]
  %v66 = vld [vmem:[%s0 + $0xd8] sm:$0xf]
  %v67 = vld [vmem:[%s0 + $0xdc] sm:$0xf]
  %v68 = vld [vmem:[%s0 + $0xe0] sm:$0xf]
  %v69 = vld [vmem:[%s0 + $0xe4] sm:$0xf]
  %v70 = vld [vmem:[%s0 + $0xe8] sm:$0xf]
  %v71 = vld [vmem:[%s0 + $0xec] sm:$0xf]
  %v72 = vld [vmem:[%s0 + $0xf0] sm:$0xf]
  %v73 = vld [vmem:[%s0 + $0xf4] sm:$0xf]
  %v74 = vld [vmem:[%s0 + $0xf8] sm:$0xf]
  %v75 = vld [vmem:[%s0 + $0xfc] sm:$0xf]
  %v76 = vld [vmem:[%s1] sm:$0xf]
  %v77 = vld [vmem:[%s1 + $0x4] sm:$0xf]
  %v78 = vld [vmem:[%s1 + $0x8] sm:$0xf]
  %v79 = vld [vmem:[%s1 + $0xc] sm:$0xf]
  %v80 = vld [vmem:[%s1 + $0x10] sm:$0xf]
  %v81 = vld [vmem:[%s1 + $0x14] sm:$0xf]
  %v146 = vunpack.c.l.b16 %v12
  %v147 = vunpack.c.l.b16 %v13
  %v148 = vunpack.c.l.b16 %v14
  %v149 = vunpack.c.l.b16 %v15
  %v150 = vunpack.c.l.b16 %v16
  %v151 = vunpack.c.l.b16 %v17
  %v152 = vunpack.c.l.b16 %v18
  %v153 = vunpack.c.l.b16 %v19
  %v154 = vunpack.c.l.b16 %v20
  %v155 = vunpack.c.l.b16 %v21
  %v156 = vunpack.c.l.b16 %v22
  %v157 = vunpack.c.l.b16 %v23
  %v158 = vunpack.c.l.b16 %v24
  %v159 = vunpack.c.l.b16 %v25
  %v160 = vunpack.c.l.b16 %v26
  %v161 = vunpack.c.l.b16 %v27
  %v162 = vunpack.c.l.b16 %v28
  %v163 = vunpack.c.l.b16 %v29
  %v164 = vunpack.c.l.b16 %v30
  %v165 = vunpack.c.l.b16 %v31
  %v166 = vunpack.c.l.b16 %v32
  %v167 = vunpack.c.l.b16 %v33
  %v168 = vunpack.c.l.b16 %v34
  %v169 = vunpack.c.l.b16 %v35
  %v170 = vunpack.c.l.b16 %v36
  %v171 = vunpack.c.l.b16 %v37
  %v172 = vunpack.c.l.b16 %v38
  %v173 = vunpack.c.l.b16 %v39
  %v174 = vunpack.c.l.b16 %v40
  %v175 = vunpack.c.l.b16 %v41
  %v176 = vunpack.c.l.b16 %v42
  %v177 = vunpack.c.l.b16 %v43
  %v178 = vunpack.c.l.b16 %v44
  %v179 = vunpack.c.l.b16 %v45
  %v180 = vunpack.c.l.b16 %v46
  %v181 = vunpack.c.l.b16 %v47
  %v182 = vunpack.c.l.b16 %v48
  %v183 = vunpack.c.l.b16 %v49
  %v184 = vunpack.c.l.b16 %v50
  %v185 = vunpack.c.l.b16 %v51
  %v186 = vunpack.c.l.b16 %v52
  %v187 = vunpack.c.l.b16 %v53
  %v188 = vunpack.c.l.b16 %v54
  %v189 = vunpack.c.l.b16 %v55
  %v190 = vunpack.c.l.b16 %v56
  %v191 = vunpack.c.l.b16 %v57
  %v192 = vunpack.c.l.b16 %v58
  %v193 = vunpack.c.l.b16 %v59
  %v194 = vunpack.c.l.b16 %v60
  %v195 = vunpack.c.l.b16 %v61
  %v196 = vunpack.c.l.b16 %v62
  %v197 = vunpack.c.l.b16 %v63
  %v198 = vunpack.c.l.b16 %v64
  %v199 = vunpack.c.l.b16 %v65
  %v200 = vunpack.c.l.b16 %v66
  %v201 = vunpack.c.l.b16 %v67
  %v202 = vunpack.c.l.b16 %v68
  %v203 = vunpack.c.l.b16 %v69
  %v204 = vunpack.c.l.b16 %v70
  %v205 = vunpack.c.l.b16 %v71
  %v206 = vunpack.c.l.b16 %v72
  %v207 = vunpack.c.l.b16 %v73
  %v208 = vunpack.c.l.b16 %v74
  %v209 = vunpack.c.l.b16 %v75
  %v210 = vpack.c.b16 %v147, %v146
  %v211 = vpack.c.b16 %v149, %v148
  %v212 = vpack.c.b16 %v151, %v150
  %v213 = vpack.c.b16 %v153, %v152
  %v214 = vpack.c.b16 %v155, %v154
  %v215 = vpack.c.b16 %v157, %v156
  %v216 = vpack.c.b16 %v159, %v158
  %v217 = vpack.c.b16 %v161, %v160
  %v218 = vpack.c.b16 %v163, %v162
  %v219 = vpack.c.b16 %v165, %v164
  %v220 = vpack.c.b16 %v167, %v166
  %v221 = vpack.c.b16 %v169, %v168
  %v222 = vpack.c.b16 %v171, %v170
  %v223 = vpack.c.b16 %v173, %v172
  %v224 = vpack.c.b16 %v175, %v174
  %v225 = vpack.c.b16 %v177, %v176
  %v226 = vpack.c.b16 %v179, %v178
  %v227 = vpack.c.b16 %v181, %v180
  %v228 = vpack.c.b16 %v183, %v182
  %v229 = vpack.c.b16 %v185, %v184
  %v230 = vpack.c.b16 %v187, %v186
  %v231 = vpack.c.b16 %v189, %v188
  %v232 = vpack.c.b16 %v191, %v190
  %v233 = vpack.c.b16 %v193, %v192
  %v234 = vpack.c.b16 %v195, %v194
  %v235 = vpack.c.b16 %v197, %v196
  %v236 = vpack.c.b16 %v199, %v198
  %v237 = vpack.c.b16 %v201, %v200
  %v238 = vpack.c.b16 %v203, %v202
  %v239 = vpack.c.b16 %v205, %v204
  %v240 = vpack.c.b16 %v207, %v206
  %v241 = vpack.c.b16 %v209, %v208
  %v248 = vunpack.c.l.b16 %v76
  %v249 = vunpack.c.l.b16 %v77
  %v250 = vunpack.c.l.b16 %v78
  %v251 = vunpack.c.l.b16 %v79
  %v252 = vunpack.c.l.b16 %v80
  %v253 = vunpack.c.l.b16 %v81
  %v254 = vpack.c.b16 %v249, %v248
  %v255 = vpack.c.b16 %v251, %v250
  %v256 = vpack.c.b16 %v253, %v252
  %vm260 = vcmask 392192
  %v262 = vsel %vm260, %v210, 0
  %v265 = vsel %vm260, %v211, 0
  %v268 = vsel %vm260, %v212, 0
  %v271 = vsel %vm260, %v213, 0
  %v274 = vsel %vm260, %v214, 0
  %v277 = vsel %vm260, %v215, 0
  %v280 = vsel %vm260, %v216, 0
  %v283 = vsel %vm260, %v217, 0
  %v286 = vsel %vm260, %v218, 0
  %v289 = vsel %vm260, %v219, 0
  %v292 = vsel %vm260, %v220, 0
  %v295 = vsel %vm260, %v221, 0
  %v298 = vsel %vm260, %v222, 0
  %v301 = vsel %vm260, %v223, 0
  %v304 = vsel %vm260, %v224, 0
  %v307 = vsel %vm260, %v225, 0
  %v310 = vsel %vm260, %v226, 0
  %v313 = vsel %vm260, %v227, 0
  %v316 = vsel %vm260, %v228, 0
  %v319 = vsel %vm260, %v229, 0
  %v322 = vsel %vm260, %v230, 0
  %v325 = vsel %vm260, %v231, 0
  %v328 = vsel %vm260, %v232, 0
  %v331 = vsel %vm260, %v233, 0
  %v334 = vsel %vm260, %v234, 0
  %v337 = vsel %vm260, %v235, 0
  %v340 = vsel %vm260, %v236, 0
  %v343 = vsel %vm260, %v237, 0
  %v346 = vsel %vm260, %v238, 0
  %v349 = vsel %vm260, %v239, 0
  %v352 = vsel %vm260, %v240, 0
  %v355 = vsel %vm260, %v241, 0
  %357 = vmatprep.subr.bf16.mxu0 0
  %358 = vmatpush1.bf16.msra.mxu0 %v254
  %359 = vmatprep.subr.bf16.mxu0 0
  %360 = vmatpush1.bf16.msra.mxu0 %v255
  %361 = vmatprep.subr.bf16.mxu0 0
  %362 = vmatpush1.bf16.msra.mxu0 %v256
  %363 = vmatprep.subr.bf16.mxu0 0
  %364 = vmatpush1.bf16.msra.mxu0 0
  %365 = vmatprep.subr.bf16.mxu0 0
  %366 = vmatpush1.bf16.msra.mxu0 0
  %367 = vmatprep.subr.bf16.mxu0 0
  %368 = vmatpush1.bf16.msra.mxu0 0
  %369 = vmatprep.subr.bf16.mxu0 0
  %370 = vmatpush1.bf16.msra.mxu0 0
  %371 = vmatprep.subr.bf16.mxu0 0
  %372 = vmatpush1.bf16.msra.mxu0 0
  %373 = vmatprep.subr.bf16.mxu0 0
  %374 = vmatpush1.bf16.msra.mxu0 0
  %375 = vmatprep.subr.bf16.mxu0 0
  %376 = vmatpush1.bf16.msra.mxu0 0
  %377 = vmatprep.subr.bf16.mxu0 0
  %378 = vmatpush1.bf16.msra.mxu0 0
  %379 = vmatprep.subr.bf16.mxu0 0
  %380 = vmatpush1.bf16.msra.mxu0 0
  %381 = vmatprep.subr.bf16.mxu0 0
  %382 = vmatpush1.bf16.msra.mxu0 0
  %383 = vmatprep.subr.bf16.mxu0 0
  %384 = vmatpush1.bf16.msra.mxu0 0
  %385 = vmatprep.subr.bf16.mxu0 0
  %386 = vmatpush1.bf16.msra.mxu0 0
  %387 = vmatprep.subr.bf16.mxu0 0
  %388 = vmatpush1.bf16.msra.mxu0 0
  %389 = vmatprep.mubr.bf16.mxu0 0
  %390 = vmatmul.mubr.bf16.gmra.mrb[0].mxu0 %v262
  %v391 = vpop.f32.mrb[0].mxu0
  %v392 = vadd.f32 0.0, %v391
  %v393 = vpop.f32.mrb[0].mxu0
  %v394 = vpop.f32.mrb[0].mxu0
  %v395 = vadd.f32 0.0, %v394
  %v396 = vpop.f32.mrb[0].mxu0
  %397 = vmatprep.mubr.bf16.mxu0 0
  %398 = vmatmul.mubr.bf16.gmra.mrb[0].mxu0 %v265
  %v399 = vpop.f32.mrb[0].mxu0
  %v400 = vadd.f32 0.0, %v399
  %v401 = vpop.f32.mrb[0].mxu0
  %v402 = vpop.f32.mrb[0].mxu0
  %v403 = vadd.f32 0.0, %v402
  %v404 = vpop.f32.mrb[0].mxu0
  %405 = vmatprep.mubr.bf16.mxu0 0
  %406 = vmatmul.mubr.bf16.gmra.mrb[0].mxu0 %v268
  %v407 = vpop.f32.mrb[0].mxu0
  %v408 = vadd.f32 0.0, %v407
  %v409 = vpop.f32.mrb[0].mxu0
  %v410 = vpop.f32.mrb[0].mxu0
  %v411 = vadd.f32 0.0, %v410
  %v412 = vpop.f32.mrb[0].mxu0
  %413 = vmatprep.mubr.bf16.mxu0 0
  %414 = vmatmul.mubr.bf16.gmra.mrb[0].mxu0 %v271
  %v415 = vpop.f32.mrb[0].mxu0
  %v416 = vadd.f32 0.0, %v415
  %v417 = vpop.f32.mrb[0].mxu0
  %v418 = vpop.f32.mrb[0].mxu0
  %v419 = vadd.f32 0.0, %v418
  %v420 = vpop.f32.mrb[0].mxu0
  %421 = vmatprep.mubr.bf16.mxu0 0
  %422 = vmatmul.mubr.bf16.gmra.mrb[0].mxu0 %v274
  %v423 = vpop.f32.mrb[0].mxu0
  %v424 = vadd.f32 0.0, %v423
  %v425 = vpop.f32.mrb[0].mxu0
  %v426 = vpop.f32.mrb[0].mxu0
  %v427 = vadd.f32 0.0, %v426
  %v428 = vpop.f32.mrb[0].mxu0
  %429 = vmatprep.mubr.bf16.mxu0 0
  %430 = vmatmul.mubr.bf16.gmra.mrb[0].mxu0 %v277
  %v431 = vpop.f32.mrb[0].mxu0
  %v432 = vadd.f32 0.0, %v431
  %v433 = vpop.f32.mrb[0].mxu0
  %v434 = vpop.f32.mrb[0].mxu0
  %v435 = vadd.f32 0.0, %v434
  %v436 = vpop.f32.mrb[0].mxu0
  %437 = vmatprep.mubr.bf16.mxu0 0
  %438 = vmatmul.mubr.bf16.gmra.mrb[0].mxu0 %v280
  %v439 = vpop.f32.mrb[0].mxu0
  %v440 = vadd.f32 0.0, %v439
  %v441 = vpop.f32.mrb[0].mxu0
  %v442 = vpop.f32.mrb[0].mxu0
  %v443 = vadd.f32 0.0, %v442
  %v444 = vpop.f32.mrb[0].mxu0
  %445 = vmatprep.mubr.bf16.mxu0 0
  %446 = vmatmul.mubr.bf16.gmra.mrb[0].mxu0 %v283
  %v447 = vpop.f32.mrb[0].mxu0
  %v448 = vadd.f32 0.0, %v447
  %v449 = vpop.f32.mrb[0].mxu0
  %v450 = vpop.f32.mrb[0].mxu0
  %v451 = vadd.f32 0.0, %v450
  %v452 = vpop.f32.mrb[0].mxu0
  %453 = vmatprep.mubr.bf16.mxu0 0
  %454 = vmatmul.mubr.bf16.gmra.mrb[0].mxu0 %v286
  %v455 = vpop.f32.mrb[0].mxu0
  %v456 = vadd.f32 0.0, %v455
  %v457 = vpop.f32.mrb[0].mxu0
  %v458 = vpop.f32.mrb[0].mxu0
  %v459 = vadd.f32 0.0, %v458
  %v460 = vpop.f32.mrb[0].mxu0
  %461 = vmatprep.mubr.bf16.mxu0 0
  %462 = vmatmul.mubr.bf16.gmra.mrb[0].mxu0 %v289
  %v463 = vpop.f32.mrb[0].mxu0
  %v464 = vadd.f32 0.0, %v463
  %v465 = vpop.f32.mrb[0].mxu0
  %v466 = vpop.f32.mrb[0].mxu0
  %v467 = vadd.f32 0.0, %v466
  %v468 = vpop.f32.mrb[0].mxu0
  %469 = vmatprep.mubr.bf16.mxu0 0
  %470 = vmatmul.mubr.bf16.gmra.mrb[0].mxu0 %v292
  %v471 = vpop.f32.mrb[0].mxu0
  %v472 = vadd.f32 0.0, %v471
  %v473 = vpop.f32.mrb[0].mxu0
  %v474 = vpop.f32.mrb[0].mxu0
  %v475 = vadd.f32 0.0, %v474
  %v476 = vpop.f32.mrb[0].mxu0
  %477 = vmatprep.mubr.bf16.mxu0 0
  %478 = vmatmul.mubr.bf16.gmra.mrb[0].mxu0 %v295
  %v479 = vpop.f32.mrb[0].mxu0
  %v480 = vadd.f32 0.0, %v479
  %v481 = vpop.f32.mrb[0].mxu0
  %v482 = vpop.f32.mrb[0].mxu0
  %v483 = vadd.f32 0.0, %v482
  %v484 = vpop.f32.mrb[0].mxu0
  %485 = vmatprep.mubr.bf16.mxu0 0
  %486 = vmatmul.mubr.bf16.gmra.mrb[0].mxu0 %v298
  %v487 = vpop.f32.mrb[0].mxu0
  %v488 = vadd.f32 0.0, %v487
  %v489 = vpop.f32.mrb[0].mxu0
  %v490 = vpop.f32.mrb[0].mxu0
  %v491 = vadd.f32 0.0, %v490
  %v492 = vpop.f32.mrb[0].mxu0
  %493 = vmatprep.mubr.bf16.mxu0 0
  %494 = vmatmul.mubr.bf16.gmra.mrb[0].mxu0 %v301
  %v495 = vpop.f32.mrb[0].mxu0
  %v496 = vadd.f32 0.0, %v495
  %v497 = vpop.f32.mrb[0].mxu0
  %v498 = vpop.f32.mrb[0].mxu0
  %v499 = vadd.f32 0.0, %v498
  %v500 = vpop.f32.mrb[0].mxu0
  %501 = vmatprep.mubr.bf16.mxu0 0
  %502 = vmatmul.mubr.bf16.gmra.mrb[0].mxu0 %v304
  %v503 = vpop.f32.mrb[0].mxu0
  %v504 = vadd.f32 0.0, %v503
  %v505 = vpop.f32.mrb[0].mxu0
  %v506 = vpop.f32.mrb[0].mxu0
  %v507 = vadd.f32 0.0, %v506
  %v508 = vpop.f32.mrb[0].mxu0
  %509 = vmatprep.mubr.bf16.mxu0 0
  %510 = vmatmul.mubr.bf16.gmra.mrb[0].mxu0 %v307
  %v511 = vpop.f32.mrb[0].mxu0
  %v512 = vadd.f32 0.0, %v511
  %v513 = vpop.f32.mrb[0].mxu0
  %v514 = vpop.f32.mrb[0].mxu0
  %v515 = vadd.f32 0.0, %v514
  %v516 = vpop.f32.mrb[0].mxu0
  %517 = vmatprep.mubr.bf16.mxu0 0
  %518 = vmatmul.mubr.bf16.gmra.mrb[0].mxu0 %v310
  %v519 = vpop.f32.mrb[0].mxu0
  %v520 = vadd.f32 0.0, %v519
  %v521 = vpop.f32.mrb[0].mxu0
  %v522 = vpop.f32.mrb[0].mxu0
  %v523 = vadd.f32 0.0, %v522
  %v524 = vpop.f32.mrb[0].mxu0
  %525 = vmatprep.mubr.bf16.mxu0 0
  %526 = vmatmul.mubr.bf16.gmra.mrb[0].mxu0 %v313
  %v527 = vpop.f32.mrb[0].mxu0
  %v528 = vadd.f32 0.0, %v527
  %v529 = vpop.f32.mrb[0].mxu0
  %v530 = vpop.f32.mrb[0].mxu0
  %v531 = vadd.f32 0.0, %v530
  %v532 = vpop.f32.mrb[0].mxu0
  %533 = vmatprep.mubr.bf16.mxu0 0
  %534 = vmatmul.mubr.bf16.gmra.mrb[0].mxu0 %v316
  %v535 = vpop.f32.mrb[0].mxu0
  %v536 = vadd.f32 0.0, %v535
  %v537 = vpop.f32.mrb[0].mxu0
  %v538 = vpop.f32.mrb[0].mxu0
  %v539 = vadd.f32 0.0, %v538
  %v540 = vpop.f32.mrb[0].mxu0
  %541 = vmatprep.mubr.bf16.mxu0 0
  %542 = vmatmul.mubr.bf16.gmra.mrb[0].mxu0 %v319
  %v543 = vpop.f32.mrb[0].mxu0
  %v544 = vadd.f32 0.0, %v543
  %v545 = vpop.f32.mrb[0].mxu0
  %v546 = vpop.f32.mrb[0].mxu0
  %v547 = vadd.f32 0.0, %v546
  %v548 = vpop.f32.mrb[0].mxu0
  %549 = vmatprep.mubr.bf16.mxu0 0
  %550 = vmatmul.mubr.bf16.gmra.mrb[0].mxu0 %v322
  %v551 = vpop.f32.mrb[0].mxu0
  %v552 = vadd.f32 0.0, %v551
  %v553 = vpop.f32.mrb[0].mxu0
  %v554 = vpop.f32.mrb[0].mxu0
  %v555 = vadd.f32 0.0, %v554
  %v556 = vpop.f32.mrb[0].mxu0
  %557 = vmatprep.mubr.bf16.mxu0 0
  %558 = vmatmul.mubr.bf16.gmra.mrb[0].mxu0 %v325
  %v559 = vpop.f32.mrb[0].mxu0
  %v560 = vadd.f32 0.0, %v559
  %v561 = vpop.f32.mrb[0].mxu0
  %v562 = vpop.f32.mrb[0].mxu0
  %v563 = vadd.f32 0.0, %v562
  %v564 = vpop.f32.mrb[0].mxu0
  %565 = vmatprep.mubr.bf16.mxu0 0
  %566 = vmatmul.mubr.bf16.gmra.mrb[0].mxu0 %v328
  %v567 = vpop.f32.mrb[0].mxu0
  %v568 = vadd.f32 0.0, %v567
  %v569 = vpop.f32.mrb[0].mxu0
  %v570 = vpop.f32.mrb[0].mxu0
  %v571 = vadd.f32 0.0, %v570
  %v572 = vpop.f32.mrb[0].mxu0
  %573 = vmatprep.mubr.bf16.mxu0 0
  %574 = vmatmul.mubr.bf16.gmra.mrb[0].mxu0 %v331
  %v575 = vpop.f32.mrb[0].mxu0
  %v576 = vadd.f32 0.0, %v575
  %v577 = vpop.f32.mrb[0].mxu0
  %v578 = vpop.f32.mrb[0].mxu0
  %v579 = vadd.f32 0.0, %v578
  %v580 = vpop.f32.mrb[0].mxu0
  %581 = vmatprep.mubr.bf16.mxu0 0
  %582 = vmatmul.mubr.bf16.gmra.mrb[0].mxu0 %v334
  %v583 = vpop.f32.mrb[0].mxu0
  %v584 = vadd.f32 0.0, %v583
  %v585 = vpop.f32.mrb[0].mxu0
  %v586 = vpop.f32.mrb[0].mxu0
  %v587 = vadd.f32 0.0, %v586
  %v588 = vpop.f32.mrb[0].mxu0
  %589 = vmatprep.mubr.bf16.mxu0 0
  %590 = vmatmul.mubr.bf16.gmra.mrb[0].mxu0 %v337
  %v591 = vpop.f32.mrb[0].mxu0
  %v592 = vadd.f32 0.0, %v591
  %v593 = vpop.f32.mrb[0].mxu0
  %v594 = vpop.f32.mrb[0].mxu0
  %v595 = vadd.f32 0.0, %v594
  %v596 = vpop.f32.mrb[0].mxu0
  %597 = vmatprep.mubr.bf16.mxu0 0
  %598 = vmatmul.mubr.bf16.gmra.mrb[0].mxu0 %v340
  %v599 = vpop.f32.mrb[0].mxu0
  %v600 = vadd.f32 0.0, %v599
  %v601 = vpop.f32.mrb[0].mxu0
  %v602 = vpop.f32.mrb[0].mxu0
  %v603 = vadd.f32 0.0, %v602
  %v604 = vpop.f32.mrb[0].mxu0
  %605 = vmatprep.mubr.bf16.mxu0 0
  %606 = vmatmul.mubr.bf16.gmra.mrb[0].mxu0 %v343
  %v607 = vpop.f32.mrb[0].mxu0
  %v608 = vadd.f32 0.0, %v607
  %v609 = vpop.f32.mrb[0].mxu0
  %v610 = vpop.f32.mrb[0].mxu0
  %v611 = vadd.f32 0.0, %v610
  %v612 = vpop.f32.mrb[0].mxu0
  %613 = vmatprep.mubr.bf16.mxu0 0
  %614 = vmatmul.mubr.bf16.gmra.mrb[0].mxu0 %v346
  %v615 = vpop.f32.mrb[0].mxu0
  %v616 = vadd.f32 0.0, %v615
  %v617 = vpop.f32.mrb[0].mxu0
  %v618 = vpop.f32.mrb[0].mxu0
  %v619 = vadd.f32 0.0, %v618
  %v620 = vpop.f32.mrb[0].mxu0
  %621 = vmatprep.mubr.bf16.mxu0 0
  %622 = vmatmul.mubr.bf16.gmra.mrb[0].mxu0 %v349
  %v623 = vpop.f32.mrb[0].mxu0
  %v624 = vadd.f32 0.0, %v623
  %v625 = vpop.f32.mrb[0].mxu0
  %v626 = vpop.f32.mrb[0].mxu0
  %v627 = vadd.f32 0.0, %v626
  %v628 = vpop.f32.mrb[0].mxu0
  %629 = vmatprep.mubr.bf16.mxu0 0
  %630 = vmatmul.mubr.bf16.gmra.mrb[0].mxu0 %v352
  %v631 = vpop.f32.mrb[0].mxu0
  %v632 = vadd.f32 0.0, %v631
  %v633 = vpop.f32.mrb[0].mxu0
  %v634 = vpop.f32.mrb[0].mxu0
  %v635 = vadd.f32 0.0, %v634
  %v636 = vpop.f32.mrb[0].mxu0
  %637 = vmatprep.mubr.bf16.mxu0 0
  %638 = vmatmul.mubr.bf16.gmra.mrb[0].mxu0 %v355
  %v639 = vpop.f32.mrb[0].mxu0
  %v640 = vadd.f32 0.0, %v639
  %v641 = vpop.f32.mrb[0].mxu0
  %v642 = vpop.f32.mrb[0].mxu0
  %v643 = vadd.f32 0.0, %v642
  %v644 = vpop.f32.mrb[0].mxu0
  %645 = vdwg.mxu0
  %v646 = vmax.f32 %v392, 0.0
  %v647 = vmax.f32 %v395, 0.0
  %v648 = vmax.f32 %v400, 0.0
  %v649 = vmax.f32 %v403, 0.0
  %v650 = vmax.f32 %v408, 0.0
  %v651 = vmax.f32 %v411, 0.0
  %v652 = vmax.f32 %v416, 0.0
  %v653 = vmax.f32 %v419, 0.0
  %v654 = vmax.f32 %v424, 0.0
  %v655 = vmax.f32 %v427, 0.0
  %v656 = vmax.f32 %v432, 0.0
  %v657 = vmax.f32 %v435, 0.0
  %v658 = vmax.f32 %v440, 0.0
  %v659 = vmax.f32 %v443, 0.0
  %v660 = vmax.f32 %v448, 0.0
  %v661 = vmax.f32 %v451, 0.0
  %v662 = vmax.f32 %v456, 0.0
  %v663 = vmax.f32 %v459, 0.0
  %v664 = vmax.f32 %v464, 0.0
  %v665 = vmax.f32 %v467, 0.0
  %v666 = vmax.f32 %v472, 0.0
  %v667 = vmax.f32 %v475, 0.0
  %v668 = vmax.f32 %v480, 0.0
  %v669 = vmax.f32 %v483, 0.0
  %v670 = vmax.f32 %v488, 0.0
  %v671 = vmax.f32 %v491, 0.0
  %v672 = vmax.f32 %v496, 0.0
  %v673 = vmax.f32 %v499, 0.0
  %v674 = vmax.f32 %v504, 0.0
  %v675 = vmax.f32 %v507, 0.0
  %v676 = vmax.f32 %v512, 0.0
  %v677 = vmax.f32 %v515, 0.0
  %v678 = vmax.f32 %v520, 0.0
  %v679 = vmax.f32 %v523, 0.0
  %v680 = vmax.f32 %v528, 0.0
  %v681 = vmax.f32 %v531, 0.0
  %v682 = vmax.f32 %v536, 0.0
  %v683 = vmax.f32 %v539, 0.0
  %v684 = vmax.f32 %v544, 0.0
  %v685 = vmax.f32 %v547, 0.0
  %v686 = vmax.f32 %v552, 0.0
  %v687 = vmax.f32 %v555, 0.0
  %v688 = vmax.f32 %v560, 0.0
  %v689 = vmax.f32 %v563, 0.0
  %v690 = vmax.f32 %v568, 0.0
  %v691 = vmax.f32 %v571, 0.0
  %v692 = vmax.f32 %v576, 0.0
  %v693 = vmax.f32 %v579, 0.0
  %v694 = vmax.f32 %v584, 0.0
  %v695 = vmax.f32 %v587, 0.0
  %v696 = vmax.f32 %v592, 0.0
  %v697 = vmax.f32 %v595, 0.0
  %v698 = vmax.f32 %v600, 0.0
  %v699 = vmax.f32 %v603, 0.0
  %v700 = vmax.f32 %v608, 0.0
  %v701 = vmax.f32 %v611, 0.0
  %v702 = vmax.f32 %v616, 0.0
  %v703 = vmax.f32 %v619, 0.0
  %v704 = vmax.f32 %v624, 0.0
  %v705 = vmax.f32 %v627, 0.0
  %v706 = vmax.f32 %v632, 0.0
  %v707 = vmax.f32 %v635, 0.0
  %v708 = vmax.f32 %v640, 0.0
  %v709 = vmax.f32 %v643, 0.0
  %710 = vst [vmem:[%s2] sm:$0xff] %v646
  %711 = vst [vmem:[%s2 + $0x8] sm:$0xff] %v647
  %712 = vst [vmem:[%s2 + $0x10] sm:$0xff] %v648
  %713 = vst [vmem:[%s2 + $0x18] sm:$0xff] %v649
  %714 = vst [vmem:[%s2 + $0x20] sm:$0xff] %v650
  %715 = vst [vmem:[%s2 + $0x28] sm:$0xff] %v651
  %716 = vst [vmem:[%s2 + $0x30] sm:$0xff] %v652
  %717 = vst [vmem:[%s2 + $0x38] sm:$0xff] %v653
  %718 = vst [vmem:[%s2 + $0x40] sm:$0xff] %v654
  %719 = vst [vmem:[%s2 + $0x48] sm:$0xff] %v655
  %720 = vst [vmem:[%s2 + $0x50] sm:$0xff] %v656
  %721 = vst [vmem:[%s2 + $0x58] sm:$0xff] %v657
  %722 = vst [vmem:[%s2 + $0x60] sm:$0xff] %v658
  %723 = vst [vmem:[%s2 + $0x68] sm:$0xff] %v659
  %724 = vst [vmem:[%s2 + $0x70] sm:$0xff] %v660
  %725 = vst [vmem:[%s2 + $0x78] sm:$0xff] %v661
  %726 = vst [vmem:[%s2 + $0x80] sm:$0xff] %v662
  %727 = vst [vmem:[%s2 + $0x88] sm:$0xff] %v663
  %728 = vst [vmem:[%s2 + $0x90] sm:$0xff] %v664
  %729 = vst [vmem:[%s2 + $0x98] sm:$0xff] %v665
  %730 = vst [vmem:[%s2 + $0xa0] sm:$0xff] %v666
  %731 = vst [vmem:[%s2 + $0xa8] sm:$0xff] %v667
  %732 = vst [vmem:[%s2 + $0xb0] sm:$0xff] %v668
  %733 = vst [vmem:[%s2 + $0xb8] sm:$0xff] %v669
  %734 = vst [vmem:[%s2 + $0xc0] sm:$0xff] %v670
  %735 = vst [vmem:[%s2 + $0xc8] sm:$0xff] %v671
  %736 = vst [vmem:[%s2 + $0xd0] sm:$0xff] %v672
  %737 = vst [vmem:[%s2 + $0xd8] sm:$0xff] %v673
  %738 = vst [vmem:[%s2 + $0xe0] sm:$0xff] %v674
  %739 = vst [vmem:[%s2 + $0xe8] sm:$0xff] %v675
  %740 = vst [vmem:[%s2 + $0xf0] sm:$0xff] %v676
  %741 = vst [vmem:[%s2 + $0xf8] sm:$0xff] %v677
  %742 = vst [vmem:[%s2 + $0x100] sm:$0xff] %v678
  %743 = vst [vmem:[%s2 + $0x108] sm:$0xff] %v679
  %744 = vst [vmem:[%s2 + $0x110] sm:$0xff] %v680
  %745 = vst [vmem:[%s2 + $0x118] sm:$0xff] %v681
  %746 = vst [vmem:[%s2 + $0x120] sm:$0xff] %v682
  %747 = vst [vmem:[%s2 + $0x128] sm:$0xff] %v683
  %748 = vst [vmem:[%s2 + $0x130] sm:$0xff] %v684
  %749 = vst [vmem:[%s2 + $0x138] sm:$0xff] %v685
  %750 = vst [vmem:[%s2 + $0x140] sm:$0xff] %v686
  %751 = vst [vmem:[%s2 + $0x148] sm:$0xff] %v687
  %752 = vst [vmem:[%s2 + $0x150] sm:$0xff] %v688
  %753 = vst [vmem:[%s2 + $0x158] sm:$0xff] %v689
  %754 = vst [vmem:[%s2 + $0x160] sm:$0xff] %v690
  %755 = vst [vmem:[%s2 + $0x168] sm:$0xff] %v691
  %756 = vst [vmem:[%s2 + $0x170] sm:$0xff] %v692
  %757 = vst [vmem:[%s2 + $0x178] sm:$0xff] %v693
  %758 = vst [vmem:[%s2 + $0x180] sm:$0xff] %v694
  %759 = vst [vmem:[%s2 + $0x188] sm:$0xff] %v695
  %760 = vst [vmem:[%s2 + $0x190] sm:$0xff] %v696
  %761 = vst [vmem:[%s2 + $0x198] sm:$0xff] %v697
  %762 = vst [vmem:[%s2 + $0x1a0] sm:$0xff] %v698
  %763 = vst [vmem:[%s2 + $0x1a8] sm:$0xff] %v699
  %764 = vst [vmem:[%s2 + $0x1b0] sm:$0xff] %v700
  %765 = vst [vmem:[%s2 + $0x1b8] sm:$0xff] %v701
  %766 = vst [vmem:[%s2 + $0x1c0] sm:$0xff] %v702
  %767 = vst [vmem:[%s2 + $0x1c8] sm:$0xff] %v703
  %768 = vst [vmem:[%s2 + $0x1d0] sm:$0xff] %v704
  %769 = vst [vmem:[%s2 + $0x1d8] sm:$0xff] %v705
  %770 = vst [vmem:[%s2 + $0x1e0] sm:$0xff] %v706
  %771 = vst [vmem:[%s2 + $0x1e8] sm:$0xff] %v707
  %772 = vst [vmem:[%s2 + $0x1f0] sm:$0xff] %v708
  %773 = vst [vmem:[%s2 + $0x1f8] sm:$0xff] %v709
  // Predicated region
  $region10: #{generator_forward.8} parent=0 // pred_check
    _
  $region11: #{generator_forward.8} parent=0 // pred_check_branch
    %775 = sbr.rel (0) target = $region13
  $region12: #{generator_forward.8} parent=0 // pred_region
    _
  $region13: #{generator_forward.8} parent=0 // pred_fallthru
    _
  // Predicated region
  $region14: #{generator_forward.8} parent=0 // pred_check
    _
  $region15: #{generator_forward.8} parent=0 // pred_check_branch
    %777 = sbr.rel (0) target = $region17
  $region16: #{generator_forward.8} parent=0 // pred_region
    _
  $region17: #{generator_forward.8} parent=0 // pred_fallthru
    _

// kernel: generator_forward.9
$region0: #{generator_forward.9}
  #allocation0 [shape = 'u32[]', space=smem, size = 0x4, offset = 0x4, fixed_abs, tag = 'smem constant byte address 0x4 - core index']
  #allocation1 [shape = 'u32[144,128]{1,0:T(1,128)}', space=vmem, size = 0x12000, scoped, tag = 'internal scratch']
  #allocation2 [shape = 'f32[1,128,128]{2,1,0:T(8,128)}', space=vmem, size = 0x10000, scoped, tag = 'scratch operand']
  #allocation3 [shape = 'f32[1,128]{1,0:T(1,128)}', space=vmem, size = 0x200, scoped, tag = 'scratch operand']
  #allocation4 [shape = 'f32[1,128]{1,0:T(1,128)}', space=vmem, size = 0x200, scoped, tag = 'scratch operand']
  %s0 = inlined_call_operand.vmem [shape: bf16[1,128,256], index: 0, kind: input, shape index: {}]
  %s1 = inlined_call_operand.vmem [shape: bf16[1,256,128], index: 1, kind: input, shape index: {}]
  %s2 = inlined_call_operand.vmem [shape: f32[1,128,128], index: 2, kind: output, shape index: {}]
  %s3 = sld [smem:[#allocation0]]
  $region53: #{generator_forward.9} parent=0
    _
  %s5 = ssub.s32 1, %s3
  %s6 = scalar_select 0, %s5, %s3
  loop: start=0, step=1, limit=4
  $region2: #{generator_forward.9} parent=0 // loop_pre_header
    _
  $region3: #{generator_forward.9} parent=0 // loop_header
    %s8 = sphi 0, %s12
    %p9 = scmp.ge.s32.totalorder %s8, 4
    %s15 = sphi 0, %s34
    %s16 = sphi 0, %s30
    %s17 = sphi 0, %s26
    %s18 = sphi 0, %s15
    %s19 = sphi 0, %s16
    %s20 = sphi 0, %s17
    %s21 = sphi 0, %s18
    %s22 = sphi 0, %s19
    %s23 = sphi 0, %s20
    %s43 = sphi 0, %s45
    %s46 = sphi 0, %s43
    %s47 = sphi 0, %s46
    %s63 = sphi 0, %s47
    %s69 = sphi 0, %s71
    %s72 = sphi 0, %s69
    %s73 = sphi 0, %s72
    %s89 = sphi 0, %s73
    %s99 = sphi 0, %s101
    %s102 = sphi 0, %s99
    %s103 = sphi 0, %s102
    %s119 = sphi 0, %s103
  $region4: #{generator_forward.9} parent=0 // loop_header_branch
    %11 = sbr.rel (%p9) target = $region8
  $region5: #{generator_forward.9} parent=0 // loop_body
    %s13 = ssub.s32 %s8, 1
    %s14 = ssub.s32 %s8, 2
    %s24 = sadd.s32 1, %s17
    %p25 = scmp.ge.s32.totalorder %s24, 1
    %s26 = scalar_select %p25, 0, %s24
    %s27 = sadd.s32 1, %s16
    %s28 = scalar_select %p25, %s27, %s16
    %p29 = scmp.ge.s32.totalorder %s28, 1
    %s30 = scalar_select %p29, 0, %s28
    %s31 = sadd.s32 1, %s15
    %s32 = scalar_select %p29, %s31, %s15
    %p33 = scmp.ge.s32.totalorder %s32, 2
    %s34 = scalar_select %p33, 0, %s32
    %s35 = ssub.s32 1, %s15
    %s36 = smul.u32 %s17, %s35
    %s37 = ssub.s32 1, %s34
    %s38 = smul.u32 %s26, %s37
    %s39 = ssub.s32 %s16, %s30
    %s40 = ssub.s32 %s36, %s38
    %s41 = sor.u32 %s39, %s40
    %p42 = scmp.eq.s32.totalorder %s41, 0
    %s44 = sadd.s32 %s43, 1
    %s45 = scalar_select %p42, %s43, %s44
    %p48 = pneg %p42
    %p49 = scmp.eq.s32.totalorder %s8, 1
    %p50 = por %p48, %p49
    %p51 = scmp.ne.s32.totalorder %s43, %s46
    %p52 = scmp.eq.s32.totalorder %s8, 0
    %p53 = por %p51, %p52
    %p54 = scmp.ne.s32.totalorder %s43, %s46
    %p55 = scmp.eq.s32.totalorder %s13, 1
    %p56 = por %p54, %p55
    %p57 = scmp.ne.s32.totalorder %s46, %s47
    %p58 = scmp.eq.s32.totalorder %s13, 0
    %p59 = por %p57, %p58
    %p60 = scmp.ne.s32.totalorder %s46, %s47
    %p61 = scmp.eq.s32.totalorder %s14, 1
    %p62 = por %p60, %p61
    %p64 = scmp.ne.s32.totalorder %s47, %s63
    %p65 = scmp.eq.s32.totalorder %s14, 0
    %p66 = por %p64, %p65
    %s67 = ssub.s32 %s16, %s30
    %p68 = scmp.eq.s32.totalorder %s67, 0
    %s70 = sadd.s32 %s69, 1
    %s71 = scalar_select %p68, %s69, %s70
    %p74 = pneg %p68
    %p75 = scmp.eq.s32.totalorder %s8, 1
    %p76 = por %p74, %p75
    %p77 = scmp.ne.s32.totalorder %s69, %s72
    %p78 = scmp.eq.s32.totalorder %s8, 0
    %p79 = por %p77, %p78
    %p80 = scmp.ne.s32.totalorder %s69, %s72
    %p81 = scmp.eq.s32.totalorder %s13, 1
    %p82 = por %p80, %p81
    %p83 = scmp.ne.s32.totalorder %s72, %s73
    %p84 = scmp.eq.s32.totalorder %s13, 0
    %p85 = por %p83, %p84
    %p86 = scmp.ne.s32.totalorder %s72, %s73
    %p87 = scmp.eq.s32.totalorder %s14, 1
    %p88 = por %p86, %p87
    %p90 = scmp.ne.s32.totalorder %s73, %s89
    %p91 = scmp.eq.s32.totalorder %s14, 0
    %p92 = por %p90, %p91
    %s93 = smul.u32 %s17, %s15
    %s94 = smul.u32 %s26, %s34
    %s95 = ssub.s32 %s16, %s30
    %s96 = ssub.s32 %s93, %s94
    %s97 = sor.u32 %s95, %s96
    %p98 = scmp.eq.s32.totalorder %s97, 0
    %s100 = sadd.s32 %s99, 1
    %s101 = scalar_select %p98, %s99, %s100
    %p104 = pneg %p98
    %p105 = scmp.eq.s32.totalorder %s8, 1
    %p106 = por %p104, %p105
    %p107 = scmp.ne.s32.totalorder %s99, %s102
    %p108 = scmp.eq.s32.totalorder %s8, 0
    %p109 = por %p107, %p108
    %p110 = scmp.ne.s32.totalorder %s99, %s102
    %p111 = scmp.eq.s32.totalorder %s13, 1
    %p112 = por %p110, %p111
    %p113 = scmp.ne.s32.totalorder %s102, %s103
    %p114 = scmp.eq.s32.totalorder %s13, 0
    %p115 = por %p113, %p114
    %p116 = scmp.ne.s32.totalorder %s102, %s103
    %p117 = scmp.eq.s32.totalorder %s14, 1
    %p118 = por %p116, %p117
    %p120 = scmp.ne.s32.totalorder %s103, %s119
    %p121 = scmp.eq.s32.totalorder %s14, 0
    %p122 = por %p120, %p121
    %p123 = scmp.le.s32.totalorder 1, %s8
    %p124 = scmp.lt.s32.totalorder %s8, 3
    %p125 = pnand %p123, %p124
    %p126 = pneg %p125
    // Predicated region
    $region9: #{generator_forward.9} parent=5 // pred_check
      _
    $region10: #{generator_forward.9} parent=5 // pred_check_branch
      %128 = sbr.rel (%p125) target = $region12
    $region11: #{generator_forward.9} parent=5 // pred_region
      %s129 = ssub.s32 %s8, 1
      // Predicated region
      $region13: #{generator_forward.9} parent=11 // pred_check
        %p130 = pneg %p85
      $region14: #{generator_forward.9} parent=11 // pred_check_branch
        %132 = sbr.rel (%p130) target = $region16
      $region15: #{generator_forward.9} parent=11 // pred_region
        %p133 = scmp.lt.s32.totalorder %s19, 0
        %s134 = scalar_select %p133, %s19, 0
        %s135 = smul.addr %s134, 32
        %s136 = smul.addr %s135, 4
        %s137 = scalar_lea.vmem %s1, %s136
      $region16: #{generator_forward.9} parent=11 // pred_fallthru
        _
    $region12: #{generator_forward.9} parent=5 // pred_fallthru
      _
    %p138 = scmp.lt.s32.totalorder %s8, 2
    // Predicated region
    $region17: #{generator_forward.9} parent=5 // pred_check
      %p139 = pneg %p138
    $region18: #{generator_forward.9} parent=5 // pred_check_branch
      %141 = sbr.rel (%p139) target = $region20
    $region19: #{generator_forward.9} parent=5 // pred_region
      // Predicated region
      $region21: #{generator_forward.9} parent=19 // pred_check
        %p142 = pneg %p53
      $region22: #{generator_forward.9} parent=19 // pred_check_branch
        %144 = sbr.rel (%p142) target = $region24
      $region23: #{generator_forward.9} parent=19 // pred_region
        %s145 = ssub.s32 1, %s15
        %s146 = smul.u32 %s17, %s145
        %s147 = smul.u32 16, %s146
        %p148 = scmp.lt.s32.totalorder %s16, 0
        %s149 = scalar_select %p148, %s16, 0
        %p150 = scmp.lt.s32.totalorder %s147, 15
        %s151 = scalar_select %p150, %s147, 15
        %s152 = smul.addr %s151, 2
        %s153 = smul.addr %s149, 32
        %s154 = sadd.s32 %s152, %s153
        %s155 = smul.addr %s154, 4
        %s156 = scalar_lea.vmem %s0, %s155
        %s157 = ssub.s32 1, %s15
        %s158 = smul.u32 %s17, %s157
        %s159 = smul.u32 16, %s158
      $region24: #{generator_forward.9} parent=19 // pred_fallthru
        _
    $region20: #{generator_forward.9} parent=5 // pred_fallthru
      _
    %p160 = scmp.le.s32.totalorder 1, %s8
    %p161 = scmp.lt.s32.totalorder %s8, 3
    %p162 = pnand %p160, %p161
    %p163 = pneg %p162
    // Predicated region
    $region25: #{generator_forward.9} parent=5 // pred_check
      _
    $region26: #{generator_forward.9} parent=5 // pred_check_branch
      %165 = sbr.rel (%p162) target = $region28
    $region27: #{generator_forward.9} parent=5 // pred_region
      %s166 = ssub.s32 %s8, 1
      %s167 = ssub.s32 1, %s18
      %s168 = smul.u32 %s20, %s167
      %s169 = smul.u32 16, %s168
      %p170 = scmp.lt.s32.totalorder %s19, 0
      %s171 = scalar_select %p170, %s19, 0
      %p172 = scmp.lt.s32.totalorder %s169, 15
      %s173 = scalar_select %p172, %s169, 15
      %s174 = smul.addr %s173, 2
      %s175 = smul.addr %s171, 32
      %s176 = sadd.s32 %s174, %s175
      %s177 = smul.addr %s176, 4
      %s178 = scalar_lea.vmem %s0, %s177
      %p179 = pneg %p59
      %p180 = pneg %p56
      %p181 = scmp.lt.s32.totalorder %s19, 0
      %s182 = scalar_select %p181, %s19, 0
      %s183 = smul.addr %s182, 32
      %s184 = smul.addr %s183, 4
      %s185 = scalar_lea.vmem %s1, %s184
      %p186 = pneg %p85
      %p187 = pneg %p82
      %p188 = pneg %p115
      %p189 = pneg %p112
      %s190 = smul.u32 %s20, %s18
      %s191 = smul.u32 16, %s190
      %p192 = scmp.lt.s32.totalorder %s19, 0
      %s193 = scalar_select %p192, %s19, 0
      %p194 = scmp.lt.s32.totalorder %s191, 15
      %s195 = scalar_select %p194, %s191, 15
      %s196 = smul.addr %s193, 16
      %s197 = sadd.s32 %s195, %s196
      %s198 = smul.addr %s197, 8
      %s199 = scalar_lea.vmem %s2, %s198
      %s200 = ssub.s32 1, %s18
      %s201 = smul.u32 %s20, %s200
      %s202 = smul.u32 16, %s201
      %p203 = scmp.lt.s32.totalorder %s19, 0
      %s204 = scalar_select %p203, %s19, 0
      %p205 = scmp.lt.s32.totalorder %s202, 15
      %s206 = scalar_select %p205, %s202, 15
      %s207 = smul.addr %s206, 2
      %s208 = smul.addr %s204, 32
      %s209 = sadd.s32 %s207, %s208
      %s210 = smul.addr %s209, 4
      %s211 = scalar_lea.vmem %s0, %s210
      %s212 = ssub.s32 1, %s18
      %s213 = smul.u32 %s20, %s212
      %s214 = smul.u32 16, %s213
      %p215 = scmp.lt.s32.totalorder %s19, 0
      %s216 = scalar_select %p215, %s19, 0
      %s217 = smul.addr %s216, 32
      %s218 = smul.addr %s217, 4
      %s219 = scalar_lea.vmem %s1, %s218
      %s220 = smul.u32 %s20, %s18
      %s221 = smul.u32 16, %s220
      %p222 = scmp.lt.s32.totalorder %s19, 0
      %s223 = scalar_select %p222, %s19, 0
      %p224 = scmp.lt.s32.totalorder %s221, 15
      %s225 = scalar_select %p224, %s221, 15
      %s226 = smul.addr %s223, 16
      %s227 = sadd.s32 %s225, %s226
      %s228 = smul.addr %s227, 8
      %s229 = scalar_lea.vmem %s2, %s228
      %s230 = smul.u32 %s20, %s18
      %s231 = smul.u32 16, %s230
      %s233 = smul.u32 %s20, 128
      %p234 = scmp.eq.s32.totalorder %s18, 0
      %p235 = scmp.eq.s32.totalorder %s19, 0
      %p236 = pnand %p234, %p235
      %p237 = pneg %p236
      %p238 = scmp.eq.s32.totalorder %s20, 0
      %p239 = pnand %p237, %p238
      %p240 = pneg %p239
      // Predicated region
      $region29: #{generator_forward.9} parent=27 // pred_check
        _
      $region30: #{generator_forward.9} parent=27 // pred_check_branch
        %242 = sbr.rel (%p239) target = $region32
      $region31: #{generator_forward.9} parent=27 // pred_region
        %243 = vst [vmem:[#allocation3] sm:$0x1] 0.0
        %244 = vst [vmem:[#allocation4] sm:$0x1] 0.0
      $region32: #{generator_forward.9} parent=27 // pred_fallthru
        _
      // Predicated region
      $region33: #{generator_forward.9} parent=27 // pred_check
        %p245 = pneg %p234
      $region34: #{generator_forward.9} parent=27 // pred_check_branch
        %247 = sbr.rel (%p245) target = $region36
      $region35: #{generator_forward.9} parent=27 // pred_region
        %v248 = vld [vmem:[%s211] sm:$0xff]
        %v249 = vld [vmem:[%s211 + $0x8] sm:$0xff]
        %v250 = vld [vmem:[%s211 + $0x10] sm:$0xff]
        %v251 = vld [vmem:[%s211 + $0x18] sm:$0xff]
        %v252 = vld [vmem:[%s211 + $0x20] sm:$0xff]
        %v253 = vld [vmem:[%s211 + $0x28] sm:$0xff]
        %v254 = vld [vmem:[%s211 + $0x30] sm:$0xff]
        %v255 = vld [vmem:[%s211 + $0x38] sm:$0xff]
        %v256 = vld [vmem:[%s211 + $0x40] sm:$0xff]
        %v257 = vld [vmem:[%s211 + $0x48] sm:$0xff]
        %v258 = vld [vmem:[%s211 + $0x50] sm:$0xff]
        %v259 = vld [vmem:[%s211 + $0x58] sm:$0xff]
        %v260 = vld [vmem:[%s211 + $0x60] sm:$0xff]
        %v261 = vld [vmem:[%s211 + $0x68] sm:$0xff]
        %v262 = vld [vmem:[%s211 + $0x70] sm:$0xff]
        %v263 = vld [vmem:[%s211 + $0x78] sm:$0xff]
        %v264 = vld [vmem:[%s219] sm:$0xf]
        %v265 = vld [vmem:[%s219 + $0x4] sm:$0xf]
        %v266 = vld [vmem:[%s219 + $0x8] sm:$0xf]
        %v267 = vld [vmem:[%s219 + $0xc] sm:$0xf]
        %v268 = vld [vmem:[%s219 + $0x10] sm:$0xf]
        %v269 = vld [vmem:[%s219 + $0x14] sm:$0xf]
        %v270 = vld [vmem:[%s219 + $0x18] sm:$0xf]
        %v271 = vld [vmem:[%s219 + $0x1c] sm:$0xf]
        %v272 = vld [vmem:[%s219 + $0x20] sm:$0xf]
        %v273 = vld [vmem:[%s219 + $0x24] sm:$0xf]
        %v274 = vld [vmem:[%s219 + $0x28] sm:$0xf]
        %v275 = vld [vmem:[%s219 + $0x2c] sm:$0xf]
        %v276 = vld [vmem:[%s219 + $0x30] sm:$0xf]
        %v277 = vld [vmem:[%s219 + $0x34] sm:$0xf]
        %v278 = vld [vmem:[%s219 + $0x38] sm:$0xf]
        %v279 = vld [vmem:[%s219 + $0x3c] sm:$0xf]
        %v280 = vld [vmem:[%s219 + $0x40] sm:$0xf]
        %v281 = vld [vmem:[%s219 + $0x44] sm:$0xf]
        %v282 = vld [vmem:[%s219 + $0x48] sm:$0xf]
        %v283 = vld [vmem:[%s219 + $0x4c] sm:$0xf]
        %v284 = vld [vmem:[%s219 + $0x50] sm:$0xf]
        %v285 = vld [vmem:[%s219 + $0x54] sm:$0xf]
        %v286 = vld [vmem:[%s219 + $0x58] sm:$0xf]
        %v287 = vld [vmem:[%s219 + $0x5c] sm:$0xf]
        %v288 = vld [vmem:[%s219 + $0x60] sm:$0xf]
        %v289 = vld [vmem:[%s219 + $0x64] sm:$0xf]
        %v290 = vld [vmem:[%s219 + $0x68] sm:$0xf]
        %v291 = vld [vmem:[%s219 + $0x6c] sm:$0xf]
        %v292 = vld [vmem:[%s219 + $0x70] sm:$0xf]
        %v293 = vld [vmem:[%s219 + $0x74] sm:$0xf]
        %v294 = vld [vmem:[%s219 + $0x78] sm:$0xf]
        %v295 = vld [vmem:[%s219 + $0x7c] sm:$0xf]
        %v312 = vunpack.c.l.b16 %v248
        %v313 = vunpack.c.h.b16 %v248
        %v314 = vunpack.c.l.b16 %v249
        %v315 = vunpack.c.h.b16 %v249
        %v316 = vunpack.c.l.b16 %v250
        %v317 = vunpack.c.h.b16 %v250
        %v318 = vunpack.c.l.b16 %v251
        %v319 = vunpack.c.h.b16 %v251
        %v320 = vunpack.c.l.b16 %v252
        %v321 = vunpack.c.h.b16 %v252
        %v322 = vunpack.c.l.b16 %v253
        %v323 = vunpack.c.h.b16 %v253
        %v324 = vunpack.c.l.b16 %v254
        %v325 = vunpack.c.h.b16 %v254
        %v326 = vunpack.c.l.b16 %v255
        %v327 = vunpack.c.h.b16 %v255
        %v328 = vunpack.c.l.b16 %v256
        %v329 = vunpack.c.h.b16 %v256
        %v330 = vunpack.c.l.b16 %v257
        %v331 = vunpack.c.h.b16 %v257
        %v332 = vunpack.c.l.b16 %v258
        %v333 = vunpack.c.h.b16 %v258
        %v334 = vunpack.c.l.b16 %v259
        %v335 = vunpack.c.h.b16 %v259
        %v336 = vunpack.c.l.b16 %v260
        %v337 = vunpack.c.h.b16 %v260
        %v338 = vunpack.c.l.b16 %v261
        %v339 = vunpack.c.h.b16 %v261
        %v340 = vunpack.c.l.b16 %v262
        %v341 = vunpack.c.h.b16 %v262
        %v342 = vunpack.c.l.b16 %v263
        %v343 = vunpack.c.h.b16 %v263
        %v344 = vpack.c.b16 %v314, %v312
        %v345 = vpack.c.b16 %v315, %v313
        %v346 = vpack.c.b16 %v318, %v316
        %v347 = vpack.c.b16 %v319, %v317
        %v348 = vpack.c.b16 %v322, %v320
        %v349 = vpack.c.b16 %v323, %v321
        %v350 = vpack.c.b16 %v326, %v324
        %v351 = vpack.c.b16 %v327, %v325
        %v352 = vpack.c.b16 %v330, %v328
        %v353 = vpack.c.b16 %v331, %v329
        %v354 = vpack.c.b16 %v334, %v332
        %v355 = vpack.c.b16 %v335, %v333
        %v356 = vpack.c.b16 %v338, %v336
        %v357 = vpack.c.b16 %v339, %v337
        %v358 = vpack.c.b16 %v342, %v340
        %v359 = vpack.c.b16 %v343, %v341
        %v408 = vunpack.c.l.b16 %v264
        %v409 = vunpack.c.l.b16 %v265
        %v410 = vunpack.c.l.b16 %v266
        %v411 = vunpack.c.l.b16 %v267
        %v412 = vunpack.c.l.b16 %v268
        %v413 = vunpack.c.l.b16 %v269
        %v414 = vunpack.c.l.b16 %v270
        %v415 = vunpack.c.l.b16 %v271
        %v416 = vunpack.c.l.b16 %v272
        %v417 = vunpack.c.l.b16 %v273
        %v418 = vunpack.c.l.b16 %v274
        %v419 = vunpack.c.l.b16 %v275
        %v420 = vunpack.c.l.b16 %v276
        %v421 = vunpack.c.l.b16 %v277
        %v422 = vunpack.c.l.b16 %v278
        %v423 = vunpack.c.l.b16 %v279
        %v424 = vunpack.c.l.b16 %v280
        %v425 = vunpack.c.l.b16 %v281
        %v426 = vunpack.c.l.b16 %v282
        %v427 = vunpack.c.l.b16 %v283
        %v428 = vunpack.c.l.b16 %v284
        %v429 = vunpack.c.l.b16 %v285
        %v430 = vunpack.c.l.b16 %v286
        %v431 = vunpack.c.l.b16 %v287
        %v432 = vunpack.c.l.b16 %v288
        %v433 = vunpack.c.l.b16 %v289
        %v434 = vunpack.c.l.b16 %v290
        %v435 = vunpack.c.l.b16 %v291
        %v436 = vunpack.c.l.b16 %v292
        %v437 = vunpack.c.l.b16 %v293
        %v438 = vunpack.c.l.b16 %v294
        %v439 = vunpack.c.l.b16 %v295
        %v440 = vpack.c.b16 %v409, %v408
        %v441 = vpack.c.b16 %v411, %v410
        %v442 = vpack.c.b16 %v413, %v412
        %v443 = vpack.c.b16 %v415, %v414
        %v444 = vpack.c.b16 %v417, %v416
        %v445 = vpack.c.b16 %v419, %v418
        %v446 = vpack.c.b16 %v421, %v420
        %v447 = vpack.c.b16 %v423, %v422
        %v448 = vpack.c.b16 %v425, %v424
        %v449 = vpack.c.b16 %v427, %v426
        %v450 = vpack.c.b16 %v429, %v428
        %v451 = vpack.c.b16 %v431, %v430
        %v452 = vpack.c.b16 %v433, %v432
        %v453 = vpack.c.b16 %v435, %v434
        %v454 = vpack.c.b16 %v437, %v436
        %v455 = vpack.c.b16 %v439, %v438
        %472 = vmatprep.subr.bf16.mxu0 0
        %473 = vmatpush1.bf16.msra.mxu0 %v440
        %474 = vmatprep.subr.bf16.mxu0 0
        %475 = vmatpush1.bf16.msra.mxu0 %v441
        %476 = vmatprep.subr.bf16.mxu0 0
        %477 = vmatpush1.bf16.msra.mxu0 %v442
        %478 = vmatprep.subr.bf16.mxu0 0
        %479 = vmatpush1.bf16.msra.mxu0 %v443
        %480 = vmatprep.subr.bf16.mxu0 0
        %481 = vmatpush1.bf16.msra.mxu0 %v444
        %482 = vmatprep.subr.bf16.mxu0 0
        %483 = vmatpush1.bf16.msra.mxu0 %v445
        %484 = vmatprep.subr.bf16.mxu0 0
        %485 = vmatpush1.bf16.msra.mxu0 %v446
        %486 = vmatprep.subr.bf16.mxu0 0
        %487 = vmatpush1.bf16.msra.mxu0 %v447
        %488 = vmatprep.subr.bf16.mxu0 0
        %489 = vmatpush1.bf16.msra.mxu0 %v448
        %490 = vmatprep.subr.bf16.mxu0 0
        %491 = vmatpush1.bf16.msra.mxu0 %v449
        %492 = vmatprep.subr.bf16.mxu0 0
        %493 = vmatpush1.bf16.msra.mxu0 %v450
        %494 = vmatprep.subr.bf16.mxu0 0
        %495 = vmatpush1.bf16.msra.mxu0 %v451
        %496 = vmatprep.subr.bf16.mxu0 0
        %497 = vmatpush1.bf16.msra.mxu0 %v452
        %498 = vmatprep.subr.bf16.mxu0 0
        %499 = vmatpush1.bf16.msra.mxu0 %v453
        %500 = vmatprep.subr.bf16.mxu0 0
        %501 = vmatpush1.bf16.msra.mxu0 %v454
        %502 = vmatprep.subr.bf16.mxu0 0
        %503 = vmatpush1.bf16.msra.mxu0 %v455
        %504 = vmatprep.mubr.bf16.mxu0 %v345
        %505 = vmatmul.mubr.bf16.gmra.mrb[0].mxu0 %v344
        %v506 = vpop.f32.mrb[0].mxu0
        %v507 = vadd.f32 0.0, %v506
        %v508 = vpop.f32.mrb[0].mxu0
        %v509 = vpop.f32.mrb[0].mxu0
        %v510 = vadd.f32 0.0, %v509
        %v511 = vpop.f32.mrb[0].mxu0
        %512 = vmatprep.mubr.bf16.mxu0 %v347
        %513 = vmatmul.mubr.bf16.gmra.mrb[0].mxu0 %v346
        %v514 = vpop.f32.mrb[0].mxu0
        %v515 = vadd.f32 0.0, %v514
        %v516 = vpop.f32.mrb[0].mxu0
        %v517 = vpop.f32.mrb[0].mxu0
        %v518 = vadd.f32 0.0, %v517
        %v519 = vpop.f32.mrb[0].mxu0
        %520 = vmatprep.mubr.bf16.mxu0 %v349
        %521 = vmatmul.mubr.bf16.gmra.mrb[0].mxu0 %v348
        %v522 = vpop.f32.mrb[0].mxu0
        %v523 = vadd.f32 0.0, %v522
        %v524 = vpop.f32.mrb[0].mxu0
        %v525 = vpop.f32.mrb[0].mxu0
        %v526 = vadd.f32 0.0, %v525
        %v527 = vpop.f32.mrb[0].mxu0
        %528 = vmatprep.mubr.bf16.mxu0 %v351
        %529 = vmatmul.mubr.bf16.gmra.mrb[0].mxu0 %v350
        %v530 = vpop.f32.mrb[0].mxu0
        %v531 = vadd.f32 0.0, %v530
        %v532 = vpop.f32.mrb[0].mxu0
        %v533 = vpop.f32.mrb[0].mxu0
        %v534 = vadd.f32 0.0, %v533
        %v535 = vpop.f32.mrb[0].mxu0
        %536 = vmatprep.mubr.bf16.mxu0 %v353
        %537 = vmatmul.mubr.bf16.gmra.mrb[0].mxu0 %v352
        %v538 = vpop.f32.mrb[0].mxu0
        %v539 = vadd.f32 0.0, %v538
        %v540 = vpop.f32.mrb[0].mxu0
        %v541 = vpop.f32.mrb[0].mxu0
        %v542 = vadd.f32 0.0, %v541
        %v543 = vpop.f32.mrb[0].mxu0
        %544 = vmatprep.mubr.bf16.mxu0 %v355
        %545 = vmatmul.mubr.bf16.gmra.mrb[0].mxu0 %v354
        %v546 = vpop.f32.mrb[0].mxu0
        %v547 = vadd.f32 0.0, %v546
        %v548 = vpop.f32.mrb[0].mxu0
        %v549 = vpop.f32.mrb[0].mxu0
        %v550 = vadd.f32 0.0, %v549
        %v551 = vpop.f32.mrb[0].mxu0
        %552 = vmatprep.mubr.bf16.mxu0 %v357
        %553 = vmatmul.mubr.bf16.gmra.mrb[0].mxu0 %v356
        %v554 = vpop.f32.mrb[0].mxu0
        %v555 = vadd.f32 0.0, %v554
        %v556 = vpop.f32.mrb[0].mxu0
        %v557 = vpop.f32.mrb[0].mxu0
        %v558 = vadd.f32 0.0, %v557
        %v559 = vpop.f32.mrb[0].mxu0
        %560 = vmatprep.mubr.bf16.mxu0 %v359
        %561 = vmatmul.mubr.bf16.gmra.mrb[0].mxu0 %v358
        %v562 = vpop.f32.mrb[0].mxu0
        %v563 = vadd.f32 0.0, %v562
        %v564 = vpop.f32.mrb[0].mxu0
        %v565 = vpop.f32.mrb[0].mxu0
        %v566 = vadd.f32 0.0, %v565
        %v567 = vpop.f32.mrb[0].mxu0
        %568 = vdwg.mxu0
        %s569 = smul.u32 %s19, 128
        %s570 = sadd.s32 %s233, %s569
        %s571 = scalar_lea.vmem [#allocation2], %s570
        %572 = vst [vmem:[%s571] sm:$0xff] %v507
        %573 = vst [vmem:[%s571 + $0x8] sm:$0xff] %v510
        %574 = vst [vmem:[%s571 + $0x10] sm:$0xff] %v515
        %575 = vst [vmem:[%s571 + $0x18] sm:$0xff] %v518
        %576 = vst [vmem:[%s571 + $0x20] sm:$0xff] %v523
        %577 = vst [vmem:[%s571 + $0x28] sm:$0xff] %v526
        %578 = vst [vmem:[%s571 + $0x30] sm:$0xff] %v531
        %579 = vst [vmem:[%s571 + $0x38] sm:$0xff] %v534
        %580 = vst [vmem:[%s571 + $0x40] sm:$0xff] %v539
        %581 = vst [vmem:[%s571 + $0x48] sm:$0xff] %v542
        %582 = vst [vmem:[%s571 + $0x50] sm:$0xff] %v547
        %583 = vst [vmem:[%s571 + $0x58] sm:$0xff] %v550
        %584 = vst [vmem:[%s571 + $0x60] sm:$0xff] %v555
        %585 = vst [vmem:[%s571 + $0x68] sm:$0xff] %v558
        %586 = vst [vmem:[%s571 + $0x70] sm:$0xff] %v563
        %587 = vst [vmem:[%s571 + $0x78] sm:$0xff] %v566
        %v588 = vld [vmem:[#allocation3] sm:$0x1]
        %v589 = vadd.f32 %v507, %v510
        %v590 = vadd.f32 %v589, %v515
        %v591 = vadd.f32 %v590, %v518
        %v592 = vadd.f32 %v591, %v523
        %v593 = vadd.f32 %v592, %v526
        %v594 = vadd.f32 %v593, %v531
        %v595 = vadd.f32 %v594, %v534
        %v596 = vadd.f32 %v595, %v539
        %v597 = vadd.f32 %v596, %v542
        %v598 = vadd.f32 %v597, %v547
        %v599 = vadd.f32 %v598, %v550
        %v600 = vadd.f32 %v599, %v555
        %v601 = vadd.f32 %v600, %v558
        %v602 = vadd.f32 %v601, %v563
        %v603 = vadd.f32 %v602, %v566
        %v604 = vrot.slane %v603, 4
        %v605 = vadd.f32 %v603, %v604
        %v606 = vrot.slane %v605, 2
        %v607 = vadd.f32 %v605, %v606
        %v608 = vrot.slane %v607, 1
        %v609 = vadd.f32 %v607, %v608
        %v610 = vadd.f32 %v588, %v609
        %611 = vst [vmem:[#allocation3] sm:$0x1] %v610
        %v612 = vld [vmem:[#allocation4] sm:$0x1]
        %v613 = vmul.f32 %v507, %v507
        %v614 = vmul.f32 %v510, %v510
        %v615 = vmul.f32 %v515, %v515
        %v616 = vmul.f32 %v518, %v518
        %v617 = vmul.f32 %v523, %v523
        %v618 = vmul.f32 %v526, %v526
        %v619 = vmul.f32 %v531, %v531
        %v620 = vmul.f32 %v534, %v534
        %v621 = vmul.f32 %v539, %v539
        %v622 = vmul.f32 %v542, %v542
        %v623 = vmul.f32 %v547, %v547
        %v624 = vmul.f32 %v550, %v550
        %v625 = vmul.f32 %v555, %v555
        %v626 = vmul.f32 %v558, %v558
        %v627 = vmul.f32 %v563, %v563
        %v628 = vmul.f32 %v566, %v566
        %v629 = vadd.f32 %v613, %v614
        %v630 = vadd.f32 %v629, %v615
        %v631 = vadd.f32 %v630, %v616
        %v632 = vadd.f32 %v631, %v617
        %v633 = vadd.f32 %v632, %v618
        %v634 = vadd.f32 %v633, %v619
        %v635 = vadd.f32 %v634, %v620
        %v636 = vadd.f32 %v635, %v621
        %v637 = vadd.f32 %v636, %v622
        %v638 = vadd.f32 %v637, %v623
        %v639 = vadd.f32 %v638, %v624
        %v640 = vadd.f32 %v639, %v625
        %v641 = vadd.f32 %v640, %v626
        %v642 = vadd.f32 %v641, %v627
        %v643 = vadd.f32 %v642, %v628
        %v644 = vrot.slane %v643, 4
        %v645 = vadd.f32 %v643, %v644
        %v646 = vrot.slane %v645, 2
        %v647 = vadd.f32 %v645, %v646
        %v648 = vrot.slane %v647, 1
        %v649 = vadd.f32 %v647, %v648
        %v650 = vadd.f32 %v612, %v649
        %651 = vst [vmem:[#allocation4] sm:$0x1] %v650
      $region36: #{generator_forward.9} parent=27 // pred_fallthru
        _
      %p652 = scmp.eq.s32.totalorder %s18, 1
      // Predicated region
      $region37: #{generator_forward.9} parent=27 // pred_check
        %p653 = pneg %p652
      $region38: #{generator_forward.9} parent=27 // pred_check_branch
        %655 = sbr.rel (%p653) target = $region40
      $region39: #{generator_forward.9} parent=27 // pred_region
        %v656 = vld [vmem:[#allocation3] sm:$0x1]
        %v657 = vmul.f32 %v656, 0.0078125
        %v658 = vld [vmem:[#allocation4] sm:$0x1]
        %v659 = vmul.f32 %v658, 0.0078125
        %v660 = vmul.f32 %v657, %v657
        %v661 = vsub.f32 %v659, %v660
        %v662 = vmax.f32 %v661, 0.0
        %v663 = vadd.f32 %v662, 1e-05
        %v664 = vrsqrt.pop %v663
        %s665 = smul.u32 %s19, 128
        %s666 = sadd.s32 %s233, %s665
        %s667 = scalar_lea.vmem [#allocation2], %s666
        %v668 = vld [vmem:[%s667] sm:$0xff]
        %v669 = vld [vmem:[%s667 + $0x8] sm:$0xff]
        %v670 = vld [vmem:[%s667 + $0x10] sm:$0xff]
        %v671 = vld [vmem:[%s667 + $0x18] sm:$0xff]
        %v672 = vld [vmem:[%s667 + $0x20] sm:$0xff]
        %v673 = vld [vmem:[%s667 + $0x28] sm:$0xff]
        %v674 = vld [vmem:[%s667 + $0x30] sm:$0xff]
        %v675 = vld [vmem:[%s667 + $0x38] sm:$0xff]
        %v676 = vld [vmem:[%s667 + $0x40] sm:$0xff]
        %v677 = vld [vmem:[%s667 + $0x48] sm:$0xff]
        %v678 = vld [vmem:[%s667 + $0x50] sm:$0xff]
        %v679 = vld [vmem:[%s667 + $0x58] sm:$0xff]
        %v680 = vld [vmem:[%s667 + $0x60] sm:$0xff]
        %v681 = vld [vmem:[%s667 + $0x68] sm:$0xff]
        %v682 = vld [vmem:[%s667 + $0x70] sm:$0xff]
        %v683 = vld [vmem:[%s667 + $0x78] sm:$0xff]
        %v685 = vlaneseq
        %v686 = vshrl.u32 %v685, 7
        %v687 = vsub.s32 0, %v686
        %v688 = vrot.slane %v657, %v687
        %v690 = vsub.f32 %v668, %v688
        %v691 = vsub.f32 %v669, %v688
        %v692 = vsub.f32 %v670, %v688
        %v693 = vsub.f32 %v671, %v688
        %v694 = vsub.f32 %v672, %v688
        %v695 = vsub.f32 %v673, %v688
        %v696 = vsub.f32 %v674, %v688
        %v697 = vsub.f32 %v675, %v688
        %v698 = vsub.f32 %v676, %v688
        %v699 = vsub.f32 %v677, %v688
        %v700 = vsub.f32 %v678, %v688
        %v701 = vsub.f32 %v679, %v688
        %v702 = vsub.f32 %v680, %v688
        %v703 = vsub.f32 %v681, %v688
        %v704 = vsub.f32 %v682, %v688
        %v705 = vsub.f32 %v683, %v688
        %v707 = vlaneseq
        %v708 = vshrl.u32 %v707, 7
        %v709 = vsub.s32 0, %v708
        %v710 = vrot.slane %v664, %v709
        %v712 = vmul.f32 %v690, %v710
        %v713 = vmul.f32 %v691, %v710
        %v714 = vmul.f32 %v692, %v710
        %v715 = vmul.f32 %v693, %v710
        %v716 = vmul.f32 %v694, %v710
        %v717 = vmul.f32 %v695, %v710
        %v718 = vmul.f32 %v696, %v710
        %v719 = vmul.f32 %v697, %v710
        %v720 = vmul.f32 %v698, %v710
        %v721 = vmul.f32 %v699, %v710
        %v722 = vmul.f32 %v700, %v710
        %v723 = vmul.f32 %v701, %v710
        %v724 = vmul.f32 %v702, %v710
        %v725 = vmul.f32 %v703, %v710
        %v726 = vmul.f32 %v704, %v710
        %v727 = vmul.f32 %v705, %v710
        %vm728 = vcmp.ge.f32.partialorder %v712, 0.0
        %vm729 = vcmp.ge.f32.partialorder %v713, 0.0
        %vm730 = vcmp.ge.f32.partialorder %v714, 0.0
        %vm731 = vcmp.ge.f32.partialorder %v715, 0.0
        %vm732 = vcmp.ge.f32.partialorder %v716, 0.0
        %vm733 = vcmp.ge.f32.partialorder %v717, 0.0
        %vm734 = vcmp.ge.f32.partialorder %v718, 0.0
        %vm735 = vcmp.ge.f32.partialorder %v719, 0.0
        %vm736 = vcmp.ge.f32.partialorder %v720, 0.0
        %vm737 = vcmp.ge.f32.partialorder %v721, 0.0
        %vm738 = vcmp.ge.f32.partialorder %v722, 0.0
        %vm739 = vcmp.ge.f32.partialorder %v723, 0.0
        %vm740 = vcmp.ge.f32.partialorder %v724, 0.0
        %vm741 = vcmp.ge.f32.partialorder %v725, 0.0
        %vm742 = vcmp.ge.f32.partialorder %v726, 0.0
        %vm743 = vcmp.ge.f32.partialorder %v727, 0.0
        %v744 = vmul.f32 %v712, 0.2
        %v745 = vmul.f32 %v713, 0.2
        %v746 = vmul.f32 %v714, 0.2
        %v747 = vmul.f32 %v715, 0.2
        %v748 = vmul.f32 %v716, 0.2
        %v749 = vmul.f32 %v717, 0.2
        %v750 = vmul.f32 %v718, 0.2
        %v751 = vmul.f32 %v719, 0.2
        %v752 = vmul.f32 %v720, 0.2
        %v753 = vmul.f32 %v721, 0.2
        %v754 = vmul.f32 %v722, 0.2
        %v755 = vmul.f32 %v723, 0.2
        %v756 = vmul.f32 %v724, 0.2
        %v757 = vmul.f32 %v725, 0.2
        %v758 = vmul.f32 %v726, 0.2
        %v759 = vmul.f32 %v727, 0.2
        %v760 = vsel %vm728, %v712, %v744
        %v761 = vsel %vm729, %v713, %v745
        %v762 = vsel %vm730, %v714, %v746
        %v763 = vsel %vm731, %v715, %v747
        %v764 = vsel %vm732, %v716, %v748
        %v765 = vsel %vm733, %v717, %v749
        %v766 = vsel %vm734, %v718, %v750
        %v767 = vsel %vm735, %v719, %v751
        %v768 = vsel %vm736, %v720, %v752
        %v769 = vsel %vm737, %v721, %v753
        %v770 = vsel %vm738, %v722, %v754
        %v771 = vsel %vm739, %v723, %v755
        %v772 = vsel %vm740, %v724, %v756
        %v773 = vsel %vm741, %v725, %v757
        %v774 = vsel %vm742, %v726, %v758
        %v775 = vsel %vm743, %v727, %v759
        %776 = vst [vmem:[%s229] sm:$0xff] %v760
        %777 = vst [vmem:[%s229 + $0x8] sm:$0xff] %v761
        %778 = vst [vmem:[%s229 + $0x10] sm:$0xff] %v762
        %779 = vst [vmem:[%s229 + $0x18] sm:$0xff] %v763
        %780 = vst [vmem:[%s229 + $0x20] sm:$0xff] %v764
        %781 = vst [vmem:[%s229 + $0x28] sm:$0xff] %v765
        %782 = vst [vmem:[%s229 + $0x30] sm:$0xff] %v766
        %783 = vst [vmem:[%s229 + $0x38] sm:$0xff] %v767
        %784 = vst [vmem:[%s229 + $0x40] sm:$0xff] %v768
        %785 = vst [vmem:[%s229 + $0x48] sm:$0xff] %v769
        %786 = vst [vmem:[%s229 + $0x50] sm:$0xff] %v770
        %787 = vst [vmem:[%s229 + $0x58] sm:$0xff] %v771
        %788 = vst [vmem:[%s229 + $0x60] sm:$0xff] %v772
        %789 = vst [vmem:[%s229 + $0x68] sm:$0xff] %v773
        %790 = vst [vmem:[%s229 + $0x70] sm:$0xff] %v774
        %791 = vst [vmem:[%s229 + $0x78] sm:$0xff] %v775
      $region40: #{generator_forward.9} parent=27 // pred_fallthru
        _
      %s792 = smul.u32 %s20, %s18
      %s793 = smul.u32 16, %s792
      %p794 = scmp.lt.s32.totalorder %s19, 0
      %s795 = scalar_select %p794, %s19, 0
      %p796 = scmp.lt.s32.totalorder %s793, 15
      %s797 = scalar_select %p796, %s793, 15
      %s798 = smul.addr %s795, 16
      %s799 = sadd.s32 %s797, %s798
      %s800 = smul.addr %s799, 8
      %s801 = scalar_lea.vmem %s2, %s800
      // Predicated region
      $region41: #{generator_forward.9} parent=27 // pred_check
        %p802 = pneg %p112
      $region42: #{generator_forward.9} parent=27 // pred_check_branch
        %804 = sbr.rel (%p802) target = $region44
      $region43: #{generator_forward.9} parent=27 // pred_region
        %s805 = smul.u32 %s20, %s18
        %s806 = smul.u32 16, %s805
      $region44: #{generator_forward.9} parent=27 // pred_fallthru
        _
    $region28: #{generator_forward.9} parent=5 // pred_fallthru
      _
    %p807 = scmp.le.s32.totalorder 2, %s8
    // Predicated region
    $region45: #{generator_forward.9} parent=5 // pred_check
      %p808 = pneg %p807
    $region46: #{generator_forward.9} parent=5 // pred_check_branch
      %810 = sbr.rel (%p808) target = $region48
    $region47: #{generator_forward.9} parent=5 // pred_region
      %s811 = ssub.s32 %s8, 2
      // Predicated region
      $region49: #{generator_forward.9} parent=47 // pred_check
        %p812 = pneg %p118
      $region50: #{generator_forward.9} parent=47 // pred_check_branch
        %814 = sbr.rel (%p812) target = $region52
      $region51: #{generator_forward.9} parent=47 // pred_region
        %s815 = smul.u32 %s23, %s21
        %s816 = smul.u32 16, %s815
        %p817 = scmp.lt.s32.totalorder %s22, 0
        %s818 = scalar_select %p817, %s22, 0
        %p819 = scmp.lt.s32.totalorder %s816, 15
        %s820 = scalar_select %p819, %s816, 15
        %s821 = smul.addr %s818, 16
        %s822 = sadd.s32 %s820, %s821
        %s823 = smul.addr %s822, 8
        %s824 = scalar_lea.vmem %s2, %s823
      $region52: #{generator_forward.9} parent=47 // pred_fallthru
        _
    $region48: #{generator_forward.9} parent=5 // pred_fallthru
      _
  $region6: #{generator_forward.9} parent=0 // loop_footer
    %s12 = sadd.s32 1, %s8
  $region7: #{generator_forward.9} parent=0 // loop_footer_branch
    %7 = sbr.rel target = $region3
  $region8: #{generator_forward.9} parent=0 // loop_exit
    _

// kernel: generator_forward.10
$region0: #{generator_forward.10}
  #allocation0 [shape = 'u32[]', space=smem, size = 0x4, offset = 0x4, fixed_abs, tag = 'smem constant byte address 0x4 - core index']
  #allocation1 [shape = 'u32[144,128]{1,0:T(1,128)}', space=vmem, size = 0x12000, scoped, tag = 'internal scratch']
  #allocation2 [shape = 'f32[1,32,128]{2,1,0:T(8,128)}', space=vmem, size = 0x4000, scoped, tag = 'scratch operand']
  #allocation3 [shape = 'f32[1,128]{1,0:T(1,128)}', space=vmem, size = 0x200, scoped, tag = 'scratch operand']
  #allocation4 [shape = 'f32[1,128]{1,0:T(1,128)}', space=vmem, size = 0x200, scoped, tag = 'scratch operand']
  %s0 = inlined_call_operand.vmem [shape: bf16[1,32,512], index: 0, kind: input, shape index: {}]
  %s1 = inlined_call_operand.vmem [shape: bf16[1,512,128], index: 1, kind: input, shape index: {}]
  %s2 = inlined_call_operand.vmem [shape: f32[1,32,128], index: 2, kind: output, shape index: {}]
  %s3 = sld [smem:[#allocation0]]
  $region53: #{generator_forward.10} parent=0
    _
  %s5 = ssub.s32 1, %s3
  %s6 = scalar_select 0, %s5, %s3
  loop: start=0, step=1, limit=4
  $region2: #{generator_forward.10} parent=0 // loop_pre_header
    _
  $region3: #{generator_forward.10} parent=0 // loop_header
    %s8 = sphi 0, %s12
    %p9 = scmp.ge.s32.totalorder %s8, 4
    %s15 = sphi 0, %s34
    %s16 = sphi 0, %s30
    %s17 = sphi 0, %s26
    %s18 = sphi 0, %s15
    %s19 = sphi 0, %s16
    %s20 = sphi 0, %s17
    %s21 = sphi 0, %s18
    %s22 = sphi 0, %s19
    %s23 = sphi 0, %s20
    %s43 = sphi 0, %s45
    %s46 = sphi 0, %s43
    %s47 = sphi 0, %s46
    %s63 = sphi 0, %s47
    %s69 = sphi 0, %s71
    %s72 = sphi 0, %s69
    %s73 = sphi 0, %s72
    %s89 = sphi 0, %s73
    %s99 = sphi 0, %s101
    %s102 = sphi 0, %s99
    %s103 = sphi 0, %s102
    %s119 = sphi 0, %s103
  $region4: #{generator_forward.10} parent=0 // loop_header_branch
    %11 = sbr.rel (%p9) target = $region8
  $region5: #{generator_forward.10} parent=0 // loop_body
    %s13 = ssub.s32 %s8, 1
    %s14 = ssub.s32 %s8, 2
    %s24 = sadd.s32 1, %s17
    %p25 = scmp.ge.s32.totalorder %s24, 1
    %s26 = scalar_select %p25, 0, %s24
    %s27 = sadd.s32 1, %s16
    %s28 = scalar_select %p25, %s27, %s16
    %p29 = scmp.ge.s32.totalorder %s28, 1
    %s30 = scalar_select %p29, 0, %s28
    %s31 = sadd.s32 1, %s15
    %s32 = scalar_select %p29, %s31, %s15
    %p33 = scmp.ge.s32.totalorder %s32, 2
    %s34 = scalar_select %p33, 0, %s32
    %s35 = ssub.s32 1, %s15
    %s36 = smul.u32 %s17, %s35
    %s37 = ssub.s32 1, %s34
    %s38 = smul.u32 %s26, %s37
    %s39 = ssub.s32 %s16, %s30
    %s40 = ssub.s32 %s36, %s38
    %s41 = sor.u32 %s39, %s40
    %p42 = scmp.eq.s32.totalorder %s41, 0
    %s44 = sadd.s32 %s43, 1
    %s45 = scalar_select %p42, %s43, %s44
    %p48 = pneg %p42
    %p49 = scmp.eq.s32.totalorder %s8, 1
    %p50 = por %p48, %p49
    %p51 = scmp.ne.s32.totalorder %s43, %s46
    %p52 = scmp.eq.s32.totalorder %s8, 0
    %p53 = por %p51, %p52
    %p54 = scmp.ne.s32.totalorder %s43, %s46
    %p55 = scmp.eq.s32.totalorder %s13, 1
    %p56 = por %p54, %p55
    %p57 = scmp.ne.s32.totalorder %s46, %s47
    %p58 = scmp.eq.s32.totalorder %s13, 0
    %p59 = por %p57, %p58
    %p60 = scmp.ne.s32.totalorder %s46, %s47
    %p61 = scmp.eq.s32.totalorder %s14, 1
    %p62 = por %p60, %p61
    %p64 = scmp.ne.s32.totalorder %s47, %s63
    %p65 = scmp.eq.s32.totalorder %s14, 0
    %p66 = por %p64, %p65
    %s67 = ssub.s32 %s16, %s30
    %p68 = scmp.eq.s32.totalorder %s67, 0
    %s70 = sadd.s32 %s69, 1
    %s71 = scalar_select %p68, %s69, %s70
    %p74 = pneg %p68
    %p75 = scmp.eq.s32.totalorder %s8, 1
    %p76 = por %p74, %p75
    %p77 = scmp.ne.s32.totalorder %s69, %s72
    %p78 = scmp.eq.s32.totalorder %s8, 0
    %p79 = por %p77, %p78
    %p80 = scmp.ne.s32.totalorder %s69, %s72
    %p81 = scmp.eq.s32.totalorder %s13, 1
    %p82 = por %p80, %p81
    %p83 = scmp.ne.s32.totalorder %s72, %s73
    %p84 = scmp.eq.s32.totalorder %s13, 0
    %p85 = por %p83, %p84
    %p86 = scmp.ne.s32.totalorder %s72, %s73
    %p87 = scmp.eq.s32.totalorder %s14, 1
    %p88 = por %p86, %p87
    %p90 = scmp.ne.s32.totalorder %s73, %s89
    %p91 = scmp.eq.s32.totalorder %s14, 0
    %p92 = por %p90, %p91
    %s93 = smul.u32 %s17, %s15
    %s94 = smul.u32 %s26, %s34
    %s95 = ssub.s32 %s16, %s30
    %s96 = ssub.s32 %s93, %s94
    %s97 = sor.u32 %s95, %s96
    %p98 = scmp.eq.s32.totalorder %s97, 0
    %s100 = sadd.s32 %s99, 1
    %s101 = scalar_select %p98, %s99, %s100
    %p104 = pneg %p98
    %p105 = scmp.eq.s32.totalorder %s8, 1
    %p106 = por %p104, %p105
    %p107 = scmp.ne.s32.totalorder %s99, %s102
    %p108 = scmp.eq.s32.totalorder %s8, 0
    %p109 = por %p107, %p108
    %p110 = scmp.ne.s32.totalorder %s99, %s102
    %p111 = scmp.eq.s32.totalorder %s13, 1
    %p112 = por %p110, %p111
    %p113 = scmp.ne.s32.totalorder %s102, %s103
    %p114 = scmp.eq.s32.totalorder %s13, 0
    %p115 = por %p113, %p114
    %p116 = scmp.ne.s32.totalorder %s102, %s103
    %p117 = scmp.eq.s32.totalorder %s14, 1
    %p118 = por %p116, %p117
    %p120 = scmp.ne.s32.totalorder %s103, %s119
    %p121 = scmp.eq.s32.totalorder %s14, 0
    %p122 = por %p120, %p121
    %p123 = scmp.le.s32.totalorder 1, %s8
    %p124 = scmp.lt.s32.totalorder %s8, 3
    %p125 = pnand %p123, %p124
    %p126 = pneg %p125
    // Predicated region
    $region9: #{generator_forward.10} parent=5 // pred_check
      _
    $region10: #{generator_forward.10} parent=5 // pred_check_branch
      %128 = sbr.rel (%p125) target = $region12
    $region11: #{generator_forward.10} parent=5 // pred_region
      %s129 = ssub.s32 %s8, 1
      // Predicated region
      $region13: #{generator_forward.10} parent=11 // pred_check
        %p130 = pneg %p85
      $region14: #{generator_forward.10} parent=11 // pred_check_branch
        %132 = sbr.rel (%p130) target = $region16
      $region15: #{generator_forward.10} parent=11 // pred_region
        %p133 = scmp.lt.s32.totalorder %s19, 0
        %s134 = scalar_select %p133, %s19, 0
        %s135 = smul.addr %s134, 64
        %s136 = smul.addr %s135, 4
        %s137 = scalar_lea.vmem %s1, %s136
      $region16: #{generator_forward.10} parent=11 // pred_fallthru
        _
    $region12: #{generator_forward.10} parent=5 // pred_fallthru
      _
    %p138 = scmp.lt.s32.totalorder %s8, 2
    // Predicated region
    $region17: #{generator_forward.10} parent=5 // pred_check
      %p139 = pneg %p138
    $region18: #{generator_forward.10} parent=5 // pred_check_branch
      %141 = sbr.rel (%p139) target = $region20
    $region19: #{generator_forward.10} parent=5 // pred_region
      // Predicated region
      $region21: #{generator_forward.10} parent=19 // pred_check
        %p142 = pneg %p53
      $region22: #{generator_forward.10} parent=19 // pred_check_branch
        %144 = sbr.rel (%p142) target = $region24
      $region23: #{generator_forward.10} parent=19 // pred_region
        %s145 = ssub.s32 1, %s15
        %s146 = smul.u32 %s17, %s145
        %s147 = smul.u32 4, %s146
        %p148 = scmp.lt.s32.totalorder %s16, 0
        %s149 = scalar_select %p148, %s16, 0
        %p150 = scmp.lt.s32.totalorder %s147, 3
        %s151 = scalar_select %p150, %s147, 3
        %s152 = smul.addr %s151, 4
        %s153 = smul.addr %s149, 16
        %s154 = sadd.s32 %s152, %s153
        %s155 = smul.addr %s154, 4
        %s156 = scalar_lea.vmem %s0, %s155
        %s157 = ssub.s32 1, %s15
        %s158 = smul.u32 %s17, %s157
        %s159 = smul.u32 4, %s158
      $region24: #{generator_forward.10} parent=19 // pred_fallthru
        _
    $region20: #{generator_forward.10} parent=5 // pred_fallthru
      _
    %p160 = scmp.le.s32.totalorder 1, %s8
    %p161 = scmp.lt.s32.totalorder %s8, 3
    %p162 = pnand %p160, %p161
    %p163 = pneg %p162
    // Predicated region
    $region25: #{generator_forward.10} parent=5 // pred_check
      _
    $region26: #{generator_forward.10} parent=5 // pred_check_branch
      %165 = sbr.rel (%p162) target = $region28
    $region27: #{generator_forward.10} parent=5 // pred_region
      %s166 = ssub.s32 %s8, 1
      %s167 = ssub.s32 1, %s18
      %s168 = smul.u32 %s20, %s167
      %s169 = smul.u32 4, %s168
      %p170 = scmp.lt.s32.totalorder %s19, 0
      %s171 = scalar_select %p170, %s19, 0
      %p172 = scmp.lt.s32.totalorder %s169, 3
      %s173 = scalar_select %p172, %s169, 3
      %s174 = smul.addr %s173, 4
      %s175 = smul.addr %s171, 16
      %s176 = sadd.s32 %s174, %s175
      %s177 = smul.addr %s176, 4
      %s178 = scalar_lea.vmem %s0, %s177
      %p179 = pneg %p59
      %p180 = pneg %p56
      %p181 = scmp.lt.s32.totalorder %s19, 0
      %s182 = scalar_select %p181, %s19, 0
      %s183 = smul.addr %s182, 64
      %s184 = smul.addr %s183, 4
      %s185 = scalar_lea.vmem %s1, %s184
      %p186 = pneg %p85
      %p187 = pneg %p82
      %p188 = pneg %p115
      %p189 = pneg %p112
      %s190 = smul.u32 %s20, %s18
      %s191 = smul.u32 4, %s190
      %p192 = scmp.lt.s32.totalorder %s19, 0
      %s193 = scalar_select %p192, %s19, 0
      %p194 = scmp.lt.s32.totalorder %s191, 3
      %s195 = scalar_select %p194, %s191, 3
      %s196 = smul.addr %s193, 4
      %s197 = sadd.s32 %s195, %s196
      %s198 = smul.addr %s197, 8
      %s199 = scalar_lea.vmem %s2, %s198
      %s200 = ssub.s32 1, %s18
      %s201 = smul.u32 %s20, %s200
      %s202 = smul.u32 4, %s201
      %p203 = scmp.lt.s32.totalorder %s19, 0
      %s204 = scalar_select %p203, %s19, 0
      %p205 = scmp.lt.s32.totalorder %s202, 3
      %s206 = scalar_select %p205, %s202, 3
      %s207 = smul.addr %s206, 4
      %s208 = smul.addr %s204, 16
      %s209 = sadd.s32 %s207, %s208
      %s210 = smul.addr %s209, 4
      %s211 = scalar_lea.vmem %s0, %s210
      %s212 = ssub.s32 1, %s18
      %s213 = smul.u32 %s20, %s212
      %s214 = smul.u32 4, %s213
      %p215 = scmp.lt.s32.totalorder %s19, 0
      %s216 = scalar_select %p215, %s19, 0
      %s217 = smul.addr %s216, 64
      %s218 = smul.addr %s217, 4
      %s219 = scalar_lea.vmem %s1, %s218
      %s220 = smul.u32 %s20, %s18
      %s221 = smul.u32 4, %s220
      %p222 = scmp.lt.s32.totalorder %s19, 0
      %s223 = scalar_select %p222, %s19, 0
      %p224 = scmp.lt.s32.totalorder %s221, 3
      %s225 = scalar_select %p224, %s221, 3
      %s226 = smul.addr %s223, 4
      %s227 = sadd.s32 %s225, %s226
      %s228 = smul.addr %s227, 8
      %s229 = scalar_lea.vmem %s2, %s228
      %s230 = smul.u32 %s20, %s18
      %s231 = smul.u32 4, %s230
      %s233 = smul.u32 %s20, 32
      %p234 = scmp.eq.s32.totalorder %s18, 0
      %p235 = scmp.eq.s32.totalorder %s19, 0
      %p236 = pnand %p234, %p235
      %p237 = pneg %p236
      %p238 = scmp.eq.s32.totalorder %s20, 0
      %p239 = pnand %p237, %p238
      %p240 = pneg %p239
      // Predicated region
      $region29: #{generator_forward.10} parent=27 // pred_check
        _
      $region30: #{generator_forward.10} parent=27 // pred_check_branch
        %242 = sbr.rel (%p239) target = $region32
      $region31: #{generator_forward.10} parent=27 // pred_region
        %243 = vst [vmem:[#allocation3] sm:$0x1] 0.0
        %244 = vst [vmem:[#allocation4] sm:$0x1] 0.0
      $region32: #{generator_forward.10} parent=27 // pred_fallthru
        _
      // Predicated region
      $region33: #{generator_forward.10} parent=27 // pred_check
        %p245 = pneg %p234
      $region34: #{generator_forward.10} parent=27 // pred_check_branch
        %247 = sbr.rel (%p245) target = $region36
      $region35: #{generator_forward.10} parent=27 // pred_region
        %v248 = vld [vmem:[%s211] sm:$0xff]
        %v249 = vld [vmem:[%s211 + $0x8] sm:$0xff]
        %v250 = vld [vmem:[%s211 + $0x10] sm:$0xff]
        %v251 = vld [vmem:[%s211 + $0x18] sm:$0xff]
        %v252 = vld [vmem:[%s211 + $0x20] sm:$0xff]
        %v253 = vld [vmem:[%s211 + $0x28] sm:$0xff]
        %v254 = vld [vmem:[%s211 + $0x30] sm:$0xff]
        %v255 = vld [vmem:[%s211 + $0x38] sm:$0xff]
        %v256 = vld [vmem:[%s219] sm:$0xf]
        %v257 = vld [vmem:[%s219 + $0x4] sm:$0xf]
        %v258 = vld [vmem:[%s219 + $0x8] sm:$0xf]
        %v259 = vld [vmem:[%s219 + $0xc] sm:$0xf]
        %v260 = vld [vmem:[%s219 + $0x10] sm:$0xf]
        %v261 = vld [vmem:[%s219 + $0x14] sm:$0xf]
        %v262 = vld [vmem:[%s219 + $0x18] sm:$0xf]
        %v263 = vld [vmem:[%s219 + $0x1c] sm:$0xf]
        %v264 = vld [vmem:[%s219 + $0x20] sm:$0xf]
        %v265 = vld [vmem:[%s219 + $0x24] sm:$0xf]
        %v266 = vld [vmem:[%s219 + $0x28] sm:$0xf]
        %v267 = vld [vmem:[%s219 + $0x2c] sm:$0xf]
        %v268 = vld [vmem:[%s219 + $0x30] sm:$0xf]
        %v269 = vld [vmem:[%s219 + $0x34] sm:$0xf]
        %v270 = vld [vmem:[%s219 + $0x38] sm:$0xf]
        %v271 = vld [vmem:[%s219 + $0x3c] sm:$0xf]
        %v272 = vld [vmem:[%s219 + $0x40] sm:$0xf]
        %v273 = vld [vmem:[%s219 + $0x44] sm:$0xf]
        %v274 = vld [vmem:[%s219 + $0x48] sm:$0xf]
        %v275 = vld [vmem:[%s219 + $0x4c] sm:$0xf]
        %v276 = vld [vmem:[%s219 + $0x50] sm:$0xf]
        %v277 = vld [vmem:[%s219 + $0x54] sm:$0xf]
        %v278 = vld [vmem:[%s219 + $0x58] sm:$0xf]
        %v279 = vld [vmem:[%s219 + $0x5c] sm:$0xf]
        %v280 = vld [vmem:[%s219 + $0x60] sm:$0xf]
        %v281 = vld [vmem:[%s219 + $0x64] sm:$0xf]
        %v282 = vld [vmem:[%s219 + $0x68] sm:$0xf]
        %v283 = vld [vmem:[%s219 + $0x6c] sm:$0xf]
        %v284 = vld [vmem:[%s219 + $0x70] sm:$0xf]
        %v285 = vld [vmem:[%s219 + $0x74] sm:$0xf]
        %v286 = vld [vmem:[%s219 + $0x78] sm:$0xf]
        %v287 = vld [vmem:[%s219 + $0x7c] sm:$0xf]
        %v288 = vld [vmem:[%s219 + $0x80] sm:$0xf]
        %v289 = vld [vmem:[%s219 + $0x84] sm:$0xf]
        %v290 = vld [vmem:[%s219 + $0x88] sm:$0xf]
        %v291 = vld [vmem:[%s219 + $0x8c] sm:$0xf]
        %v292 = vld [vmem:[%s219 + $0x90] sm:$0xf]
        %v293 = vld [vmem:[%s219 + $0x94] sm:$0xf]
        %v294 = vld [vmem:[%s219 + $0x98] sm:$0xf]
        %v295 = vld [vmem:[%s219 + $0x9c] sm:$0xf]
        %v296 = vld [vmem:[%s219 + $0xa0] sm:$0xf]
        %v297 = vld [vmem:[%s219 + $0xa4] sm:$0xf]
        %v298 = vld [vmem:[%s219 + $0xa8] sm:$0xf]
        %v299 = vld [vmem:[%s219 + $0xac] sm:$0xf]
        %v300 = vld [vmem:[%s219 + $0xb0] sm:$0xf]
        %v301 = vld [vmem:[%s219 + $0xb4] sm:$0xf]
        %v302 = vld [vmem:[%s219 + $0xb8] sm:$0xf]
        %v303 = vld [vmem:[%s219 + $0xbc] sm:$0xf]
        %v304 = vld [vmem:[%s219 + $0xc0] sm:$0xf]
        %v305 = vld [vmem:[%s219 + $0xc4] sm:$0xf]
        %v306 = vld [vmem:[%s219 + $0xc8] sm:$0xf]
        %v307 = vld [vmem:[%s219 + $0xcc] sm:$0xf]
        %v308 = vld [vmem:[%s219 + $0xd0] sm:$0xf]
        %v309 = vld [vmem:[%s219 + $0xd4] sm:$0xf]
        %v310 = vld [vmem:[%s219 + $0xd8] sm:$0xf]
        %v311 = vld [vmem:[%s219 + $0xdc] sm:$0xf]
        %v312 = vld [vmem:[%s219 + $0xe0] sm:$0xf]
        %v313 = vld [vmem:[%s219 + $0xe4] sm:$0xf]
        %v314 = vld [vmem:[%s219 + $0xe8] sm:$0xf]
        %v315 = vld [vmem:[%s219 + $0xec] sm:$0xf]
        %v316 = vld [vmem:[%s219 + $0xf0] sm:$0xf]
        %v317 = vld [vmem:[%s219 + $0xf4] sm:$0xf]
        %v318 = vld [vmem:[%s219 + $0xf8] sm:$0xf]
        %v319 = vld [vmem:[%s219 + $0xfc] sm:$0xf]
        %v328 = vunpack.c.l.b16 %v248
        %v329 = vunpack.c.h.b16 %v248
        %v330 = vunpack.c.l.b16 %v249
        %v331 = vunpack.c.h.b16 %v249
        %v332 = vunpack.c.l.b16 %v250
        %v333 = vunpack.c.h.b16 %v250
        %v334 = vunpack.c.l.b16 %v251
        %v335 = vunpack.c.h.b16 %v251
        %v336 = vunpack.c.l.b16 %v252
        %v337 = vunpack.c.h.b16 %v252
        %v338 = vunpack.c.l.b16 %v253
        %v339 = vunpack.c.h.b16 %v253
        %v340 = vunpack.c.l.b16 %v254
        %v341 = vunpack.c.h.b16 %v254
        %v342 = vunpack.c.l.b16 %v255
        %v343 = vunpack.c.h.b16 %v255
        %v344 = vpack.c.b16 %v332, %v328
        %v345 = vpack.c.b16 %v333, %v329
        %v346 = vpack.c.b16 %v334, %v330
        %v347 = vpack.c.b16 %v335, %v331
        %v348 = vpack.c.b16 %v340, %v336
        %v349 = vpack.c.b16 %v341, %v337
        %v350 = vpack.c.b16 %v342, %v338
        %v351 = vpack.c.b16 %v343, %v339
        %v424 = vunpack.c.l.b16 %v256
        %v425 = vunpack.c.l.b16 %v257
        %v426 = vunpack.c.l.b16 %v258
        %v427 = vunpack.c.l.b16 %v259
        %v428 = vunpack.c.l.b16 %v260
        %v429 = vunpack.c.l.b16 %v261
        %v430 = vunpack.c.l.b16 %v262
        %v431 = vunpack.c.l.b16 %v263
        %v432 = vunpack.c.l.b16 %v264
        %v433 = vunpack.c.l.b16 %v265
        %v434 = vunpack.c.l.b16 %v266
        %v435 = vunpack.c.l.b16 %v267
        %v436 = vunpack.c.l.b16 %v268
        %v437 = vunpack.c.l.b16 %v269
        %v438 = vunpack.c.l.b16 %v270
        %v439 = vunpack.c.l.b16 %v271
        %v440 = vunpack.c.l.b16 %v272
        %v441 = vunpack.c.l.b16 %v273
        %v442 = vunpack.c.l.b16 %v274
        %v443 = vunpack.c.l.b16 %v275
        %v444 = vunpack.c.l.b16 %v276
        %v445 = vunpack.c.l.b16 %v277
        %v446 = vunpack.c.l.b16 %v278
        %v447 = vunpack.c.l.b16 %v279
        %v448 = vunpack.c.l.b16 %v280
        %v449 = vunpack.c.l.b16 %v281
        %v450 = vunpack.c.l.b16 %v282
        %v451 = vunpack.c.l.b16 %v283
        %v452 = vunpack.c.l.b16 %v284
        %v453 = vunpack.c.l.b16 %v285
        %v454 = vunpack.c.l.b16 %v286
        %v455 = vunpack.c.l.b16 %v287
        %v456 = vunpack.c.l.b16 %v288
        %v457 = vunpack.c.l.b16 %v289
        %v458 = vunpack.c.l.b16 %v290
        %v459 = vunpack.c.l.b16 %v291
        %v460 = vunpack.c.l.b16 %v292
        %v461 = vunpack.c.l.b16 %v293
        %v462 = vunpack.c.l.b16 %v294
        %v463 = vunpack.c.l.b16 %v295
        %v464 = vunpack.c.l.b16 %v296
        %v465 = vunpack.c.l.b16 %v297
        %v466 = vunpack.c.l.b16 %v298
        %v467 = vunpack.c.l.b16 %v299
        %v468 = vunpack.c.l.b16 %v300
        %v469 = vunpack.c.l.b16 %v301
        %v470 = vunpack.c.l.b16 %v302
        %v471 = vunpack.c.l.b16 %v303
        %v472 = vunpack.c.l.b16 %v304
        %v473 = vunpack.c.l.b16 %v305
        %v474 = vunpack.c.l.b16 %v306
        %v475 = vunpack.c.l.b16 %v307
        %v476 = vunpack.c.l.b16 %v308
        %v477 = vunpack.c.l.b16 %v309
        %v478 = vunpack.c.l.b16 %v310
        %v479 = vunpack.c.l.b16 %v311
        %v480 = vunpack.c.l.b16 %v312
        %v481 = vunpack.c.l.b16 %v313
        %v482 = vunpack.c.l.b16 %v314
        %v483 = vunpack.c.l.b16 %v315
        %v484 = vunpack.c.l.b16 %v316
        %v485 = vunpack.c.l.b16 %v317
        %v486 = vunpack.c.l.b16 %v318
        %v487 = vunpack.c.l.b16 %v319
        %v488 = vpack.c.b16 %v425, %v424
        %v489 = vpack.c.b16 %v427, %v426
        %v490 = vpack.c.b16 %v429, %v428
        %v491 = vpack.c.b16 %v431, %v430
        %v492 = vpack.c.b16 %v433, %v432
        %v493 = vpack.c.b16 %v435, %v434
        %v494 = vpack.c.b16 %v437, %v436
        %v495 = vpack.c.b16 %v439, %v438
        %v496 = vpack.c.b16 %v441, %v440
        %v497 = vpack.c.b16 %v443, %v442
        %v498 = vpack.c.b16 %v445, %v444
        %v499 = vpack.c.b16 %v447, %v446
        %v500 = vpack.c.b16 %v449, %v448
        %v501 = vpack.c.b16 %v451, %v450
        %v502 = vpack.c.b16 %v453, %v452
        %v503 = vpack.c.b16 %v455, %v454
        %v504 = vpack.c.b16 %v457, %v456
        %v505 = vpack.c.b16 %v459, %v458
        %v506 = vpack.c.b16 %v461, %v460
        %v507 = vpack.c.b16 %v463, %v462
        %v508 = vpack.c.b16 %v465, %v464
        %v509 = vpack.c.b16 %v467, %v466
        %v510 = vpack.c.b16 %v469, %v468
        %v511 = vpack.c.b16 %v471, %v470
        %v512 = vpack.c.b16 %v473, %v472
        %v513 = vpack.c.b16 %v475, %v474
        %v514 = vpack.c.b16 %v477, %v476
        %v515 = vpack.c.b16 %v479, %v478
        %v516 = vpack.c.b16 %v481, %v480
        %v517 = vpack.c.b16 %v483, %v482
        %v518 = vpack.c.b16 %v485, %v484
        %v519 = vpack.c.b16 %v487, %v486
        %552 = vmatprep.subr.bf16.mxu0 0
        %553 = vmatpush1.bf16.msra.mxu0 %v488
        %554 = vmatprep.subr.bf16.mxu0 0
        %555 = vmatpush1.bf16.msra.mxu0 %v489
        %556 = vmatprep.subr.bf16.mxu0 0
        %557 = vmatpush1.bf16.msra.mxu0 %v490
        %558 = vmatprep.subr.bf16.mxu0 0
        %559 = vmatpush1.bf16.msra.mxu0 %v491
        %560 = vmatprep.subr.bf16.mxu0 0
        %561 = vmatpush1.bf16.msra.mxu0 %v492
        %562 = vmatprep.subr.bf16.mxu0 0
        %563 = vmatpush1.bf16.msra.mxu0 %v493
        %564 = vmatprep.subr.bf16.mxu0 0
        %565 = vmatpush1.bf16.msra.mxu0 %v494
        %566 = vmatprep.subr.bf16.mxu0 0
        %567 = vmatpush1.bf16.msra.mxu0 %v495
        %568 = vmatprep.subr.bf16.mxu0 0
        %569 = vmatpush1.bf16.msra.mxu0 %v496
        %570 = vmatprep.subr.bf16.mxu0 0
        %571 = vmatpush1.bf16.msra.mxu0 %v497
        %572 = vmatprep.subr.bf16.mxu0 0
        %573 = vmatpush1.bf16.msra.mxu0 %v498
        %574 = vmatprep.subr.bf16.mxu0 0
        %575 = vmatpush1.bf16.msra.mxu0 %v499
        %576 = vmatprep.subr.bf16.mxu0 0
        %577 = vmatpush1.bf16.msra.mxu0 %v500
        %578 = vmatprep.subr.bf16.mxu0 0
        %579 = vmatpush1.bf16.msra.mxu0 %v501
        %580 = vmatprep.subr.bf16.mxu0 0
        %581 = vmatpush1.bf16.msra.mxu0 %v502
        %582 = vmatprep.subr.bf16.mxu0 0
        %583 = vmatpush1.bf16.msra.mxu0 %v503
        %584 = vmatprep.mubr.bf16.mxu0 %v345
        %585 = vmatmul.mubr.bf16.gmra.mrb[0].mxu0 %v344
        %v586 = vpop.f32.mrb[0].mxu0
        %v587 = vadd.f32 0.0, %v586
        %v588 = vpop.f32.mrb[0].mxu0
        %v589 = vpop.f32.mrb[0].mxu0
        %v590 = vadd.f32 0.0, %v589
        %v591 = vpop.f32.mrb[0].mxu0
        %592 = vmatprep.mubr.bf16.mxu0 %v349
        %593 = vmatmul.mubr.bf16.gmra.mrb[0].mxu0 %v348
        %v594 = vpop.f32.mrb[0].mxu0
        %v595 = vadd.f32 0.0, %v594
        %v596 = vpop.f32.mrb[0].mxu0
        %v597 = vpop.f32.mrb[0].mxu0
        %v598 = vadd.f32 0.0, %v597
        %v599 = vpop.f32.mrb[0].mxu0
        %600 = vdwg.mxu0
        %601 = vmatprep.subr.bf16.mxu0 0
        %602 = vmatpush1.bf16.msra.mxu0 %v504
        %603 = vmatprep.subr.bf16.mxu0 0
        %604 = vmatpush1.bf16.msra.mxu0 %v505
        %605 = vmatprep.subr.bf16.mxu0 0
        %606 = vmatpush1.bf16.msra.mxu0 %v506
        %607 = vmatprep.subr.bf16.mxu0 0
        %608 = vmatpush1.bf16.msra.mxu0 %v507
        %609 = vmatprep.subr.bf16.mxu0 0
        %610 = vmatpush1.bf16.msra.mxu0 %v508
        %611 = vmatprep.subr.bf16.mxu0 0
        %612 = vmatpush1.bf16.msra.mxu0 %v509
        %613 = vmatprep.subr.bf16.mxu0 0
        %614 = vmatpush1.bf16.msra.mxu0 %v510
        %615 = vmatprep.subr.bf16.mxu0 0
        %616 = vmatpush1.bf16.msra.mxu0 %v511
        %617 = vmatprep.subr.bf16.mxu0 0
        %618 = vmatpush1.bf16.msra.mxu0 %v512
        %619 = vmatprep.subr.bf16.mxu0 0
        %620 = vmatpush1.bf16.msra.mxu0 %v513
        %621 = vmatprep.subr.bf16.mxu0 0
        %622 = vmatpush1.bf16.msra.mxu0 %v514
        %623 = vmatprep.subr.bf16.mxu0 0
        %624 = vmatpush1.bf16.msra.mxu0 %v515
        %625 = vmatprep.subr.bf16.mxu0 0
        %626 = vmatpush1.bf16.msra.mxu0 %v516
        %627 = vmatprep.subr.bf16.mxu0 0
        %628 = vmatpush1.bf16.msra.mxu0 %v517
        %629 = vmatprep.subr.bf16.mxu0 0
        %630 = vmatpush1.bf16.msra.mxu0 %v518
        %631 = vmatprep.subr.bf16.mxu0 0
        %632 = vmatpush1.bf16.msra.mxu0 %v519
        %633 = vmatprep.mubr.bf16.mxu0 %v347
        %634 = vmatmul.mubr.bf16.gmra.mrb[0].mxu0 %v346
        %v635 = vpop.f32.mrb[0].mxu0
        %v636 = vadd.f32 %v587, %v635
        %v637 = vpop.f32.mrb[0].mxu0
        %v638 = vpop.f32.mrb[0].mxu0
        %v639 = vadd.f32 %v590, %v638
        %v640 = vpop.f32.mrb[0].mxu0
        %641 = vmatprep.mubr.bf16.mxu0 %v351
        %642 = vmatmul.mubr.bf16.gmra.mrb[0].mxu0 %v350
        %v643 = vpop.f32.mrb[0].mxu0
        %v644 = vadd.f32 %v595, %v643
        %v645 = vpop.f32.mrb[0].mxu0
        %v646 = vpop.f32.mrb[0].mxu0
        %v647 = vadd.f32 %v598, %v646
        %v648 = vpop.f32.mrb[0].mxu0
        %649 = vdwg.mxu0
        %s650 = smul.u32 %s19, 32
        %s651 = sadd.s32 %s233, %s650
        %s652 = scalar_lea.vmem [#allocation2], %s651
        %653 = vst [vmem:[%s652] sm:$0xff] %v636
        %654 = vst [vmem:[%s652 + $0x8] sm:$0xff] %v639
        %655 = vst [vmem:[%s652 + $0x10] sm:$0xff] %v644
        %656 = vst [vmem:[%s652 + $0x18] sm:$0xff] %v647
        %v657 = vld [vmem:[#allocation3] sm:$0x1]
        %v658 = vadd.f32 %v636, %v639
        %v659 = vadd.f32 %v658, %v644
        %v660 = vadd.f32 %v659, %v647
        %v661 = vrot.slane %v660, 4
        %v662 = vadd.f32 %v660, %v661
        %v663 = vrot.slane %v662, 2
        %v664 = vadd.f32 %v662, %v663
        %v665 = vrot.slane %v664, 1
        %v666 = vadd.f32 %v664, %v665
        %v667 = vadd.f32 %v657, %v666
        %668 = vst [vmem:[#allocation3] sm:$0x1] %v667
        %v669 = vld [vmem:[#allocation4] sm:$0x1]
        %v670 = vmul.f32 %v636, %v636
        %v671 = vmul.f32 %v639, %v639
        %v672 = vmul.f32 %v644, %v644
        %v673 = vmul.f32 %v647, %v647
        %v674 = vadd.f32 %v670, %v671
        %v675 = vadd.f32 %v674, %v672
        %v676 = vadd.f32 %v675, %v673
        %v677 = vrot.slane %v676, 4
        %v678 = vadd.f32 %v676, %v677
        %v679 = vrot.slane %v678, 2
        %v680 = vadd.f32 %v678, %v679
        %v681 = vrot.slane %v680, 1
        %v682 = vadd.f32 %v680, %v681
        %v683 = vadd.f32 %v669, %v682
        %684 = vst [vmem:[#allocation4] sm:$0x1] %v683
      $region36: #{generator_forward.10} parent=27 // pred_fallthru
        _
      %p685 = scmp.eq.s32.totalorder %s18, 1
      // Predicated region
      $region37: #{generator_forward.10} parent=27 // pred_check
        %p686 = pneg %p685
      $region38: #{generator_forward.10} parent=27 // pred_check_branch
        %688 = sbr.rel (%p686) target = $region40
      $region39: #{generator_forward.10} parent=27 // pred_region
        %v689 = vld [vmem:[#allocation3] sm:$0x1]
        %v690 = vmul.f32 %v689, 0.03125
        %v691 = vld [vmem:[#allocation4] sm:$0x1]
        %v692 = vmul.f32 %v691, 0.03125
        %v693 = vmul.f32 %v690, %v690
        %v694 = vsub.f32 %v692, %v693
        %v695 = vmax.f32 %v694, 0.0
        %v696 = vadd.f32 %v695, 1e-05
        %v697 = vrsqrt.pop %v696
        %s698 = smul.u32 %s19, 32
        %s699 = sadd.s32 %s233, %s698
        %s700 = scalar_lea.vmem [#allocation2], %s699
        %v701 = vld [vmem:[%s700] sm:$0xff]
        %v702 = vld [vmem:[%s700 + $0x8] sm:$0xff]
        %v703 = vld [vmem:[%s700 + $0x10] sm:$0xff]
        %v704 = vld [vmem:[%s700 + $0x18] sm:$0xff]
        %v706 = vlaneseq
        %v707 = vshrl.u32 %v706, 7
        %v708 = vsub.s32 0, %v707
        %v709 = vrot.slane %v690, %v708
        %v711 = vsub.f32 %v701, %v709
        %v712 = vsub.f32 %v702, %v709
        %v713 = vsub.f32 %v703, %v709
        %v714 = vsub.f32 %v704, %v709
        %v716 = vlaneseq
        %v717 = vshrl.u32 %v716, 7
        %v718 = vsub.s32 0, %v717
        %v719 = vrot.slane %v697, %v718
        %v721 = vmul.f32 %v711, %v719
        %v722 = vmul.f32 %v712, %v719
        %v723 = vmul.f32 %v713, %v719
        %v724 = vmul.f32 %v714, %v719
        %vm725 = vcmp.ge.f32.partialorder %v721, 0.0
        %vm726 = vcmp.ge.f32.partialorder %v722, 0.0
        %vm727 = vcmp.ge.f32.partialorder %v723, 0.0
        %vm728 = vcmp.ge.f32.partialorder %v724, 0.0
        %v729 = vmul.f32 %v721, 0.2
        %v730 = vmul.f32 %v722, 0.2
        %v731 = vmul.f32 %v723, 0.2
        %v732 = vmul.f32 %v724, 0.2
        %v733 = vsel %vm725, %v721, %v729
        %v734 = vsel %vm726, %v722, %v730
        %v735 = vsel %vm727, %v723, %v731
        %v736 = vsel %vm728, %v724, %v732
        %737 = vst [vmem:[%s229] sm:$0xff] %v733
        %738 = vst [vmem:[%s229 + $0x8] sm:$0xff] %v734
        %739 = vst [vmem:[%s229 + $0x10] sm:$0xff] %v735
        %740 = vst [vmem:[%s229 + $0x18] sm:$0xff] %v736
      $region40: #{generator_forward.10} parent=27 // pred_fallthru
        _
      %s741 = smul.u32 %s20, %s18
      %s742 = smul.u32 4, %s741
      %p743 = scmp.lt.s32.totalorder %s19, 0
      %s744 = scalar_select %p743, %s19, 0
      %p745 = scmp.lt.s32.totalorder %s742, 3
      %s746 = scalar_select %p745, %s742, 3
      %s747 = smul.addr %s744, 4
      %s748 = sadd.s32 %s746, %s747
      %s749 = smul.addr %s748, 8
      %s750 = scalar_lea.vmem %s2, %s749
      // Predicated region
      $region41: #{generator_forward.10} parent=27 // pred_check
        %p751 = pneg %p112
      $region42: #{generator_forward.10} parent=27 // pred_check_branch
        %753 = sbr.rel (%p751) target = $region44
      $region43: #{generator_forward.10} parent=27 // pred_region
        %s754 = smul.u32 %s20, %s18
        %s755 = smul.u32 4, %s754
      $region44: #{generator_forward.10} parent=27 // pred_fallthru
        _
    $region28: #{generator_forward.10} parent=5 // pred_fallthru
      _
    %p756 = scmp.le.s32.totalorder 2, %s8
    // Predicated region
    $region45: #{generator_forward.10} parent=5 // pred_check
      %p757 = pneg %p756
    $region46: #{generator_forward.10} parent=5 // pred_check_branch
      %759 = sbr.rel (%p757) target = $region48
    $region47: #{generator_forward.10} parent=5 // pred_region
      %s760 = ssub.s32 %s8, 2
      // Predicated region
      $region49: #{generator_forward.10} parent=47 // pred_check
        %p761 = pneg %p118
      $region50: #{generator_forward.10} parent=47 // pred_check_branch
        %763 = sbr.rel (%p761) target = $region52
      $region51: #{generator_forward.10} parent=47 // pred_region
        %s764 = smul.u32 %s23, %s21
        %s765 = smul.u32 4, %s764
        %p766 = scmp.lt.s32.totalorder %s22, 0
        %s767 = scalar_select %p766, %s22, 0
        %p768 = scmp.lt.s32.totalorder %s765, 3
        %s769 = scalar_select %p768, %s765, 3
        %s770 = smul.addr %s767, 4
        %s771 = sadd.s32 %s769, %s770
        %s772 = smul.addr %s771, 8
        %s773 = scalar_lea.vmem %s2, %s772
      $region52: #{generator_forward.10} parent=47 // pred_fallthru
        _
    $region48: #{generator_forward.10} parent=5 // pred_fallthru
      _
  $region6: #{generator_forward.10} parent=0 // loop_footer
    %s12 = sadd.s32 1, %s8
  $region7: #{generator_forward.10} parent=0 // loop_footer_branch
    %7 = sbr.rel target = $region3
  $region8: #{generator_forward.10} parent=0 // loop_exit
    _

// kernel: generator_forward.11
$region0: #{generator_forward.11}
  #allocation0 [shape = 'u32[]', space=smem, size = 0x4, offset = 0x4, fixed_abs, tag = 'smem constant byte address 0x4 - core index']
  #allocation1 [shape = 'u32[144,128]{1,0:T(1,128)}', space=vmem, size = 0x12000, scoped, tag = 'internal scratch']
  #allocation2 [shape = 'f32[1,16,128]{2,1,0:T(8,128)}', space=vmem, size = 0x2000, scoped, tag = 'scratch operand']
  #allocation3 [shape = 'f32[1,128]{1,0:T(1,128)}', space=vmem, size = 0x200, scoped, tag = 'scratch operand']
  #allocation4 [shape = 'f32[1,128]{1,0:T(1,128)}', space=vmem, size = 0x200, scoped, tag = 'scratch operand']
  %s0 = inlined_call_operand.vmem [shape: bf16[1,16,1024], index: 0, kind: input, shape index: {}]
  %s1 = inlined_call_operand.vmem [shape: bf16[1,1024,128], index: 1, kind: input, shape index: {}]
  %s2 = inlined_call_operand.vmem [shape: f32[1,16,128], index: 2, kind: output, shape index: {}]
  %s3 = sld [smem:[#allocation0]]
  $region53: #{generator_forward.11} parent=0
    _
  %s5 = ssub.s32 1, %s3
  %s6 = scalar_select 0, %s5, %s3
  loop: start=0, step=1, limit=4
  $region2: #{generator_forward.11} parent=0 // loop_pre_header
    _
  $region3: #{generator_forward.11} parent=0 // loop_header
    %s8 = sphi 0, %s12
    %p9 = scmp.ge.s32.totalorder %s8, 4
    %s15 = sphi 0, %s34
    %s16 = sphi 0, %s30
    %s17 = sphi 0, %s26
    %s18 = sphi 0, %s15
    %s19 = sphi 0, %s16
    %s20 = sphi 0, %s17
    %s21 = sphi 0, %s18
    %s22 = sphi 0, %s19
    %s23 = sphi 0, %s20
    %s43 = sphi 0, %s45
    %s46 = sphi 0, %s43
    %s47 = sphi 0, %s46
    %s63 = sphi 0, %s47
    %s69 = sphi 0, %s71
    %s72 = sphi 0, %s69
    %s73 = sphi 0, %s72
    %s89 = sphi 0, %s73
    %s99 = sphi 0, %s101
    %s102 = sphi 0, %s99
    %s103 = sphi 0, %s102
    %s119 = sphi 0, %s103
  $region4: #{generator_forward.11} parent=0 // loop_header_branch
    %11 = sbr.rel (%p9) target = $region8
  $region5: #{generator_forward.11} parent=0 // loop_body
    %s13 = ssub.s32 %s8, 1
    %s14 = ssub.s32 %s8, 2
    %s24 = sadd.s32 1, %s17
    %p25 = scmp.ge.s32.totalorder %s24, 1
    %s26 = scalar_select %p25, 0, %s24
    %s27 = sadd.s32 1, %s16
    %s28 = scalar_select %p25, %s27, %s16
    %p29 = scmp.ge.s32.totalorder %s28, 1
    %s30 = scalar_select %p29, 0, %s28
    %s31 = sadd.s32 1, %s15
    %s32 = scalar_select %p29, %s31, %s15
    %p33 = scmp.ge.s32.totalorder %s32, 2
    %s34 = scalar_select %p33, 0, %s32
    %s35 = ssub.s32 1, %s15
    %s36 = smul.u32 %s17, %s35
    %s37 = ssub.s32 1, %s34
    %s38 = smul.u32 %s26, %s37
    %s39 = ssub.s32 %s16, %s30
    %s40 = ssub.s32 %s36, %s38
    %s41 = sor.u32 %s39, %s40
    %p42 = scmp.eq.s32.totalorder %s41, 0
    %s44 = sadd.s32 %s43, 1
    %s45 = scalar_select %p42, %s43, %s44
    %p48 = pneg %p42
    %p49 = scmp.eq.s32.totalorder %s8, 1
    %p50 = por %p48, %p49
    %p51 = scmp.ne.s32.totalorder %s43, %s46
    %p52 = scmp.eq.s32.totalorder %s8, 0
    %p53 = por %p51, %p52
    %p54 = scmp.ne.s32.totalorder %s43, %s46
    %p55 = scmp.eq.s32.totalorder %s13, 1
    %p56 = por %p54, %p55
    %p57 = scmp.ne.s32.totalorder %s46, %s47
    %p58 = scmp.eq.s32.totalorder %s13, 0
    %p59 = por %p57, %p58
    %p60 = scmp.ne.s32.totalorder %s46, %s47
    %p61 = scmp.eq.s32.totalorder %s14, 1
    %p62 = por %p60, %p61
    %p64 = scmp.ne.s32.totalorder %s47, %s63
    %p65 = scmp.eq.s32.totalorder %s14, 0
    %p66 = por %p64, %p65
    %s67 = ssub.s32 %s16, %s30
    %p68 = scmp.eq.s32.totalorder %s67, 0
    %s70 = sadd.s32 %s69, 1
    %s71 = scalar_select %p68, %s69, %s70
    %p74 = pneg %p68
    %p75 = scmp.eq.s32.totalorder %s8, 1
    %p76 = por %p74, %p75
    %p77 = scmp.ne.s32.totalorder %s69, %s72
    %p78 = scmp.eq.s32.totalorder %s8, 0
    %p79 = por %p77, %p78
    %p80 = scmp.ne.s32.totalorder %s69, %s72
    %p81 = scmp.eq.s32.totalorder %s13, 1
    %p82 = por %p80, %p81
    %p83 = scmp.ne.s32.totalorder %s72, %s73
    %p84 = scmp.eq.s32.totalorder %s13, 0
    %p85 = por %p83, %p84
    %p86 = scmp.ne.s32.totalorder %s72, %s73
    %p87 = scmp.eq.s32.totalorder %s14, 1
    %p88 = por %p86, %p87
    %p90 = scmp.ne.s32.totalorder %s73, %s89
    %p91 = scmp.eq.s32.totalorder %s14, 0
    %p92 = por %p90, %p91
    %s93 = smul.u32 %s17, %s15
    %s94 = smul.u32 %s26, %s34
    %s95 = ssub.s32 %s16, %s30
    %s96 = ssub.s32 %s93, %s94
    %s97 = sor.u32 %s95, %s96
    %p98 = scmp.eq.s32.totalorder %s97, 0
    %s100 = sadd.s32 %s99, 1
    %s101 = scalar_select %p98, %s99, %s100
    %p104 = pneg %p98
    %p105 = scmp.eq.s32.totalorder %s8, 1
    %p106 = por %p104, %p105
    %p107 = scmp.ne.s32.totalorder %s99, %s102
    %p108 = scmp.eq.s32.totalorder %s8, 0
    %p109 = por %p107, %p108
    %p110 = scmp.ne.s32.totalorder %s99, %s102
    %p111 = scmp.eq.s32.totalorder %s13, 1
    %p112 = por %p110, %p111
    %p113 = scmp.ne.s32.totalorder %s102, %s103
    %p114 = scmp.eq.s32.totalorder %s13, 0
    %p115 = por %p113, %p114
    %p116 = scmp.ne.s32.totalorder %s102, %s103
    %p117 = scmp.eq.s32.totalorder %s14, 1
    %p118 = por %p116, %p117
    %p120 = scmp.ne.s32.totalorder %s103, %s119
    %p121 = scmp.eq.s32.totalorder %s14, 0
    %p122 = por %p120, %p121
    %p123 = scmp.le.s32.totalorder 1, %s8
    %p124 = scmp.lt.s32.totalorder %s8, 3
    %p125 = pnand %p123, %p124
    %p126 = pneg %p125
    // Predicated region
    $region9: #{generator_forward.11} parent=5 // pred_check
      _
    $region10: #{generator_forward.11} parent=5 // pred_check_branch
      %128 = sbr.rel (%p125) target = $region12
    $region11: #{generator_forward.11} parent=5 // pred_region
      %s129 = ssub.s32 %s8, 1
      // Predicated region
      $region13: #{generator_forward.11} parent=11 // pred_check
        %p130 = pneg %p85
      $region14: #{generator_forward.11} parent=11 // pred_check_branch
        %132 = sbr.rel (%p130) target = $region16
      $region15: #{generator_forward.11} parent=11 // pred_region
        %p133 = scmp.lt.s32.totalorder %s19, 0
        %s134 = scalar_select %p133, %s19, 0
        %s135 = smul.addr %s134, 128
        %s136 = smul.addr %s135, 4
        %s137 = scalar_lea.vmem %s1, %s136
      $region16: #{generator_forward.11} parent=11 // pred_fallthru
        _
    $region12: #{generator_forward.11} parent=5 // pred_fallthru
      _
    %p138 = scmp.lt.s32.totalorder %s8, 2
    // Predicated region
    $region17: #{generator_forward.11} parent=5 // pred_check
      %p139 = pneg %p138
    $region18: #{generator_forward.11} parent=5 // pred_check_branch
      %141 = sbr.rel (%p139) target = $region20
    $region19: #{generator_forward.11} parent=5 // pred_region
      // Predicated region
      $region21: #{generator_forward.11} parent=19 // pred_check
        %p142 = pneg %p53
      $region22: #{generator_forward.11} parent=19 // pred_check_branch
        %144 = sbr.rel (%p142) target = $region24
      $region23: #{generator_forward.11} parent=19 // pred_region
        %s145 = ssub.s32 1, %s15
        %s146 = smul.u32 %s17, %s145
        %s147 = smul.u32 2, %s146
        %p148 = scmp.lt.s32.totalorder %s16, 0
        %s149 = scalar_select %p148, %s16, 0
        %p150 = scmp.lt.s32.totalorder %s147, 1
        %s151 = scalar_select %p150, %s147, 1
        %s152 = smul.addr %s151, 8
        %s153 = smul.addr %s149, 16
        %s154 = sadd.s32 %s152, %s153
        %s155 = smul.addr %s154, 4
        %s156 = scalar_lea.vmem %s0, %s155
        %s157 = ssub.s32 1, %s15
        %s158 = smul.u32 %s17, %s157
        %s159 = smul.u32 2, %s158
      $region24: #{generator_forward.11} parent=19 // pred_fallthru
        _
    $region20: #{generator_forward.11} parent=5 // pred_fallthru
      _
    %p160 = scmp.le.s32.totalorder 1, %s8
    %p161 = scmp.lt.s32.totalorder %s8, 3
    %p162 = pnand %p160, %p161
    %p163 = pneg %p162
    // Predicated region
    $region25: #{generator_forward.11} parent=5 // pred_check
      _
    $region26: #{generator_forward.11} parent=5 // pred_check_branch
      %165 = sbr.rel (%p162) target = $region28
    $region27: #{generator_forward.11} parent=5 // pred_region
      %s166 = ssub.s32 %s8, 1
      %s167 = ssub.s32 1, %s18
      %s168 = smul.u32 %s20, %s167
      %s169 = smul.u32 2, %s168
      %p170 = scmp.lt.s32.totalorder %s19, 0
      %s171 = scalar_select %p170, %s19, 0
      %p172 = scmp.lt.s32.totalorder %s169, 1
      %s173 = scalar_select %p172, %s169, 1
      %s174 = smul.addr %s173, 8
      %s175 = smul.addr %s171, 16
      %s176 = sadd.s32 %s174, %s175
      %s177 = smul.addr %s176, 4
      %s178 = scalar_lea.vmem %s0, %s177
      %p179 = pneg %p59
      %p180 = pneg %p56
      %p181 = scmp.lt.s32.totalorder %s19, 0
      %s182 = scalar_select %p181, %s19, 0
      %s183 = smul.addr %s182, 128
      %s184 = smul.addr %s183, 4
      %s185 = scalar_lea.vmem %s1, %s184
      %p186 = pneg %p85
      %p187 = pneg %p82
      %p188 = pneg %p115
      %p189 = pneg %p112
      %s190 = smul.u32 %s20, %s18
      %s191 = smul.u32 2, %s190
      %p192 = scmp.lt.s32.totalorder %s19, 0
      %s193 = scalar_select %p192, %s19, 0
      %p194 = scmp.lt.s32.totalorder %s191, 1
      %s195 = scalar_select %p194, %s191, 1
      %s196 = smul.addr %s193, 2
      %s197 = sadd.s32 %s195, %s196
      %s198 = smul.addr %s197, 8
      %s199 = scalar_lea.vmem %s2, %s198
      %s200 = ssub.s32 1, %s18
      %s201 = smul.u32 %s20, %s200
      %s202 = smul.u32 2, %s201
      %p203 = scmp.lt.s32.totalorder %s19, 0
      %s204 = scalar_select %p203, %s19, 0
      %p205 = scmp.lt.s32.totalorder %s202, 1
      %s206 = scalar_select %p205, %s202, 1
      %s207 = smul.addr %s206, 8
      %s208 = smul.addr %s204, 16
      %s209 = sadd.s32 %s207, %s208
      %s210 = smul.addr %s209, 4
      %s211 = scalar_lea.vmem %s0, %s210
      %s212 = ssub.s32 1, %s18
      %s213 = smul.u32 %s20, %s212
      %s214 = smul.u32 2, %s213
      %p215 = scmp.lt.s32.totalorder %s19, 0
      %s216 = scalar_select %p215, %s19, 0
      %s217 = smul.addr %s216, 128
      %s218 = smul.addr %s217, 4
      %s219 = scalar_lea.vmem %s1, %s218
      %s220 = smul.u32 %s20, %s18
      %s221 = smul.u32 2, %s220
      %p222 = scmp.lt.s32.totalorder %s19, 0
      %s223 = scalar_select %p222, %s19, 0
      %p224 = scmp.lt.s32.totalorder %s221, 1
      %s225 = scalar_select %p224, %s221, 1
      %s226 = smul.addr %s223, 2
      %s227 = sadd.s32 %s225, %s226
      %s228 = smul.addr %s227, 8
      %s229 = scalar_lea.vmem %s2, %s228
      %s230 = smul.u32 %s20, %s18
      %s231 = smul.u32 2, %s230
      %s233 = smul.u32 %s20, 16
      %p234 = scmp.eq.s32.totalorder %s18, 0
      %p235 = scmp.eq.s32.totalorder %s19, 0
      %p236 = pnand %p234, %p235
      %p237 = pneg %p236
      %p238 = scmp.eq.s32.totalorder %s20, 0
      %p239 = pnand %p237, %p238
      %p240 = pneg %p239
      // Predicated region
      $region29: #{generator_forward.11} parent=27 // pred_check
        _
      $region30: #{generator_forward.11} parent=27 // pred_check_branch
        %242 = sbr.rel (%p239) target = $region32
      $region31: #{generator_forward.11} parent=27 // pred_region
        %243 = vst [vmem:[#allocation3] sm:$0x1] 0.0
        %244 = vst [vmem:[#allocation4] sm:$0x1] 0.0
      $region32: #{generator_forward.11} parent=27 // pred_fallthru
        _
      // Predicated region
      $region33: #{generator_forward.11} parent=27 // pred_check
        %p245 = pneg %p234
      $region34: #{generator_forward.11} parent=27 // pred_check_branch
        %247 = sbr.rel (%p245) target = $region36
      $region35: #{generator_forward.11} parent=27 // pred_region
        %v248 = vld [vmem:[%s211] sm:$0xff]
        %v249 = vld [vmem:[%s211 + $0x8] sm:$0xff]
        %v250 = vld [vmem:[%s211 + $0x10] sm:$0xff]
        %v251 = vld [vmem:[%s211 + $0x18] sm:$0xff]
        %v252 = vld [vmem:[%s211 + $0x20] sm:$0xff]
        %v253 = vld [vmem:[%s211 + $0x28] sm:$0xff]
        %v254 = vld [vmem:[%s211 + $0x30] sm:$0xff]
        %v255 = vld [vmem:[%s211 + $0x38] sm:$0xff]
        %v256 = vld [vmem:[%s219] sm:$0xf]
        %v257 = vld [vmem:[%s219 + $0x4] sm:$0xf]
        %v258 = vld [vmem:[%s219 + $0x8] sm:$0xf]
        %v259 = vld [vmem:[%s219 + $0xc] sm:$0xf]
        %v260 = vld [vmem:[%s219 + $0x10] sm:$0xf]
        %v261 = vld [vmem:[%s219 + $0x14] sm:$0xf]
        %v262 = vld [vmem:[%s219 + $0x18] sm:$0xf]
        %v263 = vld [vmem:[%s219 + $0x1c] sm:$0xf]
        %v264 = vld [vmem:[%s219 + $0x20] sm:$0xf]
        %v265 = vld [vmem:[%s219 + $0x24] sm:$0xf]
        %v266 = vld [vmem:[%s219 + $0x28] sm:$0xf]
        %v267 = vld [vmem:[%s219 + $0x2c] sm:$0xf]
        %v268 = vld [vmem:[%s219 + $0x30] sm:$0xf]
        %v269 = vld [vmem:[%s219 + $0x34] sm:$0xf]
        %v270 = vld [vmem:[%s219 + $0x38] sm:$0xf]
        %v271 = vld [vmem:[%s219 + $0x3c] sm:$0xf]
        %v272 = vld [vmem:[%s219 + $0x40] sm:$0xf]
        %v273 = vld [vmem:[%s219 + $0x44] sm:$0xf]
        %v274 = vld [vmem:[%s219 + $0x48] sm:$0xf]
        %v275 = vld [vmem:[%s219 + $0x4c] sm:$0xf]
        %v276 = vld [vmem:[%s219 + $0x50] sm:$0xf]
        %v277 = vld [vmem:[%s219 + $0x54] sm:$0xf]
        %v278 = vld [vmem:[%s219 + $0x58] sm:$0xf]
        %v279 = vld [vmem:[%s219 + $0x5c] sm:$0xf]
        %v280 = vld [vmem:[%s219 + $0x60] sm:$0xf]
        %v281 = vld [vmem:[%s219 + $0x64] sm:$0xf]
        %v282 = vld [vmem:[%s219 + $0x68] sm:$0xf]
        %v283 = vld [vmem:[%s219 + $0x6c] sm:$0xf]
        %v284 = vld [vmem:[%s219 + $0x70] sm:$0xf]
        %v285 = vld [vmem:[%s219 + $0x74] sm:$0xf]
        %v286 = vld [vmem:[%s219 + $0x78] sm:$0xf]
        %v287 = vld [vmem:[%s219 + $0x7c] sm:$0xf]
        %v288 = vld [vmem:[%s219 + $0x80] sm:$0xf]
        %v289 = vld [vmem:[%s219 + $0x84] sm:$0xf]
        %v290 = vld [vmem:[%s219 + $0x88] sm:$0xf]
        %v291 = vld [vmem:[%s219 + $0x8c] sm:$0xf]
        %v292 = vld [vmem:[%s219 + $0x90] sm:$0xf]
        %v293 = vld [vmem:[%s219 + $0x94] sm:$0xf]
        %v294 = vld [vmem:[%s219 + $0x98] sm:$0xf]
        %v295 = vld [vmem:[%s219 + $0x9c] sm:$0xf]
        %v296 = vld [vmem:[%s219 + $0xa0] sm:$0xf]
        %v297 = vld [vmem:[%s219 + $0xa4] sm:$0xf]
        %v298 = vld [vmem:[%s219 + $0xa8] sm:$0xf]
        %v299 = vld [vmem:[%s219 + $0xac] sm:$0xf]
        %v300 = vld [vmem:[%s219 + $0xb0] sm:$0xf]
        %v301 = vld [vmem:[%s219 + $0xb4] sm:$0xf]
        %v302 = vld [vmem:[%s219 + $0xb8] sm:$0xf]
        %v303 = vld [vmem:[%s219 + $0xbc] sm:$0xf]
        %v304 = vld [vmem:[%s219 + $0xc0] sm:$0xf]
        %v305 = vld [vmem:[%s219 + $0xc4] sm:$0xf]
        %v306 = vld [vmem:[%s219 + $0xc8] sm:$0xf]
        %v307 = vld [vmem:[%s219 + $0xcc] sm:$0xf]
        %v308 = vld [vmem:[%s219 + $0xd0] sm:$0xf]
        %v309 = vld [vmem:[%s219 + $0xd4] sm:$0xf]
        %v310 = vld [vmem:[%s219 + $0xd8] sm:$0xf]
        %v311 = vld [vmem:[%s219 + $0xdc] sm:$0xf]
        %v312 = vld [vmem:[%s219 + $0xe0] sm:$0xf]
        %v313 = vld [vmem:[%s219 + $0xe4] sm:$0xf]
        %v314 = vld [vmem:[%s219 + $0xe8] sm:$0xf]
        %v315 = vld [vmem:[%s219 + $0xec] sm:$0xf]
        %v316 = vld [vmem:[%s219 + $0xf0] sm:$0xf]
        %v317 = vld [vmem:[%s219 + $0xf4] sm:$0xf]
        %v318 = vld [vmem:[%s219 + $0xf8] sm:$0xf]
        %v319 = vld [vmem:[%s219 + $0xfc] sm:$0xf]
        %v320 = vld [vmem:[%s219 + $0x100] sm:$0xf]
        %v321 = vld [vmem:[%s219 + $0x104] sm:$0xf]
        %v322 = vld [vmem:[%s219 + $0x108] sm:$0xf]
        %v323 = vld [vmem:[%s219 + $0x10c] sm:$0xf]
        %v324 = vld [vmem:[%s219 + $0x110] sm:$0xf]
        %v325 = vld [vmem:[%s219 + $0x114] sm:$0xf]
        %v326 = vld [vmem:[%s219 + $0x118] sm:$0xf]
        %v327 = vld [vmem:[%s219 + $0x11c] sm:$0xf]
        %v328 = vld [vmem:[%s219 + $0x120] sm:$0xf]
        %v329 = vld [vmem:[%s219 + $0x124] sm:$0xf]
        %v330 = vld [vmem:[%s219 + $0x128] sm:$0xf]
        %v331 = vld [vmem:[%s219 + $0x12c] sm:$0xf]
        %v332 = vld [vmem:[%s219 + $0x130] sm:$0xf]
        %v333 = vld [vmem:[%s219 + $0x134] sm:$0xf]
        %v334 = vld [vmem:[%s219 + $0x138] sm:$0xf]
        %v335 = vld [vmem:[%s219 + $0x13c] sm:$0xf]
        %v336 = vld [vmem:[%s219 + $0x140] sm:$0xf]
        %v337 = vld [vmem:[%s219 + $0x144] sm:$0xf]
        %v338 = vld [vmem:[%s219 + $0x148] sm:$0xf]
        %v339 = vld [vmem:[%s219 + $0x14c] sm:$0xf]
        %v340 = vld [vmem:[%s219 + $0x150] sm:$0xf]
        %v341 = vld [vmem:[%s219 + $0x154] sm:$0xf]
        %v342 = vld [vmem:[%s219 + $0x158] sm:$0xf]
        %v343 = vld [vmem:[%s219 + $0x15c] sm:$0xf]
        %v344 = vld [vmem:[%s219 + $0x160] sm:$0xf]
        %v345 = vld [vmem:[%s219 + $0x164] sm:$0xf]
        %v346 = vld [vmem:[%s219 + $0x168] sm:$0xf]
        %v347 = vld [vmem:[%s219 + $0x16c] sm:$0xf]
        %v348 = vld [vmem:[%s219 + $0x170] sm:$0xf]
        %v349 = vld [vmem:[%s219 + $0x174] sm:$0xf]
        %v350 = vld [vmem:[%s219 + $0x178] sm:$0xf]
        %v351 = vld [vmem:[%s219 + $0x17c] sm:$0xf]
        %v352 = vld [vmem:[%s219 + $0x180] sm:$0xf]
        %v353 = vld [vmem:[%s219 + $0x184] sm:$0xf]
        %v354 = vld [vmem:[%s219 + $0x188] sm:$0xf]
        %v355 = vld [vmem:[%s219 + $0x18c] sm:$0xf]
        %v356 = vld [vmem:[%s219 + $0x190] sm:$0xf]
        %v357 = vld [vmem:[%s219 + $0x194] sm:$0xf]
        %v358 = vld [vmem:[%s219 + $0x198] sm:$0xf]
        %v359 = vld [vmem:[%s219 + $0x19c] sm:$0xf]
        %v360 = vld [vmem:[%s219 + $0x1a0] sm:$0xf]
        %v361 = vld [vmem:[%s219 + $0x1a4] sm:$0xf]
        %v362 = vld [vmem:[%s219 + $0x1a8] sm:$0xf]
        %v363 = vld [vmem:[%s219 + $0x1ac] sm:$0xf]
        %v364 = vld [vmem:[%s219 + $0x1b0] sm:$0xf]
        %v365 = vld [vmem:[%s219 + $0x1b4] sm:$0xf]
        %v366 = vld [vmem:[%s219 + $0x1b8] sm:$0xf]
        %v367 = vld [vmem:[%s219 + $0x1bc] sm:$0xf]
        %v368 = vld [vmem:[%s219 + $0x1c0] sm:$0xf]
        %v369 = vld [vmem:[%s219 + $0x1c4] sm:$0xf]
        %v370 = vld [vmem:[%s219 + $0x1c8] sm:$0xf]
        %v371 = vld [vmem:[%s219 + $0x1cc] sm:$0xf]
        %v372 = vld [vmem:[%s219 + $0x1d0] sm:$0xf]
        %v373 = vld [vmem:[%s219 + $0x1d4] sm:$0xf]
        %v374 = vld [vmem:[%s219 + $0x1d8] sm:$0xf]
        %v375 = vld [vmem:[%s219 + $0x1dc] sm:$0xf]
        %v376 = vld [vmem:[%s219 + $0x1e0] sm:$0xf]
        %v377 = vld [vmem:[%s219 + $0x1e4] sm:$0xf]
        %v378 = vld [vmem:[%s219 + $0x1e8] sm:$0xf]
        %v379 = vld [vmem:[%s219 + $0x1ec] sm:$0xf]
        %v380 = vld [vmem:[%s219 + $0x1f0] sm:$0xf]
        %v381 = vld [vmem:[%s219 + $0x1f4] sm:$0xf]
        %v382 = vld [vmem:[%s219 + $0x1f8] sm:$0xf]
        %v383 = vld [vmem:[%s219 + $0x1fc] sm:$0xf]
        %v392 = vunpack.c.l.b16 %v248
        %v393 = vunpack.c.h.b16 %v248
        %v394 = vunpack.c.l.b16 %v249
        %v395 = vunpack.c.h.b16 %v249
        %v396 = vunpack.c.l.b16 %v250
        %v397 = vunpack.c.h.b16 %v250
        %v398 = vunpack.c.l.b16 %v251
        %v399 = vunpack.c.h.b16 %v251
        %v400 = vunpack.c.l.b16 %v252
        %v401 = vunpack.c.h.b16 %v252
        %v402 = vunpack.c.l.b16 %v253
        %v403 = vunpack.c.h.b16 %v253
        %v404 = vunpack.c.l.b16 %v254
        %v405 = vunpack.c.h.b16 %v254
        %v406 = vunpack.c.l.b16 %v255
        %v407 = vunpack.c.h.b16 %v255
        %v408 = vpack.c.b16 %v400, %v392
        %v409 = vpack.c.b16 %v401, %v393
        %v410 = vpack.c.b16 %v402, %v394
        %v411 = vpack.c.b16 %v403, %v395
        %v412 = vpack.c.b16 %v404, %v396
        %v413 = vpack.c.b16 %v405, %v397
        %v414 = vpack.c.b16 %v406, %v398
        %v415 = vpack.c.b16 %v407, %v399
        %v552 = vunpack.c.l.b16 %v256
        %v553 = vunpack.c.l.b16 %v257
        %v554 = vunpack.c.l.b16 %v258
        %v555 = vunpack.c.l.b16 %v259
        %v556 = vunpack.c.l.b16 %v260
        %v557 = vunpack.c.l.b16 %v261
        %v558 = vunpack.c.l.b16 %v262
        %v559 = vunpack.c.l.b16 %v263
        %v560 = vunpack.c.l.b16 %v264
        %v561 = vunpack.c.l.b16 %v265
        %v562 = vunpack.c.l.b16 %v266
        %v563 = vunpack.c.l.b16 %v267
        %v564 = vunpack.c.l.b16 %v268
        %v565 = vunpack.c.l.b16 %v269
        %v566 = vunpack.c.l.b16 %v270
        %v567 = vunpack.c.l.b16 %v271
        %v568 = vunpack.c.l.b16 %v272
        %v569 = vunpack.c.l.b16 %v273
        %v570 = vunpack.c.l.b16 %v274
        %v571 = vunpack.c.l.b16 %v275
        %v572 = vunpack.c.l.b16 %v276
        %v573 = vunpack.c.l.b16 %v277
        %v574 = vunpack.c.l.b16 %v278
        %v575 = vunpack.c.l.b16 %v279
        %v576 = vunpack.c.l.b16 %v280
        %v577 = vunpack.c.l.b16 %v281
        %v578 = vunpack.c.l.b16 %v282
        %v579 = vunpack.c.l.b16 %v283
        %v580 = vunpack.c.l.b16 %v284
        %v581 = vunpack.c.l.b16 %v285
        %v582 = vunpack.c.l.b16 %v286
        %v583 = vunpack.c.l.b16 %v287
        %v584 = vunpack.c.l.b16 %v288
        %v585 = vunpack.c.l.b16 %v289
        %v586 = vunpack.c.l.b16 %v290
        %v587 = vunpack.c.l.b16 %v291
        %v588 = vunpack.c.l.b16 %v292
        %v589 = vunpack.c.l.b16 %v293
        %v590 = vunpack.c.l.b16 %v294
        %v591 = vunpack.c.l.b16 %v295
        %v592 = vunpack.c.l.b16 %v296
        %v593 = vunpack.c.l.b16 %v297
        %v594 = vunpack.c.l.b16 %v298
        %v595 = vunpack.c.l.b16 %v299
        %v596 = vunpack.c.l.b16 %v300
        %v597 = vunpack.c.l.b16 %v301
        %v598 = vunpack.c.l.b16 %v302
        %v599 = vunpack.c.l.b16 %v303
        %v600 = vunpack.c.l.b16 %v304
        %v601 = vunpack.c.l.b16 %v305
        %v602 = vunpack.c.l.b16 %v306
        %v603 = vunpack.c.l.b16 %v307
        %v604 = vunpack.c.l.b16 %v308
        %v605 = vunpack.c.l.b16 %v309
        %v606 = vunpack.c.l.b16 %v310
        %v607 = vunpack.c.l.b16 %v311
        %v608 = vunpack.c.l.b16 %v312
        %v609 = vunpack.c.l.b16 %v313
        %v610 = vunpack.c.l.b16 %v314
        %v611 = vunpack.c.l.b16 %v315
        %v612 = vunpack.c.l.b16 %v316
        %v613 = vunpack.c.l.b16 %v317
        %v614 = vunpack.c.l.b16 %v318
        %v615 = vunpack.c.l.b16 %v319
        %v616 = vunpack.c.l.b16 %v320
        %v617 = vunpack.c.l.b16 %v321
        %v618 = vunpack.c.l.b16 %v322
        %v619 = vunpack.c.l.b16 %v323
        %v620 = vunpack.c.l.b16 %v324
        %v621 = vunpack.c.l.b16 %v325
        %v622 = vunpack.c.l.b16 %v326
        %v623 = vunpack.c.l.b16 %v327
        %v624 = vunpack.c.l.b16 %v328
        %v625 = vunpack.c.l.b16 %v329
        %v626 = vunpack.c.l.b16 %v330
        %v627 = vunpack.c.l.b16 %v331
        %v628 = vunpack.c.l.b16 %v332
        %v629 = vunpack.c.l.b16 %v333
        %v630 = vunpack.c.l.b16 %v334
        %v631 = vunpack.c.l.b16 %v335
        %v632 = vunpack.c.l.b16 %v336
        %v633 = vunpack.c.l.b16 %v337
        %v634 = vunpack.c.l.b16 %v338
        %v635 = vunpack.c.l.b16 %v339
        %v636 = vunpack.c.l.b16 %v340
        %v637 = vunpack.c.l.b16 %v341
        %v638 = vunpack.c.l.b16 %v342
        %v639 = vunpack.c.l.b16 %v343
        %v640 = vunpack.c.l.b16 %v344
        %v641 = vunpack.c.l.b16 %v345
        %v642 = vunpack.c.l.b16 %v346
        %v643 = vunpack.c.l.b16 %v347
        %v644 = vunpack.c.l.b16 %v348
        %v645 = vunpack.c.l.b16 %v349
        %v646 = vunpack.c.l.b16 %v350
        %v647 = vunpack.c.l.b16 %v351
        %v648 = vunpack.c.l.b16 %v352
        %v649 = vunpack.c.l.b16 %v353
        %v650 = vunpack.c.l.b16 %v354
        %v651 = vunpack.c.l.b16 %v355
        %v652 = vunpack.c.l.b16 %v356
        %v653 = vunpack.c.l.b16 %v357
        %v654 = vunpack.c.l.b16 %v358
        %v655 = vunpack.c.l.b16 %v359
        %v656 = vunpack.c.l.b16 %v360
        %v657 = vunpack.c.l.b16 %v361
        %v658 = vunpack.c.l.b16 %v362
        %v659 = vunpack.c.l.b16 %v363
        %v660 = vunpack.c.l.b16 %v364
        %v661 = vunpack.c.l.b16 %v365
        %v662 = vunpack.c.l.b16 %v366
        %v663 = vunpack.c.l.b16 %v367
        %v664 = vunpack.c.l.b16 %v368
        %v665 = vunpack.c.l.b16 %v369
        %v666 = vunpack.c.l.b16 %v370
        %v667 = vunpack.c.l.b16 %v371
        %v668 = vunpack.c.l.b16 %v372
        %v669 = vunpack.c.l.b16 %v373
        %v670 = vunpack.c.l.b16 %v374
        %v671 = vunpack.c.l.b16 %v375
        %v672 = vunpack.c.l.b16 %v376
        %v673 = vunpack.c.l.b16 %v377
        %v674 = vunpack.c.l.b16 %v378
        %v675 = vunpack.c.l.b16 %v379
        %v676 = vunpack.c.l.b16 %v380
        %v677 = vunpack.c.l.b16 %v381
        %v678 = vunpack.c.l.b16 %v382
        %v679 = vunpack.c.l.b16 %v383
        %v680 = vpack.c.b16 %v553, %v552
        %v681 = vpack.c.b16 %v555, %v554
        %v682 = vpack.c.b16 %v557, %v556
        %v683 = vpack.c.b16 %v559, %v558
        %v684 = vpack.c.b16 %v561, %v560
        %v685 = vpack.c.b16 %v563, %v562
        %v686 = vpack.c.b16 %v565, %v564
        %v687 = vpack.c.b16 %v567, %v566
        %v688 = vpack.c.b16 %v569, %v568
        %v689 = vpack.c.b16 %v571, %v570
        %v690 = vpack.c.b16 %v573, %v572
        %v691 = vpack.c.b16 %v575, %v574
        %v692 = vpack.c.b16 %v577, %v576
        %v693 = vpack.c.b16 %v579, %v578
        %v694 = vpack.c.b16 %v581, %v580
        %v695 = vpack.c.b16 %v583, %v582
        %v696 = vpack.c.b16 %v585, %v584
        %v697 = vpack.c.b16 %v587, %v586
        %v698 = vpack.c.b16 %v589, %v588
        %v699 = vpack.c.b16 %v591, %v590
        %v700 = vpack.c.b16 %v593, %v592
        %v701 = vpack.c.b16 %v595, %v594
        %v702 = vpack.c.b16 %v597, %v596
        %v703 = vpack.c.b16 %v599, %v598
        %v704 = vpack.c.b16 %v601, %v600
        %v705 = vpack.c.b16 %v603, %v602
        %v706 = vpack.c.b16 %v605, %v604
        %v707 = vpack.c.b16 %v607, %v606
        %v708 = vpack.c.b16 %v609, %v608
        %v709 = vpack.c.b16 %v611, %v610
        %v710 = vpack.c.b16 %v613, %v612
        %v711 = vpack.c.b16 %v615, %v614
        %v712 = vpack.c.b16 %v617, %v616
        %v713 = vpack.c.b16 %v619, %v618
        %v714 = vpack.c.b16 %v621, %v620
        %v715 = vpack.c.b16 %v623, %v622
        %v716 = vpack.c.b16 %v625, %v624
        %v717 = vpack.c.b16 %v627, %v626
        %v718 = vpack.c.b16 %v629, %v628
        %v719 = vpack.c.b16 %v631, %v630
        %v720 = vpack.c.b16 %v633, %v632
        %v721 = vpack.c.b16 %v635, %v634
        %v722 = vpack.c.b16 %v637, %v636
        %v723 = vpack.c.b16 %v639, %v638
        %v724 = vpack.c.b16 %v641, %v640
        %v725 = vpack.c.b16 %v643, %v642
        %v726 = vpack.c.b16 %v645, %v644
        %v727 = vpack.c.b16 %v647, %v646
        %v728 = vpack.c.b16 %v649, %v648
        %v729 = vpack.c.b16 %v651, %v650
        %v730 = vpack.c.b16 %v653, %v652
        %v731 = vpack.c.b16 %v655, %v654
        %v732 = vpack.c.b16 %v657, %v656
        %v733 = vpack.c.b16 %v659, %v658
        %v734 = vpack.c.b16 %v661, %v660
        %v735 = vpack.c.b16 %v663, %v662
        %v736 = vpack.c.b16 %v665, %v664
        %v737 = vpack.c.b16 %v667, %v666
        %v738 = vpack.c.b16 %v669, %v668
        %v739 = vpack.c.b16 %v671, %v670
        %v740 = vpack.c.b16 %v673, %v672
        %v741 = vpack.c.b16 %v675, %v674
        %v742 = vpack.c.b16 %v677, %v676
        %v743 = vpack.c.b16 %v679, %v678
        %808 = vmatprep.subr.bf16.mxu0 0
        %809 = vmatpush1.bf16.msra.mxu0 %v680
        %810 = vmatprep.subr.bf16.mxu0 0
        %811 = vmatpush1.bf16.msra.mxu0 %v681
        %812 = vmatprep.subr.bf16.mxu0 0
        %813 = vmatpush1.bf16.msra.mxu0 %v682
        %814 = vmatprep.subr.bf16.mxu0 0
        %815 = vmatpush1.bf16.msra.mxu0 %v683
        %816 = vmatprep.subr.bf16.mxu0 0
        %817 = vmatpush1.bf16.msra.mxu0 %v684
        %818 = vmatprep.subr.bf16.mxu0 0
        %819 = vmatpush1.bf16.msra.mxu0 %v685
        %820 = vmatprep.subr.bf16.mxu0 0
        %821 = vmatpush1.bf16.msra.mxu0 %v686
        %822 = vmatprep.subr.bf16.mxu0 0
        %823 = vmatpush1.bf16.msra.mxu0 %v687
        %824 = vmatprep.subr.bf16.mxu0 0
        %825 = vmatpush1.bf16.msra.mxu0 %v688
        %826 = vmatprep.subr.bf16.mxu0 0
        %827 = vmatpush1.bf16.msra.mxu0 %v689
        %828 = vmatprep.subr.bf16.mxu0 0
        %829 = vmatpush1.bf16.msra.mxu0 %v690
        %830 = vmatprep.subr.bf16.mxu0 0
        %831 = vmatpush1.bf16.msra.mxu0 %v691
        %832 = vmatprep.subr.bf16.mxu0 0
        %833 = vmatpush1.bf16.msra.mxu0 %v692
        %834 = vmatprep.subr.bf16.mxu0 0
        %835 = vmatpush1.bf16.msra.mxu0 %v693
        %836 = vmatprep.subr.bf16.mxu0 0
        %837 = vmatpush1.bf16.msra.mxu0 %v694
        %838 = vmatprep.subr.bf16.mxu0 0
        %839 = vmatpush1.bf16.msra.mxu0 %v695
        %840 = vmatprep.mubr.bf16.mxu0 %v409
        %841 = vmatmul.mubr.bf16.gmra.mrb[0].mxu0 %v408
        %v842 = vpop.f32.mrb[0].mxu0
        %v843 = vadd.f32 0.0, %v842
        %v844 = vpop.f32.mrb[0].mxu0
        %v845 = vpop.f32.mrb[0].mxu0
        %v846 = vadd.f32 0.0, %v845
        %v847 = vpop.f32.mrb[0].mxu0
        %848 = vdwg.mxu0
        %849 = vmatprep.subr.bf16.mxu0 0
        %850 = vmatpush1.bf16.msra.mxu0 %v696
        %851 = vmatprep.subr.bf16.mxu0 0
        %852 = vmatpush1.bf16.msra.mxu0 %v697
        %853 = vmatprep.subr.bf16.mxu0 0
        %854 = vmatpush1.bf16.msra.mxu0 %v698
        %855 = vmatprep.subr.bf16.mxu0 0
        %856 = vmatpush1.bf16.msra.mxu0 %v699
        %857 = vmatprep.subr.bf16.mxu0 0
        %858 = vmatpush1.bf16.msra.mxu0 %v700
        %859 = vmatprep.subr.bf16.mxu0 0
        %860 = vmatpush1.bf16.msra.mxu0 %v701
        %861 = vmatprep.subr.bf16.mxu0 0
        %862 = vmatpush1.bf16.msra.mxu0 %v702
        %863 = vmatprep.subr.bf16.mxu0 0
        %864 = vmatpush1.bf16.msra.mxu0 %v703
        %865 = vmatprep.subr.bf16.mxu0 0
        %866 = vmatpush1.bf16.msra.mxu0 %v704
        %867 = vmatprep.subr.bf16.mxu0 0
        %868 = vmatpush1.bf16.msra.mxu0 %v705
        %869 = vmatprep.subr.bf16.mxu0 0
        %870 = vmatpush1.bf16.msra.mxu0 %v706
        %871 = vmatprep.subr.bf16.mxu0 0
        %872 = vmatpush1.bf16.msra.mxu0 %v707
        %873 = vmatprep.subr.bf16.mxu0 0
        %874 = vmatpush1.bf16.msra.mxu0 %v708
        %875 = vmatprep.subr.bf16.mxu0 0
        %876 = vmatpush1.bf16.msra.mxu0 %v709
        %877 = vmatprep.subr.bf16.mxu0 0
        %878 = vmatpush1.bf16.msra.mxu0 %v710
        %879 = vmatprep.subr.bf16.mxu0 0
        %880 = vmatpush1.bf16.msra.mxu0 %v711
        %881 = vmatprep.mubr.bf16.mxu0 %v411
        %882 = vmatmul.mubr.bf16.gmra.mrb[0].mxu0 %v410
        %v883 = vpop.f32.mrb[0].mxu0
        %v884 = vadd.f32 %v843, %v883
        %v885 = vpop.f32.mrb[0].mxu0
        %v886 = vpop.f32.mrb[0].mxu0
        %v887 = vadd.f32 %v846, %v886
        %v888 = vpop.f32.mrb[0].mxu0
        %889 = vdwg.mxu0
        %890 = vmatprep.subr.bf16.mxu0 0
        %891 = vmatpush1.bf16.msra.mxu0 %v712
        %892 = vmatprep.subr.bf16.mxu0 0
        %893 = vmatpush1.bf16.msra.mxu0 %v713
        %894 = vmatprep.subr.bf16.mxu0 0
        %895 = vmatpush1.bf16.msra.mxu0 %v714
        %896 = vmatprep.subr.bf16.mxu0 0
        %897 = vmatpush1.bf16.msra.mxu0 %v715
        %898 = vmatprep.subr.bf16.mxu0 0
        %899 = vmatpush1.bf16.msra.mxu0 %v716
        %900 = vmatprep.subr.bf16.mxu0 0
        %901 = vmatpush1.bf16.msra.mxu0 %v717
        %902 = vmatprep.subr.bf16.mxu0 0
        %903 = vmatpush1.bf16.msra.mxu0 %v718
        %904 = vmatprep.subr.bf16.mxu0 0
        %905 = vmatpush1.bf16.msra.mxu0 %v719
        %906 = vmatprep.subr.bf16.mxu0 0
        %907 = vmatpush1.bf16.msra.mxu0 %v720
        %908 = vmatprep.subr.bf16.mxu0 0
        %909 = vmatpush1.bf16.msra.mxu0 %v721
        %910 = vmatprep.subr.bf16.mxu0 0
        %911 = vmatpush1.bf16.msra.mxu0 %v722
        %912 = vmatprep.subr.bf16.mxu0 0
        %913 = vmatpush1.bf16.msra.mxu0 %v723
        %914 = vmatprep.subr.bf16.mxu0 0
        %915 = vmatpush1.bf16.msra.mxu0 %v724
        %916 = vmatprep.subr.bf16.mxu0 0
        %917 = vmatpush1.bf16.msra.mxu0 %v725
        %918 = vmatprep.subr.bf16.mxu0 0
        %919 = vmatpush1.bf16.msra.mxu0 %v726
        %920 = vmatprep.subr.bf16.mxu0 0
        %921 = vmatpush1.bf16.msra.mxu0 %v727
        %922 = vmatprep.mubr.bf16.mxu0 %v413
        %923 = vmatmul.mubr.bf16.gmra.mrb[0].mxu0 %v412
        %v924 = vpop.f32.mrb[0].mxu0
        %v925 = vadd.f32 %v884, %v924
        %v926 = vpop.f32.mrb[0].mxu0
        %v927 = vpop.f32.mrb[0].mxu0
        %v928 = vadd.f32 %v887, %v927
        %v929 = vpop.f32.mrb[0].mxu0
        %930 = vdwg.mxu0
        %931 = vmatprep.subr.bf16.mxu0 0
        %932 = vmatpush1.bf16.msra.mxu0 %v728
        %933 = vmatprep.subr.bf16.mxu0 0
        %934 = vmatpush1.bf16.msra.mxu0 %v729
        %935 = vmatprep.subr.bf16.mxu0 0
        %936 = vmatpush1.bf16.msra.mxu0 %v730
        %937 = vmatprep.subr.bf16.mxu0 0
        %938 = vmatpush1.bf16.msra.mxu0 %v731
        %939 = vmatprep.subr.bf16.mxu0 0
        %940 = vmatpush1.bf16.msra.mxu0 %v732
        %941 = vmatprep.subr.bf16.mxu0 0
        %942 = vmatpush1.bf16.msra.mxu0 %v733
        %943 = vmatprep.subr.bf16.mxu0 0
        %944 = vmatpush1.bf16.msra.mxu0 %v734
        %945 = vmatprep.subr.bf16.mxu0 0
        %946 = vmatpush1.bf16.msra.mxu0 %v735
        %947 = vmatprep.subr.bf16.mxu0 0
        %948 = vmatpush1.bf16.msra.mxu0 %v736
        %949 = vmatprep.subr.bf16.mxu0 0
        %950 = vmatpush1.bf16.msra.mxu0 %v737
        %951 = vmatprep.subr.bf16.mxu0 0
        %952 = vmatpush1.bf16.msra.mxu0 %v738
        %953 = vmatprep.subr.bf16.mxu0 0
        %954 = vmatpush1.bf16.msra.mxu0 %v739
        %955 = vmatprep.subr.bf16.mxu0 0
        %956 = vmatpush1.bf16.msra.mxu0 %v740
        %957 = vmatprep.subr.bf16.mxu0 0
        %958 = vmatpush1.bf16.msra.mxu0 %v741
        %959 = vmatprep.subr.bf16.mxu0 0
        %960 = vmatpush1.bf16.msra.mxu0 %v742
        %961 = vmatprep.subr.bf16.mxu0 0
        %962 = vmatpush1.bf16.msra.mxu0 %v743
        %963 = vmatprep.mubr.bf16.mxu0 %v415
        %964 = vmatmul.mubr.bf16.gmra.mrb[0].mxu0 %v414
        %v965 = vpop.f32.mrb[0].mxu0
        %v966 = vadd.f32 %v925, %v965
        %v967 = vpop.f32.mrb[0].mxu0
        %v968 = vpop.f32.mrb[0].mxu0
        %v969 = vadd.f32 %v928, %v968
        %v970 = vpop.f32.mrb[0].mxu0
        %971 = vdwg.mxu0
        %s972 = smul.u32 %s19, 16
        %s973 = sadd.s32 %s233, %s972
        %s974 = scalar_lea.vmem [#allocation2], %s973
        %975 = vst [vmem:[%s974] sm:$0xff] %v966
        %976 = vst [vmem:[%s974 + $0x8] sm:$0xff] %v969
        %v977 = vld [vmem:[#allocation3] sm:$0x1]
        %v978 = vadd.f32 %v966, %v969
        %v979 = vrot.slane %v978, 4
        %v980 = vadd.f32 %v978, %v979
        %v981 = vrot.slane %v980, 2
        %v982 = vadd.f32 %v980, %v981
        %v983 = vrot.slane %v982, 1
        %v984 = vadd.f32 %v982, %v983
        %v985 = vadd.f32 %v977, %v984
        %986 = vst [vmem:[#allocation3] sm:$0x1] %v985
        %v987 = vld [vmem:[#allocation4] sm:$0x1]
        %v988 = vmul.f32 %v966, %v966
        %v989 = vmul.f32 %v969, %v969
        %v990 = vadd.f32 %v988, %v989
        %v991 = vrot.slane %v990, 4
        %v992 = vadd.f32 %v990, %v991
        %v993 = vrot.slane %v992, 2
        %v994 = vadd.f32 %v992, %v993
        %v995 = vrot.slane %v994, 1
        %v996 = vadd.f32 %v994, %v995
        %v997 = vadd.f32 %v987, %v996
        %998 = vst [vmem:[#allocation4] sm:$0x1] %v997
      $region36: #{generator_forward.11} parent=27 // pred_fallthru
        _
      %p999 = scmp.eq.s32.totalorder %s18, 1
      // Predicated region
      $region37: #{generator_forward.11} parent=27 // pred_check
        %p1000 = pneg %p999
      $region38: #{generator_forward.11} parent=27 // pred_check_branch
        %1002 = sbr.rel (%p1000) target = $region40
      $region39: #{generator_forward.11} parent=27 // pred_region
        %v1003 = vld [vmem:[#allocation3] sm:$0x1]
        %v1004 = vmul.f32 %v1003, 0.125
        %v1005 = vld [vmem:[#allocation4] sm:$0x1]
        %v1006 = vmul.f32 %v1005, 0.125
        %v1007 = vmul.f32 %v1004, %v1004
        %v1008 = vsub.f32 %v1006, %v1007
        %v1009 = vmax.f32 %v1008, 0.0
        %v1010 = vadd.f32 %v1009, 1e-05
        %v1011 = vrsqrt.pop %v1010
        %s1012 = smul.u32 %s19, 16
        %s1013 = sadd.s32 %s233, %s1012
        %s1014 = scalar_lea.vmem [#allocation2], %s1013
        %v1015 = vld [vmem:[%s1014] sm:$0xff]
        %v1016 = vld [vmem:[%s1014 + $0x8] sm:$0xff]
        %v1018 = vlaneseq
        %v1019 = vshrl.u32 %v1018, 7
        %v1020 = vsub.s32 0, %v1019
        %v1021 = vrot.slane %v1004, %v1020
        %v1023 = vsub.f32 %v1015, %v1021
        %v1024 = vsub.f32 %v1016, %v1021
        %v1026 = vlaneseq
        %v1027 = vshrl.u32 %v1026, 7
        %v1028 = vsub.s32 0, %v1027
        %v1029 = vrot.slane %v1011, %v1028
        %v1031 = vmul.f32 %v1023, %v1029
        %v1032 = vmul.f32 %v1024, %v1029
        %vm1033 = vcmp.ge.f32.partialorder %v1031, 0.0
        %vm1034 = vcmp.ge.f32.partialorder %v1032, 0.0
        %v1035 = vmul.f32 %v1031, 0.2
        %v1036 = vmul.f32 %v1032, 0.2
        %v1037 = vsel %vm1033, %v1031, %v1035
        %v1038 = vsel %vm1034, %v1032, %v1036
        %1039 = vst [vmem:[%s229] sm:$0xff] %v1037
        %1040 = vst [vmem:[%s229 + $0x8] sm:$0xff] %v1038
      $region40: #{generator_forward.11} parent=27 // pred_fallthru
        _
      %s1041 = smul.u32 %s20, %s18
      %s1042 = smul.u32 2, %s1041
      %p1043 = scmp.lt.s32.totalorder %s19, 0
      %s1044 = scalar_select %p1043, %s19, 0
      %p1045 = scmp.lt.s32.totalorder %s1042, 1
      %s1046 = scalar_select %p1045, %s1042, 1
      %s1047 = smul.addr %s1044, 2
      %s1048 = sadd.s32 %s1046, %s1047
      %s1049 = smul.addr %s1048, 8
      %s1050 = scalar_lea.vmem %s2, %s1049
      // Predicated region
      $region41: #{generator_forward.11} parent=27 // pred_check
        %p1051 = pneg %p112
      $region42: #{generator_forward.11} parent=27 // pred_check_branch
        %1053 = sbr.rel (%p1051) target = $region44
      $region43: #{generator_forward.11} parent=27 // pred_region
        %s1054 = smul.u32 %s20, %s18
        %s1055 = smul.u32 2, %s1054
      $region44: #{generator_forward.11} parent=27 // pred_fallthru
        _
    $region28: #{generator_forward.11} parent=5 // pred_fallthru
      _
    %p1056 = scmp.le.s32.totalorder 2, %s8
    // Predicated region
    $region45: #{generator_forward.11} parent=5 // pred_check
      %p1057 = pneg %p1056
    $region46: #{generator_forward.11} parent=5 // pred_check_branch
      %1059 = sbr.rel (%p1057) target = $region48
    $region47: #{generator_forward.11} parent=5 // pred_region
      %s1060 = ssub.s32 %s8, 2
      // Predicated region
      $region49: #{generator_forward.11} parent=47 // pred_check
        %p1061 = pneg %p118
      $region50: #{generator_forward.11} parent=47 // pred_check_branch
        %1063 = sbr.rel (%p1061) target = $region52
      $region51: #{generator_forward.11} parent=47 // pred_region
        %s1064 = smul.u32 %s23, %s21
        %s1065 = smul.u32 2, %s1064
        %p1066 = scmp.lt.s32.totalorder %s22, 0
        %s1067 = scalar_select %p1066, %s22, 0
        %p1068 = scmp.lt.s32.totalorder %s1065, 1
        %s1069 = scalar_select %p1068, %s1065, 1
        %s1070 = smul.addr %s1067, 2
        %s1071 = sadd.s32 %s1069, %s1070
        %s1072 = smul.addr %s1071, 8
        %s1073 = scalar_lea.vmem %s2, %s1072
      $region52: #{generator_forward.11} parent=47 // pred_fallthru
        _
    $region48: #{generator_forward.11} parent=5 // pred_fallthru
      _
  $region6: #{generator_forward.11} parent=0 // loop_footer
    %s12 = sadd.s32 1, %s8
  $region7: #{generator_forward.11} parent=0 // loop_footer_branch
    %7 = sbr.rel target = $region3
  $region8: #{generator_forward.11} parent=0 // loop_exit
    _

// kernel: generator_forward.12
$region0: #{generator_forward.12}
  #allocation0 [shape = 'u32[]', space=smem, size = 0x4, offset = 0x4, fixed_abs, tag = 'smem constant byte address 0x4 - core index']
  #allocation1 [shape = 'u32[144,128]{1,0:T(1,128)}', space=vmem, size = 0x12000, scoped, tag = 'internal scratch']
  #allocation2 [shape = 'f32[4,16,128]{2,1,0:T(8,128)}', space=vmem, size = 0x8000, scoped, tag = 'scratch operand']
  #allocation3 [shape = 'f32[1,128]{1,0:T(1,128)}', space=vmem, size = 0x200, scoped, tag = 'scratch operand']
  #allocation4 [shape = 'f32[1,128]{1,0:T(1,128)}', space=vmem, size = 0x200, scoped, tag = 'scratch operand']
  %s0 = inlined_call_operand.vmem [shape: bf16[4,16,512], index: 0, kind: input, shape index: {}]
  %s1 = inlined_call_operand.vmem [shape: bf16[4,512,128], index: 1, kind: input, shape index: {}]
  %s2 = inlined_call_operand.vmem [shape: f32[4,16,128], index: 2, kind: output, shape index: {}]
  %s3 = sld [smem:[#allocation0]]
  $region53: #{generator_forward.12} parent=0
    _
  %s5 = ssub.s32 1, %s3
  %s6 = scalar_select 0, %s5, %s3
  loop: start=0, step=1, limit=10
  $region2: #{generator_forward.12} parent=0 // loop_pre_header
    _
  $region3: #{generator_forward.12} parent=0 // loop_header
    %s8 = sphi 0, %s12
    %p9 = scmp.ge.s32.totalorder %s8, 10
    %s15 = sphi 0, %s34
    %s16 = sphi 0, %s30
    %s17 = sphi 0, %s26
    %s18 = sphi 0, %s15
    %s19 = sphi 0, %s16
    %s20 = sphi 0, %s17
    %s21 = sphi 0, %s18
    %s22 = sphi 0, %s19
    %s23 = sphi 0, %s20
    %s43 = sphi 0, %s45
    %s46 = sphi 0, %s43
    %s47 = sphi 0, %s46
    %s63 = sphi 0, %s47
    %s69 = sphi 0, %s71
    %s72 = sphi 0, %s69
    %s73 = sphi 0, %s72
    %s89 = sphi 0, %s73
    %s99 = sphi 0, %s101
    %s102 = sphi 0, %s99
    %s103 = sphi 0, %s102
    %s119 = sphi 0, %s103
  $region4: #{generator_forward.12} parent=0 // loop_header_branch
    %11 = sbr.rel (%p9) target = $region8
  $region5: #{generator_forward.12} parent=0 // loop_body
    %s13 = ssub.s32 %s8, 1
    %s14 = ssub.s32 %s8, 2
    %s24 = sadd.s32 1, %s17
    %p25 = scmp.ge.s32.totalorder %s24, 1
    %s26 = scalar_select %p25, 0, %s24
    %s27 = sadd.s32 1, %s16
    %s28 = scalar_select %p25, %s27, %s16
    %p29 = scmp.ge.s32.totalorder %s28, 4
    %s30 = scalar_select %p29, 0, %s28
    %s31 = sadd.s32 1, %s15
    %s32 = scalar_select %p29, %s31, %s15
    %p33 = scmp.ge.s32.totalorder %s32, 2
    %s34 = scalar_select %p33, 0, %s32
    %s35 = ssub.s32 1, %s15
    %s36 = smul.u32 %s17, %s35
    %s37 = ssub.s32 1, %s34
    %s38 = smul.u32 %s26, %s37
    %s39 = ssub.s32 %s16, %s30
    %s40 = ssub.s32 %s36, %s38
    %s41 = sor.u32 %s39, %s40
    %p42 = scmp.eq.s32.totalorder %s41, 0
    %s44 = sadd.s32 %s43, 1
    %s45 = scalar_select %p42, %s43, %s44
    %p48 = pneg %p42
    %p49 = scmp.eq.s32.totalorder %s8, 7
    %p50 = por %p48, %p49
    %p51 = scmp.ne.s32.totalorder %s43, %s46
    %p52 = scmp.eq.s32.totalorder %s8, 0
    %p53 = por %p51, %p52
    %p54 = scmp.ne.s32.totalorder %s43, %s46
    %p55 = scmp.eq.s32.totalorder %s13, 7
    %p56 = por %p54, %p55
    %p57 = scmp.ne.s32.totalorder %s46, %s47
    %p58 = scmp.eq.s32.totalorder %s13, 0
    %p59 = por %p57, %p58
    %p60 = scmp.ne.s32.totalorder %s46, %s47
    %p61 = scmp.eq.s32.totalorder %s14, 7
    %p62 = por %p60, %p61
    %p64 = scmp.ne.s32.totalorder %s47, %s63
    %p65 = scmp.eq.s32.totalorder %s14, 0
    %p66 = por %p64, %p65
    %s67 = ssub.s32 %s16, %s30
    %p68 = scmp.eq.s32.totalorder %s67, 0
    %s70 = sadd.s32 %s69, 1
    %s71 = scalar_select %p68, %s69, %s70
    %p74 = pneg %p68
    %p75 = scmp.eq.s32.totalorder %s8, 7
    %p76 = por %p74, %p75
    %p77 = scmp.ne.s32.totalorder %s69, %s72
    %p78 = scmp.eq.s32.totalorder %s8, 0
    %p79 = por %p77, %p78
    %p80 = scmp.ne.s32.totalorder %s69, %s72
    %p81 = scmp.eq.s32.totalorder %s13, 7
    %p82 = por %p80, %p81
    %p83 = scmp.ne.s32.totalorder %s72, %s73
    %p84 = scmp.eq.s32.totalorder %s13, 0
    %p85 = por %p83, %p84
    %p86 = scmp.ne.s32.totalorder %s72, %s73
    %p87 = scmp.eq.s32.totalorder %s14, 7
    %p88 = por %p86, %p87
    %p90 = scmp.ne.s32.totalorder %s73, %s89
    %p91 = scmp.eq.s32.totalorder %s14, 0
    %p92 = por %p90, %p91
    %s93 = smul.u32 %s17, %s15
    %s94 = smul.u32 %s26, %s34
    %s95 = ssub.s32 %s16, %s30
    %s96 = ssub.s32 %s93, %s94
    %s97 = sor.u32 %s95, %s96
    %p98 = scmp.eq.s32.totalorder %s97, 0
    %s100 = sadd.s32 %s99, 1
    %s101 = scalar_select %p98, %s99, %s100
    %p104 = pneg %p98
    %p105 = scmp.eq.s32.totalorder %s8, 7
    %p106 = por %p104, %p105
    %p107 = scmp.ne.s32.totalorder %s99, %s102
    %p108 = scmp.eq.s32.totalorder %s8, 0
    %p109 = por %p107, %p108
    %p110 = scmp.ne.s32.totalorder %s99, %s102
    %p111 = scmp.eq.s32.totalorder %s13, 7
    %p112 = por %p110, %p111
    %p113 = scmp.ne.s32.totalorder %s102, %s103
    %p114 = scmp.eq.s32.totalorder %s13, 0
    %p115 = por %p113, %p114
    %p116 = scmp.ne.s32.totalorder %s102, %s103
    %p117 = scmp.eq.s32.totalorder %s14, 7
    %p118 = por %p116, %p117
    %p120 = scmp.ne.s32.totalorder %s103, %s119
    %p121 = scmp.eq.s32.totalorder %s14, 0
    %p122 = por %p120, %p121
    %p123 = scmp.le.s32.totalorder 1, %s8
    %p124 = scmp.lt.s32.totalorder %s8, 9
    %p125 = pnand %p123, %p124
    %p126 = pneg %p125
    // Predicated region
    $region9: #{generator_forward.12} parent=5 // pred_check
      _
    $region10: #{generator_forward.12} parent=5 // pred_check_branch
      %128 = sbr.rel (%p125) target = $region12
    $region11: #{generator_forward.12} parent=5 // pred_region
      %s129 = ssub.s32 %s8, 1
    $region12: #{generator_forward.12} parent=5 // pred_fallthru
      _
    %p130 = scmp.lt.s32.totalorder %s8, 8
    // Predicated region
    $region13: #{generator_forward.12} parent=5 // pred_check
      %p131 = pneg %p130
    $region14: #{generator_forward.12} parent=5 // pred_check_branch
      %133 = sbr.rel (%p131) target = $region16
    $region15: #{generator_forward.12} parent=5 // pred_region
      // Predicated region
      $region17: #{generator_forward.12} parent=15 // pred_check
        %p134 = pneg %p53
      $region18: #{generator_forward.12} parent=15 // pred_check_branch
        %136 = sbr.rel (%p134) target = $region20
      $region19: #{generator_forward.12} parent=15 // pred_region
        %s137 = ssub.s32 1, %s15
        %s138 = smul.u32 %s17, %s137
        %s139 = smul.u32 2, %s138
        %p140 = scmp.lt.s32.totalorder %s16, 3
        %s141 = scalar_select %p140, %s16, 3
        %p142 = scmp.lt.s32.totalorder %s139, 1
        %s143 = scalar_select %p142, %s139, 1
        %s144 = smul.addr %s143, 4
        %s145 = smul.addr %s141, 8
        %s146 = sadd.s32 %s144, %s145
        %s147 = smul.addr %s146, 4
        %s148 = scalar_lea.vmem %s0, %s147
        %s149 = ssub.s32 1, %s15
        %s150 = smul.u32 %s17, %s149
        %s151 = smul.u32 2, %s150
      $region20: #{generator_forward.12} parent=15 // pred_fallthru
        _
      // Predicated region
      $region21: #{generator_forward.12} parent=15 // pred_check
        %p152 = pneg %p79
      $region22: #{generator_forward.12} parent=15 // pred_check_branch
        %154 = sbr.rel (%p152) target = $region24
      $region23: #{generator_forward.12} parent=15 // pred_region
        %p155 = scmp.lt.s32.totalorder %s16, 3
        %s156 = scalar_select %p155, %s16, 3
        %s157 = smul.addr %s156, 64
        %s158 = smul.addr %s157, 4
        %s159 = scalar_lea.vmem %s1, %s158
      $region24: #{generator_forward.12} parent=15 // pred_fallthru
        _
    $region16: #{generator_forward.12} parent=5 // pred_fallthru
      _
    %p160 = scmp.le.s32.totalorder 1, %s8
    %p161 = scmp.lt.s32.totalorder %s8, 9
    %p162 = pnand %p160, %p161
    %p163 = pneg %p162
    // Predicated region
    $region25: #{generator_forward.12} parent=5 // pred_check
      _
    $region26: #{generator_forward.12} parent=5 // pred_check_branch
      %165 = sbr.rel (%p162) target = $region28
    $region27: #{generator_forward.12} parent=5 // pred_region
      %s166 = ssub.s32 %s8, 1
      %s167 = ssub.s32 1, %s18
      %s168 = smul.u32 %s20, %s167
      %s169 = smul.u32 2, %s168
      %p170 = scmp.lt.s32.totalorder %s19, 3
      %s171 = scalar_select %p170, %s19, 3
      %p172 = scmp.lt.s32.totalorder %s169, 1
      %s173 = scalar_select %p172, %s169, 1
      %s174 = smul.addr %s173, 4
      %s175 = smul.addr %s171, 8
      %s176 = sadd.s32 %s174, %s175
      %s177 = smul.addr %s176, 4
      %s178 = scalar_lea.vmem %s0, %s177
      %p179 = pneg %p59
      %p180 = pneg %p56
      %p181 = scmp.lt.s32.totalorder %s19, 3
      %s182 = scalar_select %p181, %s19, 3
      %s183 = smul.addr %s182, 64
      %s184 = smul.addr %s183, 4
      %s185 = scalar_lea.vmem %s1, %s184
      %p186 = pneg %p85
      %p187 = pneg %p82
      %p188 = pneg %p115
      %p189 = pneg %p112
      %s190 = smul.u32 %s20, %s18
      %s191 = smul.u32 2, %s190
      %p192 = scmp.lt.s32.totalorder %s19, 3
      %s193 = scalar_select %p192, %s19, 3
      %p194 = scmp.lt.s32.totalorder %s191, 1
      %s195 = scalar_select %p194, %s191, 1
      %s196 = smul.addr %s193, 2
      %s197 = sadd.s32 %s195, %s196
      %s198 = smul.addr %s197, 8
      %s199 = scalar_lea.vmem %s2, %s198
      %s200 = ssub.s32 1, %s18
      %s201 = smul.u32 %s20, %s200
      %s202 = smul.u32 2, %s201
      %p203 = scmp.lt.s32.totalorder %s19, 3
      %s204 = scalar_select %p203, %s19, 3
      %p205 = scmp.lt.s32.totalorder %s202, 1
      %s206 = scalar_select %p205, %s202, 1
      %s207 = smul.addr %s206, 4
      %s208 = smul.addr %s204, 8
      %s209 = sadd.s32 %s207, %s208
      %s210 = smul.addr %s209, 4
      %s211 = scalar_lea.vmem %s0, %s210
      %s212 = ssub.s32 1, %s18
      %s213 = smul.u32 %s20, %s212
      %s214 = smul.u32 2, %s213
      %p215 = scmp.lt.s32.totalorder %s19, 3
      %s216 = scalar_select %p215, %s19, 3
      %s217 = smul.addr %s216, 64
      %s218 = smul.addr %s217, 4
      %s219 = scalar_lea.vmem %s1, %s218
      %s220 = smul.u32 %s20, %s18
      %s221 = smul.u32 2, %s220
      %p222 = scmp.lt.s32.totalorder %s19, 3
      %s223 = scalar_select %p222, %s19, 3
      %p224 = scmp.lt.s32.totalorder %s221, 1
      %s225 = scalar_select %p224, %s221, 1
      %s226 = smul.addr %s223, 2
      %s227 = sadd.s32 %s225, %s226
      %s228 = smul.addr %s227, 8
      %s229 = scalar_lea.vmem %s2, %s228
      %s230 = smul.u32 %s20, %s18
      %s231 = smul.u32 2, %s230
      %s233 = smul.u32 %s20, 16
      %p234 = scmp.eq.s32.totalorder %s18, 0
      %p235 = scmp.eq.s32.totalorder %s19, 0
      %p236 = pnand %p234, %p235
      %p237 = pneg %p236
      %p238 = scmp.eq.s32.totalorder %s20, 0
      %p239 = pnand %p237, %p238
      %p240 = pneg %p239
      // Predicated region
      $region29: #{generator_forward.12} parent=27 // pred_check
        _
      $region30: #{generator_forward.12} parent=27 // pred_check_branch
        %242 = sbr.rel (%p239) target = $region32
      $region31: #{generator_forward.12} parent=27 // pred_region
        %243 = vst [vmem:[#allocation3] sm:$0x1] 0.0
        %244 = vst [vmem:[#allocation4] sm:$0x1] 0.0
      $region32: #{generator_forward.12} parent=27 // pred_fallthru
        _
      // Predicated region
      $region33: #{generator_forward.12} parent=27 // pred_check
        %p245 = pneg %p234
      $region34: #{generator_forward.12} parent=27 // pred_check_branch
        %247 = sbr.rel (%p245) target = $region36
      $region35: #{generator_forward.12} parent=27 // pred_region
        %v248 = vld [vmem:[%s211] sm:$0xff]
        %v249 = vld [vmem:[%s211 + $0x8] sm:$0xff]
        %v250 = vld [vmem:[%s211 + $0x10] sm:$0xff]
        %v251 = vld [vmem:[%s211 + $0x18] sm:$0xff]
        %v252 = vld [vmem:[%s219] sm:$0xf]
        %v253 = vld [vmem:[%s219 + $0x4] sm:$0xf]
        %v254 = vld [vmem:[%s219 + $0x8] sm:$0xf]
        %v255 = vld [vmem:[%s219 + $0xc] sm:$0xf]
        %v256 = vld [vmem:[%s219 + $0x10] sm:$0xf]
        %v257 = vld [vmem:[%s219 + $0x14] sm:$0xf]
        %v258 = vld [vmem:[%s219 + $0x18] sm:$0xf]
        %v259 = vld [vmem:[%s219 + $0x1c] sm:$0xf]
        %v260 = vld [vmem:[%s219 + $0x20] sm:$0xf]
        %v261 = vld [vmem:[%s219 + $0x24] sm:$0xf]
        %v262 = vld [vmem:[%s219 + $0x28] sm:$0xf]
        %v263 = vld [vmem:[%s219 + $0x2c] sm:$0xf]
        %v264 = vld [vmem:[%s219 + $0x30] sm:$0xf]
        %v265 = vld [vmem:[%s219 + $0x34] sm:$0xf]
        %v266 = vld [vmem:[%s219 + $0x38] sm:$0xf]
        %v267 = vld [vmem:[%s219 + $0x3c] sm:$0xf]
        %v268 = vld [vmem:[%s219 + $0x40] sm:$0xf]
        %v269 = vld [vmem:[%s219 + $0x44] sm:$0xf]
        %v270 = vld [vmem:[%s219 + $0x48] sm:$0xf]
        %v271 = vld [vmem:[%s219 + $0x4c] sm:$0xf]
        %v272 = vld [vmem:[%s219 + $0x50] sm:$0xf]
        %v273 = vld [vmem:[%s219 + $0x54] sm:$0xf]
        %v274 = vld [vmem:[%s219 + $0x58] sm:$0xf]
        %v275 = vld [vmem:[%s219 + $0x5c] sm:$0xf]
        %v276 = vld [vmem:[%s219 + $0x60] sm:$0xf]
        %v277 = vld [vmem:[%s219 + $0x64] sm:$0xf]
        %v278 = vld [vmem:[%s219 + $0x68] sm:$0xf]
        %v279 = vld [vmem:[%s219 + $0x6c] sm:$0xf]
        %v280 = vld [vmem:[%s219 + $0x70] sm:$0xf]
        %v281 = vld [vmem:[%s219 + $0x74] sm:$0xf]
        %v282 = vld [vmem:[%s219 + $0x78] sm:$0xf]
        %v283 = vld [vmem:[%s219 + $0x7c] sm:$0xf]
        %v284 = vld [vmem:[%s219 + $0x80] sm:$0xf]
        %v285 = vld [vmem:[%s219 + $0x84] sm:$0xf]
        %v286 = vld [vmem:[%s219 + $0x88] sm:$0xf]
        %v287 = vld [vmem:[%s219 + $0x8c] sm:$0xf]
        %v288 = vld [vmem:[%s219 + $0x90] sm:$0xf]
        %v289 = vld [vmem:[%s219 + $0x94] sm:$0xf]
        %v290 = vld [vmem:[%s219 + $0x98] sm:$0xf]
        %v291 = vld [vmem:[%s219 + $0x9c] sm:$0xf]
        %v292 = vld [vmem:[%s219 + $0xa0] sm:$0xf]
        %v293 = vld [vmem:[%s219 + $0xa4] sm:$0xf]
        %v294 = vld [vmem:[%s219 + $0xa8] sm:$0xf]
        %v295 = vld [vmem:[%s219 + $0xac] sm:$0xf]
        %v296 = vld [vmem:[%s219 + $0xb0] sm:$0xf]
        %v297 = vld [vmem:[%s219 + $0xb4] sm:$0xf]
        %v298 = vld [vmem:[%s219 + $0xb8] sm:$0xf]
        %v299 = vld [vmem:[%s219 + $0xbc] sm:$0xf]
        %v300 = vld [vmem:[%s219 + $0xc0] sm:$0xf]
        %v301 = vld [vmem:[%s219 + $0xc4] sm:$0xf]
        %v302 = vld [vmem:[%s219 + $0xc8] sm:$0xf]
        %v303 = vld [vmem:[%s219 + $0xcc] sm:$0xf]
        %v304 = vld [vmem:[%s219 + $0xd0] sm:$0xf]
        %v305 = vld [vmem:[%s219 + $0xd4] sm:$0xf]
        %v306 = vld [vmem:[%s219 + $0xd8] sm:$0xf]
        %v307 = vld [vmem:[%s219 + $0xdc] sm:$0xf]
        %v308 = vld [vmem:[%s219 + $0xe0] sm:$0xf]
        %v309 = vld [vmem:[%s219 + $0xe4] sm:$0xf]
        %v310 = vld [vmem:[%s219 + $0xe8] sm:$0xf]
        %v311 = vld [vmem:[%s219 + $0xec] sm:$0xf]
        %v312 = vld [vmem:[%s219 + $0xf0] sm:$0xf]
        %v313 = vld [vmem:[%s219 + $0xf4] sm:$0xf]
        %v314 = vld [vmem:[%s219 + $0xf8] sm:$0xf]
        %v315 = vld [vmem:[%s219 + $0xfc] sm:$0xf]
        %v320 = vunpack.c.l.b16 %v248
        %v321 = vunpack.c.h.b16 %v248
        %v322 = vunpack.c.l.b16 %v249
        %v323 = vunpack.c.h.b16 %v249
        %v324 = vunpack.c.l.b16 %v250
        %v325 = vunpack.c.h.b16 %v250
        %v326 = vunpack.c.l.b16 %v251
        %v327 = vunpack.c.h.b16 %v251
        %v328 = vpack.c.b16 %v324, %v320
        %v329 = vpack.c.b16 %v325, %v321
        %v330 = vpack.c.b16 %v326, %v322
        %v331 = vpack.c.b16 %v327, %v323
        %v400 = vunpack.c.l.b16 %v252
        %v401 = vunpack.c.l.b16 %v253
        %v402 = vunpack.c.l.b16 %v254
        %v403 = vunpack.c.l.b16 %v255
        %v404 = vunpack.c.l.b16 %v256
        %v405 = vunpack.c.l.b16 %v257
        %v406 = vunpack.c.l.b16 %v258
        %v407 = vunpack.c.l.b16 %v259
        %v408 = vunpack.c.l.b16 %v260
        %v409 = vunpack.c.l.b16 %v261
        %v410 = vunpack.c.l.b16 %v262
        %v411 = vunpack.c.l.b16 %v263
        %v412 = vunpack.c.l.b16 %v264
        %v413 = vunpack.c.l.b16 %v265
        %v414 = vunpack.c.l.b16 %v266
        %v415 = vunpack.c.l.b16 %v267
        %v416 = vunpack.c.l.b16 %v268
        %v417 = vunpack.c.l.b16 %v269
        %v418 = vunpack.c.l.b16 %v270
        %v419 = vunpack.c.l.b16 %v271
        %v420 = vunpack.c.l.b16 %v272
        %v421 = vunpack.c.l.b16 %v273
        %v422 = vunpack.c.l.b16 %v274
        %v423 = vunpack.c.l.b16 %v275
        %v424 = vunpack.c.l.b16 %v276
        %v425 = vunpack.c.l.b16 %v277
        %v426 = vunpack.c.l.b16 %v278
        %v427 = vunpack.c.l.b16 %v279
        %v428 = vunpack.c.l.b16 %v280
        %v429 = vunpack.c.l.b16 %v281
        %v430 = vunpack.c.l.b16 %v282
        %v431 = vunpack.c.l.b16 %v283
        %v432 = vunpack.c.l.b16 %v284
        %v433 = vunpack.c.l.b16 %v285
        %v434 = vunpack.c.l.b16 %v286
        %v435 = vunpack.c.l.b16 %v287
        %v436 = vunpack.c.l.b16 %v288
        %v437 = vunpack.c.l.b16 %v289
        %v438 = vunpack.c.l.b16 %v290
        %v439 = vunpack.c.l.b16 %v291
        %v440 = vunpack.c.l.b16 %v292
        %v441 = vunpack.c.l.b16 %v293
        %v442 = vunpack.c.l.b16 %v294
        %v443 = vunpack.c.l.b16 %v295
        %v444 = vunpack.c.l.b16 %v296
        %v445 = vunpack.c.l.b16 %v297
        %v446 = vunpack.c.l.b16 %v298
        %v447 = vunpack.c.l.b16 %v299
        %v448 = vunpack.c.l.b16 %v300
        %v449 = vunpack.c.l.b16 %v301
        %v450 = vunpack.c.l.b16 %v302
        %v451 = vunpack.c.l.b16 %v303
        %v452 = vunpack.c.l.b16 %v304
        %v453 = vunpack.c.l.b16 %v305
        %v454 = vunpack.c.l.b16 %v306
        %v455 = vunpack.c.l.b16 %v307
        %v456 = vunpack.c.l.b16 %v308
        %v457 = vunpack.c.l.b16 %v309
        %v458 = vunpack.c.l.b16 %v310
        %v459 = vunpack.c.l.b16 %v311
        %v460 = vunpack.c.l.b16 %v312
        %v461 = vunpack.c.l.b16 %v313
        %v462 = vunpack.c.l.b16 %v314
        %v463 = vunpack.c.l.b16 %v315
        %v464 = vpack.c.b16 %v401, %v400
        %v465 = vpack.c.b16 %v403, %v402
        %v466 = vpack.c.b16 %v405, %v404
        %v467 = vpack.c.b16 %v407, %v406
        %v468 = vpack.c.b16 %v409, %v408
        %v469 = vpack.c.b16 %v411, %v410
        %v470 = vpack.c.b16 %v413, %v412
        %v471 = vpack.c.b16 %v415, %v414
        %v472 = vpack.c.b16 %v417, %v416
        %v473 = vpack.c.b16 %v419, %v418
        %v474 = vpack.c.b16 %v421, %v420
        %v475 = vpack.c.b16 %v423, %v422
        %v476 = vpack.c.b16 %v425, %v424
        %v477 = vpack.c.b16 %v427, %v426
        %v478 = vpack.c.b16 %v429, %v428
        %v479 = vpack.c.b16 %v431, %v430
        %v480 = vpack.c.b16 %v433, %v432
        %v481 = vpack.c.b16 %v435, %v434
        %v482 = vpack.c.b16 %v437, %v436
        %v483 = vpack.c.b16 %v439, %v438
        %v484 = vpack.c.b16 %v441, %v440
        %v485 = vpack.c.b16 %v443, %v442
        %v486 = vpack.c.b16 %v445, %v444
        %v487 = vpack.c.b16 %v447, %v446
        %v488 = vpack.c.b16 %v449, %v448
        %v489 = vpack.c.b16 %v451, %v450
        %v490 = vpack.c.b16 %v453, %v452
        %v491 = vpack.c.b16 %v455, %v454
        %v492 = vpack.c.b16 %v457, %v456
        %v493 = vpack.c.b16 %v459, %v458
        %v494 = vpack.c.b16 %v461, %v460
        %v495 = vpack.c.b16 %v463, %v462
        %528 = vmatprep.subr.bf16.mxu0 0
        %529 = vmatpush1.bf16.msra.mxu0 %v464
        %530 = vmatprep.subr.bf16.mxu0 0
        %531 = vmatpush1.bf16.msra.mxu0 %v465
        %532 = vmatprep.subr.bf16.mxu0 0
        %533 = vmatpush1.bf16.msra.mxu0 %v466
        %534 = vmatprep.subr.bf16.mxu0 0
        %535 = vmatpush1.bf16.msra.mxu0 %v467
        %536 = vmatprep.subr.bf16.mxu0 0
        %537 = vmatpush1.bf16.msra.mxu0 %v468
        %538 = vmatprep.subr.bf16.mxu0 0
        %539 = vmatpush1.bf16.msra.mxu0 %v469
        %540 = vmatprep.subr.bf16.mxu0 0
        %541 = vmatpush1.bf16.msra.mxu0 %v470
        %542 = vmatprep.subr.bf16.mxu0 0
        %543 = vmatpush1.bf16.msra.mxu0 %v471
        %544 = vmatprep.subr.bf16.mxu0 0
        %545 = vmatpush1.bf16.msra.mxu0 %v472
        %546 = vmatprep.subr.bf16.mxu0 0
        %547 = vmatpush1.bf16.msra.mxu0 %v473
        %548 = vmatprep.subr.bf16.mxu0 0
        %549 = vmatpush1.bf16.msra.mxu0 %v474
        %550 = vmatprep.subr.bf16.mxu0 0
        %551 = vmatpush1.bf16.msra.mxu0 %v475
        %552 = vmatprep.subr.bf16.mxu0 0
        %553 = vmatpush1.bf16.msra.mxu0 %v476
        %554 = vmatprep.subr.bf16.mxu0 0
        %555 = vmatpush1.bf16.msra.mxu0 %v477
        %556 = vmatprep.subr.bf16.mxu0 0
        %557 = vmatpush1.bf16.msra.mxu0 %v478
        %558 = vmatprep.subr.bf16.mxu0 0
        %559 = vmatpush1.bf16.msra.mxu0 %v479
        %560 = vmatprep.mubr.bf16.mxu0 %v329
        %561 = vmatmul.mubr.bf16.gmra.mrb[0].mxu0 %v328
        %v562 = vpop.f32.mrb[0].mxu0
        %v563 = vadd.f32 0.0, %v562
        %v564 = vpop.f32.mrb[0].mxu0
        %v565 = vpop.f32.mrb[0].mxu0
        %v566 = vadd.f32 0.0, %v565
        %v567 = vpop.f32.mrb[0].mxu0
        %568 = vdwg.mxu0
        %569 = vmatprep.subr.bf16.mxu0 0
        %570 = vmatpush1.bf16.msra.mxu0 %v480
        %571 = vmatprep.subr.bf16.mxu0 0
        %572 = vmatpush1.bf16.msra.mxu0 %v481
        %573 = vmatprep.subr.bf16.mxu0 0
        %574 = vmatpush1.bf16.msra.mxu0 %v482
        %575 = vmatprep.subr.bf16.mxu0 0
        %576 = vmatpush1.bf16.msra.mxu0 %v483
        %577 = vmatprep.subr.bf16.mxu0 0
        %578 = vmatpush1.bf16.msra.mxu0 %v484
        %579 = vmatprep.subr.bf16.mxu0 0
        %580 = vmatpush1.bf16.msra.mxu0 %v485
        %581 = vmatprep.subr.bf16.mxu0 0
        %582 = vmatpush1.bf16.msra.mxu0 %v486
        %583 = vmatprep.subr.bf16.mxu0 0
        %584 = vmatpush1.bf16.msra.mxu0 %v487
        %585 = vmatprep.subr.bf16.mxu0 0
        %586 = vmatpush1.bf16.msra.mxu0 %v488
        %587 = vmatprep.subr.bf16.mxu0 0
        %588 = vmatpush1.bf16.msra.mxu0 %v489
        %589 = vmatprep.subr.bf16.mxu0 0
        %590 = vmatpush1.bf16.msra.mxu0 %v490
        %591 = vmatprep.subr.bf16.mxu0 0
        %592 = vmatpush1.bf16.msra.mxu0 %v491
        %593 = vmatprep.subr.bf16.mxu0 0
        %594 = vmatpush1.bf16.msra.mxu0 %v492
        %595 = vmatprep.subr.bf16.mxu0 0
        %596 = vmatpush1.bf16.msra.mxu0 %v493
        %597 = vmatprep.subr.bf16.mxu0 0
        %598 = vmatpush1.bf16.msra.mxu0 %v494
        %599 = vmatprep.subr.bf16.mxu0 0
        %600 = vmatpush1.bf16.msra.mxu0 %v495
        %601 = vmatprep.mubr.bf16.mxu0 %v331
        %602 = vmatmul.mubr.bf16.gmra.mrb[0].mxu0 %v330
        %v603 = vpop.f32.mrb[0].mxu0
        %v604 = vadd.f32 %v563, %v603
        %v605 = vpop.f32.mrb[0].mxu0
        %v606 = vpop.f32.mrb[0].mxu0
        %v607 = vadd.f32 %v566, %v606
        %v608 = vpop.f32.mrb[0].mxu0
        %609 = vdwg.mxu0
        %s610 = smul.u32 %s19, 16
        %s611 = sadd.s32 %s233, %s610
        %s612 = scalar_lea.vmem [#allocation2], %s611
        %613 = vst [vmem:[%s612] sm:$0xff] %v604
        %614 = vst [vmem:[%s612 + $0x8] sm:$0xff] %v607
        %v615 = vld [vmem:[#allocation3] sm:$0x1]
        %v616 = vadd.f32 %v604, %v607
        %v617 = vrot.slane %v616, 4
        %v618 = vadd.f32 %v616, %v617
        %v619 = vrot.slane %v618, 2
        %v620 = vadd.f32 %v618, %v619
        %v621 = vrot.slane %v620, 1
        %v622 = vadd.f32 %v620, %v621
        %v623 = vadd.f32 %v615, %v622
        %624 = vst [vmem:[#allocation3] sm:$0x1] %v623
        %v625 = vld [vmem:[#allocation4] sm:$0x1]
        %v626 = vmul.f32 %v604, %v604
        %v627 = vmul.f32 %v607, %v607
        %v628 = vadd.f32 %v626, %v627
        %v629 = vrot.slane %v628, 4
        %v630 = vadd.f32 %v628, %v629
        %v631 = vrot.slane %v630, 2
        %v632 = vadd.f32 %v630, %v631
        %v633 = vrot.slane %v632, 1
        %v634 = vadd.f32 %v632, %v633
        %v635 = vadd.f32 %v625, %v634
        %636 = vst [vmem:[#allocation4] sm:$0x1] %v635
      $region36: #{generator_forward.12} parent=27 // pred_fallthru
        _
      %p637 = scmp.eq.s32.totalorder %s18, 1
      // Predicated region
      $region37: #{generator_forward.12} parent=27 // pred_check
        %p638 = pneg %p637
      $region38: #{generator_forward.12} parent=27 // pred_check_branch
        %640 = sbr.rel (%p638) target = $region40
      $region39: #{generator_forward.12} parent=27 // pred_region
        %v641 = vld [vmem:[#allocation3] sm:$0x1]
        %v642 = vmul.f32 %v641, 0.03125
        %v643 = vld [vmem:[#allocation4] sm:$0x1]
        %v644 = vmul.f32 %v643, 0.03125
        %v645 = vmul.f32 %v642, %v642
        %v646 = vsub.f32 %v644, %v645
        %v647 = vmax.f32 %v646, 0.0
        %v648 = vadd.f32 %v647, 1e-05
        %v649 = vrsqrt.pop %v648
        %s650 = smul.u32 %s19, 16
        %s651 = sadd.s32 %s233, %s650
        %s652 = scalar_lea.vmem [#allocation2], %s651
        %v653 = vld [vmem:[%s652] sm:$0xff]
        %v654 = vld [vmem:[%s652 + $0x8] sm:$0xff]
        %v656 = vlaneseq
        %v657 = vshrl.u32 %v656, 7
        %v658 = vsub.s32 0, %v657
        %v659 = vrot.slane %v642, %v658
        %v661 = vsub.f32 %v653, %v659
        %v662 = vsub.f32 %v654, %v659
        %v664 = vlaneseq
        %v665 = vshrl.u32 %v664, 7
        %v666 = vsub.s32 0, %v665
        %v667 = vrot.slane %v649, %v666
        %v669 = vmul.f32 %v661, %v667
        %v670 = vmul.f32 %v662, %v667
        %v671 = vmax.f32 %v669, 0.0
        %v672 = vmax.f32 %v670, 0.0
        %673 = vst [vmem:[%s229] sm:$0xff] %v671
        %674 = vst [vmem:[%s229 + $0x8] sm:$0xff] %v672
      $region40: #{generator_forward.12} parent=27 // pred_fallthru
        _
      %s675 = smul.u32 %s20, %s18
      %s676 = smul.u32 2, %s675
      %p677 = scmp.lt.s32.totalorder %s19, 3
      %s678 = scalar_select %p677, %s19, 3
      %p679 = scmp.lt.s32.totalorder %s676, 1
      %s680 = scalar_select %p679, %s676, 1
      %s681 = smul.addr %s678, 2
      %s682 = sadd.s32 %s680, %s681
      %s683 = smul.addr %s682, 8
      %s684 = scalar_lea.vmem %s2, %s683
      // Predicated region
      $region41: #{generator_forward.12} parent=27 // pred_check
        %p685 = pneg %p112
      $region42: #{generator_forward.12} parent=27 // pred_check_branch
        %687 = sbr.rel (%p685) target = $region44
      $region43: #{generator_forward.12} parent=27 // pred_region
        %s688 = smul.u32 %s20, %s18
        %s689 = smul.u32 2, %s688
      $region44: #{generator_forward.12} parent=27 // pred_fallthru
        _
    $region28: #{generator_forward.12} parent=5 // pred_fallthru
      _
    %p690 = scmp.le.s32.totalorder 2, %s8
    // Predicated region
    $region45: #{generator_forward.12} parent=5 // pred_check
      %p691 = pneg %p690
    $region46: #{generator_forward.12} parent=5 // pred_check_branch
      %693 = sbr.rel (%p691) target = $region48
    $region47: #{generator_forward.12} parent=5 // pred_region
      %s694 = ssub.s32 %s8, 2
      // Predicated region
      $region49: #{generator_forward.12} parent=47 // pred_check
        %p695 = pneg %p118
      $region50: #{generator_forward.12} parent=47 // pred_check_branch
        %697 = sbr.rel (%p695) target = $region52
      $region51: #{generator_forward.12} parent=47 // pred_region
        %s698 = smul.u32 %s23, %s21
        %s699 = smul.u32 2, %s698
        %p700 = scmp.lt.s32.totalorder %s22, 3
        %s701 = scalar_select %p700, %s22, 3
        %p702 = scmp.lt.s32.totalorder %s699, 1
        %s703 = scalar_select %p702, %s699, 1
        %s704 = smul.addr %s701, 2
        %s705 = sadd.s32 %s703, %s704
        %s706 = smul.addr %s705, 8
        %s707 = scalar_lea.vmem %s2, %s706
      $region52: #{generator_forward.12} parent=47 // pred_fallthru
        _
    $region48: #{generator_forward.12} parent=5 // pred_fallthru
      _
  $region6: #{generator_forward.12} parent=0 // loop_footer
    %s12 = sadd.s32 1, %s8
  $region7: #{generator_forward.12} parent=0 // loop_footer_branch
    %7 = sbr.rel target = $region3
  $region8: #{generator_forward.12} parent=0 // loop_exit
    _

// kernel: generator_forward.13
$region0: #{generator_forward.13}
  #allocation0 [shape = 'u32[]', space=smem, size = 0x4, offset = 0x4, fixed_abs, tag = 'smem constant byte address 0x4 - core index']
  #allocation1 [shape = 'u32[144,128]{1,0:T(1,128)}', space=vmem, size = 0x12000, scoped, tag = 'internal scratch']
  #allocation2 [shape = 'f32[4,32,128]{2,1,0:T(8,128)}', space=vmem, size = 0x10000, scoped, tag = 'scratch operand']
  #allocation3 [shape = 'f32[1,128]{1,0:T(1,128)}', space=vmem, size = 0x200, scoped, tag = 'scratch operand']
  #allocation4 [shape = 'f32[1,128]{1,0:T(1,128)}', space=vmem, size = 0x200, scoped, tag = 'scratch operand']
  %s0 = inlined_call_operand.vmem [shape: bf16[4,32,256], index: 0, kind: input, shape index: {}]
  %s1 = inlined_call_operand.vmem [shape: bf16[4,256,128], index: 1, kind: input, shape index: {}]
  %s2 = inlined_call_operand.vmem [shape: f32[4,32,128], index: 2, kind: output, shape index: {}]
  %s3 = sld [smem:[#allocation0]]
  $region53: #{generator_forward.13} parent=0
    _
  %s5 = ssub.s32 1, %s3
  %s6 = scalar_select 0, %s5, %s3
  loop: start=0, step=1, limit=10
  $region2: #{generator_forward.13} parent=0 // loop_pre_header
    _
  $region3: #{generator_forward.13} parent=0 // loop_header
    %s8 = sphi 0, %s12
    %p9 = scmp.ge.s32.totalorder %s8, 10
    %s15 = sphi 0, %s34
    %s16 = sphi 0, %s30
    %s17 = sphi 0, %s26
    %s18 = sphi 0, %s15
    %s19 = sphi 0, %s16
    %s20 = sphi 0, %s17
    %s21 = sphi 0, %s18
    %s22 = sphi 0, %s19
    %s23 = sphi 0, %s20
    %s43 = sphi 0, %s45
    %s46 = sphi 0, %s43
    %s47 = sphi 0, %s46
    %s63 = sphi 0, %s47
    %s69 = sphi 0, %s71
    %s72 = sphi 0, %s69
    %s73 = sphi 0, %s72
    %s89 = sphi 0, %s73
    %s99 = sphi 0, %s101
    %s102 = sphi 0, %s99
    %s103 = sphi 0, %s102
    %s119 = sphi 0, %s103
  $region4: #{generator_forward.13} parent=0 // loop_header_branch
    %11 = sbr.rel (%p9) target = $region8
  $region5: #{generator_forward.13} parent=0 // loop_body
    %s13 = ssub.s32 %s8, 1
    %s14 = ssub.s32 %s8, 2
    %s24 = sadd.s32 1, %s17
    %p25 = scmp.ge.s32.totalorder %s24, 1
    %s26 = scalar_select %p25, 0, %s24
    %s27 = sadd.s32 1, %s16
    %s28 = scalar_select %p25, %s27, %s16
    %p29 = scmp.ge.s32.totalorder %s28, 4
    %s30 = scalar_select %p29, 0, %s28
    %s31 = sadd.s32 1, %s15
    %s32 = scalar_select %p29, %s31, %s15
    %p33 = scmp.ge.s32.totalorder %s32, 2
    %s34 = scalar_select %p33, 0, %s32
    %s35 = ssub.s32 1, %s15
    %s36 = smul.u32 %s17, %s35
    %s37 = ssub.s32 1, %s34
    %s38 = smul.u32 %s26, %s37
    %s39 = ssub.s32 %s16, %s30
    %s40 = ssub.s32 %s36, %s38
    %s41 = sor.u32 %s39, %s40
    %p42 = scmp.eq.s32.totalorder %s41, 0
    %s44 = sadd.s32 %s43, 1
    %s45 = scalar_select %p42, %s43, %s44
    %p48 = pneg %p42
    %p49 = scmp.eq.s32.totalorder %s8, 7
    %p50 = por %p48, %p49
    %p51 = scmp.ne.s32.totalorder %s43, %s46
    %p52 = scmp.eq.s32.totalorder %s8, 0
    %p53 = por %p51, %p52
    %p54 = scmp.ne.s32.totalorder %s43, %s46
    %p55 = scmp.eq.s32.totalorder %s13, 7
    %p56 = por %p54, %p55
    %p57 = scmp.ne.s32.totalorder %s46, %s47
    %p58 = scmp.eq.s32.totalorder %s13, 0
    %p59 = por %p57, %p58
    %p60 = scmp.ne.s32.totalorder %s46, %s47
    %p61 = scmp.eq.s32.totalorder %s14, 7
    %p62 = por %p60, %p61
    %p64 = scmp.ne.s32.totalorder %s47, %s63
    %p65 = scmp.eq.s32.totalorder %s14, 0
    %p66 = por %p64, %p65
    %s67 = ssub.s32 %s16, %s30
    %p68 = scmp.eq.s32.totalorder %s67, 0
    %s70 = sadd.s32 %s69, 1
    %s71 = scalar_select %p68, %s69, %s70
    %p74 = pneg %p68
    %p75 = scmp.eq.s32.totalorder %s8, 7
    %p76 = por %p74, %p75
    %p77 = scmp.ne.s32.totalorder %s69, %s72
    %p78 = scmp.eq.s32.totalorder %s8, 0
    %p79 = por %p77, %p78
    %p80 = scmp.ne.s32.totalorder %s69, %s72
    %p81 = scmp.eq.s32.totalorder %s13, 7
    %p82 = por %p80, %p81
    %p83 = scmp.ne.s32.totalorder %s72, %s73
    %p84 = scmp.eq.s32.totalorder %s13, 0
    %p85 = por %p83, %p84
    %p86 = scmp.ne.s32.totalorder %s72, %s73
    %p87 = scmp.eq.s32.totalorder %s14, 7
    %p88 = por %p86, %p87
    %p90 = scmp.ne.s32.totalorder %s73, %s89
    %p91 = scmp.eq.s32.totalorder %s14, 0
    %p92 = por %p90, %p91
    %s93 = smul.u32 %s17, %s15
    %s94 = smul.u32 %s26, %s34
    %s95 = ssub.s32 %s16, %s30
    %s96 = ssub.s32 %s93, %s94
    %s97 = sor.u32 %s95, %s96
    %p98 = scmp.eq.s32.totalorder %s97, 0
    %s100 = sadd.s32 %s99, 1
    %s101 = scalar_select %p98, %s99, %s100
    %p104 = pneg %p98
    %p105 = scmp.eq.s32.totalorder %s8, 7
    %p106 = por %p104, %p105
    %p107 = scmp.ne.s32.totalorder %s99, %s102
    %p108 = scmp.eq.s32.totalorder %s8, 0
    %p109 = por %p107, %p108
    %p110 = scmp.ne.s32.totalorder %s99, %s102
    %p111 = scmp.eq.s32.totalorder %s13, 7
    %p112 = por %p110, %p111
    %p113 = scmp.ne.s32.totalorder %s102, %s103
    %p114 = scmp.eq.s32.totalorder %s13, 0
    %p115 = por %p113, %p114
    %p116 = scmp.ne.s32.totalorder %s102, %s103
    %p117 = scmp.eq.s32.totalorder %s14, 7
    %p118 = por %p116, %p117
    %p120 = scmp.ne.s32.totalorder %s103, %s119
    %p121 = scmp.eq.s32.totalorder %s14, 0
    %p122 = por %p120, %p121
    %p123 = scmp.le.s32.totalorder 1, %s8
    %p124 = scmp.lt.s32.totalorder %s8, 9
    %p125 = pnand %p123, %p124
    %p126 = pneg %p125
    // Predicated region
    $region9: #{generator_forward.13} parent=5 // pred_check
      _
    $region10: #{generator_forward.13} parent=5 // pred_check_branch
      %128 = sbr.rel (%p125) target = $region12
    $region11: #{generator_forward.13} parent=5 // pred_region
      %s129 = ssub.s32 %s8, 1
    $region12: #{generator_forward.13} parent=5 // pred_fallthru
      _
    %p130 = scmp.lt.s32.totalorder %s8, 8
    // Predicated region
    $region13: #{generator_forward.13} parent=5 // pred_check
      %p131 = pneg %p130
    $region14: #{generator_forward.13} parent=5 // pred_check_branch
      %133 = sbr.rel (%p131) target = $region16
    $region15: #{generator_forward.13} parent=5 // pred_region
      // Predicated region
      $region17: #{generator_forward.13} parent=15 // pred_check
        %p134 = pneg %p53
      $region18: #{generator_forward.13} parent=15 // pred_check_branch
        %136 = sbr.rel (%p134) target = $region20
      $region19: #{generator_forward.13} parent=15 // pred_region
        %s137 = ssub.s32 1, %s15
        %s138 = smul.u32 %s17, %s137
        %s139 = smul.u32 4, %s138
        %p140 = scmp.lt.s32.totalorder %s16, 3
        %s141 = scalar_select %p140, %s16, 3
        %p142 = scmp.lt.s32.totalorder %s139, 3
        %s143 = scalar_select %p142, %s139, 3
        %s144 = smul.addr %s143, 2
        %s145 = smul.addr %s141, 8
        %s146 = sadd.s32 %s144, %s145
        %s147 = smul.addr %s146, 4
        %s148 = scalar_lea.vmem %s0, %s147
        %s149 = ssub.s32 1, %s15
        %s150 = smul.u32 %s17, %s149
        %s151 = smul.u32 4, %s150
      $region20: #{generator_forward.13} parent=15 // pred_fallthru
        _
      // Predicated region
      $region21: #{generator_forward.13} parent=15 // pred_check
        %p152 = pneg %p79
      $region22: #{generator_forward.13} parent=15 // pred_check_branch
        %154 = sbr.rel (%p152) target = $region24
      $region23: #{generator_forward.13} parent=15 // pred_region
        %p155 = scmp.lt.s32.totalorder %s16, 3
        %s156 = scalar_select %p155, %s16, 3
        %s157 = smul.addr %s156, 32
        %s158 = smul.addr %s157, 4
        %s159 = scalar_lea.vmem %s1, %s158
      $region24: #{generator_forward.13} parent=15 // pred_fallthru
        _
    $region16: #{generator_forward.13} parent=5 // pred_fallthru
      _
    %p160 = scmp.le.s32.totalorder 1, %s8
    %p161 = scmp.lt.s32.totalorder %s8, 9
    %p162 = pnand %p160, %p161
    %p163 = pneg %p162
    // Predicated region
    $region25: #{generator_forward.13} parent=5 // pred_check
      _
    $region26: #{generator_forward.13} parent=5 // pred_check_branch
      %165 = sbr.rel (%p162) target = $region28
    $region27: #{generator_forward.13} parent=5 // pred_region
      %s166 = ssub.s32 %s8, 1
      %s167 = ssub.s32 1, %s18
      %s168 = smul.u32 %s20, %s167
      %s169 = smul.u32 4, %s168
      %p170 = scmp.lt.s32.totalorder %s19, 3
      %s171 = scalar_select %p170, %s19, 3
      %p172 = scmp.lt.s32.totalorder %s169, 3
      %s173 = scalar_select %p172, %s169, 3
      %s174 = smul.addr %s173, 2
      %s175 = smul.addr %s171, 8
      %s176 = sadd.s32 %s174, %s175
      %s177 = smul.addr %s176, 4
      %s178 = scalar_lea.vmem %s0, %s177
      %p179 = pneg %p59
      %p180 = pneg %p56
      %p181 = scmp.lt.s32.totalorder %s19, 3
      %s182 = scalar_select %p181, %s19, 3
      %s183 = smul.addr %s182, 32
      %s184 = smul.addr %s183, 4
      %s185 = scalar_lea.vmem %s1, %s184
      %p186 = pneg %p85
      %p187 = pneg %p82
      %p188 = pneg %p115
      %p189 = pneg %p112
      %s190 = smul.u32 %s20, %s18
      %s191 = smul.u32 4, %s190
      %p192 = scmp.lt.s32.totalorder %s19, 3
      %s193 = scalar_select %p192, %s19, 3
      %p194 = scmp.lt.s32.totalorder %s191, 3
      %s195 = scalar_select %p194, %s191, 3
      %s196 = smul.addr %s193, 4
      %s197 = sadd.s32 %s195, %s196
      %s198 = smul.addr %s197, 8
      %s199 = scalar_lea.vmem %s2, %s198
      %s200 = ssub.s32 1, %s18
      %s201 = smul.u32 %s20, %s200
      %s202 = smul.u32 4, %s201
      %p203 = scmp.lt.s32.totalorder %s19, 3
      %s204 = scalar_select %p203, %s19, 3
      %p205 = scmp.lt.s32.totalorder %s202, 3
      %s206 = scalar_select %p205, %s202, 3
      %s207 = smul.addr %s206, 2
      %s208 = smul.addr %s204, 8
      %s209 = sadd.s32 %s207, %s208
      %s210 = smul.addr %s209, 4
      %s211 = scalar_lea.vmem %s0, %s210
      %s212 = ssub.s32 1, %s18
      %s213 = smul.u32 %s20, %s212
      %s214 = smul.u32 4, %s213
      %p215 = scmp.lt.s32.totalorder %s19, 3
      %s216 = scalar_select %p215, %s19, 3
      %s217 = smul.addr %s216, 32
      %s218 = smul.addr %s217, 4
      %s219 = scalar_lea.vmem %s1, %s218
      %s220 = smul.u32 %s20, %s18
      %s221 = smul.u32 4, %s220
      %p222 = scmp.lt.s32.totalorder %s19, 3
      %s223 = scalar_select %p222, %s19, 3
      %p224 = scmp.lt.s32.totalorder %s221, 3
      %s225 = scalar_select %p224, %s221, 3
      %s226 = smul.addr %s223, 4
      %s227 = sadd.s32 %s225, %s226
      %s228 = smul.addr %s227, 8
      %s229 = scalar_lea.vmem %s2, %s228
      %s230 = smul.u32 %s20, %s18
      %s231 = smul.u32 4, %s230
      %s233 = smul.u32 %s20, 32
      %p234 = scmp.eq.s32.totalorder %s18, 0
      %p235 = scmp.eq.s32.totalorder %s19, 0
      %p236 = pnand %p234, %p235
      %p237 = pneg %p236
      %p238 = scmp.eq.s32.totalorder %s20, 0
      %p239 = pnand %p237, %p238
      %p240 = pneg %p239
      // Predicated region
      $region29: #{generator_forward.13} parent=27 // pred_check
        _
      $region30: #{generator_forward.13} parent=27 // pred_check_branch
        %242 = sbr.rel (%p239) target = $region32
      $region31: #{generator_forward.13} parent=27 // pred_region
        %243 = vst [vmem:[#allocation3] sm:$0x1] 0.0
        %244 = vst [vmem:[#allocation4] sm:$0x1] 0.0
      $region32: #{generator_forward.13} parent=27 // pred_fallthru
        _
      // Predicated region
      $region33: #{generator_forward.13} parent=27 // pred_check
        %p245 = pneg %p234
      $region34: #{generator_forward.13} parent=27 // pred_check_branch
        %247 = sbr.rel (%p245) target = $region36
      $region35: #{generator_forward.13} parent=27 // pred_region
        %v248 = vld [vmem:[%s211] sm:$0xff]
        %v249 = vld [vmem:[%s211 + $0x8] sm:$0xff]
        %v250 = vld [vmem:[%s211 + $0x10] sm:$0xff]
        %v251 = vld [vmem:[%s211 + $0x18] sm:$0xff]
        %v252 = vld [vmem:[%s219] sm:$0xf]
        %v253 = vld [vmem:[%s219 + $0x4] sm:$0xf]
        %v254 = vld [vmem:[%s219 + $0x8] sm:$0xf]
        %v255 = vld [vmem:[%s219 + $0xc] sm:$0xf]
        %v256 = vld [vmem:[%s219 + $0x10] sm:$0xf]
        %v257 = vld [vmem:[%s219 + $0x14] sm:$0xf]
        %v258 = vld [vmem:[%s219 + $0x18] sm:$0xf]
        %v259 = vld [vmem:[%s219 + $0x1c] sm:$0xf]
        %v260 = vld [vmem:[%s219 + $0x20] sm:$0xf]
        %v261 = vld [vmem:[%s219 + $0x24] sm:$0xf]
        %v262 = vld [vmem:[%s219 + $0x28] sm:$0xf]
        %v263 = vld [vmem:[%s219 + $0x2c] sm:$0xf]
        %v264 = vld [vmem:[%s219 + $0x30] sm:$0xf]
        %v265 = vld [vmem:[%s219 + $0x34] sm:$0xf]
        %v266 = vld [vmem:[%s219 + $0x38] sm:$0xf]
        %v267 = vld [vmem:[%s219 + $0x3c] sm:$0xf]
        %v268 = vld [vmem:[%s219 + $0x40] sm:$0xf]
        %v269 = vld [vmem:[%s219 + $0x44] sm:$0xf]
        %v270 = vld [vmem:[%s219 + $0x48] sm:$0xf]
        %v271 = vld [vmem:[%s219 + $0x4c] sm:$0xf]
        %v272 = vld [vmem:[%s219 + $0x50] sm:$0xf]
        %v273 = vld [vmem:[%s219 + $0x54] sm:$0xf]
        %v274 = vld [vmem:[%s219 + $0x58] sm:$0xf]
        %v275 = vld [vmem:[%s219 + $0x5c] sm:$0xf]
        %v276 = vld [vmem:[%s219 + $0x60] sm:$0xf]
        %v277 = vld [vmem:[%s219 + $0x64] sm:$0xf]
        %v278 = vld [vmem:[%s219 + $0x68] sm:$0xf]
        %v279 = vld [vmem:[%s219 + $0x6c] sm:$0xf]
        %v280 = vld [vmem:[%s219 + $0x70] sm:$0xf]
        %v281 = vld [vmem:[%s219 + $0x74] sm:$0xf]
        %v282 = vld [vmem:[%s219 + $0x78] sm:$0xf]
        %v283 = vld [vmem:[%s219 + $0x7c] sm:$0xf]
        %v288 = vunpack.c.l.b16 %v248
        %v289 = vunpack.c.h.b16 %v248
        %v290 = vunpack.c.l.b16 %v249
        %v291 = vunpack.c.h.b16 %v249
        %v292 = vunpack.c.l.b16 %v250
        %v293 = vunpack.c.h.b16 %v250
        %v294 = vunpack.c.l.b16 %v251
        %v295 = vunpack.c.h.b16 %v251
        %v296 = vpack.c.b16 %v290, %v288
        %v297 = vpack.c.b16 %v291, %v289
        %v298 = vpack.c.b16 %v294, %v292
        %v299 = vpack.c.b16 %v295, %v293
        %v336 = vunpack.c.l.b16 %v252
        %v337 = vunpack.c.l.b16 %v253
        %v338 = vunpack.c.l.b16 %v254
        %v339 = vunpack.c.l.b16 %v255
        %v340 = vunpack.c.l.b16 %v256
        %v341 = vunpack.c.l.b16 %v257
        %v342 = vunpack.c.l.b16 %v258
        %v343 = vunpack.c.l.b16 %v259
        %v344 = vunpack.c.l.b16 %v260
        %v345 = vunpack.c.l.b16 %v261
        %v346 = vunpack.c.l.b16 %v262
        %v347 = vunpack.c.l.b16 %v263
        %v348 = vunpack.c.l.b16 %v264
        %v349 = vunpack.c.l.b16 %v265
        %v350 = vunpack.c.l.b16 %v266
        %v351 = vunpack.c.l.b16 %v267
        %v352 = vunpack.c.l.b16 %v268
        %v353 = vunpack.c.l.b16 %v269
        %v354 = vunpack.c.l.b16 %v270
        %v355 = vunpack.c.l.b16 %v271
        %v356 = vunpack.c.l.b16 %v272
        %v357 = vunpack.c.l.b16 %v273
        %v358 = vunpack.c.l.b16 %v274
        %v359 = vunpack.c.l.b16 %v275
        %v360 = vunpack.c.l.b16 %v276
        %v361 = vunpack.c.l.b16 %v277
        %v362 = vunpack.c.l.b16 %v278
        %v363 = vunpack.c.l.b16 %v279
        %v364 = vunpack.c.l.b16 %v280
        %v365 = vunpack.c.l.b16 %v281
        %v366 = vunpack.c.l.b16 %v282
        %v367 = vunpack.c.l.b16 %v283
        %v368 = vpack.c.b16 %v337, %v336
        %v369 = vpack.c.b16 %v339, %v338
        %v370 = vpack.c.b16 %v341, %v340
        %v371 = vpack.c.b16 %v343, %v342
        %v372 = vpack.c.b16 %v345, %v344
        %v373 = vpack.c.b16 %v347, %v346
        %v374 = vpack.c.b16 %v349, %v348
        %v375 = vpack.c.b16 %v351, %v350
        %v376 = vpack.c.b16 %v353, %v352
        %v377 = vpack.c.b16 %v355, %v354
        %v378 = vpack.c.b16 %v357, %v356
        %v379 = vpack.c.b16 %v359, %v358
        %v380 = vpack.c.b16 %v361, %v360
        %v381 = vpack.c.b16 %v363, %v362
        %v382 = vpack.c.b16 %v365, %v364
        %v383 = vpack.c.b16 %v367, %v366
        %400 = vmatprep.subr.bf16.mxu0 0
        %401 = vmatpush1.bf16.msra.mxu0 %v368
        %402 = vmatprep.subr.bf16.mxu0 0
        %403 = vmatpush1.bf16.msra.mxu0 %v369
        %404 = vmatprep.subr.bf16.mxu0 0
        %405 = vmatpush1.bf16.msra.mxu0 %v370
        %406 = vmatprep.subr.bf16.mxu0 0
        %407 = vmatpush1.bf16.msra.mxu0 %v371
        %408 = vmatprep.subr.bf16.mxu0 0
        %409 = vmatpush1.bf16.msra.mxu0 %v372
        %410 = vmatprep.subr.bf16.mxu0 0
        %411 = vmatpush1.bf16.msra.mxu0 %v373
        %412 = vmatprep.subr.bf16.mxu0 0
        %413 = vmatpush1.bf16.msra.mxu0 %v374
        %414 = vmatprep.subr.bf16.mxu0 0
        %415 = vmatpush1.bf16.msra.mxu0 %v375
        %416 = vmatprep.subr.bf16.mxu0 0
        %417 = vmatpush1.bf16.msra.mxu0 %v376
        %418 = vmatprep.subr.bf16.mxu0 0
        %419 = vmatpush1.bf16.msra.mxu0 %v377
        %420 = vmatprep.subr.bf16.mxu0 0
        %421 = vmatpush1.bf16.msra.mxu0 %v378
        %422 = vmatprep.subr.bf16.mxu0 0
        %423 = vmatpush1.bf16.msra.mxu0 %v379
        %424 = vmatprep.subr.bf16.mxu0 0
        %425 = vmatpush1.bf16.msra.mxu0 %v380
        %426 = vmatprep.subr.bf16.mxu0 0
        %427 = vmatpush1.bf16.msra.mxu0 %v381
        %428 = vmatprep.subr.bf16.mxu0 0
        %429 = vmatpush1.bf16.msra.mxu0 %v382
        %430 = vmatprep.subr.bf16.mxu0 0
        %431 = vmatpush1.bf16.msra.mxu0 %v383
        %432 = vmatprep.mubr.bf16.mxu0 %v297
        %433 = vmatmul.mubr.bf16.gmra.mrb[0].mxu0 %v296
        %v434 = vpop.f32.mrb[0].mxu0
        %v435 = vadd.f32 0.0, %v434
        %v436 = vpop.f32.mrb[0].mxu0
        %v437 = vpop.f32.mrb[0].mxu0
        %v438 = vadd.f32 0.0, %v437
        %v439 = vpop.f32.mrb[0].mxu0
        %440 = vmatprep.mubr.bf16.mxu0 %v299
        %441 = vmatmul.mubr.bf16.gmra.mrb[0].mxu0 %v298
        %v442 = vpop.f32.mrb[0].mxu0
        %v443 = vadd.f32 0.0, %v442
        %v444 = vpop.f32.mrb[0].mxu0
        %v445 = vpop.f32.mrb[0].mxu0
        %v446 = vadd.f32 0.0, %v445
        %v447 = vpop.f32.mrb[0].mxu0
        %448 = vdwg.mxu0
        %s449 = smul.u32 %s19, 32
        %s450 = sadd.s32 %s233, %s449
        %s451 = scalar_lea.vmem [#allocation2], %s450
        %452 = vst [vmem:[%s451] sm:$0xff] %v435
        %453 = vst [vmem:[%s451 + $0x8] sm:$0xff] %v438
        %454 = vst [vmem:[%s451 + $0x10] sm:$0xff] %v443
        %455 = vst [vmem:[%s451 + $0x18] sm:$0xff] %v446
        %v456 = vld [vmem:[#allocation3] sm:$0x1]
        %v457 = vadd.f32 %v435, %v438
        %v458 = vadd.f32 %v457, %v443
        %v459 = vadd.f32 %v458, %v446
        %v460 = vrot.slane %v459, 4
        %v461 = vadd.f32 %v459, %v460
        %v462 = vrot.slane %v461, 2
        %v463 = vadd.f32 %v461, %v462
        %v464 = vrot.slane %v463, 1
        %v465 = vadd.f32 %v463, %v464
        %v466 = vadd.f32 %v456, %v465
        %467 = vst [vmem:[#allocation3] sm:$0x1] %v466
        %v468 = vld [vmem:[#allocation4] sm:$0x1]
        %v469 = vmul.f32 %v435, %v435
        %v470 = vmul.f32 %v438, %v438
        %v471 = vmul.f32 %v443, %v443
        %v472 = vmul.f32 %v446, %v446
        %v473 = vadd.f32 %v469, %v470
        %v474 = vadd.f32 %v473, %v471
        %v475 = vadd.f32 %v474, %v472
        %v476 = vrot.slane %v475, 4
        %v477 = vadd.f32 %v475, %v476
        %v478 = vrot.slane %v477, 2
        %v479 = vadd.f32 %v477, %v478
        %v480 = vrot.slane %v479, 1
        %v481 = vadd.f32 %v479, %v480
        %v482 = vadd.f32 %v468, %v481
        %483 = vst [vmem:[#allocation4] sm:$0x1] %v482
      $region36: #{generator_forward.13} parent=27 // pred_fallthru
        _
      %p484 = scmp.eq.s32.totalorder %s18, 1
      // Predicated region
      $region37: #{generator_forward.13} parent=27 // pred_check
        %p485 = pneg %p484
      $region38: #{generator_forward.13} parent=27 // pred_check_branch
        %487 = sbr.rel (%p485) target = $region40
      $region39: #{generator_forward.13} parent=27 // pred_region
        %v488 = vld [vmem:[#allocation3] sm:$0x1]
        %v489 = vmul.f32 %v488, 0.0078125
        %v490 = vld [vmem:[#allocation4] sm:$0x1]
        %v491 = vmul.f32 %v490, 0.0078125
        %v492 = vmul.f32 %v489, %v489
        %v493 = vsub.f32 %v491, %v492
        %v494 = vmax.f32 %v493, 0.0
        %v495 = vadd.f32 %v494, 1e-05
        %v496 = vrsqrt.pop %v495
        %s497 = smul.u32 %s19, 32
        %s498 = sadd.s32 %s233, %s497
        %s499 = scalar_lea.vmem [#allocation2], %s498
        %v500 = vld [vmem:[%s499] sm:$0xff]
        %v501 = vld [vmem:[%s499 + $0x8] sm:$0xff]
        %v502 = vld [vmem:[%s499 + $0x10] sm:$0xff]
        %v503 = vld [vmem:[%s499 + $0x18] sm:$0xff]
        %v505 = vlaneseq
        %v506 = vshrl.u32 %v505, 7
        %v507 = vsub.s32 0, %v506
        %v508 = vrot.slane %v489, %v507
        %v510 = vsub.f32 %v500, %v508
        %v511 = vsub.f32 %v501, %v508
        %v512 = vsub.f32 %v502, %v508
        %v513 = vsub.f32 %v503, %v508
        %v515 = vlaneseq
        %v516 = vshrl.u32 %v515, 7
        %v517 = vsub.s32 0, %v516
        %v518 = vrot.slane %v496, %v517
        %v520 = vmul.f32 %v510, %v518
        %v521 = vmul.f32 %v511, %v518
        %v522 = vmul.f32 %v512, %v518
        %v523 = vmul.f32 %v513, %v518
        %v524 = vmax.f32 %v520, 0.0
        %v525 = vmax.f32 %v521, 0.0
        %v526 = vmax.f32 %v522, 0.0
        %v527 = vmax.f32 %v523, 0.0
        %528 = vst [vmem:[%s229] sm:$0xff] %v524
        %529 = vst [vmem:[%s229 + $0x8] sm:$0xff] %v525
        %530 = vst [vmem:[%s229 + $0x10] sm:$0xff] %v526
        %531 = vst [vmem:[%s229 + $0x18] sm:$0xff] %v527
      $region40: #{generator_forward.13} parent=27 // pred_fallthru
        _
      %s532 = smul.u32 %s20, %s18
      %s533 = smul.u32 4, %s532
      %p534 = scmp.lt.s32.totalorder %s19, 3
      %s535 = scalar_select %p534, %s19, 3
      %p536 = scmp.lt.s32.totalorder %s533, 3
      %s537 = scalar_select %p536, %s533, 3
      %s538 = smul.addr %s535, 4
      %s539 = sadd.s32 %s537, %s538
      %s540 = smul.addr %s539, 8
      %s541 = scalar_lea.vmem %s2, %s540
      // Predicated region
      $region41: #{generator_forward.13} parent=27 // pred_check
        %p542 = pneg %p112
      $region42: #{generator_forward.13} parent=27 // pred_check_branch
        %544 = sbr.rel (%p542) target = $region44
      $region43: #{generator_forward.13} parent=27 // pred_region
        %s545 = smul.u32 %s20, %s18
        %s546 = smul.u32 4, %s545
      $region44: #{generator_forward.13} parent=27 // pred_fallthru
        _
    $region28: #{generator_forward.13} parent=5 // pred_fallthru
      _
    %p547 = scmp.le.s32.totalorder 2, %s8
    // Predicated region
    $region45: #{generator_forward.13} parent=5 // pred_check
      %p548 = pneg %p547
    $region46: #{generator_forward.13} parent=5 // pred_check_branch
      %550 = sbr.rel (%p548) target = $region48
    $region47: #{generator_forward.13} parent=5 // pred_region
      %s551 = ssub.s32 %s8, 2
      // Predicated region
      $region49: #{generator_forward.13} parent=47 // pred_check
        %p552 = pneg %p118
      $region50: #{generator_forward.13} parent=47 // pred_check_branch
        %554 = sbr.rel (%p552) target = $region52
      $region51: #{generator_forward.13} parent=47 // pred_region
        %s555 = smul.u32 %s23, %s21
        %s556 = smul.u32 4, %s555
        %p557 = scmp.lt.s32.totalorder %s22, 3
        %s558 = scalar_select %p557, %s22, 3
        %p559 = scmp.lt.s32.totalorder %s556, 3
        %s560 = scalar_select %p559, %s556, 3
        %s561 = smul.addr %s558, 4
        %s562 = sadd.s32 %s560, %s561
        %s563 = smul.addr %s562, 8
        %s564 = scalar_lea.vmem %s2, %s563
      $region52: #{generator_forward.13} parent=47 // pred_fallthru
        _
    $region48: #{generator_forward.13} parent=5 // pred_fallthru
      _
  $region6: #{generator_forward.13} parent=0 // loop_footer
    %s12 = sadd.s32 1, %s8
  $region7: #{generator_forward.13} parent=0 // loop_footer_branch
    %7 = sbr.rel target = $region3
  $region8: #{generator_forward.13} parent=0 // loop_exit
    _

// kernel: generator_forward.14
$region0: #{generator_forward.14}
  #allocation0 [shape = 'u32[]', space=smem, size = 0x4, offset = 0x4, fixed_abs, tag = 'smem constant byte address 0x4 - core index']
  #allocation1 [shape = 'u32[144,128]{1,0:T(1,128)}', space=vmem, size = 0x12000, scoped, tag = 'internal scratch']
  #allocation2 [shape = 'f32[4,128,128]{2,1,0:T(8,128)}', space=vmem, size = 0x40000, scoped, tag = 'scratch operand']
  #allocation3 [shape = 'f32[1,128]{1,0:T(1,128)}', space=vmem, size = 0x200, scoped, tag = 'scratch operand']
  #allocation4 [shape = 'f32[1,128]{1,0:T(1,128)}', space=vmem, size = 0x200, scoped, tag = 'scratch operand']
  %s0 = inlined_call_operand.vmem [shape: bf16[4,128,128], index: 0, kind: input, shape index: {}]
  %s1 = inlined_call_operand.vmem [shape: bf16[4,128,128], index: 1, kind: input, shape index: {}]
  %s2 = inlined_call_operand.vmem [shape: f32[4,128,128], index: 2, kind: output, shape index: {}]
  %s3 = sld [smem:[#allocation0]]
  $region53: #{generator_forward.14} parent=0
    _
  %s5 = ssub.s32 1, %s3
  %s6 = scalar_select 0, %s5, %s3
  loop: start=0, step=1, limit=10
  $region2: #{generator_forward.14} parent=0 // loop_pre_header
    _
  $region3: #{generator_forward.14} parent=0 // loop_header
    %s8 = sphi 0, %s12
    %p9 = scmp.ge.s32.totalorder %s8, 10
    %s15 = sphi 0, %s34
    %s16 = sphi 0, %s30
    %s17 = sphi 0, %s26
    %s18 = sphi 0, %s15
    %s19 = sphi 0, %s16
    %s20 = sphi 0, %s17
    %s21 = sphi 0, %s18
    %s22 = sphi 0, %s19
    %s23 = sphi 0, %s20
    %s43 = sphi 0, %s45
    %s46 = sphi 0, %s43
    %s47 = sphi 0, %s46
    %s63 = sphi 0, %s47
    %s69 = sphi 0, %s71
    %s72 = sphi 0, %s69
    %s73 = sphi 0, %s72
    %s89 = sphi 0, %s73
    %s99 = sphi 0, %s101
    %s102 = sphi 0, %s99
    %s103 = sphi 0, %s102
    %s119 = sphi 0, %s103
  $region4: #{generator_forward.14} parent=0 // loop_header_branch
    %11 = sbr.rel (%p9) target = $region8
  $region5: #{generator_forward.14} parent=0 // loop_body
    %s13 = ssub.s32 %s8, 1
    %s14 = ssub.s32 %s8, 2
    %s24 = sadd.s32 1, %s17
    %p25 = scmp.ge.s32.totalorder %s24, 1
    %s26 = scalar_select %p25, 0, %s24
    %s27 = sadd.s32 1, %s16
    %s28 = scalar_select %p25, %s27, %s16
    %p29 = scmp.ge.s32.totalorder %s28, 4
    %s30 = scalar_select %p29, 0, %s28
    %s31 = sadd.s32 1, %s15
    %s32 = scalar_select %p29, %s31, %s15
    %p33 = scmp.ge.s32.totalorder %s32, 2
    %s34 = scalar_select %p33, 0, %s32
    %s35 = ssub.s32 1, %s15
    %s36 = smul.u32 %s17, %s35
    %s37 = ssub.s32 1, %s34
    %s38 = smul.u32 %s26, %s37
    %s39 = ssub.s32 %s16, %s30
    %s40 = ssub.s32 %s36, %s38
    %s41 = sor.u32 %s39, %s40
    %p42 = scmp.eq.s32.totalorder %s41, 0
    %s44 = sadd.s32 %s43, 1
    %s45 = scalar_select %p42, %s43, %s44
    %p48 = pneg %p42
    %p49 = scmp.eq.s32.totalorder %s8, 7
    %p50 = por %p48, %p49
    %p51 = scmp.ne.s32.totalorder %s43, %s46
    %p52 = scmp.eq.s32.totalorder %s8, 0
    %p53 = por %p51, %p52
    %p54 = scmp.ne.s32.totalorder %s43, %s46
    %p55 = scmp.eq.s32.totalorder %s13, 7
    %p56 = por %p54, %p55
    %p57 = scmp.ne.s32.totalorder %s46, %s47
    %p58 = scmp.eq.s32.totalorder %s13, 0
    %p59 = por %p57, %p58
    %p60 = scmp.ne.s32.totalorder %s46, %s47
    %p61 = scmp.eq.s32.totalorder %s14, 7
    %p62 = por %p60, %p61
    %p64 = scmp.ne.s32.totalorder %s47, %s63
    %p65 = scmp.eq.s32.totalorder %s14, 0
    %p66 = por %p64, %p65
    %s67 = ssub.s32 %s16, %s30
    %p68 = scmp.eq.s32.totalorder %s67, 0
    %s70 = sadd.s32 %s69, 1
    %s71 = scalar_select %p68, %s69, %s70
    %p74 = pneg %p68
    %p75 = scmp.eq.s32.totalorder %s8, 7
    %p76 = por %p74, %p75
    %p77 = scmp.ne.s32.totalorder %s69, %s72
    %p78 = scmp.eq.s32.totalorder %s8, 0
    %p79 = por %p77, %p78
    %p80 = scmp.ne.s32.totalorder %s69, %s72
    %p81 = scmp.eq.s32.totalorder %s13, 7
    %p82 = por %p80, %p81
    %p83 = scmp.ne.s32.totalorder %s72, %s73
    %p84 = scmp.eq.s32.totalorder %s13, 0
    %p85 = por %p83, %p84
    %p86 = scmp.ne.s32.totalorder %s72, %s73
    %p87 = scmp.eq.s32.totalorder %s14, 7
    %p88 = por %p86, %p87
    %p90 = scmp.ne.s32.totalorder %s73, %s89
    %p91 = scmp.eq.s32.totalorder %s14, 0
    %p92 = por %p90, %p91
    %s93 = smul.u32 %s17, %s15
    %s94 = smul.u32 %s26, %s34
    %s95 = ssub.s32 %s16, %s30
    %s96 = ssub.s32 %s93, %s94
    %s97 = sor.u32 %s95, %s96
    %p98 = scmp.eq.s32.totalorder %s97, 0
    %s100 = sadd.s32 %s99, 1
    %s101 = scalar_select %p98, %s99, %s100
    %p104 = pneg %p98
    %p105 = scmp.eq.s32.totalorder %s8, 7
    %p106 = por %p104, %p105
    %p107 = scmp.ne.s32.totalorder %s99, %s102
    %p108 = scmp.eq.s32.totalorder %s8, 0
    %p109 = por %p107, %p108
    %p110 = scmp.ne.s32.totalorder %s99, %s102
    %p111 = scmp.eq.s32.totalorder %s13, 7
    %p112 = por %p110, %p111
    %p113 = scmp.ne.s32.totalorder %s102, %s103
    %p114 = scmp.eq.s32.totalorder %s13, 0
    %p115 = por %p113, %p114
    %p116 = scmp.ne.s32.totalorder %s102, %s103
    %p117 = scmp.eq.s32.totalorder %s14, 7
    %p118 = por %p116, %p117
    %p120 = scmp.ne.s32.totalorder %s103, %s119
    %p121 = scmp.eq.s32.totalorder %s14, 0
    %p122 = por %p120, %p121
    %p123 = scmp.le.s32.totalorder 1, %s8
    %p124 = scmp.lt.s32.totalorder %s8, 9
    %p125 = pnand %p123, %p124
    %p126 = pneg %p125
    // Predicated region
    $region9: #{generator_forward.14} parent=5 // pred_check
      _
    $region10: #{generator_forward.14} parent=5 // pred_check_branch
      %128 = sbr.rel (%p125) target = $region12
    $region11: #{generator_forward.14} parent=5 // pred_region
      %s129 = ssub.s32 %s8, 1
    $region12: #{generator_forward.14} parent=5 // pred_fallthru
      _
    %p130 = scmp.lt.s32.totalorder %s8, 8
    // Predicated region
    $region13: #{generator_forward.14} parent=5 // pred_check
      %p131 = pneg %p130
    $region14: #{generator_forward.14} parent=5 // pred_check_branch
      %133 = sbr.rel (%p131) target = $region16
    $region15: #{generator_forward.14} parent=5 // pred_region
      // Predicated region
      $region17: #{generator_forward.14} parent=15 // pred_check
        %p134 = pneg %p53
      $region18: #{generator_forward.14} parent=15 // pred_check_branch
        %136 = sbr.rel (%p134) target = $region20
      $region19: #{generator_forward.14} parent=15 // pred_region
        %s137 = ssub.s32 1, %s15
        %s138 = smul.u32 %s17, %s137
        %s139 = smul.u32 16, %s138
        %p140 = scmp.lt.s32.totalorder %s16, 3
        %s141 = scalar_select %p140, %s16, 3
        %p142 = scmp.lt.s32.totalorder %s139, 15
        %s143 = scalar_select %p142, %s139, 15
        %s144 = smul.addr %s141, 16
        %s145 = sadd.s32 %s143, %s144
        %s146 = smul.addr %s145, 4
        %s147 = scalar_lea.vmem %s0, %s146
        %s148 = ssub.s32 1, %s15
        %s149 = smul.u32 %s17, %s148
        %s150 = smul.u32 16, %s149
      $region20: #{generator_forward.14} parent=15 // pred_fallthru
        _
      // Predicated region
      $region21: #{generator_forward.14} parent=15 // pred_check
        %p151 = pneg %p79
      $region22: #{generator_forward.14} parent=15 // pred_check_branch
        %153 = sbr.rel (%p151) target = $region24
      $region23: #{generator_forward.14} parent=15 // pred_region
        %p154 = scmp.lt.s32.totalorder %s16, 3
        %s155 = scalar_select %p154, %s16, 3
        %s156 = smul.addr %s155, 16
        %s157 = smul.addr %s156, 4
        %s158 = scalar_lea.vmem %s1, %s157
      $region24: #{generator_forward.14} parent=15 // pred_fallthru
        _
    $region16: #{generator_forward.14} parent=5 // pred_fallthru
      _
    %p159 = scmp.le.s32.totalorder 1, %s8
    %p160 = scmp.lt.s32.totalorder %s8, 9
    %p161 = pnand %p159, %p160
    %p162 = pneg %p161
    // Predicated region
    $region25: #{generator_forward.14} parent=5 // pred_check
      _
    $region26: #{generator_forward.14} parent=5 // pred_check_branch
      %164 = sbr.rel (%p161) target = $region28
    $region27: #{generator_forward.14} parent=5 // pred_region
      %s165 = ssub.s32 %s8, 1
      %s166 = ssub.s32 1, %s18
      %s167 = smul.u32 %s20, %s166
      %s168 = smul.u32 16, %s167
      %p169 = scmp.lt.s32.totalorder %s19, 3
      %s170 = scalar_select %p169, %s19, 3
      %p171 = scmp.lt.s32.totalorder %s168, 15
      %s172 = scalar_select %p171, %s168, 15
      %s173 = smul.addr %s170, 16
      %s174 = sadd.s32 %s172, %s173
      %s175 = smul.addr %s174, 4
      %s176 = scalar_lea.vmem %s0, %s175
      %p177 = pneg %p59
      %p178 = pneg %p56
      %p179 = scmp.lt.s32.totalorder %s19, 3
      %s180 = scalar_select %p179, %s19, 3
      %s181 = smul.addr %s180, 16
      %s182 = smul.addr %s181, 4
      %s183 = scalar_lea.vmem %s1, %s182
      %p184 = pneg %p85
      %p185 = pneg %p82
      %p186 = pneg %p115
      %p187 = pneg %p112
      %s188 = smul.u32 %s20, %s18
      %s189 = smul.u32 16, %s188
      %p190 = scmp.lt.s32.totalorder %s19, 3
      %s191 = scalar_select %p190, %s19, 3
      %p192 = scmp.lt.s32.totalorder %s189, 15
      %s193 = scalar_select %p192, %s189, 15
      %s194 = smul.addr %s191, 16
      %s195 = sadd.s32 %s193, %s194
      %s196 = smul.addr %s195, 8
      %s197 = scalar_lea.vmem %s2, %s196
      %s198 = ssub.s32 1, %s18
      %s199 = smul.u32 %s20, %s198
      %s200 = smul.u32 16, %s199
      %p201 = scmp.lt.s32.totalorder %s19, 3
      %s202 = scalar_select %p201, %s19, 3
      %p203 = scmp.lt.s32.totalorder %s200, 15
      %s204 = scalar_select %p203, %s200, 15
      %s205 = smul.addr %s202, 16
      %s206 = sadd.s32 %s204, %s205
      %s207 = smul.addr %s206, 4
      %s208 = scalar_lea.vmem %s0, %s207
      %s209 = ssub.s32 1, %s18
      %s210 = smul.u32 %s20, %s209
      %s211 = smul.u32 16, %s210
      %p212 = scmp.lt.s32.totalorder %s19, 3
      %s213 = scalar_select %p212, %s19, 3
      %s214 = smul.addr %s213, 16
      %s215 = smul.addr %s214, 4
      %s216 = scalar_lea.vmem %s1, %s215
      %s217 = smul.u32 %s20, %s18
      %s218 = smul.u32 16, %s217
      %p219 = scmp.lt.s32.totalorder %s19, 3
      %s220 = scalar_select %p219, %s19, 3
      %p221 = scmp.lt.s32.totalorder %s218, 15
      %s222 = scalar_select %p221, %s218, 15
      %s223 = smul.addr %s220, 16
      %s224 = sadd.s32 %s222, %s223
      %s225 = smul.addr %s224, 8
      %s226 = scalar_lea.vmem %s2, %s225
      %s227 = smul.u32 %s20, %s18
      %s228 = smul.u32 16, %s227
      %s230 = smul.u32 %s20, 128
      %p231 = scmp.eq.s32.totalorder %s18, 0
      %p232 = scmp.eq.s32.totalorder %s19, 0
      %p233 = pnand %p231, %p232
      %p234 = pneg %p233
      %p235 = scmp.eq.s32.totalorder %s20, 0
      %p236 = pnand %p234, %p235
      %p237 = pneg %p236
      // Predicated region
      $region29: #{generator_forward.14} parent=27 // pred_check
        _
      $region30: #{generator_forward.14} parent=27 // pred_check_branch
        %239 = sbr.rel (%p236) target = $region32
      $region31: #{generator_forward.14} parent=27 // pred_region
        %240 = vst [vmem:[#allocation3] sm:$0x1] 0.0
        %241 = vst [vmem:[#allocation4] sm:$0x1] 0.0
      $region32: #{generator_forward.14} parent=27 // pred_fallthru
        _
      // Predicated region
      $region33: #{generator_forward.14} parent=27 // pred_check
        %p242 = pneg %p231
      $region34: #{generator_forward.14} parent=27 // pred_check_branch
        %244 = sbr.rel (%p242) target = $region36
      $region35: #{generator_forward.14} parent=27 // pred_region
        %v245 = vld [vmem:[%s208] sm:$0xf]
        %v246 = vld [vmem:[%s208 + $0x4] sm:$0xf]
        %v247 = vld [vmem:[%s208 + $0x8] sm:$0xf]
        %v248 = vld [vmem:[%s208 + $0xc] sm:$0xf]
        %v249 = vld [vmem:[%s208 + $0x10] sm:$0xf]
        %v250 = vld [vmem:[%s208 + $0x14] sm:$0xf]
        %v251 = vld [vmem:[%s208 + $0x18] sm:$0xf]
        %v252 = vld [vmem:[%s208 + $0x1c] sm:$0xf]
        %v253 = vld [vmem:[%s208 + $0x20] sm:$0xf]
        %v254 = vld [vmem:[%s208 + $0x24] sm:$0xf]
        %v255 = vld [vmem:[%s208 + $0x28] sm:$0xf]
        %v256 = vld [vmem:[%s208 + $0x2c] sm:$0xf]
        %v257 = vld [vmem:[%s208 + $0x30] sm:$0xf]
        %v258 = vld [vmem:[%s208 + $0x34] sm:$0xf]
        %v259 = vld [vmem:[%s208 + $0x38] sm:$0xf]
        %v260 = vld [vmem:[%s208 + $0x3c] sm:$0xf]
        %v261 = vld [vmem:[%s216] sm:$0xf]
        %v262 = vld [vmem:[%s216 + $0x4] sm:$0xf]
        %v263 = vld [vmem:[%s216 + $0x8] sm:$0xf]
        %v264 = vld [vmem:[%s216 + $0xc] sm:$0xf]
        %v265 = vld [vmem:[%s216 + $0x10] sm:$0xf]
        %v266 = vld [vmem:[%s216 + $0x14] sm:$0xf]
        %v267 = vld [vmem:[%s216 + $0x18] sm:$0xf]
        %v268 = vld [vmem:[%s216 + $0x1c] sm:$0xf]
        %v269 = vld [vmem:[%s216 + $0x20] sm:$0xf]
        %v270 = vld [vmem:[%s216 + $0x24] sm:$0xf]
        %v271 = vld [vmem:[%s216 + $0x28] sm:$0xf]
        %v272 = vld [vmem:[%s216 + $0x2c] sm:$0xf]
        %v273 = vld [vmem:[%s216 + $0x30] sm:$0xf]
        %v274 = vld [vmem:[%s216 + $0x34] sm:$0xf]
        %v275 = vld [vmem:[%s216 + $0x38] sm:$0xf]
        %v276 = vld [vmem:[%s216 + $0x3c] sm:$0xf]
        %v293 = vunpack.c.l.b16 %v245
        %v294 = vunpack.c.l.b16 %v246
        %v295 = vunpack.c.l.b16 %v247
        %v296 = vunpack.c.l.b16 %v248
        %v297 = vunpack.c.l.b16 %v249
        %v298 = vunpack.c.l.b16 %v250
        %v299 = vunpack.c.l.b16 %v251
        %v300 = vunpack.c.l.b16 %v252
        %v301 = vunpack.c.l.b16 %v253
        %v302 = vunpack.c.l.b16 %v254
        %v303 = vunpack.c.l.b16 %v255
        %v304 = vunpack.c.l.b16 %v256
        %v305 = vunpack.c.l.b16 %v257
        %v306 = vunpack.c.l.b16 %v258
        %v307 = vunpack.c.l.b16 %v259
        %v308 = vunpack.c.l.b16 %v260
        %v309 = vpack.c.b16 %v294, %v293
        %v310 = vpack.c.b16 %v296, %v295
        %v311 = vpack.c.b16 %v298, %v297
        %v312 = vpack.c.b16 %v300, %v299
        %v313 = vpack.c.b16 %v302, %v301
        %v314 = vpack.c.b16 %v304, %v303
        %v315 = vpack.c.b16 %v306, %v305
        %v316 = vpack.c.b16 %v308, %v307
        %v341 = vunpack.c.l.b16 %v261
        %v342 = vunpack.c.l.b16 %v262
        %v343 = vunpack.c.l.b16 %v263
        %v344 = vunpack.c.l.b16 %v264
        %v345 = vunpack.c.l.b16 %v265
        %v346 = vunpack.c.l.b16 %v266
        %v347 = vunpack.c.l.b16 %v267
        %v348 = vunpack.c.l.b16 %v268
        %v349 = vunpack.c.l.b16 %v269
        %v350 = vunpack.c.l.b16 %v270
        %v351 = vunpack.c.l.b16 %v271
        %v352 = vunpack.c.l.b16 %v272
        %v353 = vunpack.c.l.b16 %v273
        %v354 = vunpack.c.l.b16 %v274
        %v355 = vunpack.c.l.b16 %v275
        %v356 = vunpack.c.l.b16 %v276
        %v357 = vpack.c.b16 %v342, %v341
        %v358 = vpack.c.b16 %v344, %v343
        %v359 = vpack.c.b16 %v346, %v345
        %v360 = vpack.c.b16 %v348, %v347
        %v361 = vpack.c.b16 %v350, %v349
        %v362 = vpack.c.b16 %v352, %v351
        %v363 = vpack.c.b16 %v354, %v353
        %v364 = vpack.c.b16 %v356, %v355
        %373 = vmatprep.subr.bf16.mxu0 0
        %374 = vmatpush1.bf16.msra.mxu0 %v357
        %375 = vmatprep.subr.bf16.mxu0 0
        %376 = vmatpush1.bf16.msra.mxu0 %v358
        %377 = vmatprep.subr.bf16.mxu0 0
        %378 = vmatpush1.bf16.msra.mxu0 %v359
        %379 = vmatprep.subr.bf16.mxu0 0
        %380 = vmatpush1.bf16.msra.mxu0 %v360
        %381 = vmatprep.subr.bf16.mxu0 0
        %382 = vmatpush1.bf16.msra.mxu0 %v361
        %383 = vmatprep.subr.bf16.mxu0 0
        %384 = vmatpush1.bf16.msra.mxu0 %v362
        %385 = vmatprep.subr.bf16.mxu0 0
        %386 = vmatpush1.bf16.msra.mxu0 %v363
        %387 = vmatprep.subr.bf16.mxu0 0
        %388 = vmatpush1.bf16.msra.mxu0 %v364
        %389 = vmatprep.subr.bf16.mxu0 0
        %390 = vmatpush1.bf16.msra.mxu0 0
        %391 = vmatprep.subr.bf16.mxu0 0
        %392 = vmatpush1.bf16.msra.mxu0 0
        %393 = vmatprep.subr.bf16.mxu0 0
        %394 = vmatpush1.bf16.msra.mxu0 0
        %395 = vmatprep.subr.bf16.mxu0 0
        %396 = vmatpush1.bf16.msra.mxu0 0
        %397 = vmatprep.subr.bf16.mxu0 0
        %398 = vmatpush1.bf16.msra.mxu0 0
        %399 = vmatprep.subr.bf16.mxu0 0
        %400 = vmatpush1.bf16.msra.mxu0 0
        %401 = vmatprep.subr.bf16.mxu0 0
        %402 = vmatpush1.bf16.msra.mxu0 0
        %403 = vmatprep.subr.bf16.mxu0 0
        %404 = vmatpush1.bf16.msra.mxu0 0
        %405 = vmatprep.mubr.bf16.mxu0 0
        %406 = vmatmul.mubr.bf16.gmra.mrb[0].mxu0 %v309
        %v407 = vpop.f32.mrb[0].mxu0
        %v408 = vadd.f32 0.0, %v407
        %v409 = vpop.f32.mrb[0].mxu0
        %v410 = vpop.f32.mrb[0].mxu0
        %v411 = vadd.f32 0.0, %v410
        %v412 = vpop.f32.mrb[0].mxu0
        %413 = vmatprep.mubr.bf16.mxu0 0
        %414 = vmatmul.mubr.bf16.gmra.mrb[0].mxu0 %v310
        %v415 = vpop.f32.mrb[0].mxu0
        %v416 = vadd.f32 0.0, %v415
        %v417 = vpop.f32.mrb[0].mxu0
        %v418 = vpop.f32.mrb[0].mxu0
        %v419 = vadd.f32 0.0, %v418
        %v420 = vpop.f32.mrb[0].mxu0
        %421 = vmatprep.mubr.bf16.mxu0 0
        %422 = vmatmul.mubr.bf16.gmra.mrb[0].mxu0 %v311
        %v423 = vpop.f32.mrb[0].mxu0
        %v424 = vadd.f32 0.0, %v423
        %v425 = vpop.f32.mrb[0].mxu0
        %v426 = vpop.f32.mrb[0].mxu0
        %v427 = vadd.f32 0.0, %v426
        %v428 = vpop.f32.mrb[0].mxu0
        %429 = vmatprep.mubr.bf16.mxu0 0
        %430 = vmatmul.mubr.bf16.gmra.mrb[0].mxu0 %v312
        %v431 = vpop.f32.mrb[0].mxu0
        %v432 = vadd.f32 0.0, %v431
        %v433 = vpop.f32.mrb[0].mxu0
        %v434 = vpop.f32.mrb[0].mxu0
        %v435 = vadd.f32 0.0, %v434
        %v436 = vpop.f32.mrb[0].mxu0
        %437 = vmatprep.mubr.bf16.mxu0 0
        %438 = vmatmul.mubr.bf16.gmra.mrb[0].mxu0 %v313
        %v439 = vpop.f32.mrb[0].mxu0
        %v440 = vadd.f32 0.0, %v439
        %v441 = vpop.f32.mrb[0].mxu0
        %v442 = vpop.f32.mrb[0].mxu0
        %v443 = vadd.f32 0.0, %v442
        %v444 = vpop.f32.mrb[0].mxu0
        %445 = vmatprep.mubr.bf16.mxu0 0
        %446 = vmatmul.mubr.bf16.gmra.mrb[0].mxu0 %v314
        %v447 = vpop.f32.mrb[0].mxu0
        %v448 = vadd.f32 0.0, %v447
        %v449 = vpop.f32.mrb[0].mxu0
        %v450 = vpop.f32.mrb[0].mxu0
        %v451 = vadd.f32 0.0, %v450
        %v452 = vpop.f32.mrb[0].mxu0
        %453 = vmatprep.mubr.bf16.mxu0 0
        %454 = vmatmul.mubr.bf16.gmra.mrb[0].mxu0 %v315
        %v455 = vpop.f32.mrb[0].mxu0
        %v456 = vadd.f32 0.0, %v455
        %v457 = vpop.f32.mrb[0].mxu0
        %v458 = vpop.f32.mrb[0].mxu0
        %v459 = vadd.f32 0.0, %v458
        %v460 = vpop.f32.mrb[0].mxu0
        %461 = vmatprep.mubr.bf16.mxu0 0
        %462 = vmatmul.mubr.bf16.gmra.mrb[0].mxu0 %v316
        %v463 = vpop.f32.mrb[0].mxu0
        %v464 = vadd.f32 0.0, %v463
        %v465 = vpop.f32.mrb[0].mxu0
        %v466 = vpop.f32.mrb[0].mxu0
        %v467 = vadd.f32 0.0, %v466
        %v468 = vpop.f32.mrb[0].mxu0
        %469 = vdwg.mxu0
        %s470 = smul.u32 %s19, 128
        %s471 = sadd.s32 %s230, %s470
        %s472 = scalar_lea.vmem [#allocation2], %s471
        %473 = vst [vmem:[%s472] sm:$0xff] %v408
        %474 = vst [vmem:[%s472 + $0x8] sm:$0xff] %v411
        %475 = vst [vmem:[%s472 + $0x10] sm:$0xff] %v416
        %476 = vst [vmem:[%s472 + $0x18] sm:$0xff] %v419
        %477 = vst [vmem:[%s472 + $0x20] sm:$0xff] %v424
        %478 = vst [vmem:[%s472 + $0x28] sm:$0xff] %v427
        %479 = vst [vmem:[%s472 + $0x30] sm:$0xff] %v432
        %480 = vst [vmem:[%s472 + $0x38] sm:$0xff] %v435
        %481 = vst [vmem:[%s472 + $0x40] sm:$0xff] %v440
        %482 = vst [vmem:[%s472 + $0x48] sm:$0xff] %v443
        %483 = vst [vmem:[%s472 + $0x50] sm:$0xff] %v448
        %484 = vst [vmem:[%s472 + $0x58] sm:$0xff] %v451
        %485 = vst [vmem:[%s472 + $0x60] sm:$0xff] %v456
        %486 = vst [vmem:[%s472 + $0x68] sm:$0xff] %v459
        %487 = vst [vmem:[%s472 + $0x70] sm:$0xff] %v464
        %488 = vst [vmem:[%s472 + $0x78] sm:$0xff] %v467
        %v489 = vld [vmem:[#allocation3] sm:$0x1]
        %v490 = vadd.f32 %v408, %v411
        %v491 = vadd.f32 %v490, %v416
        %v492 = vadd.f32 %v491, %v419
        %v493 = vadd.f32 %v492, %v424
        %v494 = vadd.f32 %v493, %v427
        %v495 = vadd.f32 %v494, %v432
        %v496 = vadd.f32 %v495, %v435
        %v497 = vadd.f32 %v496, %v440
        %v498 = vadd.f32 %v497, %v443
        %v499 = vadd.f32 %v498, %v448
        %v500 = vadd.f32 %v499, %v451
        %v501 = vadd.f32 %v500, %v456
        %v502 = vadd.f32 %v501, %v459
        %v503 = vadd.f32 %v502, %v464
        %v504 = vadd.f32 %v503, %v467
        %v505 = vrot.slane %v504, 4
        %v506 = vadd.f32 %v504, %v505
        %v507 = vrot.slane %v506, 2
        %v508 = vadd.f32 %v506, %v507
        %v509 = vrot.slane %v508, 1
        %v510 = vadd.f32 %v508, %v509
        %v511 = vadd.f32 %v489, %v510
        %512 = vst [vmem:[#allocation3] sm:$0x1] %v511
        %v513 = vld [vmem:[#allocation4] sm:$0x1]
        %v514 = vmul.f32 %v408, %v408
        %v515 = vmul.f32 %v411, %v411
        %v516 = vmul.f32 %v416, %v416
        %v517 = vmul.f32 %v419, %v419
        %v518 = vmul.f32 %v424, %v424
        %v519 = vmul.f32 %v427, %v427
        %v520 = vmul.f32 %v432, %v432
        %v521 = vmul.f32 %v435, %v435
        %v522 = vmul.f32 %v440, %v440
        %v523 = vmul.f32 %v443, %v443
        %v524 = vmul.f32 %v448, %v448
        %v525 = vmul.f32 %v451, %v451
        %v526 = vmul.f32 %v456, %v456
        %v527 = vmul.f32 %v459, %v459
        %v528 = vmul.f32 %v464, %v464
        %v529 = vmul.f32 %v467, %v467
        %v530 = vadd.f32 %v514, %v515
        %v531 = vadd.f32 %v530, %v516
        %v532 = vadd.f32 %v531, %v517
        %v533 = vadd.f32 %v532, %v518
        %v534 = vadd.f32 %v533, %v519
        %v535 = vadd.f32 %v534, %v520
        %v536 = vadd.f32 %v535, %v521
        %v537 = vadd.f32 %v536, %v522
        %v538 = vadd.f32 %v537, %v523
        %v539 = vadd.f32 %v538, %v524
        %v540 = vadd.f32 %v539, %v525
        %v541 = vadd.f32 %v540, %v526
        %v542 = vadd.f32 %v541, %v527
        %v543 = vadd.f32 %v542, %v528
        %v544 = vadd.f32 %v543, %v529
        %v545 = vrot.slane %v544, 4
        %v546 = vadd.f32 %v544, %v545
        %v547 = vrot.slane %v546, 2
        %v548 = vadd.f32 %v546, %v547
        %v549 = vrot.slane %v548, 1
        %v550 = vadd.f32 %v548, %v549
        %v551 = vadd.f32 %v513, %v550
        %552 = vst [vmem:[#allocation4] sm:$0x1] %v551
      $region36: #{generator_forward.14} parent=27 // pred_fallthru
        _
      %p553 = scmp.eq.s32.totalorder %s18, 1
      // Predicated region
      $region37: #{generator_forward.14} parent=27 // pred_check
        %p554 = pneg %p553
      $region38: #{generator_forward.14} parent=27 // pred_check_branch
        %556 = sbr.rel (%p554) target = $region40
      $region39: #{generator_forward.14} parent=27 // pred_region
        %v557 = vld [vmem:[#allocation3] sm:$0x1]
        %v558 = vmul.f32 %v557, 0.001953125
        %v559 = vld [vmem:[#allocation4] sm:$0x1]
        %v560 = vmul.f32 %v559, 0.001953125
        %v561 = vmul.f32 %v558, %v558
        %v562 = vsub.f32 %v560, %v561
        %v563 = vmax.f32 %v562, 0.0
        %v564 = vadd.f32 %v563, 1e-05
        %v565 = vrsqrt.pop %v564
        %s566 = smul.u32 %s19, 128
        %s567 = sadd.s32 %s230, %s566
        %s568 = scalar_lea.vmem [#allocation2], %s567
        %v569 = vld [vmem:[%s568] sm:$0xff]
        %v570 = vld [vmem:[%s568 + $0x8] sm:$0xff]
        %v571 = vld [vmem:[%s568 + $0x10] sm:$0xff]
        %v572 = vld [vmem:[%s568 + $0x18] sm:$0xff]
        %v573 = vld [vmem:[%s568 + $0x20] sm:$0xff]
        %v574 = vld [vmem:[%s568 + $0x28] sm:$0xff]
        %v575 = vld [vmem:[%s568 + $0x30] sm:$0xff]
        %v576 = vld [vmem:[%s568 + $0x38] sm:$0xff]
        %v577 = vld [vmem:[%s568 + $0x40] sm:$0xff]
        %v578 = vld [vmem:[%s568 + $0x48] sm:$0xff]
        %v579 = vld [vmem:[%s568 + $0x50] sm:$0xff]
        %v580 = vld [vmem:[%s568 + $0x58] sm:$0xff]
        %v581 = vld [vmem:[%s568 + $0x60] sm:$0xff]
        %v582 = vld [vmem:[%s568 + $0x68] sm:$0xff]
        %v583 = vld [vmem:[%s568 + $0x70] sm:$0xff]
        %v584 = vld [vmem:[%s568 + $0x78] sm:$0xff]
        %v586 = vlaneseq
        %v587 = vshrl.u32 %v586, 7
        %v588 = vsub.s32 0, %v587
        %v589 = vrot.slane %v558, %v588
        %v591 = vsub.f32 %v569, %v589
        %v592 = vsub.f32 %v570, %v589
        %v593 = vsub.f32 %v571, %v589
        %v594 = vsub.f32 %v572, %v589
        %v595 = vsub.f32 %v573, %v589
        %v596 = vsub.f32 %v574, %v589
        %v597 = vsub.f32 %v575, %v589
        %v598 = vsub.f32 %v576, %v589
        %v599 = vsub.f32 %v577, %v589
        %v600 = vsub.f32 %v578, %v589
        %v601 = vsub.f32 %v579, %v589
        %v602 = vsub.f32 %v580, %v589
        %v603 = vsub.f32 %v581, %v589
        %v604 = vsub.f32 %v582, %v589
        %v605 = vsub.f32 %v583, %v589
        %v606 = vsub.f32 %v584, %v589
        %v608 = vlaneseq
        %v609 = vshrl.u32 %v608, 7
        %v610 = vsub.s32 0, %v609
        %v611 = vrot.slane %v565, %v610
        %v613 = vmul.f32 %v591, %v611
        %v614 = vmul.f32 %v592, %v611
        %v615 = vmul.f32 %v593, %v611
        %v616 = vmul.f32 %v594, %v611
        %v617 = vmul.f32 %v595, %v611
        %v618 = vmul.f32 %v596, %v611
        %v619 = vmul.f32 %v597, %v611
        %v620 = vmul.f32 %v598, %v611
        %v621 = vmul.f32 %v599, %v611
        %v622 = vmul.f32 %v600, %v611
        %v623 = vmul.f32 %v601, %v611
        %v624 = vmul.f32 %v602, %v611
        %v625 = vmul.f32 %v603, %v611
        %v626 = vmul.f32 %v604, %v611
        %v627 = vmul.f32 %v605, %v611
        %v628 = vmul.f32 %v606, %v611
        %v629 = vmax.f32 %v613, 0.0
        %v630 = vmax.f32 %v614, 0.0
        %v631 = vmax.f32 %v615, 0.0
        %v632 = vmax.f32 %v616, 0.0
        %v633 = vmax.f32 %v617, 0.0
        %v634 = vmax.f32 %v618, 0.0
        %v635 = vmax.f32 %v619, 0.0
        %v636 = vmax.f32 %v620, 0.0
        %v637 = vmax.f32 %v621, 0.0
        %v638 = vmax.f32 %v622, 0.0
        %v639 = vmax.f32 %v623, 0.0
        %v640 = vmax.f32 %v624, 0.0
        %v641 = vmax.f32 %v625, 0.0
        %v642 = vmax.f32 %v626, 0.0
        %v643 = vmax.f32 %v627, 0.0
        %v644 = vmax.f32 %v628, 0.0
        %645 = vst [vmem:[%s226] sm:$0xff] %v629
        %646 = vst [vmem:[%s226 + $0x8] sm:$0xff] %v630
        %647 = vst [vmem:[%s226 + $0x10] sm:$0xff] %v631
        %648 = vst [vmem:[%s226 + $0x18] sm:$0xff] %v632
        %649 = vst [vmem:[%s226 + $0x20] sm:$0xff] %v633
        %650 = vst [vmem:[%s226 + $0x28] sm:$0xff] %v634
        %651 = vst [vmem:[%s226 + $0x30] sm:$0xff] %v635
        %652 = vst [vmem:[%s226 + $0x38] sm:$0xff] %v636
        %653 = vst [vmem:[%s226 + $0x40] sm:$0xff] %v637
        %654 = vst [vmem:[%s226 + $0x48] sm:$0xff] %v638
        %655 = vst [vmem:[%s226 + $0x50] sm:$0xff] %v639
        %656 = vst [vmem:[%s226 + $0x58] sm:$0xff] %v640
        %657 = vst [vmem:[%s226 + $0x60] sm:$0xff] %v641
        %658 = vst [vmem:[%s226 + $0x68] sm:$0xff] %v642
        %659 = vst [vmem:[%s226 + $0x70] sm:$0xff] %v643
        %660 = vst [vmem:[%s226 + $0x78] sm:$0xff] %v644
      $region40: #{generator_forward.14} parent=27 // pred_fallthru
        _
      %s661 = smul.u32 %s20, %s18
      %s662 = smul.u32 16, %s661
      %p663 = scmp.lt.s32.totalorder %s19, 3
      %s664 = scalar_select %p663, %s19, 3
      %p665 = scmp.lt.s32.totalorder %s662, 15
      %s666 = scalar_select %p665, %s662, 15
      %s667 = smul.addr %s664, 16
      %s668 = sadd.s32 %s666, %s667
      %s669 = smul.addr %s668, 8
      %s670 = scalar_lea.vmem %s2, %s669
      // Predicated region
      $region41: #{generator_forward.14} parent=27 // pred_check
        %p671 = pneg %p112
      $region42: #{generator_forward.14} parent=27 // pred_check_branch
        %673 = sbr.rel (%p671) target = $region44
      $region43: #{generator_forward.14} parent=27 // pred_region
        %s674 = smul.u32 %s20, %s18
        %s675 = smul.u32 16, %s674
      $region44: #{generator_forward.14} parent=27 // pred_fallthru
        _
    $region28: #{generator_forward.14} parent=5 // pred_fallthru
      _
    %p676 = scmp.le.s32.totalorder 2, %s8
    // Predicated region
    $region45: #{generator_forward.14} parent=5 // pred_check
      %p677 = pneg %p676
    $region46: #{generator_forward.14} parent=5 // pred_check_branch
      %679 = sbr.rel (%p677) target = $region48
    $region47: #{generator_forward.14} parent=5 // pred_region
      %s680 = ssub.s32 %s8, 2
      // Predicated region
      $region49: #{generator_forward.14} parent=47 // pred_check
        %p681 = pneg %p118
      $region50: #{generator_forward.14} parent=47 // pred_check_branch
        %683 = sbr.rel (%p681) target = $region52
      $region51: #{generator_forward.14} parent=47 // pred_region
        %s684 = smul.u32 %s23, %s21
        %s685 = smul.u32 16, %s684
        %p686 = scmp.lt.s32.totalorder %s22, 3
        %s687 = scalar_select %p686, %s22, 3
        %p688 = scmp.lt.s32.totalorder %s685, 15
        %s689 = scalar_select %p688, %s685, 15
        %s690 = smul.addr %s687, 16
        %s691 = sadd.s32 %s689, %s690
        %s692 = smul.addr %s691, 8
        %s693 = scalar_lea.vmem %s2, %s692
      $region52: #{generator_forward.14} parent=47 // pred_fallthru
        _
    $region48: #{generator_forward.14} parent=5 // pred_fallthru
      _
  $region6: #{generator_forward.14} parent=0 // loop_footer
    %s12 = sadd.s32 1, %s8
  $region7: #{generator_forward.14} parent=0 // loop_footer_branch
    %7 = sbr.rel target = $region3
  $region8: #{generator_forward.14} parent=0 // loop_exit
    _

// kernel: generator_forward.15
$region0: #{generator_forward.15}
  #allocation0 [shape = 'u32[]', space=smem, size = 0x4, offset = 0x4, fixed_abs, tag = 'smem constant byte address 0x4 - core index']
  #allocation1 [shape = 'u32[144,128]{1,0:T(1,128)}', space=vmem, size = 0x12000, scoped, tag = 'internal scratch']
  %s0 = inlined_call_operand.vmem [shape: bf16[4,512,64], index: 0, kind: input, shape index: {}]
  %s1 = inlined_call_operand.vmem [shape: bf16[4,64,128], index: 1, kind: input, shape index: {}]
  %s2 = inlined_call_operand.vmem [shape: f32[4,512,128], index: 2, kind: output, shape index: {}]
  %s3 = sld [smem:[#allocation0]]
  $region41: #{generator_forward.15} parent=0
    _
  %s5 = ssub.s32 1, %s3
  %s6 = scalar_select 0, %s5, %s3
  loop: start=0, step=1, limit=6
  $region2: #{generator_forward.15} parent=0 // loop_pre_header
    _
  $region3: #{generator_forward.15} parent=0 // loop_header
    %s8 = sphi 0, %s12
    %p9 = scmp.ge.s32.totalorder %s8, 6
    %s15 = sphi 0, %s27
    %s16 = sphi 0, %s23
    %s17 = sphi 0, %s15
    %s18 = sphi 0, %s16
    %s19 = sphi 0, %s17
    %s20 = sphi 0, %s18
    %s32 = sphi 0, %s34
    %s35 = sphi 0, %s32
    %s36 = sphi 0, %s35
    %s52 = sphi 0, %s36
    %s58 = sphi 0, %s60
    %s61 = sphi 0, %s58
    %s62 = sphi 0, %s61
    %s78 = sphi 0, %s62
    %s86 = sphi 0, %s88
    %s89 = sphi 0, %s86
    %s90 = sphi 0, %s89
    %s106 = sphi 0, %s90
  $region4: #{generator_forward.15} parent=0 // loop_header_branch
    %11 = sbr.rel (%p9) target = $region8
  $region5: #{generator_forward.15} parent=0 // loop_body
    %s13 = ssub.s32 %s8, 1
    %s14 = ssub.s32 %s8, 2
    %s21 = sadd.s32 1, %s16
    %p22 = scmp.ge.s32.totalorder %s21, 1
    %s23 = scalar_select %p22, 0, %s21
    %s24 = sadd.s32 1, %s15
    %s25 = scalar_select %p22, %s24, %s15
    %p26 = scmp.ge.s32.totalorder %s25, 4
    %s27 = scalar_select %p26, 0, %s25
    %s28 = ssub.s32 %s15, %s27
    %s29 = ssub.s32 %s16, %s23
    %s30 = sor.u32 %s28, %s29
    %p31 = scmp.eq.s32.totalorder %s30, 0
    %s33 = sadd.s32 %s32, 1
    %s34 = scalar_select %p31, %s32, %s33
    %p37 = pneg %p31
    %p38 = scmp.eq.s32.totalorder %s8, 3
    %p39 = por %p37, %p38
    %p40 = scmp.ne.s32.totalorder %s32, %s35
    %p41 = scmp.eq.s32.totalorder %s8, 0
    %p42 = por %p40, %p41
    %p43 = scmp.ne.s32.totalorder %s32, %s35
    %p44 = scmp.eq.s32.totalorder %s13, 3
    %p45 = por %p43, %p44
    %p46 = scmp.ne.s32.totalorder %s35, %s36
    %p47 = scmp.eq.s32.totalorder %s13, 0
    %p48 = por %p46, %p47
    %p49 = scmp.ne.s32.totalorder %s35, %s36
    %p50 = scmp.eq.s32.totalorder %s14, 3
    %p51 = por %p49, %p50
    %p53 = scmp.ne.s32.totalorder %s36, %s52
    %p54 = scmp.eq.s32.totalorder %s14, 0
    %p55 = por %p53, %p54
    %s56 = ssub.s32 %s15, %s27
    %p57 = scmp.eq.s32.totalorder %s56, 0
    %s59 = sadd.s32 %s58, 1
    %s60 = scalar_select %p57, %s58, %s59
    %p63 = pneg %p57
    %p64 = scmp.eq.s32.totalorder %s8, 3
    %p65 = por %p63, %p64
    %p66 = scmp.ne.s32.totalorder %s58, %s61
    %p67 = scmp.eq.s32.totalorder %s8, 0
    %p68 = por %p66, %p67
    %p69 = scmp.ne.s32.totalorder %s58, %s61
    %p70 = scmp.eq.s32.totalorder %s13, 3
    %p71 = por %p69, %p70
    %p72 = scmp.ne.s32.totalorder %s61, %s62
    %p73 = scmp.eq.s32.totalorder %s13, 0
    %p74 = por %p72, %p73
    %p75 = scmp.ne.s32.totalorder %s61, %s62
    %p76 = scmp.eq.s32.totalorder %s14, 3
    %p77 = por %p75, %p76
    %p79 = scmp.ne.s32.totalorder %s62, %s78
    %p80 = scmp.eq.s32.totalorder %s14, 0
    %p81 = por %p79, %p80
    %s82 = ssub.s32 %s15, %s27
    %s83 = ssub.s32 %s16, %s23
    %s84 = sor.u32 %s82, %s83
    %p85 = scmp.eq.s32.totalorder %s84, 0
    %s87 = sadd.s32 %s86, 1
    %s88 = scalar_select %p85, %s86, %s87
    %p91 = pneg %p85
    %p92 = scmp.eq.s32.totalorder %s8, 3
    %p93 = por %p91, %p92
    %p94 = scmp.ne.s32.totalorder %s86, %s89
    %p95 = scmp.eq.s32.totalorder %s8, 0
    %p96 = por %p94, %p95
    %p97 = scmp.ne.s32.totalorder %s86, %s89
    %p98 = scmp.eq.s32.totalorder %s13, 3
    %p99 = por %p97, %p98
    %p100 = scmp.ne.s32.totalorder %s89, %s90
    %p101 = scmp.eq.s32.totalorder %s13, 0
    %p102 = por %p100, %p101
    %p103 = scmp.ne.s32.totalorder %s89, %s90
    %p104 = scmp.eq.s32.totalorder %s14, 3
    %p105 = por %p103, %p104
    %p107 = scmp.ne.s32.totalorder %s90, %s106
    %p108 = scmp.eq.s32.totalorder %s14, 0
    %p109 = por %p107, %p108
    %p110 = scmp.le.s32.totalorder 1, %s8
    %p111 = scmp.lt.s32.totalorder %s8, 5
    %p112 = pnand %p110, %p111
    %p113 = pneg %p112
    // Predicated region
    $region9: #{generator_forward.15} parent=5 // pred_check
      _
    $region10: #{generator_forward.15} parent=5 // pred_check_branch
      %115 = sbr.rel (%p112) target = $region12
    $region11: #{generator_forward.15} parent=5 // pred_region
      %s116 = ssub.s32 %s8, 1
    $region12: #{generator_forward.15} parent=5 // pred_fallthru
      _
    %p117 = scmp.lt.s32.totalorder %s8, 4
    // Predicated region
    $region13: #{generator_forward.15} parent=5 // pred_check
      %p118 = pneg %p117
    $region14: #{generator_forward.15} parent=5 // pred_check_branch
      %120 = sbr.rel (%p118) target = $region16
    $region15: #{generator_forward.15} parent=5 // pred_region
      // Predicated region
      $region17: #{generator_forward.15} parent=15 // pred_check
        %p121 = pneg %p42
      $region18: #{generator_forward.15} parent=15 // pred_check_branch
        %123 = sbr.rel (%p121) target = $region20
      $region19: #{generator_forward.15} parent=15 // pred_region
        %s124 = smul.u32 64, %s16
        %p125 = scmp.lt.s32.totalorder %s15, 3
        %s126 = scalar_select %p125, %s15, 3
        %p127 = scmp.lt.s32.totalorder %s124, 63
        %s128 = scalar_select %p127, %s124, 63
        %s129 = smul.addr %s126, 64
        %s130 = sadd.s32 %s128, %s129
        %s131 = smul.addr %s130, 4
        %s132 = scalar_lea.vmem %s0, %s131
        %s133 = smul.u32 64, %s16
      $region20: #{generator_forward.15} parent=15 // pred_fallthru
        _
      // Predicated region
      $region21: #{generator_forward.15} parent=15 // pred_check
        %p134 = pneg %p68
      $region22: #{generator_forward.15} parent=15 // pred_check_branch
        %136 = sbr.rel (%p134) target = $region24
      $region23: #{generator_forward.15} parent=15 // pred_region
        %p137 = scmp.lt.s32.totalorder %s15, 3
        %s138 = scalar_select %p137, %s15, 3
        %s139 = smul.addr %s138, 8
        %s140 = smul.addr %s139, 4
        %s141 = scalar_lea.vmem %s1, %s140
      $region24: #{generator_forward.15} parent=15 // pred_fallthru
        _
    $region16: #{generator_forward.15} parent=5 // pred_fallthru
      _
    %p142 = scmp.le.s32.totalorder 1, %s8
    %p143 = scmp.lt.s32.totalorder %s8, 5
    %p144 = pnand %p142, %p143
    %p145 = pneg %p144
    // Predicated region
    $region25: #{generator_forward.15} parent=5 // pred_check
      _
    $region26: #{generator_forward.15} parent=5 // pred_check_branch
      %147 = sbr.rel (%p144) target = $region28
    $region27: #{generator_forward.15} parent=5 // pred_region
      %s148 = ssub.s32 %s8, 1
      %s149 = smul.u32 64, %s18
      %p150 = scmp.lt.s32.totalorder %s17, 3
      %s151 = scalar_select %p150, %s17, 3
      %p152 = scmp.lt.s32.totalorder %s149, 63
      %s153 = scalar_select %p152, %s149, 63
      %s154 = smul.addr %s151, 64
      %s155 = sadd.s32 %s153, %s154
      %s156 = smul.addr %s155, 4
      %s157 = scalar_lea.vmem %s0, %s156
      %p158 = pneg %p48
      %p159 = pneg %p45
      %p160 = scmp.lt.s32.totalorder %s17, 3
      %s161 = scalar_select %p160, %s17, 3
      %s162 = smul.addr %s161, 8
      %s163 = smul.addr %s162, 4
      %s164 = scalar_lea.vmem %s1, %s163
      %p165 = pneg %p74
      %p166 = pneg %p71
      %p167 = pneg %p102
      %p168 = pneg %p99
      %s169 = smul.u32 64, %s18
      %p170 = scmp.lt.s32.totalorder %s17, 3
      %s171 = scalar_select %p170, %s17, 3
      %p172 = scmp.lt.s32.totalorder %s169, 63
      %s173 = scalar_select %p172, %s169, 63
      %s174 = smul.addr %s171, 64
      %s175 = sadd.s32 %s173, %s174
      %s176 = smul.addr %s175, 8
      %s177 = scalar_lea.vmem %s2, %s176
      %s178 = smul.u32 64, %s18
      %p179 = scmp.lt.s32.totalorder %s17, 3
      %s180 = scalar_select %p179, %s17, 3
      %p181 = scmp.lt.s32.totalorder %s178, 63
      %s182 = scalar_select %p181, %s178, 63
      %s183 = smul.addr %s180, 64
      %s184 = sadd.s32 %s182, %s183
      %s185 = smul.addr %s184, 4
      %s186 = scalar_lea.vmem %s0, %s185
      %s187 = smul.u32 64, %s18
      %p188 = scmp.lt.s32.totalorder %s17, 3
      %s189 = scalar_select %p188, %s17, 3
      %s190 = smul.addr %s189, 8
      %s191 = smul.addr %s190, 4
      %s192 = scalar_lea.vmem %s1, %s191
      %s193 = smul.u32 64, %s18
      %p194 = scmp.lt.s32.totalorder %s17, 3
      %s195 = scalar_select %p194, %s17, 3
      %p196 = scmp.lt.s32.totalorder %s193, 63
      %s197 = scalar_select %p196, %s193, 63
      %s198 = smul.addr %s195, 64
      %s199 = sadd.s32 %s197, %s198
      %s200 = smul.addr %s199, 8
      %s201 = scalar_lea.vmem %s2, %s200
      %s202 = smul.u32 64, %s18
      %v204 = vld [vmem:[%s186] sm:$0xf]
      %v205 = vld [vmem:[%s186 + $0x4] sm:$0xf]
      %v206 = vld [vmem:[%s186 + $0x8] sm:$0xf]
      %v207 = vld [vmem:[%s186 + $0xc] sm:$0xf]
      %v208 = vld [vmem:[%s186 + $0x10] sm:$0xf]
      %v209 = vld [vmem:[%s186 + $0x14] sm:$0xf]
      %v210 = vld [vmem:[%s186 + $0x18] sm:$0xf]
      %v211 = vld [vmem:[%s186 + $0x1c] sm:$0xf]
      %v212 = vld [vmem:[%s186 + $0x20] sm:$0xf]
      %v213 = vld [vmem:[%s186 + $0x24] sm:$0xf]
      %v214 = vld [vmem:[%s186 + $0x28] sm:$0xf]
      %v215 = vld [vmem:[%s186 + $0x2c] sm:$0xf]
      %v216 = vld [vmem:[%s186 + $0x30] sm:$0xf]
      %v217 = vld [vmem:[%s186 + $0x34] sm:$0xf]
      %v218 = vld [vmem:[%s186 + $0x38] sm:$0xf]
      %v219 = vld [vmem:[%s186 + $0x3c] sm:$0xf]
      %v220 = vld [vmem:[%s186 + $0x40] sm:$0xf]
      %v221 = vld [vmem:[%s186 + $0x44] sm:$0xf]
      %v222 = vld [vmem:[%s186 + $0x48] sm:$0xf]
      %v223 = vld [vmem:[%s186 + $0x4c] sm:$0xf]
      %v224 = vld [vmem:[%s186 + $0x50] sm:$0xf]
      %v225 = vld [vmem:[%s186 + $0x54] sm:$0xf]
      %v226 = vld [vmem:[%s186 + $0x58] sm:$0xf]
      %v227 = vld [vmem:[%s186 + $0x5c] sm:$0xf]
      %v228 = vld [vmem:[%s186 + $0x60] sm:$0xf]
      %v229 = vld [vmem:[%s186 + $0x64] sm:$0xf]
      %v230 = vld [vmem:[%s186 + $0x68] sm:$0xf]
      %v231 = vld [vmem:[%s186 + $0x6c] sm:$0xf]
      %v232 = vld [vmem:[%s186 + $0x70] sm:$0xf]
      %v233 = vld [vmem:[%s186 + $0x74] sm:$0xf]
      %v234 = vld [vmem:[%s186 + $0x78] sm:$0xf]
      %v235 = vld [vmem:[%s186 + $0x7c] sm:$0xf]
      %v236 = vld [vmem:[%s186 + $0x80] sm:$0xf]
      %v237 = vld [vmem:[%s186 + $0x84] sm:$0xf]
      %v238 = vld [vmem:[%s186 + $0x88] sm:$0xf]
      %v239 = vld [vmem:[%s186 + $0x8c] sm:$0xf]
      %v240 = vld [vmem:[%s186 + $0x90] sm:$0xf]
      %v241 = vld [vmem:[%s186 + $0x94] sm:$0xf]
      %v242 = vld [vmem:[%s186 + $0x98] sm:$0xf]
      %v243 = vld [vmem:[%s186 + $0x9c] sm:$0xf]
      %v244 = vld [vmem:[%s186 + $0xa0] sm:$0xf]
      %v245 = vld [vmem:[%s186 + $0xa4] sm:$0xf]
      %v246 = vld [vmem:[%s186 + $0xa8] sm:$0xf]
      %v247 = vld [vmem:[%s186 + $0xac] sm:$0xf]
      %v248 = vld [vmem:[%s186 + $0xb0] sm:$0xf]
      %v249 = vld [vmem:[%s186 + $0xb4] sm:$0xf]
      %v250 = vld [vmem:[%s186 + $0xb8] sm:$0xf]
      %v251 = vld [vmem:[%s186 + $0xbc] sm:$0xf]
      %v252 = vld [vmem:[%s186 + $0xc0] sm:$0xf]
      %v253 = vld [vmem:[%s186 + $0xc4] sm:$0xf]
      %v254 = vld [vmem:[%s186 + $0xc8] sm:$0xf]
      %v255 = vld [vmem:[%s186 + $0xcc] sm:$0xf]
      %v256 = vld [vmem:[%s186 + $0xd0] sm:$0xf]
      %v257 = vld [vmem:[%s186 + $0xd4] sm:$0xf]
      %v258 = vld [vmem:[%s186 + $0xd8] sm:$0xf]
      %v259 = vld [vmem:[%s186 + $0xdc] sm:$0xf]
      %v260 = vld [vmem:[%s186 + $0xe0] sm:$0xf]
      %v261 = vld [vmem:[%s186 + $0xe4] sm:$0xf]
      %v262 = vld [vmem:[%s186 + $0xe8] sm:$0xf]
      %v263 = vld [vmem:[%s186 + $0xec] sm:$0xf]
      %v264 = vld [vmem:[%s186 + $0xf0] sm:$0xf]
      %v265 = vld [vmem:[%s186 + $0xf4] sm:$0xf]
      %v266 = vld [vmem:[%s186 + $0xf8] sm:$0xf]
      %v267 = vld [vmem:[%s186 + $0xfc] sm:$0xf]
      %v268 = vld [vmem:[%s192] sm:$0xf]
      %v269 = vld [vmem:[%s192 + $0x4] sm:$0xf]
      %v270 = vld [vmem:[%s192 + $0x8] sm:$0xf]
      %v271 = vld [vmem:[%s192 + $0xc] sm:$0xf]
      %v272 = vld [vmem:[%s192 + $0x10] sm:$0xf]
      %v273 = vld [vmem:[%s192 + $0x14] sm:$0xf]
      %v274 = vld [vmem:[%s192 + $0x18] sm:$0xf]
      %v275 = vld [vmem:[%s192 + $0x1c] sm:$0xf]
      %v340 = vunpack.c.l.b16 %v204
      %v341 = vunpack.c.l.b16 %v205
      %v342 = vunpack.c.l.b16 %v206
      %v343 = vunpack.c.l.b16 %v207
      %v344 = vunpack.c.l.b16 %v208
      %v345 = vunpack.c.l.b16 %v209
      %v346 = vunpack.c.l.b16 %v210
      %v347 = vunpack.c.l.b16 %v211
      %v348 = vunpack.c.l.b16 %v212
      %v349 = vunpack.c.l.b16 %v213
      %v350 = vunpack.c.l.b16 %v214
      %v351 = vunpack.c.l.b16 %v215
      %v352 = vunpack.c.l.b16 %v216
      %v353 = vunpack.c.l.b16 %v217
      %v354 = vunpack.c.l.b16 %v218
      %v355 = vunpack.c.l.b16 %v219
      %v356 = vunpack.c.l.b16 %v220
      %v357 = vunpack.c.l.b16 %v221
      %v358 = vunpack.c.l.b16 %v222
      %v359 = vunpack.c.l.b16 %v223
      %v360 = vunpack.c.l.b16 %v224
      %v361 = vunpack.c.l.b16 %v225
      %v362 = vunpack.c.l.b16 %v226
      %v363 = vunpack.c.l.b16 %v227
      %v364 = vunpack.c.l.b16 %v228
      %v365 = vunpack.c.l.b16 %v229
      %v366 = vunpack.c.l.b16 %v230
      %v367 = vunpack.c.l.b16 %v231
      %v368 = vunpack.c.l.b16 %v232
      %v369 = vunpack.c.l.b16 %v233
      %v370 = vunpack.c.l.b16 %v234
      %v371 = vunpack.c.l.b16 %v235
      %v372 = vunpack.c.l.b16 %v236
      %v373 = vunpack.c.l.b16 %v237
      %v374 = vunpack.c.l.b16 %v238
      %v375 = vunpack.c.l.b16 %v239
      %v376 = vunpack.c.l.b16 %v240
      %v377 = vunpack.c.l.b16 %v241
      %v378 = vunpack.c.l.b16 %v242
      %v379 = vunpack.c.l.b16 %v243
      %v380 = vunpack.c.l.b16 %v244
      %v381 = vunpack.c.l.b16 %v245
      %v382 = vunpack.c.l.b16 %v246
      %v383 = vunpack.c.l.b16 %v247
      %v384 = vunpack.c.l.b16 %v248
      %v385 = vunpack.c.l.b16 %v249
      %v386 = vunpack.c.l.b16 %v250
      %v387 = vunpack.c.l.b16 %v251
      %v388 = vunpack.c.l.b16 %v252
      %v389 = vunpack.c.l.b16 %v253
      %v390 = vunpack.c.l.b16 %v254
      %v391 = vunpack.c.l.b16 %v255
      %v392 = vunpack.c.l.b16 %v256
      %v393 = vunpack.c.l.b16 %v257
      %v394 = vunpack.c.l.b16 %v258
      %v395 = vunpack.c.l.b16 %v259
      %v396 = vunpack.c.l.b16 %v260
      %v397 = vunpack.c.l.b16 %v261
      %v398 = vunpack.c.l.b16 %v262
      %v399 = vunpack.c.l.b16 %v263
      %v400 = vunpack.c.l.b16 %v264
      %v401 = vunpack.c.l.b16 %v265
      %v402 = vunpack.c.l.b16 %v266
      %v403 = vunpack.c.l.b16 %v267
      %v404 = vpack.c.b16 %v341, %v340
      %v405 = vpack.c.b16 %v343, %v342
      %v406 = vpack.c.b16 %v345, %v344
      %v407 = vpack.c.b16 %v347, %v346
      %v408 = vpack.c.b16 %v349, %v348
      %v409 = vpack.c.b16 %v351, %v350
      %v410 = vpack.c.b16 %v353, %v352
      %v411 = vpack.c.b16 %v355, %v354
      %v412 = vpack.c.b16 %v357, %v356
      %v413 = vpack.c.b16 %v359, %v358
      %v414 = vpack.c.b16 %v361, %v360
      %v415 = vpack.c.b16 %v363, %v362
      %v416 = vpack.c.b16 %v365, %v364
      %v417 = vpack.c.b16 %v367, %v366
      %v418 = vpack.c.b16 %v369, %v368
      %v419 = vpack.c.b16 %v371, %v370
      %v420 = vpack.c.b16 %v373, %v372
      %v421 = vpack.c.b16 %v375, %v374
      %v422 = vpack.c.b16 %v377, %v376
      %v423 = vpack.c.b16 %v379, %v378
      %v424 = vpack.c.b16 %v381, %v380
      %v425 = vpack.c.b16 %v383, %v382
      %v426 = vpack.c.b16 %v385, %v384
      %v427 = vpack.c.b16 %v387, %v386
      %v428 = vpack.c.b16 %v389, %v388
      %v429 = vpack.c.b16 %v391, %v390
      %v430 = vpack.c.b16 %v393, %v392
      %v431 = vpack.c.b16 %v395, %v394
      %v432 = vpack.c.b16 %v397, %v396
      %v433 = vpack.c.b16 %v399, %v398
      %v434 = vpack.c.b16 %v401, %v400
      %v435 = vpack.c.b16 %v403, %v402
      %v444 = vunpack.c.l.b16 %v268
      %v445 = vunpack.c.l.b16 %v269
      %v446 = vunpack.c.l.b16 %v270
      %v447 = vunpack.c.l.b16 %v271
      %v448 = vunpack.c.l.b16 %v272
      %v449 = vunpack.c.l.b16 %v273
      %v450 = vunpack.c.l.b16 %v274
      %v451 = vunpack.c.l.b16 %v275
      %v452 = vpack.c.b16 %v445, %v444
      %v453 = vpack.c.b16 %v447, %v446
      %v454 = vpack.c.b16 %v449, %v448
      %v455 = vpack.c.b16 %v451, %v450
      %vm460 = vcmask 523264
      %v462 = vsel %vm460, %v404, 0
      %v465 = vsel %vm460, %v405, 0
      %v468 = vsel %vm460, %v406, 0
      %v471 = vsel %vm460, %v407, 0
      %v474 = vsel %vm460, %v408, 0
      %v477 = vsel %vm460, %v409, 0
      %v480 = vsel %vm460, %v410, 0
      %v483 = vsel %vm460, %v411, 0
      %v486 = vsel %vm460, %v412, 0
      %v489 = vsel %vm460, %v413, 0
      %v492 = vsel %vm460, %v414, 0
      %v495 = vsel %vm460, %v415, 0
      %v498 = vsel %vm460, %v416, 0
      %v501 = vsel %vm460, %v417, 0
      %v504 = vsel %vm460, %v418, 0
      %v507 = vsel %vm460, %v419, 0
      %v510 = vsel %vm460, %v420, 0
      %v513 = vsel %vm460, %v421, 0
      %v516 = vsel %vm460, %v422, 0
      %v519 = vsel %vm460, %v423, 0
      %v522 = vsel %vm460, %v424, 0
      %v525 = vsel %vm460, %v425, 0
      %v528 = vsel %vm460, %v426, 0
      %v531 = vsel %vm460, %v427, 0
      %v534 = vsel %vm460, %v428, 0
      %v537 = vsel %vm460, %v429, 0
      %v540 = vsel %vm460, %v430, 0
      %v543 = vsel %vm460, %v431, 0
      %v546 = vsel %vm460, %v432, 0
      %v549 = vsel %vm460, %v433, 0
      %v552 = vsel %vm460, %v434, 0
      %v555 = vsel %vm460, %v435, 0
      %557 = vmatprep.subr.bf16.mxu0 0
      %558 = vmatpush1.bf16.msra.mxu0 %v452
      %559 = vmatprep.subr.bf16.mxu0 0
      %560 = vmatpush1.bf16.msra.mxu0 %v453
      %561 = vmatprep.subr.bf16.mxu0 0
      %562 = vmatpush1.bf16.msra.mxu0 %v454
      %563 = vmatprep.subr.bf16.mxu0 0
      %564 = vmatpush1.bf16.msra.mxu0 %v455
      %565 = vmatprep.subr.bf16.mxu0 0
      %566 = vmatpush1.bf16.msra.mxu0 0
      %567 = vmatprep.subr.bf16.mxu0 0
      %568 = vmatpush1.bf16.msra.mxu0 0
      %569 = vmatprep.subr.bf16.mxu0 0
      %570 = vmatpush1.bf16.msra.mxu0 0
      %571 = vmatprep.subr.bf16.mxu0 0
      %572 = vmatpush1.bf16.msra.mxu0 0
      %573 = vmatprep.subr.bf16.mxu0 0
      %574 = vmatpush1.bf16.msra.mxu0 0
      %575 = vmatprep.subr.bf16.mxu0 0
      %576 = vmatpush1.bf16.msra.mxu0 0
      %577 = vmatprep.subr.bf16.mxu0 0
      %578 = vmatpush1.bf16.msra.mxu0 0
      %579 = vmatprep.subr.bf16.mxu0 0
      %580 = vmatpush1.bf16.msra.mxu0 0
      %581 = vmatprep.subr.bf16.mxu0 0
      %582 = vmatpush1.bf16.msra.mxu0 0
      %583 = vmatprep.subr.bf16.mxu0 0
      %584 = vmatpush1.bf16.msra.mxu0 0
      %585 = vmatprep.subr.bf16.mxu0 0
      %586 = vmatpush1.bf16.msra.mxu0 0
      %587 = vmatprep.subr.bf16.mxu0 0
      %588 = vmatpush1.bf16.msra.mxu0 0
      %589 = vmatprep.mubr.bf16.mxu0 0
      %590 = vmatmul.mubr.bf16.gmra.mrb[0].mxu0 %v462
      %v591 = vpop.f32.mrb[0].mxu0
      %v592 = vadd.f32 0.0, %v591
      %v593 = vpop.f32.mrb[0].mxu0
      %v594 = vpop.f32.mrb[0].mxu0
      %v595 = vadd.f32 0.0, %v594
      %v596 = vpop.f32.mrb[0].mxu0
      %597 = vmatprep.mubr.bf16.mxu0 0
      %598 = vmatmul.mubr.bf16.gmra.mrb[0].mxu0 %v465
      %v599 = vpop.f32.mrb[0].mxu0
      %v600 = vadd.f32 0.0, %v599
      %v601 = vpop.f32.mrb[0].mxu0
      %v602 = vpop.f32.mrb[0].mxu0
      %v603 = vadd.f32 0.0, %v602
      %v604 = vpop.f32.mrb[0].mxu0
      %605 = vmatprep.mubr.bf16.mxu0 0
      %606 = vmatmul.mubr.bf16.gmra.mrb[0].mxu0 %v468
      %v607 = vpop.f32.mrb[0].mxu0
      %v608 = vadd.f32 0.0, %v607
      %v609 = vpop.f32.mrb[0].mxu0
      %v610 = vpop.f32.mrb[0].mxu0
      %v611 = vadd.f32 0.0, %v610
      %v612 = vpop.f32.mrb[0].mxu0
      %613 = vmatprep.mubr.bf16.mxu0 0
      %614 = vmatmul.mubr.bf16.gmra.mrb[0].mxu0 %v471
      %v615 = vpop.f32.mrb[0].mxu0
      %v616 = vadd.f32 0.0, %v615
      %v617 = vpop.f32.mrb[0].mxu0
      %v618 = vpop.f32.mrb[0].mxu0
      %v619 = vadd.f32 0.0, %v618
      %v620 = vpop.f32.mrb[0].mxu0
      %621 = vmatprep.mubr.bf16.mxu0 0
      %622 = vmatmul.mubr.bf16.gmra.mrb[0].mxu0 %v474
      %v623 = vpop.f32.mrb[0].mxu0
      %v624 = vadd.f32 0.0, %v623
      %v625 = vpop.f32.mrb[0].mxu0
      %v626 = vpop.f32.mrb[0].mxu0
      %v627 = vadd.f32 0.0, %v626
      %v628 = vpop.f32.mrb[0].mxu0
      %629 = vmatprep.mubr.bf16.mxu0 0
      %630 = vmatmul.mubr.bf16.gmra.mrb[0].mxu0 %v477
      %v631 = vpop.f32.mrb[0].mxu0
      %v632 = vadd.f32 0.0, %v631
      %v633 = vpop.f32.mrb[0].mxu0
      %v634 = vpop.f32.mrb[0].mxu0
      %v635 = vadd.f32 0.0, %v634
      %v636 = vpop.f32.mrb[0].mxu0
      %637 = vmatprep.mubr.bf16.mxu0 0
      %638 = vmatmul.mubr.bf16.gmra.mrb[0].mxu0 %v480
      %v639 = vpop.f32.mrb[0].mxu0
      %v640 = vadd.f32 0.0, %v639
      %v641 = vpop.f32.mrb[0].mxu0
      %v642 = vpop.f32.mrb[0].mxu0
      %v643 = vadd.f32 0.0, %v642
      %v644 = vpop.f32.mrb[0].mxu0
      %645 = vmatprep.mubr.bf16.mxu0 0
      %646 = vmatmul.mubr.bf16.gmra.mrb[0].mxu0 %v483
      %v647 = vpop.f32.mrb[0].mxu0
      %v648 = vadd.f32 0.0, %v647
      %v649 = vpop.f32.mrb[0].mxu0
      %v650 = vpop.f32.mrb[0].mxu0
      %v651 = vadd.f32 0.0, %v650
      %v652 = vpop.f32.mrb[0].mxu0
      %653 = vmatprep.mubr.bf16.mxu0 0
      %654 = vmatmul.mubr.bf16.gmra.mrb[0].mxu0 %v486
      %v655 = vpop.f32.mrb[0].mxu0
      %v656 = vadd.f32 0.0, %v655
      %v657 = vpop.f32.mrb[0].mxu0
      %v658 = vpop.f32.mrb[0].mxu0
      %v659 = vadd.f32 0.0, %v658
      %v660 = vpop.f32.mrb[0].mxu0
      %661 = vmatprep.mubr.bf16.mxu0 0
      %662 = vmatmul.mubr.bf16.gmra.mrb[0].mxu0 %v489
      %v663 = vpop.f32.mrb[0].mxu0
      %v664 = vadd.f32 0.0, %v663
      %v665 = vpop.f32.mrb[0].mxu0
      %v666 = vpop.f32.mrb[0].mxu0
      %v667 = vadd.f32 0.0, %v666
      %v668 = vpop.f32.mrb[0].mxu0
      %669 = vmatprep.mubr.bf16.mxu0 0
      %670 = vmatmul.mubr.bf16.gmra.mrb[0].mxu0 %v492
      %v671 = vpop.f32.mrb[0].mxu0
      %v672 = vadd.f32 0.0, %v671
      %v673 = vpop.f32.mrb[0].mxu0
      %v674 = vpop.f32.mrb[0].mxu0
      %v675 = vadd.f32 0.0, %v674
      %v676 = vpop.f32.mrb[0].mxu0
      %677 = vmatprep.mubr.bf16.mxu0 0
      %678 = vmatmul.mubr.bf16.gmra.mrb[0].mxu0 %v495
      %v679 = vpop.f32.mrb[0].mxu0
      %v680 = vadd.f32 0.0, %v679
      %v681 = vpop.f32.mrb[0].mxu0
      %v682 = vpop.f32.mrb[0].mxu0
      %v683 = vadd.f32 0.0, %v682
      %v684 = vpop.f32.mrb[0].mxu0
      %685 = vmatprep.mubr.bf16.mxu0 0
      %686 = vmatmul.mubr.bf16.gmra.mrb[0].mxu0 %v498
      %v687 = vpop.f32.mrb[0].mxu0
      %v688 = vadd.f32 0.0, %v687
      %v689 = vpop.f32.mrb[0].mxu0
      %v690 = vpop.f32.mrb[0].mxu0
      %v691 = vadd.f32 0.0, %v690
      %v692 = vpop.f32.mrb[0].mxu0
      %693 = vmatprep.mubr.bf16.mxu0 0
      %694 = vmatmul.mubr.bf16.gmra.mrb[0].mxu0 %v501
      %v695 = vpop.f32.mrb[0].mxu0
      %v696 = vadd.f32 0.0, %v695
      %v697 = vpop.f32.mrb[0].mxu0
      %v698 = vpop.f32.mrb[0].mxu0
      %v699 = vadd.f32 0.0, %v698
      %v700 = vpop.f32.mrb[0].mxu0
      %701 = vmatprep.mubr.bf16.mxu0 0
      %702 = vmatmul.mubr.bf16.gmra.mrb[0].mxu0 %v504
      %v703 = vpop.f32.mrb[0].mxu0
      %v704 = vadd.f32 0.0, %v703
      %v705 = vpop.f32.mrb[0].mxu0
      %v706 = vpop.f32.mrb[0].mxu0
      %v707 = vadd.f32 0.0, %v706
      %v708 = vpop.f32.mrb[0].mxu0
      %709 = vmatprep.mubr.bf16.mxu0 0
      %710 = vmatmul.mubr.bf16.gmra.mrb[0].mxu0 %v507
      %v711 = vpop.f32.mrb[0].mxu0
      %v712 = vadd.f32 0.0, %v711
      %v713 = vpop.f32.mrb[0].mxu0
      %v714 = vpop.f32.mrb[0].mxu0
      %v715 = vadd.f32 0.0, %v714
      %v716 = vpop.f32.mrb[0].mxu0
      %717 = vmatprep.mubr.bf16.mxu0 0
      %718 = vmatmul.mubr.bf16.gmra.mrb[0].mxu0 %v510
      %v719 = vpop.f32.mrb[0].mxu0
      %v720 = vadd.f32 0.0, %v719
      %v721 = vpop.f32.mrb[0].mxu0
      %v722 = vpop.f32.mrb[0].mxu0
      %v723 = vadd.f32 0.0, %v722
      %v724 = vpop.f32.mrb[0].mxu0
      %725 = vmatprep.mubr.bf16.mxu0 0
      %726 = vmatmul.mubr.bf16.gmra.mrb[0].mxu0 %v513
      %v727 = vpop.f32.mrb[0].mxu0
      %v728 = vadd.f32 0.0, %v727
      %v729 = vpop.f32.mrb[0].mxu0
      %v730 = vpop.f32.mrb[0].mxu0
      %v731 = vadd.f32 0.0, %v730
      %v732 = vpop.f32.mrb[0].mxu0
      %733 = vmatprep.mubr.bf16.mxu0 0
      %734 = vmatmul.mubr.bf16.gmra.mrb[0].mxu0 %v516
      %v735 = vpop.f32.mrb[0].mxu0
      %v736 = vadd.f32 0.0, %v735
      %v737 = vpop.f32.mrb[0].mxu0
      %v738 = vpop.f32.mrb[0].mxu0
      %v739 = vadd.f32 0.0, %v738
      %v740 = vpop.f32.mrb[0].mxu0
      %741 = vmatprep.mubr.bf16.mxu0 0
      %742 = vmatmul.mubr.bf16.gmra.mrb[0].mxu0 %v519
      %v743 = vpop.f32.mrb[0].mxu0
      %v744 = vadd.f32 0.0, %v743
      %v745 = vpop.f32.mrb[0].mxu0
      %v746 = vpop.f32.mrb[0].mxu0
      %v747 = vadd.f32 0.0, %v746
      %v748 = vpop.f32.mrb[0].mxu0
      %749 = vmatprep.mubr.bf16.mxu0 0
      %750 = vmatmul.mubr.bf16.gmra.mrb[0].mxu0 %v522
      %v751 = vpop.f32.mrb[0].mxu0
      %v752 = vadd.f32 0.0, %v751
      %v753 = vpop.f32.mrb[0].mxu0
      %v754 = vpop.f32.mrb[0].mxu0
      %v755 = vadd.f32 0.0, %v754
      %v756 = vpop.f32.mrb[0].mxu0
      %757 = vmatprep.mubr.bf16.mxu0 0
      %758 = vmatmul.mubr.bf16.gmra.mrb[0].mxu0 %v525
      %v759 = vpop.f32.mrb[0].mxu0
      %v760 = vadd.f32 0.0, %v759
      %v761 = vpop.f32.mrb[0].mxu0
      %v762 = vpop.f32.mrb[0].mxu0
      %v763 = vadd.f32 0.0, %v762
      %v764 = vpop.f32.mrb[0].mxu0
      %765 = vmatprep.mubr.bf16.mxu0 0
      %766 = vmatmul.mubr.bf16.gmra.mrb[0].mxu0 %v528
      %v767 = vpop.f32.mrb[0].mxu0
      %v768 = vadd.f32 0.0, %v767
      %v769 = vpop.f32.mrb[0].mxu0
      %v770 = vpop.f32.mrb[0].mxu0
      %v771 = vadd.f32 0.0, %v770
      %v772 = vpop.f32.mrb[0].mxu0
      %773 = vmatprep.mubr.bf16.mxu0 0
      %774 = vmatmul.mubr.bf16.gmra.mrb[0].mxu0 %v531
      %v775 = vpop.f32.mrb[0].mxu0
      %v776 = vadd.f32 0.0, %v775
      %v777 = vpop.f32.mrb[0].mxu0
      %v778 = vpop.f32.mrb[0].mxu0
      %v779 = vadd.f32 0.0, %v778
      %v780 = vpop.f32.mrb[0].mxu0
      %781 = vmatprep.mubr.bf16.mxu0 0
      %782 = vmatmul.mubr.bf16.gmra.mrb[0].mxu0 %v534
      %v783 = vpop.f32.mrb[0].mxu0
      %v784 = vadd.f32 0.0, %v783
      %v785 = vpop.f32.mrb[0].mxu0
      %v786 = vpop.f32.mrb[0].mxu0
      %v787 = vadd.f32 0.0, %v786
      %v788 = vpop.f32.mrb[0].mxu0
      %789 = vmatprep.mubr.bf16.mxu0 0
      %790 = vmatmul.mubr.bf16.gmra.mrb[0].mxu0 %v537
      %v791 = vpop.f32.mrb[0].mxu0
      %v792 = vadd.f32 0.0, %v791
      %v793 = vpop.f32.mrb[0].mxu0
      %v794 = vpop.f32.mrb[0].mxu0
      %v795 = vadd.f32 0.0, %v794
      %v796 = vpop.f32.mrb[0].mxu0
      %797 = vmatprep.mubr.bf16.mxu0 0
      %798 = vmatmul.mubr.bf16.gmra.mrb[0].mxu0 %v540
      %v799 = vpop.f32.mrb[0].mxu0
      %v800 = vadd.f32 0.0, %v799
      %v801 = vpop.f32.mrb[0].mxu0
      %v802 = vpop.f32.mrb[0].mxu0
      %v803 = vadd.f32 0.0, %v802
      %v804 = vpop.f32.mrb[0].mxu0
      %805 = vmatprep.mubr.bf16.mxu0 0
      %806 = vmatmul.mubr.bf16.gmra.mrb[0].mxu0 %v543
      %v807 = vpop.f32.mrb[0].mxu0
      %v808 = vadd.f32 0.0, %v807
      %v809 = vpop.f32.mrb[0].mxu0
      %v810 = vpop.f32.mrb[0].mxu0
      %v811 = vadd.f32 0.0, %v810
      %v812 = vpop.f32.mrb[0].mxu0
      %813 = vmatprep.mubr.bf16.mxu0 0
      %814 = vmatmul.mubr.bf16.gmra.mrb[0].mxu0 %v546
      %v815 = vpop.f32.mrb[0].mxu0
      %v816 = vadd.f32 0.0, %v815
      %v817 = vpop.f32.mrb[0].mxu0
      %v818 = vpop.f32.mrb[0].mxu0
      %v819 = vadd.f32 0.0, %v818
      %v820 = vpop.f32.mrb[0].mxu0
      %821 = vmatprep.mubr.bf16.mxu0 0
      %822 = vmatmul.mubr.bf16.gmra.mrb[0].mxu0 %v549
      %v823 = vpop.f32.mrb[0].mxu0
      %v824 = vadd.f32 0.0, %v823
      %v825 = vpop.f32.mrb[0].mxu0
      %v826 = vpop.f32.mrb[0].mxu0
      %v827 = vadd.f32 0.0, %v826
      %v828 = vpop.f32.mrb[0].mxu0
      %829 = vmatprep.mubr.bf16.mxu0 0
      %830 = vmatmul.mubr.bf16.gmra.mrb[0].mxu0 %v552
      %v831 = vpop.f32.mrb[0].mxu0
      %v832 = vadd.f32 0.0, %v831
      %v833 = vpop.f32.mrb[0].mxu0
      %v834 = vpop.f32.mrb[0].mxu0
      %v835 = vadd.f32 0.0, %v834
      %v836 = vpop.f32.mrb[0].mxu0
      %837 = vmatprep.mubr.bf16.mxu0 0
      %838 = vmatmul.mubr.bf16.gmra.mrb[0].mxu0 %v555
      %v839 = vpop.f32.mrb[0].mxu0
      %v840 = vadd.f32 0.0, %v839
      %v841 = vpop.f32.mrb[0].mxu0
      %v842 = vpop.f32.mrb[0].mxu0
      %v843 = vadd.f32 0.0, %v842
      %v844 = vpop.f32.mrb[0].mxu0
      %845 = vdwg.mxu0
      %v846 = vtanh.pop %v592
      %v847 = vtanh.pop %v595
      %v848 = vtanh.pop %v600
      %v849 = vtanh.pop %v603
      %v850 = vtanh.pop %v608
      %v851 = vtanh.pop %v611
      %v852 = vtanh.pop %v616
      %v853 = vtanh.pop %v619
      %v854 = vtanh.pop %v624
      %v855 = vtanh.pop %v627
      %v856 = vtanh.pop %v632
      %v857 = vtanh.pop %v635
      %v858 = vtanh.pop %v640
      %v859 = vtanh.pop %v643
      %v860 = vtanh.pop %v648
      %v861 = vtanh.pop %v651
      %v862 = vtanh.pop %v656
      %v863 = vtanh.pop %v659
      %v864 = vtanh.pop %v664
      %v865 = vtanh.pop %v667
      %v866 = vtanh.pop %v672
      %v867 = vtanh.pop %v675
      %v868 = vtanh.pop %v680
      %v869 = vtanh.pop %v683
      %v870 = vtanh.pop %v688
      %v871 = vtanh.pop %v691
      %v872 = vtanh.pop %v696
      %v873 = vtanh.pop %v699
      %v874 = vtanh.pop %v704
      %v875 = vtanh.pop %v707
      %v876 = vtanh.pop %v712
      %v877 = vtanh.pop %v715
      %v878 = vtanh.pop %v720
      %v879 = vtanh.pop %v723
      %v880 = vtanh.pop %v728
      %v881 = vtanh.pop %v731
      %v882 = vtanh.pop %v736
      %v883 = vtanh.pop %v739
      %v884 = vtanh.pop %v744
      %v885 = vtanh.pop %v747
      %v886 = vtanh.pop %v752
      %v887 = vtanh.pop %v755
      %v888 = vtanh.pop %v760
      %v889 = vtanh.pop %v763
      %v890 = vtanh.pop %v768
      %v891 = vtanh.pop %v771
      %v892 = vtanh.pop %v776
      %v893 = vtanh.pop %v779
      %v894 = vtanh.pop %v784
      %v895 = vtanh.pop %v787
      %v896 = vtanh.pop %v792
      %v897 = vtanh.pop %v795
      %v898 = vtanh.pop %v800
      %v899 = vtanh.pop %v803
      %v900 = vtanh.pop %v808
      %v901 = vtanh.pop %v811
      %v902 = vtanh.pop %v816
      %v903 = vtanh.pop %v819
      %v904 = vtanh.pop %v824
      %v905 = vtanh.pop %v827
      %v906 = vtanh.pop %v832
      %v907 = vtanh.pop %v835
      %v908 = vtanh.pop %v840
      %v909 = vtanh.pop %v843
      %910 = vst [vmem:[%s201] sm:$0xff] %v846
      %911 = vst [vmem:[%s201 + $0x8] sm:$0xff] %v847
      %912 = vst [vmem:[%s201 + $0x10] sm:$0xff] %v848
      %913 = vst [vmem:[%s201 + $0x18] sm:$0xff] %v849
      %914 = vst [vmem:[%s201 + $0x20] sm:$0xff] %v850
      %915 = vst [vmem:[%s201 + $0x28] sm:$0xff] %v851
      %916 = vst [vmem:[%s201 + $0x30] sm:$0xff] %v852
      %917 = vst [vmem:[%s201 + $0x38] sm:$0xff] %v853
      %918 = vst [vmem:[%s201 + $0x40] sm:$0xff] %v854
      %919 = vst [vmem:[%s201 + $0x48] sm:$0xff] %v855
      %920 = vst [vmem:[%s201 + $0x50] sm:$0xff] %v856
      %921 = vst [vmem:[%s201 + $0x58] sm:$0xff] %v857
      %922 = vst [vmem:[%s201 + $0x60] sm:$0xff] %v858
      %923 = vst [vmem:[%s201 + $0x68] sm:$0xff] %v859
      %924 = vst [vmem:[%s201 + $0x70] sm:$0xff] %v860
      %925 = vst [vmem:[%s201 + $0x78] sm:$0xff] %v861
      %926 = vst [vmem:[%s201 + $0x80] sm:$0xff] %v862
      %927 = vst [vmem:[%s201 + $0x88] sm:$0xff] %v863
      %928 = vst [vmem:[%s201 + $0x90] sm:$0xff] %v864
      %929 = vst [vmem:[%s201 + $0x98] sm:$0xff] %v865
      %930 = vst [vmem:[%s201 + $0xa0] sm:$0xff] %v866
      %931 = vst [vmem:[%s201 + $0xa8] sm:$0xff] %v867
      %932 = vst [vmem:[%s201 + $0xb0] sm:$0xff] %v868
      %933 = vst [vmem:[%s201 + $0xb8] sm:$0xff] %v869
      %934 = vst [vmem:[%s201 + $0xc0] sm:$0xff] %v870
      %935 = vst [vmem:[%s201 + $0xc8] sm:$0xff] %v871
      %936 = vst [vmem:[%s201 + $0xd0] sm:$0xff] %v872
      %937 = vst [vmem:[%s201 + $0xd8] sm:$0xff] %v873
      %938 = vst [vmem:[%s201 + $0xe0] sm:$0xff] %v874
      %939 = vst [vmem:[%s201 + $0xe8] sm:$0xff] %v875
      %940 = vst [vmem:[%s201 + $0xf0] sm:$0xff] %v876
      %941 = vst [vmem:[%s201 + $0xf8] sm:$0xff] %v877
      %942 = vst [vmem:[%s201 + $0x100] sm:$0xff] %v878
      %943 = vst [vmem:[%s201 + $0x108] sm:$0xff] %v879
      %944 = vst [vmem:[%s201 + $0x110] sm:$0xff] %v880
      %945 = vst [vmem:[%s201 + $0x118] sm:$0xff] %v881
      %946 = vst [vmem:[%s201 + $0x120] sm:$0xff] %v882
      %947 = vst [vmem:[%s201 + $0x128] sm:$0xff] %v883
      %948 = vst [vmem:[%s201 + $0x130] sm:$0xff] %v884
      %949 = vst [vmem:[%s201 + $0x138] sm:$0xff] %v885
      %950 = vst [vmem:[%s201 + $0x140] sm:$0xff] %v886
      %951 = vst [vmem:[%s201 + $0x148] sm:$0xff] %v887
      %952 = vst [vmem:[%s201 + $0x150] sm:$0xff] %v888
      %953 = vst [vmem:[%s201 + $0x158] sm:$0xff] %v889
      %954 = vst [vmem:[%s201 + $0x160] sm:$0xff] %v890
      %955 = vst [vmem:[%s201 + $0x168] sm:$0xff] %v891
      %956 = vst [vmem:[%s201 + $0x170] sm:$0xff] %v892
      %957 = vst [vmem:[%s201 + $0x178] sm:$0xff] %v893
      %958 = vst [vmem:[%s201 + $0x180] sm:$0xff] %v894
      %959 = vst [vmem:[%s201 + $0x188] sm:$0xff] %v895
      %960 = vst [vmem:[%s201 + $0x190] sm:$0xff] %v896
      %961 = vst [vmem:[%s201 + $0x198] sm:$0xff] %v897
      %962 = vst [vmem:[%s201 + $0x1a0] sm:$0xff] %v898
      %963 = vst [vmem:[%s201 + $0x1a8] sm:$0xff] %v899
      %964 = vst [vmem:[%s201 + $0x1b0] sm:$0xff] %v900
      %965 = vst [vmem:[%s201 + $0x1b8] sm:$0xff] %v901
      %966 = vst [vmem:[%s201 + $0x1c0] sm:$0xff] %v902
      %967 = vst [vmem:[%s201 + $0x1c8] sm:$0xff] %v903
      %968 = vst [vmem:[%s201 + $0x1d0] sm:$0xff] %v904
      %969 = vst [vmem:[%s201 + $0x1d8] sm:$0xff] %v905
      %970 = vst [vmem:[%s201 + $0x1e0] sm:$0xff] %v906
      %971 = vst [vmem:[%s201 + $0x1e8] sm:$0xff] %v907
      %972 = vst [vmem:[%s201 + $0x1f0] sm:$0xff] %v908
      %973 = vst [vmem:[%s201 + $0x1f8] sm:$0xff] %v909
      %s974 = smul.u32 64, %s18
      %p975 = scmp.lt.s32.totalorder %s17, 3
      %s976 = scalar_select %p975, %s17, 3
      %p977 = scmp.lt.s32.totalorder %s974, 63
      %s978 = scalar_select %p977, %s974, 63
      %s979 = smul.addr %s976, 64
      %s980 = sadd.s32 %s978, %s979
      %s981 = smul.addr %s980, 8
      %s982 = scalar_lea.vmem %s2, %s981
      // Predicated region
      $region29: #{generator_forward.15} parent=27 // pred_check
        %p983 = pneg %p99
      $region30: #{generator_forward.15} parent=27 // pred_check_branch
        %985 = sbr.rel (%p983) target = $region32
      $region31: #{generator_forward.15} parent=27 // pred_region
        %s986 = smul.u32 64, %s18
      $region32: #{generator_forward.15} parent=27 // pred_fallthru
        _
    $region28: #{generator_forward.15} parent=5 // pred_fallthru
      _
    %p987 = scmp.le.s32.totalorder 2, %s8
    // Predicated region
    $region33: #{generator_forward.15} parent=5 // pred_check
      %p988 = pneg %p987
    $region34: #{generator_forward.15} parent=5 // pred_check_branch
      %990 = sbr.rel (%p988) target = $region36
    $region35: #{generator_forward.15} parent=5 // pred_region
      %s991 = ssub.s32 %s8, 2
      // Predicated region
      $region37: #{generator_forward.15} parent=35 // pred_check
        %p992 = pneg %p105
      $region38: #{generator_forward.15} parent=35 // pred_check_branch
        %994 = sbr.rel (%p992) target = $region40
      $region39: #{generator_forward.15} parent=35 // pred_region
        %s995 = smul.u32 64, %s20
        %p996 = scmp.lt.s32.totalorder %s19, 3
        %s997 = scalar_select %p996, %s19, 3
        %p998 = scmp.lt.s32.totalorder %s995, 63
        %s999 = scalar_select %p998, %s995, 63
        %s1000 = smul.addr %s997, 64
        %s1001 = sadd.s32 %s999, %s1000
        %s1002 = smul.addr %s1001, 8
        %s1003 = scalar_lea.vmem %s2, %s1002
      $region40: #{generator_forward.15} parent=35 // pred_fallthru
        _
    $region36: #{generator_forward.15} parent=5 // pred_fallthru
      _
  $region6: #{generator_forward.15} parent=0 // loop_footer
    %s12 = sadd.s32 1, %s8
  $region7: #{generator_forward.15} parent=0 // loop_footer_branch
    %7 = sbr.rel target = $region3
  $region8: #{generator_forward.15} parent=0 // loop_exit
    _

</llo_original>
